<compile_context>
chip_gen: v6e
topology: v6e:2x2x1
jax: 0.10.0
libtpu: 0.0.40
codegen_flags: <defaults>
</compile_context>

<pallas_src>
import functools

import jax
import jax.numpy as jnp
from jax.experimental import pallas as pl
from jax.experimental.pallas import tpu as pltpu

LEAKY_SLOPE = 0.01   # nn.LeakyReLU default
BN_EPS = 1e-5        # BatchNorm default eps


def _leaky(x):
    return jnp.where(x > 0, x, LEAKY_SLOPE * x)


def _node_spec(shape):
    """BlockSpec selecting one node's full slice (leading node axis squeezed)."""
    n = len(shape) - 1
    return pl.BlockSpec((None,) + tuple(shape[1:]),
                        lambda p, _n=n: (p,) + (0,) * _n)


def _channel_masks(M, N):
    """One-hot (M,N)/(N,M) matrices mapping row r <-> channel r % N."""
    r = jax.lax.broadcasted_iota(jnp.int32, (M, N), 0)
    c = jax.lax.broadcasted_iota(jnp.int32, (M, N), 1)
    msel = (r % N == c).astype(jnp.float32)              # (M, N)
    rt = jax.lax.broadcasted_iota(jnp.int32, (N, M), 0)
    ct = jax.lax.broadcasted_iota(jnp.int32, (N, M), 1)
    mselT = (ct % N == rt).astype(jnp.float32)           # (N, M)
    return msel, mselT


def _block_select(KM, K, M):
    """(KM, K) one-hot: row r belongs to IMF block r // M (built w/o int div)."""
    r = jax.lax.broadcasted_iota(jnp.int32, (KM, K), 0)
    c = jax.lax.broadcasted_iota(jnp.int32, (KM, K), 1)
    return ((r >= c * M) & (r < (c + 1) * M)).astype(jnp.float32)


def _bn_leaky_rows(v, msel, mselT, count):
    """BatchNorm1d(N, affine=False)+LeakyReLU on (M,D) rows ordered (b, n)."""
    rs = jnp.sum(v, axis=1, keepdims=True)                                   # (M,1)
    mu = jnp.dot(mselT, rs, preferred_element_type=jnp.float32) / count      # (N,1)
    mu_rows = jnp.dot(msel, mu, preferred_element_type=jnp.float32)          # (M,1)
    vc = v - mu_rows
    vs = jnp.sum(vc * vc, axis=1, keepdims=True)                             # (M,1)
    var = jnp.dot(mselT, vs, preferred_element_type=jnp.float32) / count     # (N,1)
    var_rows = jnp.dot(msel, var, preferred_element_type=jnp.float32)        # (M,1)
    return _leaky(vc * jax.lax.rsqrt(var_rows + BN_EPS))


# ------------------- Kernel 1: leaf MCD decomposition (no forecast) ----------
def _mcd_kernel(xpad_ref, w_ref, b_ref, o_ref, *, K, T):
    """Conv2d(1, K, (1,3), padding=(0,1)) as a 3-tap VPU stencil."""
    xpad = xpad_ref[...]                      # (M, T+2)
    w = w_ref[...]                            # (K, 3)
    b = b_ref[...]                            # (K, 1)
    for k in range(K):
        o_ref[k, :, :] = (b[k:k + 1, 0:1]
                          + w[k:k + 1, 0:1] * xpad[:, 0:T]
                          + w[k:k + 1, 1:2] * xpad[:, 1:T + 1]
                          + w[k:k + 1, 2:3] * xpad[:, 2:T + 2])


# ----------- Kernel 2: fused per-node `reconstruct` (whole stage) ------------
def _reconstruct_kernel(xpad_ref, g_ref,
                        mcdw_ref, mcdb_ref,
                        bw1_ref, bb1_ref, bw2_ref, bb2_ref,
                        bsw_ref, bsb_ref,
                        lw1_ref, lb1_ref, lw2_ref, lb2_ref,
                        rw1_ref, rb1_ref, rw2_ref, rb2_ref,
                        o_ref, *, B, N, K, T):
    M = B * N
    KM = K * M
    xpad = xpad_ref[...]                      # (M, T+2), zero-padded in time

    # Iota-built one-hot helpers (built once; no reshapes/transposes anywhere).
    msel, mselT = _channel_masks(M, N)        # channel maps on M rows
    kmsel, kmselT = _channel_masks(KM, N)     # channel maps on the K*M stack
    rep, _ = _channel_masks(KM, M)            # (KM, M): row r copies row r % M
    ksel = _block_select(KM, K, M)            # (KM, K): IMF id of each row

    # ---- MCD: all K IMFs as one stacked (KM, T) 3-tap stencil
    xpadK = jnp.dot(rep, xpad, preferred_element_type=jnp.float32)           # (KM,T+2)
    w_rows = jnp.dot(ksel, mcdw_ref[...], preferred_element_type=jnp.float32)  # (KM,3)
    b_rows = jnp.dot(ksel, mcdb_ref[...], preferred_element_type=jnp.float32)  # (KM,1)
    ximf = (b_rows
            + w_rows[:, 0:1] * xpadK[:, 0:T]
            + w_rows[:, 1:2] * xpadK[:, 1:T + 1]
            + w_rows[:, 2:3] * xpadK[:, 2:T + 2])                            # (KM, T)

    # ---- branch_select: Linear(T,64) + BN2d(N,affine=False) + LeakyReLU + Linear(64,2)
    z = jnp.dot(ximf, bw1_ref[...], preferred_element_type=jnp.float32) + bb1_ref[...]
    cnt = float(B * K * z.shape[1])
    rs = jnp.sum(z, axis=1, keepdims=True)                                   # (KM,1)
    mu = jnp.dot(kmselT, rs, preferred_element_type=jnp.float32) / cnt       # (N,1)
    mu_rows = jnp.dot(kmsel, mu, preferred_element_type=jnp.float32)         # (KM,1)
    zc = z - mu_rows
    vs = jnp.sum(zc * zc, axis=1, keepdims=True)
    var = jnp.dot(kmselT, vs, preferred_element_type=jnp.float32) / cnt      # (N,1)
    inv_rows = jax.lax.rsqrt(
        jnp.dot(kmsel, var, preferred_element_type=jnp.float32) + BN_EPS)    # (KM,1)
    zn = _leaky(zc * inv_rows)
    sel = jnp.dot(zn, bw2_ref[...], preferred_element_type=jnp.float32) + bb2_ref[...]

    # ---- gumbel_softmax(tau=1, hard=False) over the 2 branch logits (all IMFs at once)
    logits = sel + g_ref[...]                                                # (KM,2)
    l0 = logits[:, 0:1]
    l1 = logits[:, 1:2]
    mx = jnp.maximum(l0, l1)
    e0 = jnp.exp(l0 - mx)
    e1 = jnp.exp(l1 - mx)
    inv = pl.reciprocal(e0 + e1, approx=True)                                # EUP slot
    p0 = e0 * inv
    p1 = e1 * inv

    # ---- bsmask_conv: Conv2d(1, K, (K,3), padding=(0,1)); time shifts with zero
    #      boundaries via tiny iota-built shift matrices (single (KM,T) dots).
    ri = jax.lax.broadcasted_iota(jnp.int32, (T, T), 0)
    ci = jax.lax.broadcasted_iota(jnp.int32, (T, T), 1)
    s_prev = (ri + 1 == ci).astype(jnp.float32)     # y[t] = x[t-1], 0 at t=0
    s_next = (ri == ci + 1).astype(jnp.float32)     # y[t] = x[t+1], 0 at t=T-1
    x_prev = jnp.dot(ximf, s_prev, preferred_element_type=jnp.float32)       # (KM,T)
    x_next = jnp.dot(ximf, s_next, preferred_element_type=jnp.float32)       # (KM,T)

    bsw = bsw_ref[...]                        # (K, 3K), col = ki*3 + tap
    bsb = bsb_ref[...]                        # (1, K)

    # ---- masked IMFs weighted by the branch probabilities
    xl = jnp.zeros((M, T), jnp.float32)
    xr = jnp.zeros((M, T), jnp.float32)
    for ko in range(K):
        msk = jnp.zeros((M, T), jnp.float32) + bsb[:, ko:ko + 1]
        for ki in range(K):
            r0 = ki * M
            msk = msk + bsw[ko:ko + 1, 3 * ki + 0:3 * ki + 1] * x_prev[r0:r0 + M, :]
            msk = msk + bsw[ko:ko + 1, 3 * ki + 1:3 * ki + 2] * ximf[r0:r0 + M, :]
            msk = msk + bsw[ko:ko + 1, 3 * ki + 2:3 * ki + 3] * x_next[r0:r0 + M, :]
        o0 = ko * M
        xm = ximf[o0:o0 + M, :] * msk
        xl = xl + xm * p0[o0:o0 + M, :]
        xr = xr + xm * p1[o0:o0 + M, :]

    # ---- reconstruct_proj_{left,right}:
    #      Linear(T,H)+BN1d(N)+LeakyReLU+Dropout(0)+Linear(H,T)+BN1d(N)+LeakyReLU
    def _proj(v, w1, b1, w2, b2):
        h = jnp.dot(v, w1, preferred_element_type=jnp.float32) + b1
        h = _bn_leaky_rows(h, msel, mselT, float(B * h.shape[1]))
        # Dropout(p=0.0) -> identity
        y = jnp.dot(h, w2, preferred_element_type=jnp.float32) + b2
        return _bn_leaky_rows(y, msel, mselT, float(B * y.shape[1]))

    o_ref[0, :, :] = _proj(xl, lw1_ref[...], lb1_ref[...], lw2_ref[...], lb2_ref[...])
    o_ref[1, :, :] = _proj(xr, rw1_ref[...], rb1_ref[...], rw2_ref[...], rb2_ref[...])


# ----- Kernel 3: fused leaf stage (MCD decomposition + per-IMF forecast heads)
def _leaf_forecast_kernel(xpad_ref, mcdw_ref, mcdb_ref,
                          fw1_ref, fb1_ref, fw2_ref, fb2_ref,
                          o_ref, *, K, T):
    xpad = xpad_ref[...]                      # (M, T+2)
    mw = mcdw_ref[...]                        # (K, 3)
    mb = mcdb_ref[...]                        # (K, 1)
    for k in range(K):
        imf = (mb[k:k + 1, 0:1]
               + mw[k:k + 1, 0:1] * xpad[:, 0:T]
               + mw[k:k + 1, 1:2] * xpad[:, 1:T + 1]
               + mw[k:k + 1, 2:3] * xpad[:, 2:T + 2])                        # (M, T)
        h = _leaky(jnp.dot(imf, fw1_ref[k], preferred_element_type=jnp.float32)
                   + fb1_ref[k])
        o_ref[k, :, :] = (jnp.dot(h, fw2_ref[k], preferred_element_type=jnp.float32)
                          + fb2_ref[k])


# ----------------------------- level-wise glue --------------------------------
def _mcd_level(xpad, plist, B, N, K, T):
    """Batched MCD over P leaf nodes. xpad: (P, M, T+2) -> (P, K, M, T)."""
    P = xpad.shape[0]
    M = B * N
    w = jnp.stack([p["mcd"]["w"] for p in plist])                 # (P, K, 3)
    b = jnp.stack([p["mcd"]["b"] for p in plist])[:, :, None]     # (P, K, 1)
    return pl.pallas_call(
        functools.partial(_mcd_kernel, K=K, T=T),
        out_shape=jax.ShapeDtypeStruct((P, K, M, T), jnp.float32),
        grid=(P,),
        in_specs=[_node_spec((P, M, T + 2)),
                  _node_spec((P, K, 3)),
                  _node_spec((P, K, 1))],
        out_specs=_node_spec((P, K, M, T)),
        compiler_params=pltpu.CompilerParams(
            dimension_semantics=("parallel",)),
    )(xpad, w, b)


def _reconstruct_level(xpad, g, plist, B, N, K, T):
    """Batched fused reconstruct over P nodes: (P, M, T+2) -> (P, 2, M, T)."""
    P = xpad.shape[0]

    def st(get):
        return jnp.stack([get(p) for p in plist], axis=0)

    arrays = [
        xpad,                                                     # (P, M, T+2)
        g,                                                        # (P, K*M, 2)
        st(lambda p: p["mcd"]["w"]),                              # (P, K, 3)
        st(lambda p: p["mcd"]["b"])[:, :, None],                  # (P, K, 1)
        st(lambda p: p["branch"]["w1"]),                          # (P, T, 64)
        st(lambda p: p["branch"]["b1"])[:, None, :],              # (P, 1, 64)
        st(lambda p: p["branch"]["w2"]),                          # (P, 64, 2)
        st(lambda p: p["branch"]["b2"])[:, None, :],              # (P, 1, 2)
        st(lambda p: p["bsmask"]["w"]).reshape(P, K, 3 * K),      # (P, K, 3K)
        st(lambda p: p["bsmask"]["b"])[:, None, :],               # (P, 1, K)
        st(lambda p: p["proj_left"]["w1"]),                       # (P, T, H)
        st(lambda p: p["proj_left"]["b1"])[:, None, :],           # (P, 1, H)
        st(lambda p: p["proj_left"]["w2"]),                       # (P, H, T)
        st(lambda p: p["proj_left"]["b2"])[:, None, :],           # (P, 1, T)
        st(lambda p: p["proj_right"]["w1"]),
        st(lambda p: p["proj_right"]["b1"])[:, None, :],
        st(lambda p: p["proj_right"]["w2"]),
        st(lambda p: p["proj_right"]["b2"])[:, None, :],
    ]
    in_specs = [_node_spec(a.shape) for a in arrays]
    M = B * N
    return pl.pallas_call(
        functools.partial(_reconstruct_kernel, B=B, N=N, K=K, T=T),
        out_shape=jax.ShapeDtypeStruct((P, 2, M, T), jnp.float32),
        grid=(P,),
        in_specs=in_specs,
        out_specs=_node_spec((P, 2, M, T)),
        compiler_params=pltpu.CompilerParams(
            dimension_semantics=("parallel",)),
    )(*arrays)


def _leaf_forecast_level(xpad, plist, fp, B, N, K, T):
    """Fused leaf MCD + forecast heads: (P, M, T+2) -> (B, N, P*K, T)."""
    P = xpad.shape[0]
    M = B * N
    H = fp["w1"].shape[-1]
    mw = jnp.stack([p["mcd"]["w"] for p in plist])                # (P, K, 3)
    mb = jnp.stack([p["mcd"]["b"] for p in plist])[:, :, None]    # (P, K, 1)
    fw1 = fp["w1"].reshape(P, K, T, H)
    fb1 = fp["b1"].reshape(P, K, 1, H)
    fw2 = fp["w2"].reshape(P, K, H, T)
    fb2 = fp["b2"].reshape(P, K, 1, T)
    y = pl.pallas_call(
        functools.partial(_leaf_forecast_kernel, K=K, T=T),
        out_shape=jax.ShapeDtypeStruct((P, K, M, T), jnp.float32),
        grid=(P,),
        in_specs=[_node_spec((P, M, T + 2)),
                  _node_spec((P, K, 3)),
                  _node_spec((P, K, 1)),
                  _node_spec((P, K, T, H)),
                  _node_spec((P, K, 1, H)),
                  _node_spec((P, K, H, T)),
                  _node_spec((P, K, 1, T))],
        out_specs=_node_spec((P, K, M, T)),
        compiler_params=pltpu.CompilerParams(
            dimension_semantics=("parallel",)),
    )(xpad, mw, mb, fw1, fb1, fw2, fb2)
    # (P, K, M, T) -> (B, N, P*K, T); final layout fix-up on a tiny tensor.
    return y.reshape(P, K, B, N, T).transpose(2, 3, 0, 1, 4).reshape(B, N, P * K, T)


# ----------------------------- model forward ---------------------------------
def d_r_forward(x, params, current_level, total_level, key):
    """x: (B, N, T) -> (B, N, 2**level * K, T)."""
    B, N, T = x.shape
    M = B * N
    K = params["mcd"]["w"].shape[0]

    signals = x.reshape(1, M, T)      # (P, M, T) signals of the current level
    plist = [params]
    # Internal levels: each is ONE fused pallas_call over all 2^d sibling nodes.
    for _ in range(current_level):
        P = signals.shape[0]
        key, sub = jax.random.split(key)
        g = jax.random.gumbel(sub, (P, K * M, 2), jnp.float32)
        xpad = jnp.pad(signals, ((0, 0), (0, 0), (1, 1)))
        out = _reconstruct_level(xpad, g, plist, B, N, K, T)      # (P, 2, M, T)
        signals = out.reshape(2 * P, M, T)
        plist = [c for p in plist for c in (p["left"], p["right"])]

    P = signals.shape[0]
    xpad = jnp.pad(signals, ((0, 0), (0, 0), (1, 1)))
    if current_level > 0 and current_level == total_level:
        # Leaves: fused MCD decomposition + per-IMF forecast heads (1 call).
        return _leaf_forecast_level(xpad, plist, params["forecast"], B, N, K, T)

    # Leaves without forecast: MCD decomposition only.
    leaf_imf = _mcd_level(xpad, plist, B, N, K, T)                # (P, K, M, T)
    return leaf_imf.reshape(P, K, B, N, T).transpose(2, 3, 0, 1, 4).reshape(
        B, N, P * K, T)


# ------------------------- deterministic parameter init ----------------------
def _uniform(key, shape, fan_in):
    bound = 1.0 / (float(fan_in) ** 0.5)
    return jax.random.uniform(key, shape, jnp.float32, -bound, bound)


def init_d_r_params(key, input_dim, input_len, total_level, current_level,
                    enc_hidden, K_IMP):
    T, H, K = input_len, enc_hidden, K_IMP
    ks = list(jax.random.split(key, 24))
    p = {"mcd": {"w": _uniform(ks[0], (K, 3), 3),
                 "b": _uniform(ks[1], (K,), 3)}}
    if current_level == 0:
        return p
    p["branch"] = {"w1": _uniform(ks[2], (T, 64), T), "b1": _uniform(ks[3], (64,), T),
                   "w2": _uniform(ks[4], (64, 2), 64), "b2": _uniform(ks[5], (2,), 64)}
    # PyTorch Conv2d weight (out=K, in=1, K, 3) squeezed -> (K_out, K_in, 3)
    p["bsmask"] = {"w": _uniform(ks[6], (K, K, 3), K * 3),
                   "b": _uniform(ks[7], (K,), K * 3)}
    p["proj_left"] = {"w1": _uniform(ks[8], (T, H), T), "b1": _uniform(ks[9], (H,), T),
                      "w2": _uniform(ks[10], (H, T), H), "b2": _uniform(ks[11], (T,), H)}
    p["proj_right"] = {"w1": _uniform(ks[12], (T, H), T), "b1": _uniform(ks[13], (H,), T),
                       "w2": _uniform(ks[14], (H, T), H), "b2": _uniform(ks[15], (T,), H)}
    p["left"] = init_d_r_params(ks[16], input_dim, T, total_level,
                                current_level - 1, H, K)
    p["right"] = init_d_r_params(ks[17], input_dim, T, total_level,
                                 current_level - 1, H, K)
    if current_level == total_level:
        KK = (2 ** total_level) * K
        p["forecast"] = {"w1": _uniform(ks[18], (KK, T, H), T),
                         "b1": _uniform(ks[19], (KK, H), T),
                         "w2": _uniform(ks[20], (KK, H, T), H),
                         "b2": _uniform(ks[21], (KK, T), H)}
    return p


if __name__ == "__main__":
    # D_R(input_dim=N, input_len=T, total_level=1, current_level=1,
    #     dropout=0.0, enc_hidden=H, output_len=T, K_IMP=K)
    B, N, T, H, K, LEVEL = 2, 4, 16, 32, 4, 1
    key = jax.random.PRNGKey(0)
    k_params, k_x, k_gumbel = jax.random.split(key, 3)
    params = init_d_r_params(k_params, N, T, LEVEL, LEVEL, H, K)
    x = jax.random.normal(k_x, (B, N, T), jnp.float32)

    fwd = jax.jit(functools.partial(d_r_forward,
                                    current_level=LEVEL, total_level=LEVEL))
    y = fwd(x, params, key=k_gumbel)
    y = jax.block_until_ready(y)
    assert y.shape == (B, N, (2 ** LEVEL) * K, T), y.shape
    assert bool(jnp.all(jnp.isfinite(y)))
    print("KERNEL_OK")
</pallas_src>

<mosaic_0001>
module attributes {stable_mosaic.version = 11 : i64} {
  func.func @_reconstruct_kernel(%arg0: i32, %arg1: memref<1x8x18xf32, #tpu.memory_space<vmem>>, %arg2: memref<1x32x2xf32, #tpu.memory_space<vmem>>, %arg3: memref<1x4x3xf32, #tpu.memory_space<vmem>>, %arg4: memref<1x4x1xf32, #tpu.memory_space<vmem>>, %arg5: memref<1x16x64xf32, #tpu.memory_space<vmem>>, %arg6: memref<1x1x64xf32, #tpu.memory_space<vmem>>, %arg7: memref<1x64x2xf32, #tpu.memory_space<vmem>>, %arg8: memref<1x1x2xf32, #tpu.memory_space<vmem>>, %arg9: memref<1x4x12xf32, #tpu.memory_space<vmem>>, %arg10: memref<1x1x4xf32, #tpu.memory_space<vmem>>, %arg11: memref<1x16x32xf32, #tpu.memory_space<vmem>>, %arg12: memref<1x1x32xf32, #tpu.memory_space<vmem>>, %arg13: memref<1x32x16xf32, #tpu.memory_space<vmem>>, %arg14: memref<1x1x16xf32, #tpu.memory_space<vmem>>, %arg15: memref<1x16x32xf32, #tpu.memory_space<vmem>>, %arg16: memref<1x1x32xf32, #tpu.memory_space<vmem>>, %arg17: memref<1x32x16xf32, #tpu.memory_space<vmem>>, %arg18: memref<1x1x16xf32, #tpu.memory_space<vmem>>, %arg19: memref<1x2x8x16xf32, #tpu.memory_space<vmem>>) attributes {dimension_semantics = [#tpu.dimension_semantics<parallel>], iteration_bounds = array<i64: 1>, scalar_prefetch = 0 : i64, scratch_operands = 0 : i64, tpu.core_type = #tpu.core_type<tc>, window_params = [{transform_indices = @transform_0, window_bounds = array<i64: 1, 8, 18>}, {transform_indices = @transform_1, window_bounds = array<i64: 1, 32, 2>}, {transform_indices = @transform_2, window_bounds = array<i64: 1, 4, 3>}, {transform_indices = @transform_3, window_bounds = array<i64: 1, 4, 1>}, {transform_indices = @transform_4, window_bounds = array<i64: 1, 16, 64>}, {transform_indices = @transform_5, window_bounds = array<i64: 1, 1, 64>}, {transform_indices = @transform_6, window_bounds = array<i64: 1, 64, 2>}, {transform_indices = @transform_7, window_bounds = array<i64: 1, 1, 2>}, {transform_indices = @transform_8, window_bounds = array<i64: 1, 4, 12>}, {transform_indices = @transform_9, window_bounds = array<i64: 1, 1, 4>}, {transform_indices = @transform_10, window_bounds = array<i64: 1, 16, 32>}, {transform_indices = @transform_11, window_bounds = array<i64: 1, 1, 32>}, {transform_indices = @transform_12, window_bounds = array<i64: 1, 32, 16>}, {transform_indices = @transform_13, window_bounds = array<i64: 1, 1, 16>}, {transform_indices = @transform_14, window_bounds = array<i64: 1, 16, 32>}, {transform_indices = @transform_15, window_bounds = array<i64: 1, 1, 32>}, {transform_indices = @transform_16, window_bounds = array<i64: 1, 32, 16>}, {transform_indices = @transform_17, window_bounds = array<i64: 1, 1, 16>}, {transform_indices = @transform_18, window_bounds = array<i64: 1, 2, 8, 16>}]} {
    %c0 = arith.constant 0 : index
    %c0_0 = arith.constant 0 : index
    %c0_1 = arith.constant 0 : index
    %0 = vector.load %arg1[%c0, %c0_0, %c0_1] : memref<1x8x18xf32, #tpu.memory_space<vmem>>, vector<1x8x18xf32>
    %1 = vector.shape_cast %0 : vector<1x8x18xf32> to vector<8x18xf32>
    %2 = tpu.iota {dimensions = array<i32: 0>} : vector<8x4xi32>
    %3 = tpu.iota {dimensions = array<i32: 1>} : vector<8x4xi32>
    %c4_i32 = arith.constant 4 : i32
    %c0_i32 = arith.constant 0 : i32
    %4 = arith.cmpi eq, %c4_i32, %c0_i32 : i32
    %c1_i32 = arith.constant 1 : i32
    %5 = arith.select %4, %c1_i32, %c4_i32 : i32
    %6 = vector.broadcast %5 : i32 to vector<8x4xi32>
    %7 = arith.remsi %2, %6 : vector<8x4xi32>
    %c0_i32_2 = arith.constant 0 : i32
    %8 = vector.broadcast %c0_i32_2 : i32 to vector<8x4xi32>
    %9 = arith.cmpi ne, %7, %8 : vector<8x4xi32>
    %c0_i32_3 = arith.constant 0 : i32
    %10 = vector.broadcast %c0_i32_3 : i32 to vector<8x4xi32>
    %11 = arith.cmpi slt, %7, %10 : vector<8x4xi32>
    %c0_i32_4 = arith.constant 0 : i32
    %12 = arith.cmpi slt, %5, %c0_i32_4 : i32
    %13 = vector.broadcast %12 : i1 to vector<8x4xi1>
    %14 = vector.broadcast %13 : vector<8x4xi1> to vector<8x4xi1>
    %15 = arith.xori %11, %14 : vector<8x4xi1>
    %16 = arith.andi %15, %9 : vector<8x4xi1>
    %17 = vector.broadcast %5 : i32 to vector<8x4xi32>
    %18 = arith.addi %7, %17 : vector<8x4xi32>
    %19 = arith.select %16, %18, %7 : vector<8x4xi1>, vector<8x4xi32>
    %20 = arith.cmpi eq, %19, %3 : vector<8x4xi32>
    %21 = arith.extui %20 : vector<8x4xi1> to vector<8x4xi32>
    %22 = arith.sitofp %21 : vector<8x4xi32> to vector<8x4xf32>
    %23 = tpu.iota {dimensions = array<i32: 0>} : vector<4x8xi32>
    %24 = tpu.iota {dimensions = array<i32: 1>} : vector<4x8xi32>
    %c4_i32_5 = arith.constant 4 : i32
    %c0_i32_6 = arith.constant 0 : i32
    %25 = arith.cmpi eq, %c4_i32_5, %c0_i32_6 : i32
    %c1_i32_7 = arith.constant 1 : i32
    %26 = arith.select %25, %c1_i32_7, %c4_i32_5 : i32
    %27 = vector.broadcast %26 : i32 to vector<4x8xi32>
    %28 = arith.remsi %24, %27 : vector<4x8xi32>
    %c0_i32_8 = arith.constant 0 : i32
    %29 = vector.broadcast %c0_i32_8 : i32 to vector<4x8xi32>
    %30 = arith.cmpi ne, %28, %29 : vector<4x8xi32>
    %c0_i32_9 = arith.constant 0 : i32
    %31 = vector.broadcast %c0_i32_9 : i32 to vector<4x8xi32>
    %32 = arith.cmpi slt, %28, %31 : vector<4x8xi32>
    %c0_i32_10 = arith.constant 0 : i32
    %33 = arith.cmpi slt, %26, %c0_i32_10 : i32
    %34 = vector.broadcast %33 : i1 to vector<4x8xi1>
    %35 = vector.broadcast %34 : vector<4x8xi1> to vector<4x8xi1>
    %36 = arith.xori %32, %35 : vector<4x8xi1>
    %37 = arith.andi %36, %30 : vector<4x8xi1>
    %38 = vector.broadcast %26 : i32 to vector<4x8xi32>
    %39 = arith.addi %28, %38 : vector<4x8xi32>
    %40 = arith.select %37, %39, %28 : vector<4x8xi1>, vector<4x8xi32>
    %41 = arith.cmpi eq, %40, %23 : vector<4x8xi32>
    %42 = arith.extui %41 : vector<4x8xi1> to vector<4x8xi32>
    %43 = arith.sitofp %42 : vector<4x8xi32> to vector<4x8xf32>
    %44 = tpu.iota {dimensions = array<i32: 0>} : vector<32x4xi32>
    %45 = tpu.iota {dimensions = array<i32: 1>} : vector<32x4xi32>
    %c4_i32_11 = arith.constant 4 : i32
    %c0_i32_12 = arith.constant 0 : i32
    %46 = arith.cmpi eq, %c4_i32_11, %c0_i32_12 : i32
    %c1_i32_13 = arith.constant 1 : i32
    %47 = arith.select %46, %c1_i32_13, %c4_i32_11 : i32
    %48 = vector.broadcast %47 : i32 to vector<32x4xi32>
    %49 = arith.remsi %44, %48 : vector<32x4xi32>
    %c0_i32_14 = arith.constant 0 : i32
    %50 = vector.broadcast %c0_i32_14 : i32 to vector<32x4xi32>
    %51 = arith.cmpi ne, %49, %50 : vector<32x4xi32>
    %c0_i32_15 = arith.constant 0 : i32
    %52 = vector.broadcast %c0_i32_15 : i32 to vector<32x4xi32>
    %53 = arith.cmpi slt, %49, %52 : vector<32x4xi32>
    %c0_i32_16 = arith.constant 0 : i32
    %54 = arith.cmpi slt, %47, %c0_i32_16 : i32
    %55 = vector.broadcast %54 : i1 to vector<32x4xi1>
    %56 = vector.broadcast %55 : vector<32x4xi1> to vector<32x4xi1>
    %57 = arith.xori %53, %56 : vector<32x4xi1>
    %58 = arith.andi %57, %51 : vector<32x4xi1>
    %59 = vector.broadcast %47 : i32 to vector<32x4xi32>
    %60 = arith.addi %49, %59 : vector<32x4xi32>
    %61 = arith.select %58, %60, %49 : vector<32x4xi1>, vector<32x4xi32>
    %62 = arith.cmpi eq, %61, %45 : vector<32x4xi32>
    %63 = arith.extui %62 : vector<32x4xi1> to vector<32x4xi32>
    %64 = arith.sitofp %63 : vector<32x4xi32> to vector<32x4xf32>
    %65 = tpu.iota {dimensions = array<i32: 0>} : vector<4x32xi32>
    %66 = tpu.iota {dimensions = array<i32: 1>} : vector<4x32xi32>
    %c4_i32_17 = arith.constant 4 : i32
    %c0_i32_18 = arith.constant 0 : i32
    %67 = arith.cmpi eq, %c4_i32_17, %c0_i32_18 : i32
    %c1_i32_19 = arith.constant 1 : i32
    %68 = arith.select %67, %c1_i32_19, %c4_i32_17 : i32
    %69 = vector.broadcast %68 : i32 to vector<4x32xi32>
    %70 = arith.remsi %66, %69 : vector<4x32xi32>
    %c0_i32_20 = arith.constant 0 : i32
    %71 = vector.broadcast %c0_i32_20 : i32 to vector<4x32xi32>
    %72 = arith.cmpi ne, %70, %71 : vector<4x32xi32>
    %c0_i32_21 = arith.constant 0 : i32
    %73 = vector.broadcast %c0_i32_21 : i32 to vector<4x32xi32>
    %74 = arith.cmpi slt, %70, %73 : vector<4x32xi32>
    %c0_i32_22 = arith.constant 0 : i32
    %75 = arith.cmpi slt, %68, %c0_i32_22 : i32
    %76 = vector.broadcast %75 : i1 to vector<4x32xi1>
    %77 = vector.broadcast %76 : vector<4x32xi1> to vector<4x32xi1>
    %78 = arith.xori %74, %77 : vector<4x32xi1>
    %79 = arith.andi %78, %72 : vector<4x32xi1>
    %80 = vector.broadcast %68 : i32 to vector<4x32xi32>
    %81 = arith.addi %70, %80 : vector<4x32xi32>
    %82 = arith.select %79, %81, %70 : vector<4x32xi1>, vector<4x32xi32>
    %83 = arith.cmpi eq, %82, %65 : vector<4x32xi32>
    %84 = arith.extui %83 : vector<4x32xi1> to vector<4x32xi32>
    %85 = arith.sitofp %84 : vector<4x32xi32> to vector<4x32xf32>
    %86 = tpu.iota {dimensions = array<i32: 0>} : vector<32x8xi32>
    %87 = tpu.iota {dimensions = array<i32: 1>} : vector<32x8xi32>
    %c8_i32 = arith.constant 8 : i32
    %c0_i32_23 = arith.constant 0 : i32
    %88 = arith.cmpi eq, %c8_i32, %c0_i32_23 : i32
    %c1_i32_24 = arith.constant 1 : i32
    %89 = arith.select %88, %c1_i32_24, %c8_i32 : i32
    %90 = vector.broadcast %89 : i32 to vector<32x8xi32>
    %91 = arith.remsi %86, %90 : vector<32x8xi32>
    %c0_i32_25 = arith.constant 0 : i32
    %92 = vector.broadcast %c0_i32_25 : i32 to vector<32x8xi32>
    %93 = arith.cmpi ne, %91, %92 : vector<32x8xi32>
    %c0_i32_26 = arith.constant 0 : i32
    %94 = vector.broadcast %c0_i32_26 : i32 to vector<32x8xi32>
    %95 = arith.cmpi slt, %91, %94 : vector<32x8xi32>
    %c0_i32_27 = arith.constant 0 : i32
    %96 = arith.cmpi slt, %89, %c0_i32_27 : i32
    %97 = vector.broadcast %96 : i1 to vector<32x8xi1>
    %98 = vector.broadcast %97 : vector<32x8xi1> to vector<32x8xi1>
    %99 = arith.xori %95, %98 : vector<32x8xi1>
    %100 = arith.andi %99, %93 : vector<32x8xi1>
    %101 = vector.broadcast %89 : i32 to vector<32x8xi32>
    %102 = arith.addi %91, %101 : vector<32x8xi32>
    %103 = arith.select %100, %102, %91 : vector<32x8xi1>, vector<32x8xi32>
    %104 = arith.cmpi eq, %103, %87 : vector<32x8xi32>
    %105 = arith.extui %104 : vector<32x8xi1> to vector<32x8xi32>
    %106 = arith.sitofp %105 : vector<32x8xi32> to vector<32x8xf32>
    %107 = tpu.iota {dimensions = array<i32: 0>} : vector<32x4xi32>
    %108 = tpu.iota {dimensions = array<i32: 1>} : vector<32x4xi32>
    %c8_i32_28 = arith.constant 8 : i32
    %109 = vector.broadcast %c8_i32_28 : i32 to vector<32x4xi32>
    %110 = arith.muli %108, %109 : vector<32x4xi32>
    %111 = arith.cmpi sge, %107, %110 : vector<32x4xi32>
    %c1_i32_29 = arith.constant 1 : i32
    %112 = vector.broadcast %c1_i32_29 : i32 to vector<32x4xi32>
    %113 = arith.addi %108, %112 : vector<32x4xi32>
    %c8_i32_30 = arith.constant 8 : i32
    %114 = vector.broadcast %c8_i32_30 : i32 to vector<32x4xi32>
    %115 = arith.muli %113, %114 : vector<32x4xi32>
    %116 = arith.cmpi slt, %107, %115 : vector<32x4xi32>
    %117 = arith.andi %111, %116 : vector<32x4xi1>
    %118 = arith.extui %117 : vector<32x4xi1> to vector<32x4xi32>
    %119 = arith.sitofp %118 : vector<32x4xi32> to vector<32x4xf32>
    %cst = arith.constant dense<0.000000e+00> : vector<32x18xf32>
    %120 = tpu.matmul %106, %1, %cst {dimension_numbers = #tpu.dot_dimension_numbers<[1], [0], [0], [1], [0, 0, 1, 1], [], []>} : vector<32x8xf32>, vector<8x18xf32>, vector<32x18xf32> -> vector<32x18xf32>
    %c0_31 = arith.constant 0 : index
    %c0_32 = arith.constant 0 : index
    %c0_33 = arith.constant 0 : index
    %121 = vector.load %arg3[%c0_31, %c0_32, %c0_33] : memref<1x4x3xf32, #tpu.memory_space<vmem>>, vector<1x4x3xf32>
    %122 = vector.shape_cast %121 : vector<1x4x3xf32> to vector<4x3xf32>
    %cst_34 = arith.constant dense<0.000000e+00> : vector<32x3xf32>
    %123 = tpu.matmul %119, %122, %cst_34 {dimension_numbers = #tpu.dot_dimension_numbers<[1], [0], [0], [1], [0, 0, 1, 1], [], []>} : vector<32x4xf32>, vector<4x3xf32>, vector<32x3xf32> -> vector<32x3xf32>
    %c0_35 = arith.constant 0 : index
    %c0_36 = arith.constant 0 : index
    %c0_37 = arith.constant 0 : index
    %124 = vector.load %arg4[%c0_35, %c0_36, %c0_37] : memref<1x4x1xf32, #tpu.memory_space<vmem>>, vector<1x4x1xf32>
    %125 = vector.shape_cast %124 : vector<1x4x1xf32> to vector<4x1xf32>
    %cst_38 = arith.constant dense<0.000000e+00> : vector<32x1xf32>
    %126 = tpu.matmul %119, %125, %cst_38 {dimension_numbers = #tpu.dot_dimension_numbers<[1], [0], [0], [1], [0, 0, 1, 1], [], []>} : vector<32x4xf32>, vector<4x1xf32>, vector<32x1xf32> -> vector<32x1xf32>
    %127 = vector.extract_strided_slice %123 {offsets = [0, 0], sizes = [32, 1], strides = [1, 1]} : vector<32x3xf32> to vector<32x1xf32>
    %128 = vector.extract_strided_slice %120 {offsets = [0, 0], sizes = [32, 16], strides = [1, 1]} : vector<32x18xf32> to vector<32x16xf32>
    %129 = vector.broadcast %127 : vector<32x1xf32> to vector<32x16xf32>
    %130 = arith.mulf %129, %128 : vector<32x16xf32>
    %131 = vector.broadcast %126 : vector<32x1xf32> to vector<32x16xf32>
    %132 = arith.addf %131, %130 : vector<32x16xf32>
    %133 = vector.extract_strided_slice %123 {offsets = [0, 1], sizes = [32, 1], strides = [1, 1]} : vector<32x3xf32> to vector<32x1xf32>
    %134 = vector.extract_strided_slice %120 {offsets = [0, 1], sizes = [32, 16], strides = [1, 1]} : vector<32x18xf32> to vector<32x16xf32>
    %135 = vector.broadcast %133 : vector<32x1xf32> to vector<32x16xf32>
    %136 = arith.mulf %135, %134 : vector<32x16xf32>
    %137 = arith.addf %132, %136 : vector<32x16xf32>
    %138 = vector.extract_strided_slice %123 {offsets = [0, 2], sizes = [32, 1], strides = [1, 1]} : vector<32x3xf32> to vector<32x1xf32>
    %139 = vector.extract_strided_slice %120 {offsets = [0, 2], sizes = [32, 16], strides = [1, 1]} : vector<32x18xf32> to vector<32x16xf32>
    %140 = vector.broadcast %138 : vector<32x1xf32> to vector<32x16xf32>
    %141 = arith.mulf %140, %139 : vector<32x16xf32>
    %142 = arith.addf %137, %141 : vector<32x16xf32>
    %c0_39 = arith.constant 0 : index
    %c0_40 = arith.constant 0 : index
    %c0_41 = arith.constant 0 : index
    %143 = vector.load %arg5[%c0_39, %c0_40, %c0_41] : memref<1x16x64xf32, #tpu.memory_space<vmem>>, vector<1x16x64xf32>
    %144 = vector.shape_cast %143 : vector<1x16x64xf32> to vector<16x64xf32>
    %cst_42 = arith.constant dense<0.000000e+00> : vector<32x64xf32>
    %145 = tpu.matmul %142, %144, %cst_42 {dimension_numbers = #tpu.dot_dimension_numbers<[1], [0], [0], [1], [0, 0, 1, 1], [], []>} : vector<32x16xf32>, vector<16x64xf32>, vector<32x64xf32> -> vector<32x64xf32>
    %c0_43 = arith.constant 0 : index
    %c0_44 = arith.constant 0 : index
    %c0_45 = arith.constant 0 : index
    %146 = vector.load %arg6[%c0_43, %c0_44, %c0_45] : memref<1x1x64xf32, #tpu.memory_space<vmem>>, vector<1x1x64xf32>
    %147 = vector.shape_cast %146 : vector<1x1x64xf32> to vector<1x64xf32>
    %148 = vector.broadcast %147 : vector<1x64xf32> to vector<32x64xf32>
    %149 = arith.addf %145, %148 : vector<32x64xf32>
    %cst_46 = arith.constant dense<0.000000e+00> : vector<32xf32>
    %150 = vector.multi_reduction <add>, %149, %cst_46 [1] : vector<32x64xf32> to vector<32xf32>
    %151 = vector.shape_cast %150 : vector<32xf32> to vector<32x1xf32>
    %cst_47 = arith.constant dense<0.000000e+00> : vector<4x1xf32>
    %152 = tpu.matmul %85, %151, %cst_47 {dimension_numbers = #tpu.dot_dimension_numbers<[1], [0], [0], [1], [0, 0, 1, 1], [], []>} : vector<4x32xf32>, vector<32x1xf32>, vector<4x1xf32> -> vector<4x1xf32>
    %cst_48 = arith.constant 5.120000e+02 : f32
    %153 = vector.broadcast %cst_48 : f32 to vector<4x1xf32>
    %154 = arith.divf %152, %153 : vector<4x1xf32>
    %cst_49 = arith.constant dense<0.000000e+00> : vector<32x1xf32>
    %155 = tpu.matmul %64, %154, %cst_49 {dimension_numbers = #tpu.dot_dimension_numbers<[1], [0], [0], [1], [0, 0, 1, 1], [], []>} : vector<32x4xf32>, vector<4x1xf32>, vector<32x1xf32> -> vector<32x1xf32>
    %156 = vector.broadcast %155 : vector<32x1xf32> to vector<32x64xf32>
    %157 = arith.subf %149, %156 : vector<32x64xf32>
    %158 = arith.mulf %157, %157 : vector<32x64xf32>
    %cst_50 = arith.constant dense<0.000000e+00> : vector<32xf32>
    %159 = vector.multi_reduction <add>, %158, %cst_50 [1] : vector<32x64xf32> to vector<32xf32>
    %160 = vector.shape_cast %159 : vector<32xf32> to vector<32x1xf32>
    %cst_51 = arith.constant dense<0.000000e+00> : vector<4x1xf32>
    %161 = tpu.matmul %85, %160, %cst_51 {dimension_numbers = #tpu.dot_dimension_numbers<[1], [0], [0], [1], [0, 0, 1, 1], [], []>} : vector<4x32xf32>, vector<32x1xf32>, vector<4x1xf32> -> vector<4x1xf32>
    %cst_52 = arith.constant 5.120000e+02 : f32
    %162 = vector.broadcast %cst_52 : f32 to vector<4x1xf32>
    %163 = arith.divf %161, %162 : vector<4x1xf32>
    %cst_53 = arith.constant dense<0.000000e+00> : vector<32x1xf32>
    %164 = tpu.matmul %64, %163, %cst_53 {dimension_numbers = #tpu.dot_dimension_numbers<[1], [0], [0], [1], [0, 0, 1, 1], [], []>} : vector<32x4xf32>, vector<4x1xf32>, vector<32x1xf32> -> vector<32x1xf32>
    %cst_54 = arith.constant 9.99999974E-6 : f32
    %165 = vector.broadcast %cst_54 : f32 to vector<32x1xf32>
    %166 = arith.addf %164, %165 : vector<32x1xf32>
    %167 = math.rsqrt %166 : vector<32x1xf32>
    %168 = vector.broadcast %167 : vector<32x1xf32> to vector<32x64xf32>
    %169 = arith.mulf %157, %168 : vector<32x64xf32>
    %cst_55 = arith.constant 0.000000e+00 : f32
    %170 = vector.broadcast %cst_55 : f32 to vector<32x64xf32>
    %171 = arith.cmpf ogt, %169, %170 : vector<32x64xf32>
    %cst_56 = arith.constant 0.00999999977 : f32
    %172 = vector.broadcast %cst_56 : f32 to vector<32x64xf32>
    %173 = arith.mulf %172, %169 : vector<32x64xf32>
    %174 = arith.select %171, %169, %173 : vector<32x64xi1>, vector<32x64xf32>
    %c0_57 = arith.constant 0 : index
    %c0_58 = arith.constant 0 : index
    %c0_59 = arith.constant 0 : index
    %175 = vector.load %arg7[%c0_57, %c0_58, %c0_59] : memref<1x64x2xf32, #tpu.memory_space<vmem>>, vector<1x64x2xf32>
    %176 = vector.shape_cast %175 : vector<1x64x2xf32> to vector<64x2xf32>
    %cst_60 = arith.constant dense<0.000000e+00> : vector<32x2xf32>
    %177 = tpu.matmul %174, %176, %cst_60 {dimension_numbers = #tpu.dot_dimension_numbers<[1], [0], [0], [1], [0, 0, 1, 1], [], []>} : vector<32x64xf32>, vector<64x2xf32>, vector<32x2xf32> -> vector<32x2xf32>
    %c0_61 = arith.constant 0 : index
    %c0_62 = arith.constant 0 : index
    %c0_63 = arith.constant 0 : index
    %178 = vector.load %arg8[%c0_61, %c0_62, %c0_63] : memref<1x1x2xf32, #tpu.memory_space<vmem>>, vector<1x1x2xf32>
    %179 = vector.shape_cast %178 : vector<1x1x2xf32> to vector<1x2xf32>
    %180 = vector.broadcast %179 : vector<1x2xf32> to vector<32x2xf32>
    %181 = arith.addf %177, %180 : vector<32x2xf32>
    %c0_64 = arith.constant 0 : index
    %c0_65 = arith.constant 0 : index
    %c0_66 = arith.constant 0 : index
    %182 = vector.load %arg2[%c0_64, %c0_65, %c0_66] : memref<1x32x2xf32, #tpu.memory_space<vmem>>, vector<1x32x2xf32>
    %183 = vector.shape_cast %182 : vector<1x32x2xf32> to vector<32x2xf32>
    %184 = arith.addf %181, %183 : vector<32x2xf32>
    %185 = vector.extract_strided_slice %184 {offsets = [0, 0], sizes = [32, 1], strides = [1, 1]} : vector<32x2xf32> to vector<32x1xf32>
    %186 = vector.extract_strided_slice %184 {offsets = [0, 1], sizes = [32, 1], strides = [1, 1]} : vector<32x2xf32> to vector<32x1xf32>
    %187 = arith.maximumf %185, %186 : vector<32x1xf32>
    %188 = arith.subf %185, %187 : vector<32x1xf32>
    %189 = math.exp %188 : vector<32x1xf32>
    %190 = arith.subf %186, %187 : vector<32x1xf32>
    %191 = math.exp %190 : vector<32x1xf32>
    %192 = arith.addf %189, %191 : vector<32x1xf32>
    %193 = tpu.reciprocal %192 {approx = true} : vector<32x1xf32> -> vector<32x1xf32>
    %194 = arith.mulf %189, %193 : vector<32x1xf32>
    %195 = arith.mulf %191, %193 : vector<32x1xf32>
    %196 = tpu.iota {dimensions = array<i32: 0>} : vector<16x16xi32>
    %197 = tpu.iota {dimensions = array<i32: 1>} : vector<16x16xi32>
    %c1_i32_67 = arith.constant 1 : i32
    %198 = vector.broadcast %c1_i32_67 : i32 to vector<16x16xi32>
    %199 = arith.addi %196, %198 : vector<16x16xi32>
    %200 = arith.cmpi eq, %199, %197 : vector<16x16xi32>
    %201 = arith.extui %200 : vector<16x16xi1> to vector<16x16xi32>
    %202 = arith.sitofp %201 : vector<16x16xi32> to vector<16x16xf32>
    %c1_i32_68 = arith.constant 1 : i32
    %203 = vector.broadcast %c1_i32_68 : i32 to vector<16x16xi32>
    %204 = arith.addi %197, %203 : vector<16x16xi32>
    %205 = arith.cmpi eq, %196, %204 : vector<16x16xi32>
    %206 = arith.extui %205 : vector<16x16xi1> to vector<16x16xi32>
    %207 = arith.sitofp %206 : vector<16x16xi32> to vector<16x16xf32>
    %cst_69 = arith.constant dense<0.000000e+00> : vector<32x16xf32>
    %208 = tpu.matmul %142, %202, %cst_69 {dimension_numbers = #tpu.dot_dimension_numbers<[1], [0], [0], [1], [0, 0, 1, 1], [], []>} : vector<32x16xf32>, vector<16x16xf32>, vector<32x16xf32> -> vector<32x16xf32>
    %cst_70 = arith.constant dense<0.000000e+00> : vector<32x16xf32>
    %209 = tpu.matmul %142, %207, %cst_70 {dimension_numbers = #tpu.dot_dimension_numbers<[1], [0], [0], [1], [0, 0, 1, 1], [], []>} : vector<32x16xf32>, vector<16x16xf32>, vector<32x16xf32> -> vector<32x16xf32>
    %c0_71 = arith.constant 0 : index
    %c0_72 = arith.constant 0 : index
    %c0_73 = arith.constant 0 : index
    %210 = vector.load %arg9[%c0_71, %c0_72, %c0_73] : memref<1x4x12xf32, #tpu.memory_space<vmem>>, vector<1x4x12xf32>
    %211 = vector.shape_cast %210 : vector<1x4x12xf32> to vector<4x12xf32>
    %c0_74 = arith.constant 0 : index
    %c0_75 = arith.constant 0 : index
    %c0_76 = arith.constant 0 : index
    %212 = vector.load %arg10[%c0_74, %c0_75, %c0_76] : memref<1x1x4xf32, #tpu.memory_space<vmem>>, vector<1x1x4xf32>
    %213 = vector.shape_cast %212 : vector<1x1x4xf32> to vector<1x4xf32>
    %cst_77 = arith.constant 0.000000e+00 : f32
    %214 = vector.broadcast %cst_77 : f32 to vector<8x16xf32>
    %cst_78 = arith.constant 0.000000e+00 : f32
    %215 = vector.broadcast %cst_78 : f32 to vector<8x16xf32>
    %cst_79 = arith.constant 0.000000e+00 : f32
    %216 = vector.broadcast %cst_79 : f32 to vector<8x16xf32>
    %217 = vector.extract_strided_slice %213 {offsets = [0, 0], sizes = [1, 1], strides = [1, 1]} : vector<1x4xf32> to vector<1x1xf32>
    %218 = vector.broadcast %217 : vector<1x1xf32> to vector<8x16xf32>
    %219 = arith.addf %216, %218 : vector<8x16xf32>
    %220 = vector.extract_strided_slice %211 {offsets = [0, 0], sizes = [1, 1], strides = [1, 1]} : vector<4x12xf32> to vector<1x1xf32>
    %221 = vector.extract_strided_slice %208 {offsets = [0, 0], sizes = [8, 16], strides = [1, 1]} : vector<32x16xf32> to vector<8x16xf32>
    %222 = vector.broadcast %220 : vector<1x1xf32> to vector<8x16xf32>
    %223 = arith.mulf %222, %221 : vector<8x16xf32>
    %224 = arith.addf %219, %223 : vector<8x16xf32>
    %225 = vector.extract_strided_slice %211 {offsets = [0, 1], sizes = [1, 1], strides = [1, 1]} : vector<4x12xf32> to vector<1x1xf32>
    %226 = vector.extract_strided_slice %142 {offsets = [0, 0], sizes = [8, 16], strides = [1, 1]} : vector<32x16xf32> to vector<8x16xf32>
    %227 = vector.broadcast %225 : vector<1x1xf32> to vector<8x16xf32>
    %228 = arith.mulf %227, %226 : vector<8x16xf32>
    %229 = arith.addf %224, %228 : vector<8x16xf32>
    %230 = vector.extract_strided_slice %211 {offsets = [0, 2], sizes = [1, 1], strides = [1, 1]} : vector<4x12xf32> to vector<1x1xf32>
    %231 = vector.extract_strided_slice %209 {offsets = [0, 0], sizes = [8, 16], strides = [1, 1]} : vector<32x16xf32> to vector<8x16xf32>
    %232 = vector.broadcast %230 : vector<1x1xf32> to vector<8x16xf32>
    %233 = arith.mulf %232, %231 : vector<8x16xf32>
    %234 = arith.addf %229, %233 : vector<8x16xf32>
    %235 = vector.extract_strided_slice %211 {offsets = [0, 3], sizes = [1, 1], strides = [1, 1]} : vector<4x12xf32> to vector<1x1xf32>
    %236 = vector.extract_strided_slice %208 {offsets = [8, 0], sizes = [8, 16], strides = [1, 1]} : vector<32x16xf32> to vector<8x16xf32>
    %237 = vector.broadcast %235 : vector<1x1xf32> to vector<8x16xf32>
    %238 = arith.mulf %237, %236 : vector<8x16xf32>
    %239 = arith.addf %234, %238 : vector<8x16xf32>
    %240 = vector.extract_strided_slice %211 {offsets = [0, 4], sizes = [1, 1], strides = [1, 1]} : vector<4x12xf32> to vector<1x1xf32>
    %241 = vector.extract_strided_slice %142 {offsets = [8, 0], sizes = [8, 16], strides = [1, 1]} : vector<32x16xf32> to vector<8x16xf32>
    %242 = vector.broadcast %240 : vector<1x1xf32> to vector<8x16xf32>
    %243 = arith.mulf %242, %241 : vector<8x16xf32>
    %244 = arith.addf %239, %243 : vector<8x16xf32>
    %245 = vector.extract_strided_slice %211 {offsets = [0, 5], sizes = [1, 1], strides = [1, 1]} : vector<4x12xf32> to vector<1x1xf32>
    %246 = vector.extract_strided_slice %209 {offsets = [8, 0], sizes = [8, 16], strides = [1, 1]} : vector<32x16xf32> to vector<8x16xf32>
    %247 = vector.broadcast %245 : vector<1x1xf32> to vector<8x16xf32>
    %248 = arith.mulf %247, %246 : vector<8x16xf32>
    %249 = arith.addf %244, %248 : vector<8x16xf32>
    %250 = vector.extract_strided_slice %211 {offsets = [0, 6], sizes = [1, 1], strides = [1, 1]} : vector<4x12xf32> to vector<1x1xf32>
    %251 = vector.extract_strided_slice %208 {offsets = [16, 0], sizes = [8, 16], strides = [1, 1]} : vector<32x16xf32> to vector<8x16xf32>
    %252 = vector.broadcast %250 : vector<1x1xf32> to vector<8x16xf32>
    %253 = arith.mulf %252, %251 : vector<8x16xf32>
    %254 = arith.addf %249, %253 : vector<8x16xf32>
    %255 = vector.extract_strided_slice %211 {offsets = [0, 7], sizes = [1, 1], strides = [1, 1]} : vector<4x12xf32> to vector<1x1xf32>
    %256 = vector.extract_strided_slice %142 {offsets = [16, 0], sizes = [8, 16], strides = [1, 1]} : vector<32x16xf32> to vector<8x16xf32>
    %257 = vector.broadcast %255 : vector<1x1xf32> to vector<8x16xf32>
    %258 = arith.mulf %257, %256 : vector<8x16xf32>
    %259 = arith.addf %254, %258 : vector<8x16xf32>
    %260 = vector.extract_strided_slice %211 {offsets = [0, 8], sizes = [1, 1], strides = [1, 1]} : vector<4x12xf32> to vector<1x1xf32>
    %261 = vector.extract_strided_slice %209 {offsets = [16, 0], sizes = [8, 16], strides = [1, 1]} : vector<32x16xf32> to vector<8x16xf32>
    %262 = vector.broadcast %260 : vector<1x1xf32> to vector<8x16xf32>
    %263 = arith.mulf %262, %261 : vector<8x16xf32>
    %264 = arith.addf %259, %263 : vector<8x16xf32>
    %265 = vector.extract_strided_slice %211 {offsets = [0, 9], sizes = [1, 1], strides = [1, 1]} : vector<4x12xf32> to vector<1x1xf32>
    %266 = vector.extract_strided_slice %208 {offsets = [24, 0], sizes = [8, 16], strides = [1, 1]} : vector<32x16xf32> to vector<8x16xf32>
    %267 = vector.broadcast %265 : vector<1x1xf32> to vector<8x16xf32>
    %268 = arith.mulf %267, %266 : vector<8x16xf32>
    %269 = arith.addf %264, %268 : vector<8x16xf32>
    %270 = vector.extract_strided_slice %211 {offsets = [0, 10], sizes = [1, 1], strides = [1, 1]} : vector<4x12xf32> to vector<1x1xf32>
    %271 = vector.extract_strided_slice %142 {offsets = [24, 0], sizes = [8, 16], strides = [1, 1]} : vector<32x16xf32> to vector<8x16xf32>
    %272 = vector.broadcast %270 : vector<1x1xf32> to vector<8x16xf32>
    %273 = arith.mulf %272, %271 : vector<8x16xf32>
    %274 = arith.addf %269, %273 : vector<8x16xf32>
    %275 = vector.extract_strided_slice %211 {offsets = [0, 11], sizes = [1, 1], strides = [1, 1]} : vector<4x12xf32> to vector<1x1xf32>
    %276 = vector.extract_strided_slice %209 {offsets = [24, 0], sizes = [8, 16], strides = [1, 1]} : vector<32x16xf32> to vector<8x16xf32>
    %277 = vector.broadcast %275 : vector<1x1xf32> to vector<8x16xf32>
    %278 = arith.mulf %277, %276 : vector<8x16xf32>
    %279 = arith.addf %274, %278 : vector<8x16xf32>
    %280 = vector.extract_strided_slice %142 {offsets = [0, 0], sizes = [8, 16], strides = [1, 1]} : vector<32x16xf32> to vector<8x16xf32>
    %281 = arith.mulf %280, %279 : vector<8x16xf32>
    %282 = vector.extract_strided_slice %194 {offsets = [0, 0], sizes = [8, 1], strides = [1, 1]} : vector<32x1xf32> to vector<8x1xf32>
    %283 = vector.broadcast %282 : vector<8x1xf32> to vector<8x16xf32>
    %284 = arith.mulf %281, %283 : vector<8x16xf32>
    %285 = arith.addf %214, %284 : vector<8x16xf32>
    %286 = vector.extract_strided_slice %195 {offsets = [0, 0], sizes = [8, 1], strides = [1, 1]} : vector<32x1xf32> to vector<8x1xf32>
    %287 = vector.broadcast %286 : vector<8x1xf32> to vector<8x16xf32>
    %288 = arith.mulf %281, %287 : vector<8x16xf32>
    %289 = arith.addf %215, %288 : vector<8x16xf32>
    %cst_80 = arith.constant 0.000000e+00 : f32
    %290 = vector.broadcast %cst_80 : f32 to vector<8x16xf32>
    %291 = vector.extract_strided_slice %213 {offsets = [0, 1], sizes = [1, 1], strides = [1, 1]} : vector<1x4xf32> to vector<1x1xf32>
    %292 = vector.broadcast %291 : vector<1x1xf32> to vector<8x16xf32>
    %293 = arith.addf %290, %292 : vector<8x16xf32>
    %294 = vector.extract_strided_slice %211 {offsets = [1, 0], sizes = [1, 1], strides = [1, 1]} : vector<4x12xf32> to vector<1x1xf32>
    %295 = vector.extract_strided_slice %208 {offsets = [0, 0], sizes = [8, 16], strides = [1, 1]} : vector<32x16xf32> to vector<8x16xf32>
    %296 = vector.broadcast %294 : vector<1x1xf32> to vector<8x16xf32>
    %297 = arith.mulf %296, %295 : vector<8x16xf32>
    %298 = arith.addf %293, %297 : vector<8x16xf32>
    %299 = vector.extract_strided_slice %211 {offsets = [1, 1], sizes = [1, 1], strides = [1, 1]} : vector<4x12xf32> to vector<1x1xf32>
    %300 = vector.extract_strided_slice %142 {offsets = [0, 0], sizes = [8, 16], strides = [1, 1]} : vector<32x16xf32> to vector<8x16xf32>
    %301 = vector.broadcast %299 : vector<1x1xf32> to vector<8x16xf32>
    %302 = arith.mulf %301, %300 : vector<8x16xf32>
    %303 = arith.addf %298, %302 : vector<8x16xf32>
    %304 = vector.extract_strided_slice %211 {offsets = [1, 2], sizes = [1, 1], strides = [1, 1]} : vector<4x12xf32> to vector<1x1xf32>
    %305 = vector.extract_strided_slice %209 {offsets = [0, 0], sizes = [8, 16], strides = [1, 1]} : vector<32x16xf32> to vector<8x16xf32>
    %306 = vector.broadcast %304 : vector<1x1xf32> to vector<8x16xf32>
    %307 = arith.mulf %306, %305 : vector<8x16xf32>
    %308 = arith.addf %303, %307 : vector<8x16xf32>
    %309 = vector.extract_strided_slice %211 {offsets = [1, 3], sizes = [1, 1], strides = [1, 1]} : vector<4x12xf32> to vector<1x1xf32>
    %310 = vector.extract_strided_slice %208 {offsets = [8, 0], sizes = [8, 16], strides = [1, 1]} : vector<32x16xf32> to vector<8x16xf32>
    %311 = vector.broadcast %309 : vector<1x1xf32> to vector<8x16xf32>
    %312 = arith.mulf %311, %310 : vector<8x16xf32>
    %313 = arith.addf %308, %312 : vector<8x16xf32>
    %314 = vector.extract_strided_slice %211 {offsets = [1, 4], sizes = [1, 1], strides = [1, 1]} : vector<4x12xf32> to vector<1x1xf32>
    %315 = vector.extract_strided_slice %142 {offsets = [8, 0], sizes = [8, 16], strides = [1, 1]} : vector<32x16xf32> to vector<8x16xf32>
    %316 = vector.broadcast %314 : vector<1x1xf32> to vector<8x16xf32>
    %317 = arith.mulf %316, %315 : vector<8x16xf32>
    %318 = arith.addf %313, %317 : vector<8x16xf32>
    %319 = vector.extract_strided_slice %211 {offsets = [1, 5], sizes = [1, 1], strides = [1, 1]} : vector<4x12xf32> to vector<1x1xf32>
    %320 = vector.extract_strided_slice %209 {offsets = [8, 0], sizes = [8, 16], strides = [1, 1]} : vector<32x16xf32> to vector<8x16xf32>
    %321 = vector.broadcast %319 : vector<1x1xf32> to vector<8x16xf32>
    %322 = arith.mulf %321, %320 : vector<8x16xf32>
    %323 = arith.addf %318, %322 : vector<8x16xf32>
    %324 = vector.extract_strided_slice %211 {offsets = [1, 6], sizes = [1, 1], strides = [1, 1]} : vector<4x12xf32> to vector<1x1xf32>
    %325 = vector.extract_strided_slice %208 {offsets = [16, 0], sizes = [8, 16], strides = [1, 1]} : vector<32x16xf32> to vector<8x16xf32>
    %326 = vector.broadcast %324 : vector<1x1xf32> to vector<8x16xf32>
    %327 = arith.mulf %326, %325 : vector<8x16xf32>
    %328 = arith.addf %323, %327 : vector<8x16xf32>
    %329 = vector.extract_strided_slice %211 {offsets = [1, 7], sizes = [1, 1], strides = [1, 1]} : vector<4x12xf32> to vector<1x1xf32>
    %330 = vector.extract_strided_slice %142 {offsets = [16, 0], sizes = [8, 16], strides = [1, 1]} : vector<32x16xf32> to vector<8x16xf32>
    %331 = vector.broadcast %329 : vector<1x1xf32> to vector<8x16xf32>
    %332 = arith.mulf %331, %330 : vector<8x16xf32>
    %333 = arith.addf %328, %332 : vector<8x16xf32>
    %334 = vector.extract_strided_slice %211 {offsets = [1, 8], sizes = [1, 1], strides = [1, 1]} : vector<4x12xf32> to vector<1x1xf32>
    %335 = vector.extract_strided_slice %209 {offsets = [16, 0], sizes = [8, 16], strides = [1, 1]} : vector<32x16xf32> to vector<8x16xf32>
    %336 = vector.broadcast %334 : vector<1x1xf32> to vector<8x16xf32>
    %337 = arith.mulf %336, %335 : vector<8x16xf32>
    %338 = arith.addf %333, %337 : vector<8x16xf32>
    %339 = vector.extract_strided_slice %211 {offsets = [1, 9], sizes = [1, 1], strides = [1, 1]} : vector<4x12xf32> to vector<1x1xf32>
    %340 = vector.extract_strided_slice %208 {offsets = [24, 0], sizes = [8, 16], strides = [1, 1]} : vector<32x16xf32> to vector<8x16xf32>
    %341 = vector.broadcast %339 : vector<1x1xf32> to vector<8x16xf32>
    %342 = arith.mulf %341, %340 : vector<8x16xf32>
    %343 = arith.addf %338, %342 : vector<8x16xf32>
    %344 = vector.extract_strided_slice %211 {offsets = [1, 10], sizes = [1, 1], strides = [1, 1]} : vector<4x12xf32> to vector<1x1xf32>
    %345 = vector.extract_strided_slice %142 {offsets = [24, 0], sizes = [8, 16], strides = [1, 1]} : vector<32x16xf32> to vector<8x16xf32>
    %346 = vector.broadcast %344 : vector<1x1xf32> to vector<8x16xf32>
    %347 = arith.mulf %346, %345 : vector<8x16xf32>
    %348 = arith.addf %343, %347 : vector<8x16xf32>
    %349 = vector.extract_strided_slice %211 {offsets = [1, 11], sizes = [1, 1], strides = [1, 1]} : vector<4x12xf32> to vector<1x1xf32>
    %350 = vector.extract_strided_slice %209 {offsets = [24, 0], sizes = [8, 16], strides = [1, 1]} : vector<32x16xf32> to vector<8x16xf32>
    %351 = vector.broadcast %349 : vector<1x1xf32> to vector<8x16xf32>
    %352 = arith.mulf %351, %350 : vector<8x16xf32>
    %353 = arith.addf %348, %352 : vector<8x16xf32>
    %354 = vector.extract_strided_slice %142 {offsets = [8, 0], sizes = [8, 16], strides = [1, 1]} : vector<32x16xf32> to vector<8x16xf32>
    %355 = arith.mulf %354, %353 : vector<8x16xf32>
    %356 = vector.extract_strided_slice %194 {offsets = [8, 0], sizes = [8, 1], strides = [1, 1]} : vector<32x1xf32> to vector<8x1xf32>
    %357 = vector.broadcast %356 : vector<8x1xf32> to vector<8x16xf32>
    %358 = arith.mulf %355, %357 : vector<8x16xf32>
    %359 = arith.addf %285, %358 : vector<8x16xf32>
    %360 = vector.extract_strided_slice %195 {offsets = [8, 0], sizes = [8, 1], strides = [1, 1]} : vector<32x1xf32> to vector<8x1xf32>
    %361 = vector.broadcast %360 : vector<8x1xf32> to vector<8x16xf32>
    %362 = arith.mulf %355, %361 : vector<8x16xf32>
    %363 = arith.addf %289, %362 : vector<8x16xf32>
    %cst_81 = arith.constant 0.000000e+00 : f32
    %364 = vector.broadcast %cst_81 : f32 to vector<8x16xf32>
    %365 = vector.extract_strided_slice %213 {offsets = [0, 2], sizes = [1, 1], strides = [1, 1]} : vector<1x4xf32> to vector<1x1xf32>
    %366 = vector.broadcast %365 : vector<1x1xf32> to vector<8x16xf32>
    %367 = arith.addf %364, %366 : vector<8x16xf32>
    %368 = vector.extract_strided_slice %211 {offsets = [2, 0], sizes = [1, 1], strides = [1, 1]} : vector<4x12xf32> to vector<1x1xf32>
    %369 = vector.extract_strided_slice %208 {offsets = [0, 0], sizes = [8, 16], strides = [1, 1]} : vector<32x16xf32> to vector<8x16xf32>
    %370 = vector.broadcast %368 : vector<1x1xf32> to vector<8x16xf32>
    %371 = arith.mulf %370, %369 : vector<8x16xf32>
    %372 = arith.addf %367, %371 : vector<8x16xf32>
    %373 = vector.extract_strided_slice %211 {offsets = [2, 1], sizes = [1, 1], strides = [1, 1]} : vector<4x12xf32> to vector<1x1xf32>
    %374 = vector.extract_strided_slice %142 {offsets = [0, 0], sizes = [8, 16], strides = [1, 1]} : vector<32x16xf32> to vector<8x16xf32>
    %375 = vector.broadcast %373 : vector<1x1xf32> to vector<8x16xf32>
    %376 = arith.mulf %375, %374 : vector<8x16xf32>
    %377 = arith.addf %372, %376 : vector<8x16xf32>
    %378 = vector.extract_strided_slice %211 {offsets = [2, 2], sizes = [1, 1], strides = [1, 1]} : vector<4x12xf32> to vector<1x1xf32>
    %379 = vector.extract_strided_slice %209 {offsets = [0, 0], sizes = [8, 16], strides = [1, 1]} : vector<32x16xf32> to vector<8x16xf32>
    %380 = vector.broadcast %378 : vector<1x1xf32> to vector<8x16xf32>
    %381 = arith.mulf %380, %379 : vector<8x16xf32>
    %382 = arith.addf %377, %381 : vector<8x16xf32>
    %383 = vector.extract_strided_slice %211 {offsets = [2, 3], sizes = [1, 1], strides = [1, 1]} : vector<4x12xf32> to vector<1x1xf32>
    %384 = vector.extract_strided_slice %208 {offsets = [8, 0], sizes = [8, 16], strides = [1, 1]} : vector<32x16xf32> to vector<8x16xf32>
    %385 = vector.broadcast %383 : vector<1x1xf32> to vector<8x16xf32>
    %386 = arith.mulf %385, %384 : vector<8x16xf32>
    %387 = arith.addf %382, %386 : vector<8x16xf32>
    %388 = vector.extract_strided_slice %211 {offsets = [2, 4], sizes = [1, 1], strides = [1, 1]} : vector<4x12xf32> to vector<1x1xf32>
    %389 = vector.extract_strided_slice %142 {offsets = [8, 0], sizes = [8, 16], strides = [1, 1]} : vector<32x16xf32> to vector<8x16xf32>
    %390 = vector.broadcast %388 : vector<1x1xf32> to vector<8x16xf32>
    %391 = arith.mulf %390, %389 : vector<8x16xf32>
    %392 = arith.addf %387, %391 : vector<8x16xf32>
    %393 = vector.extract_strided_slice %211 {offsets = [2, 5], sizes = [1, 1], strides = [1, 1]} : vector<4x12xf32> to vector<1x1xf32>
    %394 = vector.extract_strided_slice %209 {offsets = [8, 0], sizes = [8, 16], strides = [1, 1]} : vector<32x16xf32> to vector<8x16xf32>
    %395 = vector.broadcast %393 : vector<1x1xf32> to vector<8x16xf32>
    %396 = arith.mulf %395, %394 : vector<8x16xf32>
    %397 = arith.addf %392, %396 : vector<8x16xf32>
    %398 = vector.extract_strided_slice %211 {offsets = [2, 6], sizes = [1, 1], strides = [1, 1]} : vector<4x12xf32> to vector<1x1xf32>
    %399 = vector.extract_strided_slice %208 {offsets = [16, 0], sizes = [8, 16], strides = [1, 1]} : vector<32x16xf32> to vector<8x16xf32>
    %400 = vector.broadcast %398 : vector<1x1xf32> to vector<8x16xf32>
    %401 = arith.mulf %400, %399 : vector<8x16xf32>
    %402 = arith.addf %397, %401 : vector<8x16xf32>
    %403 = vector.extract_strided_slice %211 {offsets = [2, 7], sizes = [1, 1], strides = [1, 1]} : vector<4x12xf32> to vector<1x1xf32>
    %404 = vector.extract_strided_slice %142 {offsets = [16, 0], sizes = [8, 16], strides = [1, 1]} : vector<32x16xf32> to vector<8x16xf32>
    %405 = vector.broadcast %403 : vector<1x1xf32> to vector<8x16xf32>
    %406 = arith.mulf %405, %404 : vector<8x16xf32>
    %407 = arith.addf %402, %406 : vector<8x16xf32>
    %408 = vector.extract_strided_slice %211 {offsets = [2, 8], sizes = [1, 1], strides = [1, 1]} : vector<4x12xf32> to vector<1x1xf32>
    %409 = vector.extract_strided_slice %209 {offsets = [16, 0], sizes = [8, 16], strides = [1, 1]} : vector<32x16xf32> to vector<8x16xf32>
    %410 = vector.broadcast %408 : vector<1x1xf32> to vector<8x16xf32>
    %411 = arith.mulf %410, %409 : vector<8x16xf32>
    %412 = arith.addf %407, %411 : vector<8x16xf32>
    %413 = vector.extract_strided_slice %211 {offsets = [2, 9], sizes = [1, 1], strides = [1, 1]} : vector<4x12xf32> to vector<1x1xf32>
    %414 = vector.extract_strided_slice %208 {offsets = [24, 0], sizes = [8, 16], strides = [1, 1]} : vector<32x16xf32> to vector<8x16xf32>
    %415 = vector.broadcast %413 : vector<1x1xf32> to vector<8x16xf32>
    %416 = arith.mulf %415, %414 : vector<8x16xf32>
    %417 = arith.addf %412, %416 : vector<8x16xf32>
    %418 = vector.extract_strided_slice %211 {offsets = [2, 10], sizes = [1, 1], strides = [1, 1]} : vector<4x12xf32> to vector<1x1xf32>
    %419 = vector.extract_strided_slice %142 {offsets = [24, 0], sizes = [8, 16], strides = [1, 1]} : vector<32x16xf32> to vector<8x16xf32>
    %420 = vector.broadcast %418 : vector<1x1xf32> to vector<8x16xf32>
    %421 = arith.mulf %420, %419 : vector<8x16xf32>
    %422 = arith.addf %417, %421 : vector<8x16xf32>
    %423 = vector.extract_strided_slice %211 {offsets = [2, 11], sizes = [1, 1], strides = [1, 1]} : vector<4x12xf32> to vector<1x1xf32>
    %424 = vector.extract_strided_slice %209 {offsets = [24, 0], sizes = [8, 16], strides = [1, 1]} : vector<32x16xf32> to vector<8x16xf32>
    %425 = vector.broadcast %423 : vector<1x1xf32> to vector<8x16xf32>
    %426 = arith.mulf %425, %424 : vector<8x16xf32>
    %427 = arith.addf %422, %426 : vector<8x16xf32>
    %428 = vector.extract_strided_slice %142 {offsets = [16, 0], sizes = [8, 16], strides = [1, 1]} : vector<32x16xf32> to vector<8x16xf32>
    %429 = arith.mulf %428, %427 : vector<8x16xf32>
    %430 = vector.extract_strided_slice %194 {offsets = [16, 0], sizes = [8, 1], strides = [1, 1]} : vector<32x1xf32> to vector<8x1xf32>
    %431 = vector.broadcast %430 : vector<8x1xf32> to vector<8x16xf32>
    %432 = arith.mulf %429, %431 : vector<8x16xf32>
    %433 = arith.addf %359, %432 : vector<8x16xf32>
    %434 = vector.extract_strided_slice %195 {offsets = [16, 0], sizes = [8, 1], strides = [1, 1]} : vector<32x1xf32> to vector<8x1xf32>
    %435 = vector.broadcast %434 : vector<8x1xf32> to vector<8x16xf32>
    %436 = arith.mulf %429, %435 : vector<8x16xf32>
    %437 = arith.addf %363, %436 : vector<8x16xf32>
    %cst_82 = arith.constant 0.000000e+00 : f32
    %438 = vector.broadcast %cst_82 : f32 to vector<8x16xf32>
    %439 = vector.extract_strided_slice %213 {offsets = [0, 3], sizes = [1, 1], strides = [1, 1]} : vector<1x4xf32> to vector<1x1xf32>
    %440 = vector.broadcast %439 : vector<1x1xf32> to vector<8x16xf32>
    %441 = arith.addf %438, %440 : vector<8x16xf32>
    %442 = vector.extract_strided_slice %211 {offsets = [3, 0], sizes = [1, 1], strides = [1, 1]} : vector<4x12xf32> to vector<1x1xf32>
    %443 = vector.extract_strided_slice %208 {offsets = [0, 0], sizes = [8, 16], strides = [1, 1]} : vector<32x16xf32> to vector<8x16xf32>
    %444 = vector.broadcast %442 : vector<1x1xf32> to vector<8x16xf32>
    %445 = arith.mulf %444, %443 : vector<8x16xf32>
    %446 = arith.addf %441, %445 : vector<8x16xf32>
    %447 = vector.extract_strided_slice %211 {offsets = [3, 1], sizes = [1, 1], strides = [1, 1]} : vector<4x12xf32> to vector<1x1xf32>
    %448 = vector.extract_strided_slice %142 {offsets = [0, 0], sizes = [8, 16], strides = [1, 1]} : vector<32x16xf32> to vector<8x16xf32>
    %449 = vector.broadcast %447 : vector<1x1xf32> to vector<8x16xf32>
    %450 = arith.mulf %449, %448 : vector<8x16xf32>
    %451 = arith.addf %446, %450 : vector<8x16xf32>
    %452 = vector.extract_strided_slice %211 {offsets = [3, 2], sizes = [1, 1], strides = [1, 1]} : vector<4x12xf32> to vector<1x1xf32>
    %453 = vector.extract_strided_slice %209 {offsets = [0, 0], sizes = [8, 16], strides = [1, 1]} : vector<32x16xf32> to vector<8x16xf32>
    %454 = vector.broadcast %452 : vector<1x1xf32> to vector<8x16xf32>
    %455 = arith.mulf %454, %453 : vector<8x16xf32>
    %456 = arith.addf %451, %455 : vector<8x16xf32>
    %457 = vector.extract_strided_slice %211 {offsets = [3, 3], sizes = [1, 1], strides = [1, 1]} : vector<4x12xf32> to vector<1x1xf32>
    %458 = vector.extract_strided_slice %208 {offsets = [8, 0], sizes = [8, 16], strides = [1, 1]} : vector<32x16xf32> to vector<8x16xf32>
    %459 = vector.broadcast %457 : vector<1x1xf32> to vector<8x16xf32>
    %460 = arith.mulf %459, %458 : vector<8x16xf32>
    %461 = arith.addf %456, %460 : vector<8x16xf32>
    %462 = vector.extract_strided_slice %211 {offsets = [3, 4], sizes = [1, 1], strides = [1, 1]} : vector<4x12xf32> to vector<1x1xf32>
    %463 = vector.extract_strided_slice %142 {offsets = [8, 0], sizes = [8, 16], strides = [1, 1]} : vector<32x16xf32> to vector<8x16xf32>
    %464 = vector.broadcast %462 : vector<1x1xf32> to vector<8x16xf32>
    %465 = arith.mulf %464, %463 : vector<8x16xf32>
    %466 = arith.addf %461, %465 : vector<8x16xf32>
    %467 = vector.extract_strided_slice %211 {offsets = [3, 5], sizes = [1, 1], strides = [1, 1]} : vector<4x12xf32> to vector<1x1xf32>
    %468 = vector.extract_strided_slice %209 {offsets = [8, 0], sizes = [8, 16], strides = [1, 1]} : vector<32x16xf32> to vector<8x16xf32>
    %469 = vector.broadcast %467 : vector<1x1xf32> to vector<8x16xf32>
    %470 = arith.mulf %469, %468 : vector<8x16xf32>
    %471 = arith.addf %466, %470 : vector<8x16xf32>
    %472 = vector.extract_strided_slice %211 {offsets = [3, 6], sizes = [1, 1], strides = [1, 1]} : vector<4x12xf32> to vector<1x1xf32>
    %473 = vector.extract_strided_slice %208 {offsets = [16, 0], sizes = [8, 16], strides = [1, 1]} : vector<32x16xf32> to vector<8x16xf32>
    %474 = vector.broadcast %472 : vector<1x1xf32> to vector<8x16xf32>
    %475 = arith.mulf %474, %473 : vector<8x16xf32>
    %476 = arith.addf %471, %475 : vector<8x16xf32>
    %477 = vector.extract_strided_slice %211 {offsets = [3, 7], sizes = [1, 1], strides = [1, 1]} : vector<4x12xf32> to vector<1x1xf32>
    %478 = vector.extract_strided_slice %142 {offsets = [16, 0], sizes = [8, 16], strides = [1, 1]} : vector<32x16xf32> to vector<8x16xf32>
    %479 = vector.broadcast %477 : vector<1x1xf32> to vector<8x16xf32>
    %480 = arith.mulf %479, %478 : vector<8x16xf32>
    %481 = arith.addf %476, %480 : vector<8x16xf32>
    %482 = vector.extract_strided_slice %211 {offsets = [3, 8], sizes = [1, 1], strides = [1, 1]} : vector<4x12xf32> to vector<1x1xf32>
    %483 = vector.extract_strided_slice %209 {offsets = [16, 0], sizes = [8, 16], strides = [1, 1]} : vector<32x16xf32> to vector<8x16xf32>
    %484 = vector.broadcast %482 : vector<1x1xf32> to vector<8x16xf32>
    %485 = arith.mulf %484, %483 : vector<8x16xf32>
    %486 = arith.addf %481, %485 : vector<8x16xf32>
    %487 = vector.extract_strided_slice %211 {offsets = [3, 9], sizes = [1, 1], strides = [1, 1]} : vector<4x12xf32> to vector<1x1xf32>
    %488 = vector.extract_strided_slice %208 {offsets = [24, 0], sizes = [8, 16], strides = [1, 1]} : vector<32x16xf32> to vector<8x16xf32>
    %489 = vector.broadcast %487 : vector<1x1xf32> to vector<8x16xf32>
    %490 = arith.mulf %489, %488 : vector<8x16xf32>
    %491 = arith.addf %486, %490 : vector<8x16xf32>
    %492 = vector.extract_strided_slice %211 {offsets = [3, 10], sizes = [1, 1], strides = [1, 1]} : vector<4x12xf32> to vector<1x1xf32>
    %493 = vector.extract_strided_slice %142 {offsets = [24, 0], sizes = [8, 16], strides = [1, 1]} : vector<32x16xf32> to vector<8x16xf32>
    %494 = vector.broadcast %492 : vector<1x1xf32> to vector<8x16xf32>
    %495 = arith.mulf %494, %493 : vector<8x16xf32>
    %496 = arith.addf %491, %495 : vector<8x16xf32>
    %497 = vector.extract_strided_slice %211 {offsets = [3, 11], sizes = [1, 1], strides = [1, 1]} : vector<4x12xf32> to vector<1x1xf32>
    %498 = vector.extract_strided_slice %209 {offsets = [24, 0], sizes = [8, 16], strides = [1, 1]} : vector<32x16xf32> to vector<8x16xf32>
    %499 = vector.broadcast %497 : vector<1x1xf32> to vector<8x16xf32>
    %500 = arith.mulf %499, %498 : vector<8x16xf32>
    %501 = arith.addf %496, %500 : vector<8x16xf32>
    %502 = vector.extract_strided_slice %142 {offsets = [24, 0], sizes = [8, 16], strides = [1, 1]} : vector<32x16xf32> to vector<8x16xf32>
    %503 = arith.mulf %502, %501 : vector<8x16xf32>
    %504 = vector.extract_strided_slice %194 {offsets = [24, 0], sizes = [8, 1], strides = [1, 1]} : vector<32x1xf32> to vector<8x1xf32>
    %505 = vector.broadcast %504 : vector<8x1xf32> to vector<8x16xf32>
    %506 = arith.mulf %503, %505 : vector<8x16xf32>
    %507 = arith.addf %433, %506 : vector<8x16xf32>
    %508 = vector.extract_strided_slice %195 {offsets = [24, 0], sizes = [8, 1], strides = [1, 1]} : vector<32x1xf32> to vector<8x1xf32>
    %509 = vector.broadcast %508 : vector<8x1xf32> to vector<8x16xf32>
    %510 = arith.mulf %503, %509 : vector<8x16xf32>
    %511 = arith.addf %437, %510 : vector<8x16xf32>
    %c0_83 = arith.constant 0 : index
    %c0_84 = arith.constant 0 : index
    %c0_85 = arith.constant 0 : index
    %512 = vector.load %arg11[%c0_83, %c0_84, %c0_85] : memref<1x16x32xf32, #tpu.memory_space<vmem>>, vector<1x16x32xf32>
    %513 = vector.shape_cast %512 : vector<1x16x32xf32> to vector<16x32xf32>
    %c0_86 = arith.constant 0 : index
    %c0_87 = arith.constant 0 : index
    %c0_88 = arith.constant 0 : index
    %514 = vector.load %arg12[%c0_86, %c0_87, %c0_88] : memref<1x1x32xf32, #tpu.memory_space<vmem>>, vector<1x1x32xf32>
    %515 = vector.shape_cast %514 : vector<1x1x32xf32> to vector<1x32xf32>
    %c0_89 = arith.constant 0 : index
    %c0_90 = arith.constant 0 : index
    %c0_91 = arith.constant 0 : index
    %516 = vector.load %arg13[%c0_89, %c0_90, %c0_91] : memref<1x32x16xf32, #tpu.memory_space<vmem>>, vector<1x32x16xf32>
    %517 = vector.shape_cast %516 : vector<1x32x16xf32> to vector<32x16xf32>
    %c0_92 = arith.constant 0 : index
    %c0_93 = arith.constant 0 : index
    %c0_94 = arith.constant 0 : index
    %518 = vector.load %arg14[%c0_92, %c0_93, %c0_94] : memref<1x1x16xf32, #tpu.memory_space<vmem>>, vector<1x1x16xf32>
    %519 = vector.shape_cast %518 : vector<1x1x16xf32> to vector<1x16xf32>
    %cst_95 = arith.constant dense<0.000000e+00> : vector<8x32xf32>
    %520 = tpu.matmul %507, %513, %cst_95 {dimension_numbers = #tpu.dot_dimension_numbers<[1], [0], [0], [1], [0, 0, 1, 1], [], []>} : vector<8x16xf32>, vector<16x32xf32>, vector<8x32xf32> -> vector<8x32xf32>
    %521 = vector.broadcast %515 : vector<1x32xf32> to vector<8x32xf32>
    %522 = arith.addf %520, %521 : vector<8x32xf32>
    %cst_96 = arith.constant dense<0.000000e+00> : vector<8xf32>
    %523 = vector.multi_reduction <add>, %522, %cst_96 [1] : vector<8x32xf32> to vector<8xf32>
    %524 = vector.shape_cast %523 : vector<8xf32> to vector<8x1xf32>
    %cst_97 = arith.constant dense<0.000000e+00> : vector<4x1xf32>
    %525 = tpu.matmul %43, %524, %cst_97 {dimension_numbers = #tpu.dot_dimension_numbers<[1], [0], [0], [1], [0, 0, 1, 1], [], []>} : vector<4x8xf32>, vector<8x1xf32>, vector<4x1xf32> -> vector<4x1xf32>
    %cst_98 = arith.constant 6.400000e+01 : f32
    %526 = vector.broadcast %cst_98 : f32 to vector<4x1xf32>
    %527 = arith.divf %525, %526 : vector<4x1xf32>
    %cst_99 = arith.constant dense<0.000000e+00> : vector<8x1xf32>
    %528 = tpu.matmul %22, %527, %cst_99 {dimension_numbers = #tpu.dot_dimension_numbers<[1], [0], [0], [1], [0, 0, 1, 1], [], []>} : vector<8x4xf32>, vector<4x1xf32>, vector<8x1xf32> -> vector<8x1xf32>
    %529 = vector.broadcast %528 : vector<8x1xf32> to vector<8x32xf32>
    %530 = arith.subf %522, %529 : vector<8x32xf32>
    %531 = arith.mulf %530, %530 : vector<8x32xf32>
    %cst_100 = arith.constant dense<0.000000e+00> : vector<8xf32>
    %532 = vector.multi_reduction <add>, %531, %cst_100 [1] : vector<8x32xf32> to vector<8xf32>
    %533 = vector.shape_cast %532 : vector<8xf32> to vector<8x1xf32>
    %cst_101 = arith.constant dense<0.000000e+00> : vector<4x1xf32>
    %534 = tpu.matmul %43, %533, %cst_101 {dimension_numbers = #tpu.dot_dimension_numbers<[1], [0], [0], [1], [0, 0, 1, 1], [], []>} : vector<4x8xf32>, vector<8x1xf32>, vector<4x1xf32> -> vector<4x1xf32>
    %cst_102 = arith.constant 6.400000e+01 : f32
    %535 = vector.broadcast %cst_102 : f32 to vector<4x1xf32>
    %536 = arith.divf %534, %535 : vector<4x1xf32>
    %cst_103 = arith.constant dense<0.000000e+00> : vector<8x1xf32>
    %537 = tpu.matmul %22, %536, %cst_103 {dimension_numbers = #tpu.dot_dimension_numbers<[1], [0], [0], [1], [0, 0, 1, 1], [], []>} : vector<8x4xf32>, vector<4x1xf32>, vector<8x1xf32> -> vector<8x1xf32>
    %cst_104 = arith.constant 9.99999974E-6 : f32
    %538 = vector.broadcast %cst_104 : f32 to vector<8x1xf32>
    %539 = arith.addf %537, %538 : vector<8x1xf32>
    %540 = math.rsqrt %539 : vector<8x1xf32>
    %541 = vector.broadcast %540 : vector<8x1xf32> to vector<8x32xf32>
    %542 = arith.mulf %530, %541 : vector<8x32xf32>
    %cst_105 = arith.constant 0.000000e+00 : f32
    %543 = vector.broadcast %cst_105 : f32 to vector<8x32xf32>
    %544 = arith.cmpf ogt, %542, %543 : vector<8x32xf32>
    %cst_106 = arith.constant 0.00999999977 : f32
    %545 = vector.broadcast %cst_106 : f32 to vector<8x32xf32>
    %546 = arith.mulf %545, %542 : vector<8x32xf32>
    %547 = arith.select %544, %542, %546 : vector<8x32xi1>, vector<8x32xf32>
    %cst_107 = arith.constant dense<0.000000e+00> : vector<8x16xf32>
    %548 = tpu.matmul %547, %517, %cst_107 {dimension_numbers = #tpu.dot_dimension_numbers<[1], [0], [0], [1], [0, 0, 1, 1], [], []>} : vector<8x32xf32>, vector<32x16xf32>, vector<8x16xf32> -> vector<8x16xf32>
    %549 = vector.broadcast %519 : vector<1x16xf32> to vector<8x16xf32>
    %550 = arith.addf %548, %549 : vector<8x16xf32>
    %cst_108 = arith.constant dense<0.000000e+00> : vector<8xf32>
    %551 = vector.multi_reduction <add>, %550, %cst_108 [1] : vector<8x16xf32> to vector<8xf32>
    %552 = vector.shape_cast %551 : vector<8xf32> to vector<8x1xf32>
    %cst_109 = arith.constant dense<0.000000e+00> : vector<4x1xf32>
    %553 = tpu.matmul %43, %552, %cst_109 {dimension_numbers = #tpu.dot_dimension_numbers<[1], [0], [0], [1], [0, 0, 1, 1], [], []>} : vector<4x8xf32>, vector<8x1xf32>, vector<4x1xf32> -> vector<4x1xf32>
    %cst_110 = arith.constant 3.200000e+01 : f32
    %554 = vector.broadcast %cst_110 : f32 to vector<4x1xf32>
    %555 = arith.divf %553, %554 : vector<4x1xf32>
    %cst_111 = arith.constant dense<0.000000e+00> : vector<8x1xf32>
    %556 = tpu.matmul %22, %555, %cst_111 {dimension_numbers = #tpu.dot_dimension_numbers<[1], [0], [0], [1], [0, 0, 1, 1], [], []>} : vector<8x4xf32>, vector<4x1xf32>, vector<8x1xf32> -> vector<8x1xf32>
    %557 = vector.broadcast %556 : vector<8x1xf32> to vector<8x16xf32>
    %558 = arith.subf %550, %557 : vector<8x16xf32>
    %559 = arith.mulf %558, %558 : vector<8x16xf32>
    %cst_112 = arith.constant dense<0.000000e+00> : vector<8xf32>
    %560 = vector.multi_reduction <add>, %559, %cst_112 [1] : vector<8x16xf32> to vector<8xf32>
    %561 = vector.shape_cast %560 : vector<8xf32> to vector<8x1xf32>
    %cst_113 = arith.constant dense<0.000000e+00> : vector<4x1xf32>
    %562 = tpu.matmul %43, %561, %cst_113 {dimension_numbers = #tpu.dot_dimension_numbers<[1], [0], [0], [1], [0, 0, 1, 1], [], []>} : vector<4x8xf32>, vector<8x1xf32>, vector<4x1xf32> -> vector<4x1xf32>
    %cst_114 = arith.constant 3.200000e+01 : f32
    %563 = vector.broadcast %cst_114 : f32 to vector<4x1xf32>
    %564 = arith.divf %562, %563 : vector<4x1xf32>
    %cst_115 = arith.constant dense<0.000000e+00> : vector<8x1xf32>
    %565 = tpu.matmul %22, %564, %cst_115 {dimension_numbers = #tpu.dot_dimension_numbers<[1], [0], [0], [1], [0, 0, 1, 1], [], []>} : vector<8x4xf32>, vector<4x1xf32>, vector<8x1xf32> -> vector<8x1xf32>
    %cst_116 = arith.constant 9.99999974E-6 : f32
    %566 = vector.broadcast %cst_116 : f32 to vector<8x1xf32>
    %567 = arith.addf %565, %566 : vector<8x1xf32>
    %568 = math.rsqrt %567 : vector<8x1xf32>
    %569 = vector.broadcast %568 : vector<8x1xf32> to vector<8x16xf32>
    %570 = arith.mulf %558, %569 : vector<8x16xf32>
    %cst_117 = arith.constant 0.000000e+00 : f32
    %571 = vector.broadcast %cst_117 : f32 to vector<8x16xf32>
    %572 = arith.cmpf ogt, %570, %571 : vector<8x16xf32>
    %cst_118 = arith.constant 0.00999999977 : f32
    %573 = vector.broadcast %cst_118 : f32 to vector<8x16xf32>
    %574 = arith.mulf %573, %570 : vector<8x16xf32>
    %575 = arith.select %572, %570, %574 : vector<8x16xi1>, vector<8x16xf32>
    %c0_119 = arith.constant 0 : index
    %c0_120 = arith.constant 0 : index
    %c0_121 = arith.constant 0 : index
    %c0_122 = arith.constant 0 : index
    %576 = vector.load %arg19[%c0_119, %c0_120, %c0_121, %c0_122] : memref<1x2x8x16xf32, #tpu.memory_space<vmem>>, vector<1x1x8x16xf32>
    %577 = vector.shape_cast %576 : vector<1x1x8x16xf32> to vector<8x16xf32>
    %578 = vector.shape_cast %575 : vector<8x16xf32> to vector<1x1x8x16xf32>
    tpu.vector_store %arg19[%c0_119, %c0_120, %c0_121, %c0_122], %578 {strides = array<i32>} : memref<1x2x8x16xf32, #tpu.memory_space<vmem>>, vector<1x1x8x16xf32>,
    %c0_123 = arith.constant 0 : index
    %c0_124 = arith.constant 0 : index
    %c0_125 = arith.constant 0 : index
    %579 = vector.load %arg15[%c0_123, %c0_124, %c0_125] : memref<1x16x32xf32, #tpu.memory_space<vmem>>, vector<1x16x32xf32>
    %580 = vector.shape_cast %579 : vector<1x16x32xf32> to vector<16x32xf32>
    %c0_126 = arith.constant 0 : index
    %c0_127 = arith.constant 0 : index
    %c0_128 = arith.constant 0 : index
    %581 = vector.load %arg16[%c0_126, %c0_127, %c0_128] : memref<1x1x32xf32, #tpu.memory_space<vmem>>, vector<1x1x32xf32>
    %582 = vector.shape_cast %581 : vector<1x1x32xf32> to vector<1x32xf32>
    %c0_129 = arith.constant 0 : index
    %c0_130 = arith.constant 0 : index
    %c0_131 = arith.constant 0 : index
    %583 = vector.load %arg17[%c0_129, %c0_130, %c0_131] : memref<1x32x16xf32, #tpu.memory_space<vmem>>, vector<1x32x16xf32>
    %584 = vector.shape_cast %583 : vector<1x32x16xf32> to vector<32x16xf32>
    %c0_132 = arith.constant 0 : index
    %c0_133 = arith.constant 0 : index
    %c0_134 = arith.constant 0 : index
    %585 = vector.load %arg18[%c0_132, %c0_133, %c0_134] : memref<1x1x16xf32, #tpu.memory_space<vmem>>, vector<1x1x16xf32>
    %586 = vector.shape_cast %585 : vector<1x1x16xf32> to vector<1x16xf32>
    %cst_135 = arith.constant dense<0.000000e+00> : vector<8x32xf32>
    %587 = tpu.matmul %511, %580, %cst_135 {dimension_numbers = #tpu.dot_dimension_numbers<[1], [0], [0], [1], [0, 0, 1, 1], [], []>} : vector<8x16xf32>, vector<16x32xf32>, vector<8x32xf32> -> vector<8x32xf32>
    %588 = vector.broadcast %582 : vector<1x32xf32> to vector<8x32xf32>
    %589 = arith.addf %587, %588 : vector<8x32xf32>
    %cst_136 = arith.constant dense<0.000000e+00> : vector<8xf32>
    %590 = vector.multi_reduction <add>, %589, %cst_136 [1] : vector<8x32xf32> to vector<8xf32>
    %591 = vector.shape_cast %590 : vector<8xf32> to vector<8x1xf32>
    %cst_137 = arith.constant dense<0.000000e+00> : vector<4x1xf32>
    %592 = tpu.matmul %43, %591, %cst_137 {dimension_numbers = #tpu.dot_dimension_numbers<[1], [0], [0], [1], [0, 0, 1, 1], [], []>} : vector<4x8xf32>, vector<8x1xf32>, vector<4x1xf32> -> vector<4x1xf32>
    %cst_138 = arith.constant 6.400000e+01 : f32
    %593 = vector.broadcast %cst_138 : f32 to vector<4x1xf32>
    %594 = arith.divf %592, %593 : vector<4x1xf32>
    %cst_139 = arith.constant dense<0.000000e+00> : vector<8x1xf32>
    %595 = tpu.matmul %22, %594, %cst_139 {dimension_numbers = #tpu.dot_dimension_numbers<[1], [0], [0], [1], [0, 0, 1, 1], [], []>} : vector<8x4xf32>, vector<4x1xf32>, vector<8x1xf32> -> vector<8x1xf32>
    %596 = vector.broadcast %595 : vector<8x1xf32> to vector<8x32xf32>
    %597 = arith.subf %589, %596 : vector<8x32xf32>
    %598 = arith.mulf %597, %597 : vector<8x32xf32>
    %cst_140 = arith.constant dense<0.000000e+00> : vector<8xf32>
    %599 = vector.multi_reduction <add>, %598, %cst_140 [1] : vector<8x32xf32> to vector<8xf32>
    %600 = vector.shape_cast %599 : vector<8xf32> to vector<8x1xf32>
    %cst_141 = arith.constant dense<0.000000e+00> : vector<4x1xf32>
    %601 = tpu.matmul %43, %600, %cst_141 {dimension_numbers = #tpu.dot_dimension_numbers<[1], [0], [0], [1], [0, 0, 1, 1], [], []>} : vector<4x8xf32>, vector<8x1xf32>, vector<4x1xf32> -> vector<4x1xf32>
    %cst_142 = arith.constant 6.400000e+01 : f32
    %602 = vector.broadcast %cst_142 : f32 to vector<4x1xf32>
    %603 = arith.divf %601, %602 : vector<4x1xf32>
    %cst_143 = arith.constant dense<0.000000e+00> : vector<8x1xf32>
    %604 = tpu.matmul %22, %603, %cst_143 {dimension_numbers = #tpu.dot_dimension_numbers<[1], [0], [0], [1], [0, 0, 1, 1], [], []>} : vector<8x4xf32>, vector<4x1xf32>, vector<8x1xf32> -> vector<8x1xf32>
    %cst_144 = arith.constant 9.99999974E-6 : f32
    %605 = vector.broadcast %cst_144 : f32 to vector<8x1xf32>
    %606 = arith.addf %604, %605 : vector<8x1xf32>
    %607 = math.rsqrt %606 : vector<8x1xf32>
    %608 = vector.broadcast %607 : vector<8x1xf32> to vector<8x32xf32>
    %609 = arith.mulf %597, %608 : vector<8x32xf32>
    %cst_145 = arith.constant 0.000000e+00 : f32
    %610 = vector.broadcast %cst_145 : f32 to vector<8x32xf32>
    %611 = arith.cmpf ogt, %609, %610 : vector<8x32xf32>
    %cst_146 = arith.constant 0.00999999977 : f32
    %612 = vector.broadcast %cst_146 : f32 to vector<8x32xf32>
    %613 = arith.mulf %612, %609 : vector<8x32xf32>
    %614 = arith.select %611, %609, %613 : vector<8x32xi1>, vector<8x32xf32>
    %cst_147 = arith.constant dense<0.000000e+00> : vector<8x16xf32>
    %615 = tpu.matmul %614, %584, %cst_147 {dimension_numbers = #tpu.dot_dimension_numbers<[1], [0], [0], [1], [0, 0, 1, 1], [], []>} : vector<8x32xf32>, vector<32x16xf32>, vector<8x16xf32> -> vector<8x16xf32>
    %616 = vector.broadcast %586 : vector<1x16xf32> to vector<8x16xf32>
    %617 = arith.addf %615, %616 : vector<8x16xf32>
    %cst_148 = arith.constant dense<0.000000e+00> : vector<8xf32>
    %618 = vector.multi_reduction <add>, %617, %cst_148 [1] : vector<8x16xf32> to vector<8xf32>
    %619 = vector.shape_cast %618 : vector<8xf32> to vector<8x1xf32>
    %cst_149 = arith.constant dense<0.000000e+00> : vector<4x1xf32>
    %620 = tpu.matmul %43, %619, %cst_149 {dimension_numbers = #tpu.dot_dimension_numbers<[1], [0], [0], [1], [0, 0, 1, 1], [], []>} : vector<4x8xf32>, vector<8x1xf32>, vector<4x1xf32> -> vector<4x1xf32>
    %cst_150 = arith.constant 3.200000e+01 : f32
    %621 = vector.broadcast %cst_150 : f32 to vector<4x1xf32>
    %622 = arith.divf %620, %621 : vector<4x1xf32>
    %cst_151 = arith.constant dense<0.000000e+00> : vector<8x1xf32>
    %623 = tpu.matmul %22, %622, %cst_151 {dimension_numbers = #tpu.dot_dimension_numbers<[1], [0], [0], [1], [0, 0, 1, 1], [], []>} : vector<8x4xf32>, vector<4x1xf32>, vector<8x1xf32> -> vector<8x1xf32>
    %624 = vector.broadcast %623 : vector<8x1xf32> to vector<8x16xf32>
    %625 = arith.subf %617, %624 : vector<8x16xf32>
    %626 = arith.mulf %625, %625 : vector<8x16xf32>
    %cst_152 = arith.constant dense<0.000000e+00> : vector<8xf32>
    %627 = vector.multi_reduction <add>, %626, %cst_152 [1] : vector<8x16xf32> to vector<8xf32>
    %628 = vector.shape_cast %627 : vector<8xf32> to vector<8x1xf32>
    %cst_153 = arith.constant dense<0.000000e+00> : vector<4x1xf32>
    %629 = tpu.matmul %43, %628, %cst_153 {dimension_numbers = #tpu.dot_dimension_numbers<[1], [0], [0], [1], [0, 0, 1, 1], [], []>} : vector<4x8xf32>, vector<8x1xf32>, vector<4x1xf32> -> vector<4x1xf32>
    %cst_154 = arith.constant 3.200000e+01 : f32
    %630 = vector.broadcast %cst_154 : f32 to vector<4x1xf32>
    %631 = arith.divf %629, %630 : vector<4x1xf32>
    %cst_155 = arith.constant dense<0.000000e+00> : vector<8x1xf32>
    %632 = tpu.matmul %22, %631, %cst_155 {dimension_numbers = #tpu.dot_dimension_numbers<[1], [0], [0], [1], [0, 0, 1, 1], [], []>} : vector<8x4xf32>, vector<4x1xf32>, vector<8x1xf32> -> vector<8x1xf32>
    %cst_156 = arith.constant 9.99999974E-6 : f32
    %633 = vector.broadcast %cst_156 : f32 to vector<8x1xf32>
    %634 = arith.addf %632, %633 : vector<8x1xf32>
    %635 = math.rsqrt %634 : vector<8x1xf32>
    %636 = vector.broadcast %635 : vector<8x1xf32> to vector<8x16xf32>
    %637 = arith.mulf %625, %636 : vector<8x16xf32>
    %cst_157 = arith.constant 0.000000e+00 : f32
    %638 = vector.broadcast %cst_157 : f32 to vector<8x16xf32>
    %639 = arith.cmpf ogt, %637, %638 : vector<8x16xf32>
    %cst_158 = arith.constant 0.00999999977 : f32
    %640 = vector.broadcast %cst_158 : f32 to vector<8x16xf32>
    %641 = arith.mulf %640, %637 : vector<8x16xf32>
    %642 = arith.select %639, %637, %641 : vector<8x16xi1>, vector<8x16xf32>
    %c0_159 = arith.constant 0 : index
    %c1 = arith.constant 1 : index
    %c0_160 = arith.constant 0 : index
    %c0_161 = arith.constant 0 : index
    %643 = vector.load %arg19[%c0_159, %c1, %c0_160, %c0_161] : memref<1x2x8x16xf32, #tpu.memory_space<vmem>>, vector<1x1x8x16xf32>
    %644 = vector.shape_cast %643 : vector<1x1x8x16xf32> to vector<8x16xf32>
    %645 = vector.shape_cast %642 : vector<8x16xf32> to vector<1x1x8x16xf32>
    tpu.vector_store %arg19[%c0_159, %c1, %c0_160, %c0_161], %645 {strides = array<i32>} : memref<1x2x8x16xf32, #tpu.memory_space<vmem>>, vector<1x1x8x16xf32>,
    return
  }
  func.func @transform_0(%arg0: i32) -> (i32, i32, i32) {
    %c0_i32 = arith.constant 0 : i32
    %c0_i32_0 = arith.constant 0 : i32
    %c0_i32_1 = arith.constant 0 : i32
    return %arg0, %c0_i32, %c0_i32_0 : i32, i32, i32
  }
  func.func @transform_1(%arg0: i32) -> (i32, i32, i32) {
    %c0_i32 = arith.constant 0 : i32
    %c0_i32_0 = arith.constant 0 : i32
    %c0_i32_1 = arith.constant 0 : i32
    return %arg0, %c0_i32, %c0_i32_0 : i32, i32, i32
  }
  func.func @transform_2(%arg0: i32) -> (i32, i32, i32) {
    %c0_i32 = arith.constant 0 : i32
    %c0_i32_0 = arith.constant 0 : i32
    %c0_i32_1 = arith.constant 0 : i32
    return %arg0, %c0_i32, %c0_i32_0 : i32, i32, i32
  }
  func.func @transform_3(%arg0: i32) -> (i32, i32, i32) {
    %c0_i32 = arith.constant 0 : i32
    %c0_i32_0 = arith.constant 0 : i32
    %c0_i32_1 = arith.constant 0 : i32
    return %arg0, %c0_i32, %c0_i32_0 : i32, i32, i32
  }
  func.func @transform_4(%arg0: i32) -> (i32, i32, i32) {
    %c0_i32 = arith.constant 0 : i32
    %c0_i32_0 = arith.constant 0 : i32
    %c0_i32_1 = arith.constant 0 : i32
    return %arg0, %c0_i32, %c0_i32_0 : i32, i32, i32
  }
  func.func @transform_5(%arg0: i32) -> (i32, i32, i32) {
    %c0_i32 = arith.constant 0 : i32
    %c0_i32_0 = arith.constant 0 : i32
    %c0_i32_1 = arith.constant 0 : i32
    return %arg0, %c0_i32, %c0_i32_0 : i32, i32, i32
  }
  func.func @transform_6(%arg0: i32) -> (i32, i32, i32) {
    %c0_i32 = arith.constant 0 : i32
    %c0_i32_0 = arith.constant 0 : i32
    %c0_i32_1 = arith.constant 0 : i32
    return %arg0, %c0_i32, %c0_i32_0 : i32, i32, i32
  }
  func.func @transform_7(%arg0: i32) -> (i32, i32, i32) {
    %c0_i32 = arith.constant 0 : i32
    %c0_i32_0 = arith.constant 0 : i32
    %c0_i32_1 = arith.constant 0 : i32
    return %arg0, %c0_i32, %c0_i32_0 : i32, i32, i32
  }
  func.func @transform_8(%arg0: i32) -> (i32, i32, i32) {
    %c0_i32 = arith.constant 0 : i32
    %c0_i32_0 = arith.constant 0 : i32
    %c0_i32_1 = arith.constant 0 : i32
    return %arg0, %c0_i32, %c0_i32_0 : i32, i32, i32
  }
  func.func @transform_9(%arg0: i32) -> (i32, i32, i32) {
    %c0_i32 = arith.constant 0 : i32
    %c0_i32_0 = arith.constant 0 : i32
    %c0_i32_1 = arith.constant 0 : i32
    return %arg0, %c0_i32, %c0_i32_0 : i32, i32, i32
  }
  func.func @transform_10(%arg0: i32) -> (i32, i32, i32) {
    %c0_i32 = arith.constant 0 : i32
    %c0_i32_0 = arith.constant 0 : i32
    %c0_i32_1 = arith.constant 0 : i32
    return %arg0, %c0_i32, %c0_i32_0 : i32, i32, i32
  }
  func.func @transform_11(%arg0: i32) -> (i32, i32, i32) {
    %c0_i32 = arith.constant 0 : i32
    %c0_i32_0 = arith.constant 0 : i32
    %c0_i32_1 = arith.constant 0 : i32
    return %arg0, %c0_i32, %c0_i32_0 : i32, i32, i32
  }
  func.func @transform_12(%arg0: i32) -> (i32, i32, i32) {
    %c0_i32 = arith.constant 0 : i32
    %c0_i32_0 = arith.constant 0 : i32
    %c0_i32_1 = arith.constant 0 : i32
    return %arg0, %c0_i32, %c0_i32_0 : i32, i32, i32
  }
  func.func @transform_13(%arg0: i32) -> (i32, i32, i32) {
    %c0_i32 = arith.constant 0 : i32
    %c0_i32_0 = arith.constant 0 : i32
    %c0_i32_1 = arith.constant 0 : i32
    return %arg0, %c0_i32, %c0_i32_0 : i32, i32, i32
  }
  func.func @transform_14(%arg0: i32) -> (i32, i32, i32) {
    %c0_i32 = arith.constant 0 : i32
    %c0_i32_0 = arith.constant 0 : i32
    %c0_i32_1 = arith.constant 0 : i32
    return %arg0, %c0_i32, %c0_i32_0 : i32, i32, i32
  }
  func.func @transform_15(%arg0: i32) -> (i32, i32, i32) {
    %c0_i32 = arith.constant 0 : i32
    %c0_i32_0 = arith.constant 0 : i32
    %c0_i32_1 = arith.constant 0 : i32
    return %arg0, %c0_i32, %c0_i32_0 : i32, i32, i32
  }
  func.func @transform_16(%arg0: i32) -> (i32, i32, i32) {
    %c0_i32 = arith.constant 0 : i32
    %c0_i32_0 = arith.constant 0 : i32
    %c0_i32_1 = arith.constant 0 : i32
    return %arg0, %c0_i32, %c0_i32_0 : i32, i32, i32
  }
  func.func @transform_17(%arg0: i32) -> (i32, i32, i32) {
    %c0_i32 = arith.constant 0 : i32
    %c0_i32_0 = arith.constant 0 : i32
    %c0_i32_1 = arith.constant 0 : i32
    return %arg0, %c0_i32, %c0_i32_0 : i32, i32, i32
  }
  func.func @transform_18(%arg0: i32) -> (i32, i32, i32, i32) {
    %c0_i32 = arith.constant 0 : i32
    %c0_i32_0 = arith.constant 0 : i32
    %c0_i32_1 = arith.constant 0 : i32
    %c0_i32_2 = arith.constant 0 : i32
    return %arg0, %c0_i32, %c0_i32_0, %c0_i32_1 : i32, i32, i32, i32
  }
}

module attributes {stable_mosaic.version = 11 : i64} {
  func.func @_leaf_forecast_kernel(%arg0: i32, %arg1: memref<1x8x18xf32, #tpu.memory_space<vmem>>, %arg2: memref<1x4x3xf32, #tpu.memory_space<vmem>>, %arg3: memref<1x4x1xf32, #tpu.memory_space<vmem>>, %arg4: memref<1x4x16x32xf32, #tpu.memory_space<vmem>>, %arg5: memref<1x4x1x32xf32, #tpu.memory_space<vmem>>, %arg6: memref<1x4x32x16xf32, #tpu.memory_space<vmem>>, %arg7: memref<1x4x1x16xf32, #tpu.memory_space<vmem>>, %arg8: memref<1x4x8x16xf32, #tpu.memory_space<vmem>>) attributes {dimension_semantics = [#tpu.dimension_semantics<parallel>], iteration_bounds = array<i64: 2>, scalar_prefetch = 0 : i64, scratch_operands = 0 : i64, tpu.core_type = #tpu.core_type<tc>, window_params = [{transform_indices = @transform_0, window_bounds = array<i64: 1, 8, 18>}, {transform_indices = @transform_1, window_bounds = array<i64: 1, 4, 3>}, {transform_indices = @transform_2, window_bounds = array<i64: 1, 4, 1>}, {transform_indices = @transform_3, window_bounds = array<i64: 1, 4, 16, 32>}, {transform_indices = @transform_4, window_bounds = array<i64: 1, 4, 1, 32>}, {transform_indices = @transform_5, window_bounds = array<i64: 1, 4, 32, 16>}, {transform_indices = @transform_6, window_bounds = array<i64: 1, 4, 1, 16>}, {transform_indices = @transform_7, window_bounds = array<i64: 1, 4, 8, 16>}]} {
    %c0 = arith.constant 0 : index
    %c0_0 = arith.constant 0 : index
    %c0_1 = arith.constant 0 : index
    %0 = vector.load %arg1[%c0, %c0_0, %c0_1] : memref<1x8x18xf32, #tpu.memory_space<vmem>>, vector<1x8x18xf32>
    %1 = vector.shape_cast %0 : vector<1x8x18xf32> to vector<8x18xf32>
    %c0_2 = arith.constant 0 : index
    %c0_3 = arith.constant 0 : index
    %c0_4 = arith.constant 0 : index
    %2 = vector.load %arg2[%c0_2, %c0_3, %c0_4] : memref<1x4x3xf32, #tpu.memory_space<vmem>>, vector<1x4x3xf32>
    %3 = vector.shape_cast %2 : vector<1x4x3xf32> to vector<4x3xf32>
    %c0_5 = arith.constant 0 : index
    %c0_6 = arith.constant 0 : index
    %c0_7 = arith.constant 0 : index
    %4 = vector.load %arg3[%c0_5, %c0_6, %c0_7] : memref<1x4x1xf32, #tpu.memory_space<vmem>>, vector<1x4x1xf32>
    %5 = vector.shape_cast %4 : vector<1x4x1xf32> to vector<4x1xf32>
    %6 = vector.extract_strided_slice %5 {offsets = [0, 0], sizes = [1, 1], strides = [1, 1]} : vector<4x1xf32> to vector<1x1xf32>
    %7 = vector.extract_strided_slice %3 {offsets = [0, 0], sizes = [1, 1], strides = [1, 1]} : vector<4x3xf32> to vector<1x1xf32>
    %8 = vector.extract_strided_slice %1 {offsets = [0, 0], sizes = [8, 16], strides = [1, 1]} : vector<8x18xf32> to vector<8x16xf32>
    %9 = vector.broadcast %7 : vector<1x1xf32> to vector<8x16xf32>
    %10 = arith.mulf %9, %8 : vector<8x16xf32>
    %11 = vector.broadcast %6 : vector<1x1xf32> to vector<8x16xf32>
    %12 = arith.addf %11, %10 : vector<8x16xf32>
    %13 = vector.extract_strided_slice %3 {offsets = [0, 1], sizes = [1, 1], strides = [1, 1]} : vector<4x3xf32> to vector<1x1xf32>
    %14 = vector.extract_strided_slice %1 {offsets = [0, 1], sizes = [8, 16], strides = [1, 1]} : vector<8x18xf32> to vector<8x16xf32>
    %15 = vector.broadcast %13 : vector<1x1xf32> to vector<8x16xf32>
    %16 = arith.mulf %15, %14 : vector<8x16xf32>
    %17 = arith.addf %12, %16 : vector<8x16xf32>
    %18 = vector.extract_strided_slice %3 {offsets = [0, 2], sizes = [1, 1], strides = [1, 1]} : vector<4x3xf32> to vector<1x1xf32>
    %19 = vector.extract_strided_slice %1 {offsets = [0, 2], sizes = [8, 16], strides = [1, 1]} : vector<8x18xf32> to vector<8x16xf32>
    %20 = vector.broadcast %18 : vector<1x1xf32> to vector<8x16xf32>
    %21 = arith.mulf %20, %19 : vector<8x16xf32>
    %22 = arith.addf %17, %21 : vector<8x16xf32>
    %c0_8 = arith.constant 0 : index
    %c0_9 = arith.constant 0 : index
    %c0_10 = arith.constant 0 : index
    %c0_11 = arith.constant 0 : index
    %23 = vector.load %arg4[%c0_8, %c0_9, %c0_10, %c0_11] : memref<1x4x16x32xf32, #tpu.memory_space<vmem>>, vector<1x1x16x32xf32>
    %24 = vector.shape_cast %23 : vector<1x1x16x32xf32> to vector<16x32xf32>
    %cst = arith.constant dense<0.000000e+00> : vector<8x32xf32>
    %25 = tpu.matmul %22, %24, %cst {dimension_numbers = #tpu.dot_dimension_numbers<[1], [0], [0], [1], [0, 0, 1, 1], [], []>} : vector<8x16xf32>, vector<16x32xf32>, vector<8x32xf32> -> vector<8x32xf32>
    %c0_12 = arith.constant 0 : index
    %c0_13 = arith.constant 0 : index
    %c0_14 = arith.constant 0 : index
    %c0_15 = arith.constant 0 : index
    %26 = vector.load %arg5[%c0_12, %c0_13, %c0_14, %c0_15] : memref<1x4x1x32xf32, #tpu.memory_space<vmem>>, vector<1x1x1x32xf32>
    %27 = vector.shape_cast %26 : vector<1x1x1x32xf32> to vector<1x32xf32>
    %28 = vector.broadcast %27 : vector<1x32xf32> to vector<8x32xf32>
    %29 = arith.addf %25, %28 : vector<8x32xf32>
    %cst_16 = arith.constant 0.000000e+00 : f32
    %30 = vector.broadcast %cst_16 : f32 to vector<8x32xf32>
    %31 = arith.cmpf ogt, %29, %30 : vector<8x32xf32>
    %cst_17 = arith.constant 0.00999999977 : f32
    %32 = vector.broadcast %cst_17 : f32 to vector<8x32xf32>
    %33 = arith.mulf %32, %29 : vector<8x32xf32>
    %34 = arith.select %31, %29, %33 : vector<8x32xi1>, vector<8x32xf32>
    %c0_18 = arith.constant 0 : index
    %c0_19 = arith.constant 0 : index
    %c0_20 = arith.constant 0 : index
    %c0_21 = arith.constant 0 : index
    %35 = vector.load %arg6[%c0_18, %c0_19, %c0_20, %c0_21] : memref<1x4x32x16xf32, #tpu.memory_space<vmem>>, vector<1x1x32x16xf32>
    %36 = vector.shape_cast %35 : vector<1x1x32x16xf32> to vector<32x16xf32>
    %cst_22 = arith.constant dense<0.000000e+00> : vector<8x16xf32>
    %37 = tpu.matmul %34, %36, %cst_22 {dimension_numbers = #tpu.dot_dimension_numbers<[1], [0], [0], [1], [0, 0, 1, 1], [], []>} : vector<8x32xf32>, vector<32x16xf32>, vector<8x16xf32> -> vector<8x16xf32>
    %c0_23 = arith.constant 0 : index
    %c0_24 = arith.constant 0 : index
    %c0_25 = arith.constant 0 : index
    %c0_26 = arith.constant 0 : index
    %38 = vector.load %arg7[%c0_23, %c0_24, %c0_25, %c0_26] : memref<1x4x1x16xf32, #tpu.memory_space<vmem>>, vector<1x1x1x16xf32>
    %39 = vector.shape_cast %38 : vector<1x1x1x16xf32> to vector<1x16xf32>
    %40 = vector.broadcast %39 : vector<1x16xf32> to vector<8x16xf32>
    %41 = arith.addf %37, %40 : vector<8x16xf32>
    %c0_27 = arith.constant 0 : index
    %c0_28 = arith.constant 0 : index
    %c0_29 = arith.constant 0 : index
    %c0_30 = arith.constant 0 : index
    %42 = vector.load %arg8[%c0_27, %c0_28, %c0_29, %c0_30] : memref<1x4x8x16xf32, #tpu.memory_space<vmem>>, vector<1x1x8x16xf32>
    %43 = vector.shape_cast %42 : vector<1x1x8x16xf32> to vector<8x16xf32>
    %44 = vector.shape_cast %41 : vector<8x16xf32> to vector<1x1x8x16xf32>
    tpu.vector_store %arg8[%c0_27, %c0_28, %c0_29, %c0_30], %44 {strides = array<i32>} : memref<1x4x8x16xf32, #tpu.memory_space<vmem>>, vector<1x1x8x16xf32>,
    %45 = vector.extract_strided_slice %5 {offsets = [1, 0], sizes = [1, 1], strides = [1, 1]} : vector<4x1xf32> to vector<1x1xf32>
    %46 = vector.extract_strided_slice %3 {offsets = [1, 0], sizes = [1, 1], strides = [1, 1]} : vector<4x3xf32> to vector<1x1xf32>
    %47 = vector.extract_strided_slice %1 {offsets = [0, 0], sizes = [8, 16], strides = [1, 1]} : vector<8x18xf32> to vector<8x16xf32>
    %48 = vector.broadcast %46 : vector<1x1xf32> to vector<8x16xf32>
    %49 = arith.mulf %48, %47 : vector<8x16xf32>
    %50 = vector.broadcast %45 : vector<1x1xf32> to vector<8x16xf32>
    %51 = arith.addf %50, %49 : vector<8x16xf32>
    %52 = vector.extract_strided_slice %3 {offsets = [1, 1], sizes = [1, 1], strides = [1, 1]} : vector<4x3xf32> to vector<1x1xf32>
    %53 = vector.extract_strided_slice %1 {offsets = [0, 1], sizes = [8, 16], strides = [1, 1]} : vector<8x18xf32> to vector<8x16xf32>
    %54 = vector.broadcast %52 : vector<1x1xf32> to vector<8x16xf32>
    %55 = arith.mulf %54, %53 : vector<8x16xf32>
    %56 = arith.addf %51, %55 : vector<8x16xf32>
    %57 = vector.extract_strided_slice %3 {offsets = [1, 2], sizes = [1, 1], strides = [1, 1]} : vector<4x3xf32> to vector<1x1xf32>
    %58 = vector.extract_strided_slice %1 {offsets = [0, 2], sizes = [8, 16], strides = [1, 1]} : vector<8x18xf32> to vector<8x16xf32>
    %59 = vector.broadcast %57 : vector<1x1xf32> to vector<8x16xf32>
    %60 = arith.mulf %59, %58 : vector<8x16xf32>
    %61 = arith.addf %56, %60 : vector<8x16xf32>
    %c0_31 = arith.constant 0 : index
    %c1 = arith.constant 1 : index
    %c0_32 = arith.constant 0 : index
    %c0_33 = arith.constant 0 : index
    %62 = vector.load %arg4[%c0_31, %c1, %c0_32, %c0_33] : memref<1x4x16x32xf32, #tpu.memory_space<vmem>>, vector<1x1x16x32xf32>
    %63 = vector.shape_cast %62 : vector<1x1x16x32xf32> to vector<16x32xf32>
    %cst_34 = arith.constant dense<0.000000e+00> : vector<8x32xf32>
    %64 = tpu.matmul %61, %63, %cst_34 {dimension_numbers = #tpu.dot_dimension_numbers<[1], [0], [0], [1], [0, 0, 1, 1], [], []>} : vector<8x16xf32>, vector<16x32xf32>, vector<8x32xf32> -> vector<8x32xf32>
    %c0_35 = arith.constant 0 : index
    %c1_36 = arith.constant 1 : index
    %c0_37 = arith.constant 0 : index
    %c0_38 = arith.constant 0 : index
    %65 = vector.load %arg5[%c0_35, %c1_36, %c0_37, %c0_38] : memref<1x4x1x32xf32, #tpu.memory_space<vmem>>, vector<1x1x1x32xf32>
    %66 = vector.shape_cast %65 : vector<1x1x1x32xf32> to vector<1x32xf32>
    %67 = vector.broadcast %66 : vector<1x32xf32> to vector<8x32xf32>
    %68 = arith.addf %64, %67 : vector<8x32xf32>
    %cst_39 = arith.constant 0.000000e+00 : f32
    %69 = vector.broadcast %cst_39 : f32 to vector<8x32xf32>
    %70 = arith.cmpf ogt, %68, %69 : vector<8x32xf32>
    %cst_40 = arith.constant 0.00999999977 : f32
    %71 = vector.broadcast %cst_40 : f32 to vector<8x32xf32>
    %72 = arith.mulf %71, %68 : vector<8x32xf32>
    %73 = arith.select %70, %68, %72 : vector<8x32xi1>, vector<8x32xf32>
    %c0_41 = arith.constant 0 : index
    %c1_42 = arith.constant 1 : index
    %c0_43 = arith.constant 0 : index
    %c0_44 = arith.constant 0 : index
    %74 = vector.load %arg6[%c0_41, %c1_42, %c0_43, %c0_44] : memref<1x4x32x16xf32, #tpu.memory_space<vmem>>, vector<1x1x32x16xf32>
    %75 = vector.shape_cast %74 : vector<1x1x32x16xf32> to vector<32x16xf32>
    %cst_45 = arith.constant dense<0.000000e+00> : vector<8x16xf32>
    %76 = tpu.matmul %73, %75, %cst_45 {dimension_numbers = #tpu.dot_dimension_numbers<[1], [0], [0], [1], [0, 0, 1, 1], [], []>} : vector<8x32xf32>, vector<32x16xf32>, vector<8x16xf32> -> vector<8x16xf32>
    %c0_46 = arith.constant 0 : index
    %c1_47 = arith.constant 1 : index
    %c0_48 = arith.constant 0 : index
    %c0_49 = arith.constant 0 : index
    %77 = vector.load %arg7[%c0_46, %c1_47, %c0_48, %c0_49] : memref<1x4x1x16xf32, #tpu.memory_space<vmem>>, vector<1x1x1x16xf32>
    %78 = vector.shape_cast %77 : vector<1x1x1x16xf32> to vector<1x16xf32>
    %79 = vector.broadcast %78 : vector<1x16xf32> to vector<8x16xf32>
    %80 = arith.addf %76, %79 : vector<8x16xf32>
    %c0_50 = arith.constant 0 : index
    %c1_51 = arith.constant 1 : index
    %c0_52 = arith.constant 0 : index
    %c0_53 = arith.constant 0 : index
    %81 = vector.load %arg8[%c0_50, %c1_51, %c0_52, %c0_53] : memref<1x4x8x16xf32, #tpu.memory_space<vmem>>, vector<1x1x8x16xf32>
    %82 = vector.shape_cast %81 : vector<1x1x8x16xf32> to vector<8x16xf32>
    %83 = vector.shape_cast %80 : vector<8x16xf32> to vector<1x1x8x16xf32>
    tpu.vector_store %arg8[%c0_50, %c1_51, %c0_52, %c0_53], %83 {strides = array<i32>} : memref<1x4x8x16xf32, #tpu.memory_space<vmem>>, vector<1x1x8x16xf32>,
    %84 = vector.extract_strided_slice %5 {offsets = [2, 0], sizes = [1, 1], strides = [1, 1]} : vector<4x1xf32> to vector<1x1xf32>
    %85 = vector.extract_strided_slice %3 {offsets = [2, 0], sizes = [1, 1], strides = [1, 1]} : vector<4x3xf32> to vector<1x1xf32>
    %86 = vector.extract_strided_slice %1 {offsets = [0, 0], sizes = [8, 16], strides = [1, 1]} : vector<8x18xf32> to vector<8x16xf32>
    %87 = vector.broadcast %85 : vector<1x1xf32> to vector<8x16xf32>
    %88 = arith.mulf %87, %86 : vector<8x16xf32>
    %89 = vector.broadcast %84 : vector<1x1xf32> to vector<8x16xf32>
    %90 = arith.addf %89, %88 : vector<8x16xf32>
    %91 = vector.extract_strided_slice %3 {offsets = [2, 1], sizes = [1, 1], strides = [1, 1]} : vector<4x3xf32> to vector<1x1xf32>
    %92 = vector.extract_strided_slice %1 {offsets = [0, 1], sizes = [8, 16], strides = [1, 1]} : vector<8x18xf32> to vector<8x16xf32>
    %93 = vector.broadcast %91 : vector<1x1xf32> to vector<8x16xf32>
    %94 = arith.mulf %93, %92 : vector<8x16xf32>
    %95 = arith.addf %90, %94 : vector<8x16xf32>
    %96 = vector.extract_strided_slice %3 {offsets = [2, 2], sizes = [1, 1], strides = [1, 1]} : vector<4x3xf32> to vector<1x1xf32>
    %97 = vector.extract_strided_slice %1 {offsets = [0, 2], sizes = [8, 16], strides = [1, 1]} : vector<8x18xf32> to vector<8x16xf32>
    %98 = vector.broadcast %96 : vector<1x1xf32> to vector<8x16xf32>
    %99 = arith.mulf %98, %97 : vector<8x16xf32>
    %100 = arith.addf %95, %99 : vector<8x16xf32>
    %c0_54 = arith.constant 0 : index
    %c2 = arith.constant 2 : index
    %c0_55 = arith.constant 0 : index
    %c0_56 = arith.constant 0 : index
    %101 = vector.load %arg4[%c0_54, %c2, %c0_55, %c0_56] : memref<1x4x16x32xf32, #tpu.memory_space<vmem>>, vector<1x1x16x32xf32>
    %102 = vector.shape_cast %101 : vector<1x1x16x32xf32> to vector<16x32xf32>
    %cst_57 = arith.constant dense<0.000000e+00> : vector<8x32xf32>
    %103 = tpu.matmul %100, %102, %cst_57 {dimension_numbers = #tpu.dot_dimension_numbers<[1], [0], [0], [1], [0, 0, 1, 1], [], []>} : vector<8x16xf32>, vector<16x32xf32>, vector<8x32xf32> -> vector<8x32xf32>
    %c0_58 = arith.constant 0 : index
    %c2_59 = arith.constant 2 : index
    %c0_60 = arith.constant 0 : index
    %c0_61 = arith.constant 0 : index
    %104 = vector.load %arg5[%c0_58, %c2_59, %c0_60, %c0_61] : memref<1x4x1x32xf32, #tpu.memory_space<vmem>>, vector<1x1x1x32xf32>
    %105 = vector.shape_cast %104 : vector<1x1x1x32xf32> to vector<1x32xf32>
    %106 = vector.broadcast %105 : vector<1x32xf32> to vector<8x32xf32>
    %107 = arith.addf %103, %106 : vector<8x32xf32>
    %cst_62 = arith.constant 0.000000e+00 : f32
    %108 = vector.broadcast %cst_62 : f32 to vector<8x32xf32>
    %109 = arith.cmpf ogt, %107, %108 : vector<8x32xf32>
    %cst_63 = arith.constant 0.00999999977 : f32
    %110 = vector.broadcast %cst_63 : f32 to vector<8x32xf32>
    %111 = arith.mulf %110, %107 : vector<8x32xf32>
    %112 = arith.select %109, %107, %111 : vector<8x32xi1>, vector<8x32xf32>
    %c0_64 = arith.constant 0 : index
    %c2_65 = arith.constant 2 : index
    %c0_66 = arith.constant 0 : index
    %c0_67 = arith.constant 0 : index
    %113 = vector.load %arg6[%c0_64, %c2_65, %c0_66, %c0_67] : memref<1x4x32x16xf32, #tpu.memory_space<vmem>>, vector<1x1x32x16xf32>
    %114 = vector.shape_cast %113 : vector<1x1x32x16xf32> to vector<32x16xf32>
    %cst_68 = arith.constant dense<0.000000e+00> : vector<8x16xf32>
    %115 = tpu.matmul %112, %114, %cst_68 {dimension_numbers = #tpu.dot_dimension_numbers<[1], [0], [0], [1], [0, 0, 1, 1], [], []>} : vector<8x32xf32>, vector<32x16xf32>, vector<8x16xf32> -> vector<8x16xf32>
    %c0_69 = arith.constant 0 : index
    %c2_70 = arith.constant 2 : index
    %c0_71 = arith.constant 0 : index
    %c0_72 = arith.constant 0 : index
    %116 = vector.load %arg7[%c0_69, %c2_70, %c0_71, %c0_72] : memref<1x4x1x16xf32, #tpu.memory_space<vmem>>, vector<1x1x1x16xf32>
    %117 = vector.shape_cast %116 : vector<1x1x1x16xf32> to vector<1x16xf32>
    %118 = vector.broadcast %117 : vector<1x16xf32> to vector<8x16xf32>
    %119 = arith.addf %115, %118 : vector<8x16xf32>
    %c0_73 = arith.constant 0 : index
    %c2_74 = arith.constant 2 : index
    %c0_75 = arith.constant 0 : index
    %c0_76 = arith.constant 0 : index
    %120 = vector.load %arg8[%c0_73, %c2_74, %c0_75, %c0_76] : memref<1x4x8x16xf32, #tpu.memory_space<vmem>>, vector<1x1x8x16xf32>
    %121 = vector.shape_cast %120 : vector<1x1x8x16xf32> to vector<8x16xf32>
    %122 = vector.shape_cast %119 : vector<8x16xf32> to vector<1x1x8x16xf32>
    tpu.vector_store %arg8[%c0_73, %c2_74, %c0_75, %c0_76], %122 {strides = array<i32>} : memref<1x4x8x16xf32, #tpu.memory_space<vmem>>, vector<1x1x8x16xf32>,
    %123 = vector.extract_strided_slice %5 {offsets = [3, 0], sizes = [1, 1], strides = [1, 1]} : vector<4x1xf32> to vector<1x1xf32>
    %124 = vector.extract_strided_slice %3 {offsets = [3, 0], sizes = [1, 1], strides = [1, 1]} : vector<4x3xf32> to vector<1x1xf32>
    %125 = vector.extract_strided_slice %1 {offsets = [0, 0], sizes = [8, 16], strides = [1, 1]} : vector<8x18xf32> to vector<8x16xf32>
    %126 = vector.broadcast %124 : vector<1x1xf32> to vector<8x16xf32>
    %127 = arith.mulf %126, %125 : vector<8x16xf32>
    %128 = vector.broadcast %123 : vector<1x1xf32> to vector<8x16xf32>
    %129 = arith.addf %128, %127 : vector<8x16xf32>
    %130 = vector.extract_strided_slice %3 {offsets = [3, 1], sizes = [1, 1], strides = [1, 1]} : vector<4x3xf32> to vector<1x1xf32>
    %131 = vector.extract_strided_slice %1 {offsets = [0, 1], sizes = [8, 16], strides = [1, 1]} : vector<8x18xf32> to vector<8x16xf32>
    %132 = vector.broadcast %130 : vector<1x1xf32> to vector<8x16xf32>
    %133 = arith.mulf %132, %131 : vector<8x16xf32>
    %134 = arith.addf %129, %133 : vector<8x16xf32>
    %135 = vector.extract_strided_slice %3 {offsets = [3, 2], sizes = [1, 1], strides = [1, 1]} : vector<4x3xf32> to vector<1x1xf32>
    %136 = vector.extract_strided_slice %1 {offsets = [0, 2], sizes = [8, 16], strides = [1, 1]} : vector<8x18xf32> to vector<8x16xf32>
    %137 = vector.broadcast %135 : vector<1x1xf32> to vector<8x16xf32>
    %138 = arith.mulf %137, %136 : vector<8x16xf32>
    %139 = arith.addf %134, %138 : vector<8x16xf32>
    %c0_77 = arith.constant 0 : index
    %c3 = arith.constant 3 : index
    %c0_78 = arith.constant 0 : index
    %c0_79 = arith.constant 0 : index
    %140 = vector.load %arg4[%c0_77, %c3, %c0_78, %c0_79] : memref<1x4x16x32xf32, #tpu.memory_space<vmem>>, vector<1x1x16x32xf32>
    %141 = vector.shape_cast %140 : vector<1x1x16x32xf32> to vector<16x32xf32>
    %cst_80 = arith.constant dense<0.000000e+00> : vector<8x32xf32>
    %142 = tpu.matmul %139, %141, %cst_80 {dimension_numbers = #tpu.dot_dimension_numbers<[1], [0], [0], [1], [0, 0, 1, 1], [], []>} : vector<8x16xf32>, vector<16x32xf32>, vector<8x32xf32> -> vector<8x32xf32>
    %c0_81 = arith.constant 0 : index
    %c3_82 = arith.constant 3 : index
    %c0_83 = arith.constant 0 : index
    %c0_84 = arith.constant 0 : index
    %143 = vector.load %arg5[%c0_81, %c3_82, %c0_83, %c0_84] : memref<1x4x1x32xf32, #tpu.memory_space<vmem>>, vector<1x1x1x32xf32>
    %144 = vector.shape_cast %143 : vector<1x1x1x32xf32> to vector<1x32xf32>
    %145 = vector.broadcast %144 : vector<1x32xf32> to vector<8x32xf32>
    %146 = arith.addf %142, %145 : vector<8x32xf32>
    %cst_85 = arith.constant 0.000000e+00 : f32
    %147 = vector.broadcast %cst_85 : f32 to vector<8x32xf32>
    %148 = arith.cmpf ogt, %146, %147 : vector<8x32xf32>
    %cst_86 = arith.constant 0.00999999977 : f32
    %149 = vector.broadcast %cst_86 : f32 to vector<8x32xf32>
    %150 = arith.mulf %149, %146 : vector<8x32xf32>
    %151 = arith.select %148, %146, %150 : vector<8x32xi1>, vector<8x32xf32>
    %c0_87 = arith.constant 0 : index
    %c3_88 = arith.constant 3 : index
    %c0_89 = arith.constant 0 : index
    %c0_90 = arith.constant 0 : index
    %152 = vector.load %arg6[%c0_87, %c3_88, %c0_89, %c0_90] : memref<1x4x32x16xf32, #tpu.memory_space<vmem>>, vector<1x1x32x16xf32>
    %153 = vector.shape_cast %152 : vector<1x1x32x16xf32> to vector<32x16xf32>
    %cst_91 = arith.constant dense<0.000000e+00> : vector<8x16xf32>
    %154 = tpu.matmul %151, %153, %cst_91 {dimension_numbers = #tpu.dot_dimension_numbers<[1], [0], [0], [1], [0, 0, 1, 1], [], []>} : vector<8x32xf32>, vector<32x16xf32>, vector<8x16xf32> -> vector<8x16xf32>
    %c0_92 = arith.constant 0 : index
    %c3_93 = arith.constant 3 : index
    %c0_94 = arith.constant 0 : index
    %c0_95 = arith.constant 0 : index
    %155 = vector.load %arg7[%c0_92, %c3_93, %c0_94, %c0_95] : memref<1x4x1x16xf32, #tpu.memory_space<vmem>>, vector<1x1x1x16xf32>
    %156 = vector.shape_cast %155 : vector<1x1x1x16xf32> to vector<1x16xf32>
    %157 = vector.broadcast %156 : vector<1x16xf32> to vector<8x16xf32>
    %158 = arith.addf %154, %157 : vector<8x16xf32>
    %c0_96 = arith.constant 0 : index
    %c3_97 = arith.constant 3 : index
    %c0_98 = arith.constant 0 : index
    %c0_99 = arith.constant 0 : index
    %159 = vector.load %arg8[%c0_96, %c3_97, %c0_98, %c0_99] : memref<1x4x8x16xf32, #tpu.memory_space<vmem>>, vector<1x1x8x16xf32>
    %160 = vector.shape_cast %159 : vector<1x1x8x16xf32> to vector<8x16xf32>
    %161 = vector.shape_cast %158 : vector<8x16xf32> to vector<1x1x8x16xf32>
    tpu.vector_store %arg8[%c0_96, %c3_97, %c0_98, %c0_99], %161 {strides = array<i32>} : memref<1x4x8x16xf32, #tpu.memory_space<vmem>>, vector<1x1x8x16xf32>,
    return
  }
  func.func @transform_0(%arg0: i32) -> (i32, i32, i32) {
    %c0_i32 = arith.constant 0 : i32
    %c0_i32_0 = arith.constant 0 : i32
    %c0_i32_1 = arith.constant 0 : i32
    return %arg0, %c0_i32, %c0_i32_0 : i32, i32, i32
  }
  func.func @transform_1(%arg0: i32) -> (i32, i32, i32) {
    %c0_i32 = arith.constant 0 : i32
    %c0_i32_0 = arith.constant 0 : i32
    %c0_i32_1 = arith.constant 0 : i32
    return %arg0, %c0_i32, %c0_i32_0 : i32, i32, i32
  }
  func.func @transform_2(%arg0: i32) -> (i32, i32, i32) {
    %c0_i32 = arith.constant 0 : i32
    %c0_i32_0 = arith.constant 0 : i32
    %c0_i32_1 = arith.constant 0 : i32
    return %arg0, %c0_i32, %c0_i32_0 : i32, i32, i32
  }
  func.func @transform_3(%arg0: i32) -> (i32, i32, i32, i32) {
    %c0_i32 = arith.constant 0 : i32
    %c0_i32_0 = arith.constant 0 : i32
    %c0_i32_1 = arith.constant 0 : i32
    %c0_i32_2 = arith.constant 0 : i32
    return %arg0, %c0_i32, %c0_i32_0, %c0_i32_1 : i32, i32, i32, i32
  }
  func.func @transform_4(%arg0: i32) -> (i32, i32, i32, i32) {
    %c0_i32 = arith.constant 0 : i32
    %c0_i32_0 = arith.constant 0 : i32
    %c0_i32_1 = arith.constant 0 : i32
    %c0_i32_2 = arith.constant 0 : i32
    return %arg0, %c0_i32, %c0_i32_0, %c0_i32_1 : i32, i32, i32, i32
  }
  func.func @transform_5(%arg0: i32) -> (i32, i32, i32, i32) {
    %c0_i32 = arith.constant 0 : i32
    %c0_i32_0 = arith.constant 0 : i32
    %c0_i32_1 = arith.constant 0 : i32
    %c0_i32_2 = arith.constant 0 : i32
    return %arg0, %c0_i32, %c0_i32_0, %c0_i32_1 : i32, i32, i32, i32
  }
  func.func @transform_6(%arg0: i32) -> (i32, i32, i32, i32) {
    %c0_i32 = arith.constant 0 : i32
    %c0_i32_0 = arith.constant 0 : i32
    %c0_i32_1 = arith.constant 0 : i32
    %c0_i32_2 = arith.constant 0 : i32
    return %arg0, %c0_i32, %c0_i32_0, %c0_i32_1 : i32, i32, i32, i32
  }
  func.func @transform_7(%arg0: i32) -> (i32, i32, i32, i32) {
    %c0_i32 = arith.constant 0 : i32
    %c0_i32_0 = arith.constant 0 : i32
    %c0_i32_1 = arith.constant 0 : i32
    %c0_i32_2 = arith.constant 0 : i32
    return %arg0, %c0_i32, %c0_i32_0, %c0_i32_1 : i32, i32, i32, i32
  }
}

</mosaic_0001>

<llo_original>
// kernel: d_r_forward.5
$region0: #{d_r_forward.5}
  #allocation0 [shape = 'u32[]', space=smem, size = 0x4, offset = 0x4, fixed_abs, tag = 'smem constant byte address 0x4 - core index']
  #allocation1 [shape = 'u32[144,128]{1,0:T(1,128)}', space=vmem, size = 0x12000, scoped, tag = 'internal scratch']
  %s0 = inlined_call_operand.vmem [shape: f32[2,8,18], index: 0, kind: input, shape index: {}]
  %s1 = inlined_call_operand.vmem [shape: f32[2,4,3], index: 1, kind: input, shape index: {}]
  %s2 = inlined_call_operand.vmem [shape: f32[2,4,1], index: 2, kind: input, shape index: {}]
  %s3 = inlined_call_operand.vmem [shape: f32[2,4,16,32], index: 3, kind: input, shape index: {}]
  %s4 = inlined_call_operand.vmem [shape: f32[2,4,1,32], index: 4, kind: input, shape index: {}]
  %s5 = inlined_call_operand.vmem [shape: f32[2,4,32,16], index: 5, kind: input, shape index: {}]
  %s6 = inlined_call_operand.vmem [shape: f32[2,4,1,16], index: 6, kind: input, shape index: {}]
  %s7 = inlined_call_operand.vmem [shape: f32[2,4,8,16], index: 7, kind: output, shape index: {}]
  %s8 = sld [smem:[#allocation0]]
  $region61: #{d_r_forward.5} parent=0
    _
  %s10 = ssub.s32 1, %s8
  %s11 = scalar_select 0, %s10, %s8
  loop: start=0, step=1, limit=4
  $region2: #{d_r_forward.5} parent=0 // loop_pre_header
    _
  $region3: #{d_r_forward.5} parent=0 // loop_header
    %s13 = sphi 0, %s17
    %p14 = scmp.ge.s32.totalorder %s13, 4
    %s23 = sphi 0, %s25
    %s26 = sphi 0, %s23
    %s27 = sphi 0, %s26
    %s43 = sphi 0, %s27
    %s49 = sphi 0, %s51
    %s52 = sphi 0, %s49
    %s53 = sphi 0, %s52
    %s69 = sphi 0, %s53
    %s75 = sphi 0, %s77
    %s78 = sphi 0, %s75
    %s79 = sphi 0, %s78
    %s95 = sphi 0, %s79
    %s101 = sphi 0, %s103
    %s104 = sphi 0, %s101
    %s105 = sphi 0, %s104
    %s121 = sphi 0, %s105
    %s127 = sphi 0, %s129
    %s130 = sphi 0, %s127
    %s131 = sphi 0, %s130
    %s147 = sphi 0, %s131
    %s153 = sphi 0, %s155
    %s156 = sphi 0, %s153
    %s157 = sphi 0, %s156
    %s173 = sphi 0, %s157
    %s179 = sphi 0, %s181
    %s182 = sphi 0, %s179
    %s183 = sphi 0, %s182
    %s199 = sphi 0, %s183
    %s205 = sphi 0, %s207
    %s208 = sphi 0, %s205
    %s209 = sphi 0, %s208
    %s225 = sphi 0, %s209
  $region4: #{d_r_forward.5} parent=0 // loop_header_branch
    %16 = sbr.rel (%p14) target = $region8
  $region5: #{d_r_forward.5} parent=0 // loop_body
    %s18 = ssub.s32 %s13, 1
    %s19 = ssub.s32 %s13, 2
    %s20 = sadd.s32 %s13, 1
    %s21 = ssub.s32 %s13, %s20
    %p22 = scmp.eq.s32.totalorder %s21, 0
    %s24 = sadd.s32 %s23, 1
    %s25 = scalar_select %p22, %s23, %s24
    %p28 = pneg %p22
    %p29 = scmp.eq.s32.totalorder %s13, 1
    %p30 = por %p28, %p29
    %p31 = scmp.ne.s32.totalorder %s23, %s26
    %p32 = scmp.eq.s32.totalorder %s13, 0
    %p33 = por %p31, %p32
    %p34 = scmp.ne.s32.totalorder %s23, %s26
    %p35 = scmp.eq.s32.totalorder %s18, 1
    %p36 = por %p34, %p35
    %p37 = scmp.ne.s32.totalorder %s26, %s27
    %p38 = scmp.eq.s32.totalorder %s18, 0
    %p39 = por %p37, %p38
    %p40 = scmp.ne.s32.totalorder %s26, %s27
    %p41 = scmp.eq.s32.totalorder %s19, 1
    %p42 = por %p40, %p41
    %p44 = scmp.ne.s32.totalorder %s27, %s43
    %p45 = scmp.eq.s32.totalorder %s19, 0
    %p46 = por %p44, %p45
    %s47 = ssub.s32 %s13, %s20
    %p48 = scmp.eq.s32.totalorder %s47, 0
    %s50 = sadd.s32 %s49, 1
    %s51 = scalar_select %p48, %s49, %s50
    %p54 = pneg %p48
    %p55 = scmp.eq.s32.totalorder %s13, 1
    %p56 = por %p54, %p55
    %p57 = scmp.ne.s32.totalorder %s49, %s52
    %p58 = scmp.eq.s32.totalorder %s13, 0
    %p59 = por %p57, %p58
    %p60 = scmp.ne.s32.totalorder %s49, %s52
    %p61 = scmp.eq.s32.totalorder %s18, 1
    %p62 = por %p60, %p61
    %p63 = scmp.ne.s32.totalorder %s52, %s53
    %p64 = scmp.eq.s32.totalorder %s18, 0
    %p65 = por %p63, %p64
    %p66 = scmp.ne.s32.totalorder %s52, %s53
    %p67 = scmp.eq.s32.totalorder %s19, 1
    %p68 = por %p66, %p67
    %p70 = scmp.ne.s32.totalorder %s53, %s69
    %p71 = scmp.eq.s32.totalorder %s19, 0
    %p72 = por %p70, %p71
    %s73 = ssub.s32 %s13, %s20
    %p74 = scmp.eq.s32.totalorder %s73, 0
    %s76 = sadd.s32 %s75, 1
    %s77 = scalar_select %p74, %s75, %s76
    %p80 = pneg %p74
    %p81 = scmp.eq.s32.totalorder %s13, 1
    %p82 = por %p80, %p81
    %p83 = scmp.ne.s32.totalorder %s75, %s78
    %p84 = scmp.eq.s32.totalorder %s13, 0
    %p85 = por %p83, %p84
    %p86 = scmp.ne.s32.totalorder %s75, %s78
    %p87 = scmp.eq.s32.totalorder %s18, 1
    %p88 = por %p86, %p87
    %p89 = scmp.ne.s32.totalorder %s78, %s79
    %p90 = scmp.eq.s32.totalorder %s18, 0
    %p91 = por %p89, %p90
    %p92 = scmp.ne.s32.totalorder %s78, %s79
    %p93 = scmp.eq.s32.totalorder %s19, 1
    %p94 = por %p92, %p93
    %p96 = scmp.ne.s32.totalorder %s79, %s95
    %p97 = scmp.eq.s32.totalorder %s19, 0
    %p98 = por %p96, %p97
    %s99 = ssub.s32 %s13, %s20
    %p100 = scmp.eq.s32.totalorder %s99, 0
    %s102 = sadd.s32 %s101, 1
    %s103 = scalar_select %p100, %s101, %s102
    %p106 = pneg %p100
    %p107 = scmp.eq.s32.totalorder %s13, 1
    %p108 = por %p106, %p107
    %p109 = scmp.ne.s32.totalorder %s101, %s104
    %p110 = scmp.eq.s32.totalorder %s13, 0
    %p111 = por %p109, %p110
    %p112 = scmp.ne.s32.totalorder %s101, %s104
    %p113 = scmp.eq.s32.totalorder %s18, 1
    %p114 = por %p112, %p113
    %p115 = scmp.ne.s32.totalorder %s104, %s105
    %p116 = scmp.eq.s32.totalorder %s18, 0
    %p117 = por %p115, %p116
    %p118 = scmp.ne.s32.totalorder %s104, %s105
    %p119 = scmp.eq.s32.totalorder %s19, 1
    %p120 = por %p118, %p119
    %p122 = scmp.ne.s32.totalorder %s105, %s121
    %p123 = scmp.eq.s32.totalorder %s19, 0
    %p124 = por %p122, %p123
    %s125 = ssub.s32 %s13, %s20
    %p126 = scmp.eq.s32.totalorder %s125, 0
    %s128 = sadd.s32 %s127, 1
    %s129 = scalar_select %p126, %s127, %s128
    %p132 = pneg %p126
    %p133 = scmp.eq.s32.totalorder %s13, 1
    %p134 = por %p132, %p133
    %p135 = scmp.ne.s32.totalorder %s127, %s130
    %p136 = scmp.eq.s32.totalorder %s13, 0
    %p137 = por %p135, %p136
    %p138 = scmp.ne.s32.totalorder %s127, %s130
    %p139 = scmp.eq.s32.totalorder %s18, 1
    %p140 = por %p138, %p139
    %p141 = scmp.ne.s32.totalorder %s130, %s131
    %p142 = scmp.eq.s32.totalorder %s18, 0
    %p143 = por %p141, %p142
    %p144 = scmp.ne.s32.totalorder %s130, %s131
    %p145 = scmp.eq.s32.totalorder %s19, 1
    %p146 = por %p144, %p145
    %p148 = scmp.ne.s32.totalorder %s131, %s147
    %p149 = scmp.eq.s32.totalorder %s19, 0
    %p150 = por %p148, %p149
    %s151 = ssub.s32 %s13, %s20
    %p152 = scmp.eq.s32.totalorder %s151, 0
    %s154 = sadd.s32 %s153, 1
    %s155 = scalar_select %p152, %s153, %s154
    %p158 = pneg %p152
    %p159 = scmp.eq.s32.totalorder %s13, 1
    %p160 = por %p158, %p159
    %p161 = scmp.ne.s32.totalorder %s153, %s156
    %p162 = scmp.eq.s32.totalorder %s13, 0
    %p163 = por %p161, %p162
    %p164 = scmp.ne.s32.totalorder %s153, %s156
    %p165 = scmp.eq.s32.totalorder %s18, 1
    %p166 = por %p164, %p165
    %p167 = scmp.ne.s32.totalorder %s156, %s157
    %p168 = scmp.eq.s32.totalorder %s18, 0
    %p169 = por %p167, %p168
    %p170 = scmp.ne.s32.totalorder %s156, %s157
    %p171 = scmp.eq.s32.totalorder %s19, 1
    %p172 = por %p170, %p171
    %p174 = scmp.ne.s32.totalorder %s157, %s173
    %p175 = scmp.eq.s32.totalorder %s19, 0
    %p176 = por %p174, %p175
    %s177 = ssub.s32 %s13, %s20
    %p178 = scmp.eq.s32.totalorder %s177, 0
    %s180 = sadd.s32 %s179, 1
    %s181 = scalar_select %p178, %s179, %s180
    %p184 = pneg %p178
    %p185 = scmp.eq.s32.totalorder %s13, 1
    %p186 = por %p184, %p185
    %p187 = scmp.ne.s32.totalorder %s179, %s182
    %p188 = scmp.eq.s32.totalorder %s13, 0
    %p189 = por %p187, %p188
    %p190 = scmp.ne.s32.totalorder %s179, %s182
    %p191 = scmp.eq.s32.totalorder %s18, 1
    %p192 = por %p190, %p191
    %p193 = scmp.ne.s32.totalorder %s182, %s183
    %p194 = scmp.eq.s32.totalorder %s18, 0
    %p195 = por %p193, %p194
    %p196 = scmp.ne.s32.totalorder %s182, %s183
    %p197 = scmp.eq.s32.totalorder %s19, 1
    %p198 = por %p196, %p197
    %p200 = scmp.ne.s32.totalorder %s183, %s199
    %p201 = scmp.eq.s32.totalorder %s19, 0
    %p202 = por %p200, %p201
    %s203 = ssub.s32 %s13, %s20
    %p204 = scmp.eq.s32.totalorder %s203, 0
    %s206 = sadd.s32 %s205, 1
    %s207 = scalar_select %p204, %s205, %s206
    %p210 = pneg %p204
    %p211 = scmp.eq.s32.totalorder %s13, 1
    %p212 = por %p210, %p211
    %p213 = scmp.ne.s32.totalorder %s205, %s208
    %p214 = scmp.eq.s32.totalorder %s13, 0
    %p215 = por %p213, %p214
    %p216 = scmp.ne.s32.totalorder %s205, %s208
    %p217 = scmp.eq.s32.totalorder %s18, 1
    %p218 = por %p216, %p217
    %p219 = scmp.ne.s32.totalorder %s208, %s209
    %p220 = scmp.eq.s32.totalorder %s18, 0
    %p221 = por %p219, %p220
    %p222 = scmp.ne.s32.totalorder %s208, %s209
    %p223 = scmp.eq.s32.totalorder %s19, 1
    %p224 = por %p222, %p223
    %p226 = scmp.ne.s32.totalorder %s209, %s225
    %p227 = scmp.eq.s32.totalorder %s19, 0
    %p228 = por %p226, %p227
    %p229 = scmp.le.s32.totalorder 1, %s13
    %p230 = scmp.lt.s32.totalorder %s13, 3
    %p231 = pnand %p229, %p230
    %p232 = pneg %p231
    // Predicated region
    $region9: #{d_r_forward.5} parent=5 // pred_check
      _
    $region10: #{d_r_forward.5} parent=5 // pred_check_branch
      %234 = sbr.rel (%p231) target = $region12
    $region11: #{d_r_forward.5} parent=5 // pred_region
      %s235 = ssub.s32 %s13, 1
    $region12: #{d_r_forward.5} parent=5 // pred_fallthru
      _
    %p236 = scmp.lt.s32.totalorder %s13, 2
    // Predicated region
    $region13: #{d_r_forward.5} parent=5 // pred_check
      %p237 = pneg %p236
    $region14: #{d_r_forward.5} parent=5 // pred_check_branch
      %239 = sbr.rel (%p237) target = $region16
    $region15: #{d_r_forward.5} parent=5 // pred_region
      // Predicated region
      $region17: #{d_r_forward.5} parent=15 // pred_check
        %p240 = pneg %p33
      $region18: #{d_r_forward.5} parent=15 // pred_check_branch
        %242 = sbr.rel (%p240) target = $region20
      $region19: #{d_r_forward.5} parent=15 // pred_region
        %p243 = scmp.lt.s32.totalorder %s13, 1
        %s244 = scalar_select %p243, %s13, 1
        %s245 = smul.addr %s244, 8
        %s246 = scalar_lea.vmem %s0, %s245
      $region20: #{d_r_forward.5} parent=15 // pred_fallthru
        _
      // Predicated region
      $region21: #{d_r_forward.5} parent=15 // pred_check
        %p247 = pneg %p59
      $region22: #{d_r_forward.5} parent=15 // pred_check_branch
        %249 = sbr.rel (%p247) target = $region24
      $region23: #{d_r_forward.5} parent=15 // pred_region
        %p250 = scmp.lt.s32.totalorder %s13, 1
        %s251 = scalar_select %p250, %s13, 1
        %s252 = smul.addr %s251, 4
        %s253 = scalar_lea.vmem %s1, %s252
      $region24: #{d_r_forward.5} parent=15 // pred_fallthru
        _
      // Predicated region
      $region25: #{d_r_forward.5} parent=15 // pred_check
        %p254 = pneg %p85
      $region26: #{d_r_forward.5} parent=15 // pred_check_branch
        %256 = sbr.rel (%p254) target = $region28
      $region27: #{d_r_forward.5} parent=15 // pred_region
        %p257 = scmp.lt.s32.totalorder %s13, 1
        %s258 = scalar_select %p257, %s13, 1
        %s259 = smul.addr %s258, 4
        %s260 = scalar_lea.vmem %s2, %s259
      $region28: #{d_r_forward.5} parent=15 // pred_fallthru
        _
      // Predicated region
      $region29: #{d_r_forward.5} parent=15 // pred_check
        %p261 = pneg %p111
      $region30: #{d_r_forward.5} parent=15 // pred_check_branch
        %263 = sbr.rel (%p261) target = $region32
      $region31: #{d_r_forward.5} parent=15 // pred_region
        %p264 = scmp.lt.s32.totalorder %s13, 1
        %s265 = scalar_select %p264, %s13, 1
        %s266 = smul.addr %s265, 8
        %s267 = smul.addr %s266, 8
        %s268 = scalar_lea.vmem %s3, %s267
      $region32: #{d_r_forward.5} parent=15 // pred_fallthru
        _
      // Predicated region
      $region33: #{d_r_forward.5} parent=15 // pred_check
        %p269 = pneg %p137
      $region34: #{d_r_forward.5} parent=15 // pred_check_branch
        %271 = sbr.rel (%p269) target = $region36
      $region35: #{d_r_forward.5} parent=15 // pred_region
        %p272 = scmp.lt.s32.totalorder %s13, 1
        %s273 = scalar_select %p272, %s13, 1
        %s274 = smul.addr %s273, 4
        %s275 = scalar_lea.vmem %s4, %s274
      $region36: #{d_r_forward.5} parent=15 // pred_fallthru
        _
      // Predicated region
      $region37: #{d_r_forward.5} parent=15 // pred_check
        %p276 = pneg %p163
      $region38: #{d_r_forward.5} parent=15 // pred_check_branch
        %278 = sbr.rel (%p276) target = $region40
      $region39: #{d_r_forward.5} parent=15 // pred_region
        %p279 = scmp.lt.s32.totalorder %s13, 1
        %s280 = scalar_select %p279, %s13, 1
        %s281 = smul.addr %s280, 16
        %s282 = smul.addr %s281, 8
        %s283 = scalar_lea.vmem %s5, %s282
      $region40: #{d_r_forward.5} parent=15 // pred_fallthru
        _
      // Predicated region
      $region41: #{d_r_forward.5} parent=15 // pred_check
        %p284 = pneg %p189
      $region42: #{d_r_forward.5} parent=15 // pred_check_branch
        %286 = sbr.rel (%p284) target = $region44
      $region43: #{d_r_forward.5} parent=15 // pred_region
        %p287 = scmp.lt.s32.totalorder %s13, 1
        %s288 = scalar_select %p287, %s13, 1
        %s289 = smul.addr %s288, 4
        %s290 = scalar_lea.vmem %s6, %s289
      $region44: #{d_r_forward.5} parent=15 // pred_fallthru
        _
    $region16: #{d_r_forward.5} parent=5 // pred_fallthru
      _
    %p291 = scmp.le.s32.totalorder 1, %s13
    %p292 = scmp.lt.s32.totalorder %s13, 3
    %p293 = pnand %p291, %p292
    %p294 = pneg %p293
    // Predicated region
    $region45: #{d_r_forward.5} parent=5 // pred_check
      _
    $region46: #{d_r_forward.5} parent=5 // pred_check_branch
      %296 = sbr.rel (%p293) target = $region48
    $region47: #{d_r_forward.5} parent=5 // pred_region
      %s297 = ssub.s32 %s13, 1
      %p298 = scmp.lt.s32.totalorder %s18, 1
      %s299 = scalar_select %p298, %s18, 1
      %s300 = smul.addr %s299, 8
      %s301 = scalar_lea.vmem %s0, %s300
      %p302 = pneg %p39
      %p303 = pneg %p36
      %p304 = scmp.lt.s32.totalorder %s18, 1
      %s305 = scalar_select %p304, %s18, 1
      %s306 = smul.addr %s305, 4
      %s307 = scalar_lea.vmem %s1, %s306
      %p308 = pneg %p65
      %p309 = pneg %p62
      %p310 = scmp.lt.s32.totalorder %s18, 1
      %s311 = scalar_select %p310, %s18, 1
      %s312 = smul.addr %s311, 4
      %s313 = scalar_lea.vmem %s2, %s312
      %p314 = pneg %p91
      %p315 = pneg %p88
      %p316 = scmp.lt.s32.totalorder %s18, 1
      %s317 = scalar_select %p316, %s18, 1
      %s318 = smul.addr %s317, 8
      %s319 = smul.addr %s318, 8
      %s320 = scalar_lea.vmem %s3, %s319
      %p321 = pneg %p117
      %p322 = pneg %p114
      %p323 = scmp.lt.s32.totalorder %s18, 1
      %s324 = scalar_select %p323, %s18, 1
      %s325 = smul.addr %s324, 4
      %s326 = scalar_lea.vmem %s4, %s325
      %p327 = pneg %p143
      %p328 = pneg %p140
      %p329 = scmp.lt.s32.totalorder %s18, 1
      %s330 = scalar_select %p329, %s18, 1
      %s331 = smul.addr %s330, 16
      %s332 = smul.addr %s331, 8
      %s333 = scalar_lea.vmem %s5, %s332
      %p334 = pneg %p169
      %p335 = pneg %p166
      %p336 = scmp.lt.s32.totalorder %s18, 1
      %s337 = scalar_select %p336, %s18, 1
      %s338 = smul.addr %s337, 4
      %s339 = scalar_lea.vmem %s6, %s338
      %p340 = pneg %p195
      %p341 = pneg %p192
      %p342 = pneg %p221
      %p343 = pneg %p218
      %p344 = scmp.lt.s32.totalorder %s18, 1
      %s345 = scalar_select %p344, %s18, 1
      %s346 = smul.addr %s345, 4
      %s347 = smul.addr %s346, 8
      %s348 = scalar_lea.vmem %s7, %s347
      %p349 = scmp.lt.s32.totalorder %s18, 1
      %s350 = scalar_select %p349, %s18, 1
      %s351 = smul.addr %s350, 8
      %s352 = scalar_lea.vmem %s0, %s351
      %p353 = scmp.lt.s32.totalorder %s18, 1
      %s354 = scalar_select %p353, %s18, 1
      %s355 = smul.addr %s354, 4
      %s356 = scalar_lea.vmem %s1, %s355
      %p357 = scmp.lt.s32.totalorder %s18, 1
      %s358 = scalar_select %p357, %s18, 1
      %s359 = smul.addr %s358, 4
      %s360 = scalar_lea.vmem %s2, %s359
      %p361 = scmp.lt.s32.totalorder %s18, 1
      %s362 = scalar_select %p361, %s18, 1
      %s363 = smul.addr %s362, 8
      %s364 = smul.addr %s363, 8
      %s365 = scalar_lea.vmem %s3, %s364
      %p366 = scmp.lt.s32.totalorder %s18, 1
      %s367 = scalar_select %p366, %s18, 1
      %s368 = smul.addr %s367, 4
      %s369 = scalar_lea.vmem %s4, %s368
      %p370 = scmp.lt.s32.totalorder %s18, 1
      %s371 = scalar_select %p370, %s18, 1
      %s372 = smul.addr %s371, 16
      %s373 = smul.addr %s372, 8
      %s374 = scalar_lea.vmem %s5, %s373
      %p375 = scmp.lt.s32.totalorder %s18, 1
      %s376 = scalar_select %p375, %s18, 1
      %s377 = smul.addr %s376, 4
      %s378 = scalar_lea.vmem %s6, %s377
      %p379 = scmp.lt.s32.totalorder %s18, 1
      %s380 = scalar_select %p379, %s18, 1
      %s381 = smul.addr %s380, 4
      %s382 = smul.addr %s381, 8
      %s383 = scalar_lea.vmem %s7, %s382
      %v384 = vld [vmem:[%s352] sm:$0xff]
      %v385 = vld [vmem:[%s356] sm:$0xf]
      %v386 = vld [vmem:[%s360] sm:$0xf]
      %s388 = vtos %v385
      %v389 = vstv %s388
      %v391 = vmul.f32 %v389, %v384
      %s393 = vtos %v386
      %v394 = vstv %s393
      %v396 = vadd.f32 %v394, %v391
      %397 = vrot.lane.b32.xlu0 %v385, 127
      %v398 = vpop.permute.xlu0 %397
      %s399 = vtos %v398
      %v400 = vstv %s399
      %v402 = vmul.f32 %v400, %v384
      %404 = vrot.lane.b32.xlu0 %v402, 127
      %v405 = vpop.permute.xlu0 %404
      %v407 = vadd.f32 %v396, %v405
      %408 = vrot.lane.b32.xlu0 %v385, 126
      %v409 = vpop.permute.xlu0 %408
      %s410 = vtos %v409
      %v411 = vstv %s410
      %v413 = vmul.f32 %v411, %v384
      %415 = vrot.lane.b32.xlu0 %v413, 126
      %v416 = vpop.permute.xlu0 %415
      %v418 = vadd.f32 %v407, %v416
      %v419 = vld [vmem:[%s365] sm:$0xff]
      %v420 = vld [vmem:[%s365 + $0x8] sm:$0xff]
      %v421 = vld [vmem:[%s369] sm:$0x1]
      %v423 = vlaneseq
      %v424 = vshrl.u32 %v423, 7
      %v425 = vsub.s32 0, %v424
      %v426 = vrot.slane %v421, %v425
      %vm428 = vcmask 130048
      %v430 = vsel %vm428, %v418, 0
      %432 = vmatprep.subr.mxu0 0.0
      %433 = vmatpush1.msra.mxu0 0.0
      %434 = vmatprep.subr.mxu0 0.0
      %435 = vmatpush1.msra.mxu0 0.0
      %436 = vmatprep.subr.mxu0 0.0
      %437 = vmatpush1.msra.mxu0 0.0
      %438 = vmatprep.subr.mxu0 0.0
      %439 = vmatpush1.msra.mxu0 0.0
      %440 = vmatprep.subr.mxu0 0.0
      %441 = vmatpush1.msra.mxu0 0.0
      %442 = vmatprep.subr.mxu0 0.0
      %443 = vmatpush1.msra.mxu0 0.0
      %444 = vmatprep.subr.mxu0 0.0
      %445 = vmatpush1.msra.mxu0 0.0
      %446 = vmatprep.subr.mxu0 0.0
      %447 = vmatpush1.msra.mxu0 0.0
      %448 = vmatprep.subr.mxu0 0.0
      %449 = vmatpush1.msra.mxu0 0.0
      %450 = vmatprep.subr.mxu0 0.0
      %451 = vmatpush1.msra.mxu0 0.0
      %452 = vmatprep.subr.mxu0 0.0
      %453 = vmatpush1.msra.mxu0 0.0
      %454 = vmatprep.subr.mxu0 0.0
      %455 = vmatpush1.msra.mxu0 0.0
      %456 = vmatprep.subr.mxu0 0.0
      %457 = vmatpush1.msra.mxu0 0.0
      %458 = vmatprep.subr.mxu0 0.0
      %459 = vmatpush1.msra.mxu0 0.0
      %460 = vmatprep.subr.mxu0 0.0
      %461 = vmatpush1.msra.mxu0 %v420
      %462 = vmatprep.subr.mxu0 0.0
      %463 = vmatpush1.msra.mxu0 %v419
      %464 = vmatprep.subr.mxu0 0.0
      %465 = vmatpush2.msra.mxu0 0.0
      %466 = vmatprep.subr.mxu0 0.0
      %467 = vmatpush2.msra.mxu0 0.0
      %468 = vmatprep.subr.mxu0 0.0
      %469 = vmatpush2.msra.mxu0 0.0
      %470 = vmatprep.subr.mxu0 0.0
      %471 = vmatpush2.msra.mxu0 0.0
      %472 = vmatprep.subr.mxu0 0.0
      %473 = vmatpush2.msra.mxu0 0.0
      %474 = vmatprep.subr.mxu0 0.0
      %475 = vmatpush2.msra.mxu0 0.0
      %476 = vmatprep.subr.mxu0 0.0
      %477 = vmatpush2.msra.mxu0 0.0
      %478 = vmatprep.subr.mxu0 0.0
      %479 = vmatpush2.msra.mxu0 0.0
      %480 = vmatprep.subr.mxu0 0.0
      %481 = vmatpush2.msra.mxu0 0.0
      %482 = vmatprep.subr.mxu0 0.0
      %483 = vmatpush2.msra.mxu0 0.0
      %484 = vmatprep.subr.mxu0 0.0
      %485 = vmatpush2.msra.mxu0 0.0
      %486 = vmatprep.subr.mxu0 0.0
      %487 = vmatpush2.msra.mxu0 0.0
      %488 = vmatprep.subr.mxu0 0.0
      %489 = vmatpush2.msra.mxu0 0.0
      %490 = vmatprep.subr.mxu0 0.0
      %491 = vmatpush2.msra.mxu0 0.0
      %492 = vmatprep.subr.mxu0 0.0
      %493 = vmatpush2.msra.mxu0 0.0
      %494 = vmatprep.subr.mxu0 0.0
      %495 = vmatpush2.msra.mxu0 0.0
      %496 = vmatprep.mubr.f32.mxu0 0.0
      %497 = vmatmul.mubr.f32.gmra.mxu0 %v430
      %v498 = vpop.f32.mrf.mxu0
      %v499 = vadd.f32 %v426, %v498
      %v500 = vpop.f32.mrf.mxu0
      %501 = vdwg.mxu0
      %vm502 = vcmp.gt.f32.partialorder %v499, 0.0
      %v503 = vmul.f32 %v499, 0.01
      %v504 = vsel %vm502, %v499, %v503
      %v505 = vld [vmem:[%s374] sm:$0xff]
      %v506 = vld [vmem:[%s374 + $0x8] sm:$0xff]
      %v507 = vld [vmem:[%s374 + $0x10] sm:$0xff]
      %v508 = vld [vmem:[%s374 + $0x18] sm:$0xff]
      %v509 = vld [vmem:[%s378] sm:$0x1]
      %v511 = vlaneseq
      %v512 = vshrl.u32 %v511, 7
      %v513 = vsub.s32 0, %v512
      %v514 = vrot.slane %v509, %v513
      %vm516 = vcmask 261120
      %v518 = vsel %vm516, %v504, 0
      %520 = vmatprep.subr.mxu0 0.0
      %521 = vmatpush1.msra.mxu0 0.0
      %522 = vmatprep.subr.mxu0 0.0
      %523 = vmatpush1.msra.mxu0 0.0
      %524 = vmatprep.subr.mxu0 0.0
      %525 = vmatpush1.msra.mxu0 0.0
      %526 = vmatprep.subr.mxu0 0.0
      %527 = vmatpush1.msra.mxu0 0.0
      %528 = vmatprep.subr.mxu0 0.0
      %529 = vmatpush1.msra.mxu0 0.0
      %530 = vmatprep.subr.mxu0 0.0
      %531 = vmatpush1.msra.mxu0 0.0
      %532 = vmatprep.subr.mxu0 0.0
      %533 = vmatpush1.msra.mxu0 0.0
      %534 = vmatprep.subr.mxu0 0.0
      %535 = vmatpush1.msra.mxu0 0.0
      %536 = vmatprep.subr.mxu0 0.0
      %537 = vmatpush1.msra.mxu0 0.0
      %538 = vmatprep.subr.mxu0 0.0
      %539 = vmatpush1.msra.mxu0 0.0
      %540 = vmatprep.subr.mxu0 0.0
      %541 = vmatpush1.msra.mxu0 0.0
      %542 = vmatprep.subr.mxu0 0.0
      %543 = vmatpush1.msra.mxu0 0.0
      %544 = vmatprep.subr.mxu0 0.0
      %545 = vmatpush1.msra.mxu0 %v508
      %546 = vmatprep.subr.mxu0 0.0
      %547 = vmatpush1.msra.mxu0 %v507
      %548 = vmatprep.subr.mxu0 0.0
      %549 = vmatpush1.msra.mxu0 %v506
      %550 = vmatprep.subr.mxu0 0.0
      %551 = vmatpush1.msra.mxu0 %v505
      %552 = vmatprep.subr.mxu0 0.0
      %553 = vmatpush2.msra.mxu0 0.0
      %554 = vmatprep.subr.mxu0 0.0
      %555 = vmatpush2.msra.mxu0 0.0
      %556 = vmatprep.subr.mxu0 0.0
      %557 = vmatpush2.msra.mxu0 0.0
      %558 = vmatprep.subr.mxu0 0.0
      %559 = vmatpush2.msra.mxu0 0.0
      %560 = vmatprep.subr.mxu0 0.0
      %561 = vmatpush2.msra.mxu0 0.0
      %562 = vmatprep.subr.mxu0 0.0
      %563 = vmatpush2.msra.mxu0 0.0
      %564 = vmatprep.subr.mxu0 0.0
      %565 = vmatpush2.msra.mxu0 0.0
      %566 = vmatprep.subr.mxu0 0.0
      %567 = vmatpush2.msra.mxu0 0.0
      %568 = vmatprep.subr.mxu0 0.0
      %569 = vmatpush2.msra.mxu0 0.0
      %570 = vmatprep.subr.mxu0 0.0
      %571 = vmatpush2.msra.mxu0 0.0
      %572 = vmatprep.subr.mxu0 0.0
      %573 = vmatpush2.msra.mxu0 0.0
      %574 = vmatprep.subr.mxu0 0.0
      %575 = vmatpush2.msra.mxu0 0.0
      %576 = vmatprep.subr.mxu0 0.0
      %577 = vmatpush2.msra.mxu0 0.0
      %578 = vmatprep.subr.mxu0 0.0
      %579 = vmatpush2.msra.mxu0 0.0
      %580 = vmatprep.subr.mxu0 0.0
      %581 = vmatpush2.msra.mxu0 0.0
      %582 = vmatprep.subr.mxu0 0.0
      %583 = vmatpush2.msra.mxu0 0.0
      %584 = vmatprep.mubr.f32.mxu0 0.0
      %585 = vmatmul.mubr.f32.gmra.mxu0 %v518
      %v586 = vpop.f32.mrf.mxu0
      %v587 = vadd.f32 %v514, %v586
      %v588 = vpop.f32.mrf.mxu0
      %589 = vdwg.mxu0
      %590 = vst.msk [vmem:[%s383] sm:$0xff] %vm428, %v587
      %v591 = vrot.slane %v385, 1
      %s592 = vtos %v591
      %v593 = vstv %s592
      %v595 = vmul.f32 %v593, %v384
      %v596 = vrot.slane %v386, 1
      %s597 = vtos %v596
      %v598 = vstv %s597
      %v600 = vadd.f32 %v598, %v595
      %601 = vrot.lane.b32.xlu0 %v591, 127
      %v602 = vpop.permute.xlu0 %601
      %s603 = vtos %v602
      %v604 = vstv %s603
      %v606 = vmul.f32 %v604, %v384
      %608 = vrot.lane.b32.xlu0 %v606, 127
      %v609 = vpop.permute.xlu0 %608
      %v611 = vadd.f32 %v600, %v609
      %612 = vrot.lane.b32.xlu0 %v591, 126
      %v613 = vpop.permute.xlu0 %612
      %s614 = vtos %v613
      %v615 = vstv %s614
      %v617 = vmul.f32 %v615, %v384
      %619 = vrot.lane.b32.xlu0 %v617, 126
      %v620 = vpop.permute.xlu0 %619
      %v622 = vadd.f32 %v611, %v620
      %s623 = scalar_lea.vmem %s365, 16
      %v624 = vld [vmem:[%s623] sm:$0xff]
      %v625 = vld [vmem:[%s623 + $0x8] sm:$0xff]
      %s626 = scalar_lea.vmem %s369, 1
      %v627 = vld [vmem:[%s626] sm:$0x1]
      %v629 = vlaneseq
      %v630 = vshrl.u32 %v629, 7
      %v631 = vsub.s32 0, %v630
      %v632 = vrot.slane %v627, %v631
      %v635 = vsel %vm428, %v622, 0
      %637 = vmatprep.subr.mxu0 0.0
      %638 = vmatpush1.msra.mxu0 0.0
      %639 = vmatprep.subr.mxu0 0.0
      %640 = vmatpush1.msra.mxu0 0.0
      %641 = vmatprep.subr.mxu0 0.0
      %642 = vmatpush1.msra.mxu0 0.0
      %643 = vmatprep.subr.mxu0 0.0
      %644 = vmatpush1.msra.mxu0 0.0
      %645 = vmatprep.subr.mxu0 0.0
      %646 = vmatpush1.msra.mxu0 0.0
      %647 = vmatprep.subr.mxu0 0.0
      %648 = vmatpush1.msra.mxu0 0.0
      %649 = vmatprep.subr.mxu0 0.0
      %650 = vmatpush1.msra.mxu0 0.0
      %651 = vmatprep.subr.mxu0 0.0
      %652 = vmatpush1.msra.mxu0 0.0
      %653 = vmatprep.subr.mxu0 0.0
      %654 = vmatpush1.msra.mxu0 0.0
      %655 = vmatprep.subr.mxu0 0.0
      %656 = vmatpush1.msra.mxu0 0.0
      %657 = vmatprep.subr.mxu0 0.0
      %658 = vmatpush1.msra.mxu0 0.0
      %659 = vmatprep.subr.mxu0 0.0
      %660 = vmatpush1.msra.mxu0 0.0
      %661 = vmatprep.subr.mxu0 0.0
      %662 = vmatpush1.msra.mxu0 0.0
      %663 = vmatprep.subr.mxu0 0.0
      %664 = vmatpush1.msra.mxu0 0.0
      %665 = vmatprep.subr.mxu0 0.0
      %666 = vmatpush1.msra.mxu0 %v625
      %667 = vmatprep.subr.mxu0 0.0
      %668 = vmatpush1.msra.mxu0 %v624
      %669 = vmatprep.subr.mxu0 0.0
      %670 = vmatpush2.msra.mxu0 0.0
      %671 = vmatprep.subr.mxu0 0.0
      %672 = vmatpush2.msra.mxu0 0.0
      %673 = vmatprep.subr.mxu0 0.0
      %674 = vmatpush2.msra.mxu0 0.0
      %675 = vmatprep.subr.mxu0 0.0
      %676 = vmatpush2.msra.mxu0 0.0
      %677 = vmatprep.subr.mxu0 0.0
      %678 = vmatpush2.msra.mxu0 0.0
      %679 = vmatprep.subr.mxu0 0.0
      %680 = vmatpush2.msra.mxu0 0.0
      %681 = vmatprep.subr.mxu0 0.0
      %682 = vmatpush2.msra.mxu0 0.0
      %683 = vmatprep.subr.mxu0 0.0
      %684 = vmatpush2.msra.mxu0 0.0
      %685 = vmatprep.subr.mxu0 0.0
      %686 = vmatpush2.msra.mxu0 0.0
      %687 = vmatprep.subr.mxu0 0.0
      %688 = vmatpush2.msra.mxu0 0.0
      %689 = vmatprep.subr.mxu0 0.0
      %690 = vmatpush2.msra.mxu0 0.0
      %691 = vmatprep.subr.mxu0 0.0
      %692 = vmatpush2.msra.mxu0 0.0
      %693 = vmatprep.subr.mxu0 0.0
      %694 = vmatpush2.msra.mxu0 0.0
      %695 = vmatprep.subr.mxu0 0.0
      %696 = vmatpush2.msra.mxu0 0.0
      %697 = vmatprep.subr.mxu0 0.0
      %698 = vmatpush2.msra.mxu0 0.0
      %699 = vmatprep.subr.mxu0 0.0
      %700 = vmatpush2.msra.mxu0 0.0
      %701 = vmatprep.mubr.f32.mxu0 0.0
      %702 = vmatmul.mubr.f32.gmra.mxu0 %v635
      %v703 = vpop.f32.mrf.mxu0
      %v704 = vadd.f32 %v632, %v703
      %v705 = vpop.f32.mrf.mxu0
      %706 = vdwg.mxu0
      %vm707 = vcmp.gt.f32.partialorder %v704, 0.0
      %v708 = vmul.f32 %v704, 0.01
      %v709 = vsel %vm707, %v704, %v708
      %s710 = scalar_lea.vmem %s374, 32
      %v711 = vld [vmem:[%s710] sm:$0xff]
      %v712 = vld [vmem:[%s710 + $0x8] sm:$0xff]
      %v713 = vld [vmem:[%s710 + $0x10] sm:$0xff]
      %v714 = vld [vmem:[%s710 + $0x18] sm:$0xff]
      %s715 = scalar_lea.vmem %s378, 1
      %v716 = vld [vmem:[%s715] sm:$0x1]
      %v718 = vlaneseq
      %v719 = vshrl.u32 %v718, 7
      %v720 = vsub.s32 0, %v719
      %v721 = vrot.slane %v716, %v720
      %v724 = vsel %vm516, %v709, 0
      %726 = vmatprep.subr.mxu0 0.0
      %727 = vmatpush1.msra.mxu0 0.0
      %728 = vmatprep.subr.mxu0 0.0
      %729 = vmatpush1.msra.mxu0 0.0
      %730 = vmatprep.subr.mxu0 0.0
      %731 = vmatpush1.msra.mxu0 0.0
      %732 = vmatprep.subr.mxu0 0.0
      %733 = vmatpush1.msra.mxu0 0.0
      %734 = vmatprep.subr.mxu0 0.0
      %735 = vmatpush1.msra.mxu0 0.0
      %736 = vmatprep.subr.mxu0 0.0
      %737 = vmatpush1.msra.mxu0 0.0
      %738 = vmatprep.subr.mxu0 0.0
      %739 = vmatpush1.msra.mxu0 0.0
      %740 = vmatprep.subr.mxu0 0.0
      %741 = vmatpush1.msra.mxu0 0.0
      %742 = vmatprep.subr.mxu0 0.0
      %743 = vmatpush1.msra.mxu0 0.0
      %744 = vmatprep.subr.mxu0 0.0
      %745 = vmatpush1.msra.mxu0 0.0
      %746 = vmatprep.subr.mxu0 0.0
      %747 = vmatpush1.msra.mxu0 0.0
      %748 = vmatprep.subr.mxu0 0.0
      %749 = vmatpush1.msra.mxu0 0.0
      %750 = vmatprep.subr.mxu0 0.0
      %751 = vmatpush1.msra.mxu0 %v714
      %752 = vmatprep.subr.mxu0 0.0
      %753 = vmatpush1.msra.mxu0 %v713
      %754 = vmatprep.subr.mxu0 0.0
      %755 = vmatpush1.msra.mxu0 %v712
      %756 = vmatprep.subr.mxu0 0.0
      %757 = vmatpush1.msra.mxu0 %v711
      %758 = vmatprep.subr.mxu0 0.0
      %759 = vmatpush2.msra.mxu0 0.0
      %760 = vmatprep.subr.mxu0 0.0
      %761 = vmatpush2.msra.mxu0 0.0
      %762 = vmatprep.subr.mxu0 0.0
      %763 = vmatpush2.msra.mxu0 0.0
      %764 = vmatprep.subr.mxu0 0.0
      %765 = vmatpush2.msra.mxu0 0.0
      %766 = vmatprep.subr.mxu0 0.0
      %767 = vmatpush2.msra.mxu0 0.0
      %768 = vmatprep.subr.mxu0 0.0
      %769 = vmatpush2.msra.mxu0 0.0
      %770 = vmatprep.subr.mxu0 0.0
      %771 = vmatpush2.msra.mxu0 0.0
      %772 = vmatprep.subr.mxu0 0.0
      %773 = vmatpush2.msra.mxu0 0.0
      %774 = vmatprep.subr.mxu0 0.0
      %775 = vmatpush2.msra.mxu0 0.0
      %776 = vmatprep.subr.mxu0 0.0
      %777 = vmatpush2.msra.mxu0 0.0
      %778 = vmatprep.subr.mxu0 0.0
      %779 = vmatpush2.msra.mxu0 0.0
      %780 = vmatprep.subr.mxu0 0.0
      %781 = vmatpush2.msra.mxu0 0.0
      %782 = vmatprep.subr.mxu0 0.0
      %783 = vmatpush2.msra.mxu0 0.0
      %784 = vmatprep.subr.mxu0 0.0
      %785 = vmatpush2.msra.mxu0 0.0
      %786 = vmatprep.subr.mxu0 0.0
      %787 = vmatpush2.msra.mxu0 0.0
      %788 = vmatprep.subr.mxu0 0.0
      %789 = vmatpush2.msra.mxu0 0.0
      %790 = vmatprep.mubr.f32.mxu0 0.0
      %791 = vmatmul.mubr.f32.gmra.mxu0 %v724
      %v792 = vpop.f32.mrf.mxu0
      %v793 = vadd.f32 %v721, %v792
      %v794 = vpop.f32.mrf.mxu0
      %795 = vdwg.mxu0
      %s796 = scalar_lea.vmem %s383, 8
      %797 = vst.msk [vmem:[%s796] sm:$0xff] %vm428, %v793
      %v798 = vrot.slane %v385, 2
      %s799 = vtos %v798
      %v800 = vstv %s799
      %v802 = vmul.f32 %v800, %v384
      %v803 = vrot.slane %v386, 2
      %s804 = vtos %v803
      %v805 = vstv %s804
      %v807 = vadd.f32 %v805, %v802
      %808 = vrot.lane.b32.xlu0 %v798, 127
      %v809 = vpop.permute.xlu0 %808
      %s810 = vtos %v809
      %v811 = vstv %s810
      %v813 = vmul.f32 %v811, %v384
      %815 = vrot.lane.b32.xlu0 %v813, 127
      %v816 = vpop.permute.xlu0 %815
      %v818 = vadd.f32 %v807, %v816
      %819 = vrot.lane.b32.xlu0 %v798, 126
      %v820 = vpop.permute.xlu0 %819
      %s821 = vtos %v820
      %v822 = vstv %s821
      %v824 = vmul.f32 %v822, %v384
      %826 = vrot.lane.b32.xlu0 %v824, 126
      %v827 = vpop.permute.xlu0 %826
      %v829 = vadd.f32 %v818, %v827
      %s830 = scalar_lea.vmem %s365, 32
      %v831 = vld [vmem:[%s830] sm:$0xff]
      %v832 = vld [vmem:[%s830 + $0x8] sm:$0xff]
      %s833 = scalar_lea.vmem %s369, 2
      %v834 = vld [vmem:[%s833] sm:$0x1]
      %v836 = vlaneseq
      %v837 = vshrl.u32 %v836, 7
      %v838 = vsub.s32 0, %v837
      %v839 = vrot.slane %v834, %v838
      %v842 = vsel %vm428, %v829, 0
      %844 = vmatprep.subr.mxu0 0.0
      %845 = vmatpush1.msra.mxu0 0.0
      %846 = vmatprep.subr.mxu0 0.0
      %847 = vmatpush1.msra.mxu0 0.0
      %848 = vmatprep.subr.mxu0 0.0
      %849 = vmatpush1.msra.mxu0 0.0
      %850 = vmatprep.subr.mxu0 0.0
      %851 = vmatpush1.msra.mxu0 0.0
      %852 = vmatprep.subr.mxu0 0.0
      %853 = vmatpush1.msra.mxu0 0.0
      %854 = vmatprep.subr.mxu0 0.0
      %855 = vmatpush1.msra.mxu0 0.0
      %856 = vmatprep.subr.mxu0 0.0
      %857 = vmatpush1.msra.mxu0 0.0
      %858 = vmatprep.subr.mxu0 0.0
      %859 = vmatpush1.msra.mxu0 0.0
      %860 = vmatprep.subr.mxu0 0.0
      %861 = vmatpush1.msra.mxu0 0.0
      %862 = vmatprep.subr.mxu0 0.0
      %863 = vmatpush1.msra.mxu0 0.0
      %864 = vmatprep.subr.mxu0 0.0
      %865 = vmatpush1.msra.mxu0 0.0
      %866 = vmatprep.subr.mxu0 0.0
      %867 = vmatpush1.msra.mxu0 0.0
      %868 = vmatprep.subr.mxu0 0.0
      %869 = vmatpush1.msra.mxu0 0.0
      %870 = vmatprep.subr.mxu0 0.0
      %871 = vmatpush1.msra.mxu0 0.0
      %872 = vmatprep.subr.mxu0 0.0
      %873 = vmatpush1.msra.mxu0 %v832
      %874 = vmatprep.subr.mxu0 0.0
      %875 = vmatpush1.msra.mxu0 %v831
      %876 = vmatprep.subr.mxu0 0.0
      %877 = vmatpush2.msra.mxu0 0.0
      %878 = vmatprep.subr.mxu0 0.0
      %879 = vmatpush2.msra.mxu0 0.0
      %880 = vmatprep.subr.mxu0 0.0
      %881 = vmatpush2.msra.mxu0 0.0
      %882 = vmatprep.subr.mxu0 0.0
      %883 = vmatpush2.msra.mxu0 0.0
      %884 = vmatprep.subr.mxu0 0.0
      %885 = vmatpush2.msra.mxu0 0.0
      %886 = vmatprep.subr.mxu0 0.0
      %887 = vmatpush2.msra.mxu0 0.0
      %888 = vmatprep.subr.mxu0 0.0
      %889 = vmatpush2.msra.mxu0 0.0
      %890 = vmatprep.subr.mxu0 0.0
      %891 = vmatpush2.msra.mxu0 0.0
      %892 = vmatprep.subr.mxu0 0.0
      %893 = vmatpush2.msra.mxu0 0.0
      %894 = vmatprep.subr.mxu0 0.0
      %895 = vmatpush2.msra.mxu0 0.0
      %896 = vmatprep.subr.mxu0 0.0
      %897 = vmatpush2.msra.mxu0 0.0
      %898 = vmatprep.subr.mxu0 0.0
      %899 = vmatpush2.msra.mxu0 0.0
      %900 = vmatprep.subr.mxu0 0.0
      %901 = vmatpush2.msra.mxu0 0.0
      %902 = vmatprep.subr.mxu0 0.0
      %903 = vmatpush2.msra.mxu0 0.0
      %904 = vmatprep.subr.mxu0 0.0
      %905 = vmatpush2.msra.mxu0 0.0
      %906 = vmatprep.subr.mxu0 0.0
      %907 = vmatpush2.msra.mxu0 0.0
      %908 = vmatprep.mubr.f32.mxu0 0.0
      %909 = vmatmul.mubr.f32.gmra.mxu0 %v842
      %v910 = vpop.f32.mrf.mxu0
      %v911 = vadd.f32 %v839, %v910
      %v912 = vpop.f32.mrf.mxu0
      %913 = vdwg.mxu0
      %vm914 = vcmp.gt.f32.partialorder %v911, 0.0
      %v915 = vmul.f32 %v911, 0.01
      %v916 = vsel %vm914, %v911, %v915
      %s917 = scalar_lea.vmem %s374, 64
      %v918 = vld [vmem:[%s917] sm:$0xff]
      %v919 = vld [vmem:[%s917 + $0x8] sm:$0xff]
      %v920 = vld [vmem:[%s917 + $0x10] sm:$0xff]
      %v921 = vld [vmem:[%s917 + $0x18] sm:$0xff]
      %s922 = scalar_lea.vmem %s378, 2
      %v923 = vld [vmem:[%s922] sm:$0x1]
      %v925 = vlaneseq
      %v926 = vshrl.u32 %v925, 7
      %v927 = vsub.s32 0, %v926
      %v928 = vrot.slane %v923, %v927
      %v931 = vsel %vm516, %v916, 0
      %933 = vmatprep.subr.mxu0 0.0
      %934 = vmatpush1.msra.mxu0 0.0
      %935 = vmatprep.subr.mxu0 0.0
      %936 = vmatpush1.msra.mxu0 0.0
      %937 = vmatprep.subr.mxu0 0.0
      %938 = vmatpush1.msra.mxu0 0.0
      %939 = vmatprep.subr.mxu0 0.0
      %940 = vmatpush1.msra.mxu0 0.0
      %941 = vmatprep.subr.mxu0 0.0
      %942 = vmatpush1.msra.mxu0 0.0
      %943 = vmatprep.subr.mxu0 0.0
      %944 = vmatpush1.msra.mxu0 0.0
      %945 = vmatprep.subr.mxu0 0.0
      %946 = vmatpush1.msra.mxu0 0.0
      %947 = vmatprep.subr.mxu0 0.0
      %948 = vmatpush1.msra.mxu0 0.0
      %949 = vmatprep.subr.mxu0 0.0
      %950 = vmatpush1.msra.mxu0 0.0
      %951 = vmatprep.subr.mxu0 0.0
      %952 = vmatpush1.msra.mxu0 0.0
      %953 = vmatprep.subr.mxu0 0.0
      %954 = vmatpush1.msra.mxu0 0.0
      %955 = vmatprep.subr.mxu0 0.0
      %956 = vmatpush1.msra.mxu0 0.0
      %957 = vmatprep.subr.mxu0 0.0
      %958 = vmatpush1.msra.mxu0 %v921
      %959 = vmatprep.subr.mxu0 0.0
      %960 = vmatpush1.msra.mxu0 %v920
      %961 = vmatprep.subr.mxu0 0.0
      %962 = vmatpush1.msra.mxu0 %v919
      %963 = vmatprep.subr.mxu0 0.0
      %964 = vmatpush1.msra.mxu0 %v918
      %965 = vmatprep.subr.mxu0 0.0
      %966 = vmatpush2.msra.mxu0 0.0
      %967 = vmatprep.subr.mxu0 0.0
      %968 = vmatpush2.msra.mxu0 0.0
      %969 = vmatprep.subr.mxu0 0.0
      %970 = vmatpush2.msra.mxu0 0.0
      %971 = vmatprep.subr.mxu0 0.0
      %972 = vmatpush2.msra.mxu0 0.0
      %973 = vmatprep.subr.mxu0 0.0
      %974 = vmatpush2.msra.mxu0 0.0
      %975 = vmatprep.subr.mxu0 0.0
      %976 = vmatpush2.msra.mxu0 0.0
      %977 = vmatprep.subr.mxu0 0.0
      %978 = vmatpush2.msra.mxu0 0.0
      %979 = vmatprep.subr.mxu0 0.0
      %980 = vmatpush2.msra.mxu0 0.0
      %981 = vmatprep.subr.mxu0 0.0
      %982 = vmatpush2.msra.mxu0 0.0
      %983 = vmatprep.subr.mxu0 0.0
      %984 = vmatpush2.msra.mxu0 0.0
      %985 = vmatprep.subr.mxu0 0.0
      %986 = vmatpush2.msra.mxu0 0.0
      %987 = vmatprep.subr.mxu0 0.0
      %988 = vmatpush2.msra.mxu0 0.0
      %989 = vmatprep.subr.mxu0 0.0
      %990 = vmatpush2.msra.mxu0 0.0
      %991 = vmatprep.subr.mxu0 0.0
      %992 = vmatpush2.msra.mxu0 0.0
      %993 = vmatprep.subr.mxu0 0.0
      %994 = vmatpush2.msra.mxu0 0.0
      %995 = vmatprep.subr.mxu0 0.0
      %996 = vmatpush2.msra.mxu0 0.0
      %997 = vmatprep.mubr.f32.mxu0 0.0
      %998 = vmatmul.mubr.f32.gmra.mxu0 %v931
      %v999 = vpop.f32.mrf.mxu0
      %v1000 = vadd.f32 %v928, %v999
      %v1001 = vpop.f32.mrf.mxu0
      %1002 = vdwg.mxu0
      %s1003 = scalar_lea.vmem %s383, 16
      %1004 = vst.msk [vmem:[%s1003] sm:$0xff] %vm428, %v1000
      %v1005 = vrot.slane %v385, 3
      %s1006 = vtos %v1005
      %v1007 = vstv %s1006
      %v1009 = vmul.f32 %v1007, %v384
      %v1010 = vrot.slane %v386, 3
      %s1011 = vtos %v1010
      %v1012 = vstv %s1011
      %v1014 = vadd.f32 %v1012, %v1009
      %1015 = vrot.lane.b32.xlu0 %v1005, 127
      %v1016 = vpop.permute.xlu0 %1015
      %s1017 = vtos %v1016
      %v1018 = vstv %s1017
      %v1020 = vmul.f32 %v1018, %v384
      %1022 = vrot.lane.b32.xlu0 %v1020, 127
      %v1023 = vpop.permute.xlu0 %1022
      %v1025 = vadd.f32 %v1014, %v1023
      %1026 = vrot.lane.b32.xlu0 %v1005, 126
      %v1027 = vpop.permute.xlu0 %1026
      %s1028 = vtos %v1027
      %v1029 = vstv %s1028
      %v1031 = vmul.f32 %v1029, %v384
      %1033 = vrot.lane.b32.xlu0 %v1031, 126
      %v1034 = vpop.permute.xlu0 %1033
      %v1036 = vadd.f32 %v1025, %v1034
      %s1037 = scalar_lea.vmem %s365, 48
      %v1038 = vld [vmem:[%s1037] sm:$0xff]
      %v1039 = vld [vmem:[%s1037 + $0x8] sm:$0xff]
      %s1040 = scalar_lea.vmem %s369, 3
      %v1041 = vld [vmem:[%s1040] sm:$0x1]
      %v1043 = vlaneseq
      %v1044 = vshrl.u32 %v1043, 7
      %v1045 = vsub.s32 0, %v1044
      %v1046 = vrot.slane %v1041, %v1045
      %v1049 = vsel %vm428, %v1036, 0
      %1051 = vmatprep.subr.mxu0 0.0
      %1052 = vmatpush1.msra.mxu0 0.0
      %1053 = vmatprep.subr.mxu0 0.0
      %1054 = vmatpush1.msra.mxu0 0.0
      %1055 = vmatprep.subr.mxu0 0.0
      %1056 = vmatpush1.msra.mxu0 0.0
      %1057 = vmatprep.subr.mxu0 0.0
      %1058 = vmatpush1.msra.mxu0 0.0
      %1059 = vmatprep.subr.mxu0 0.0
      %1060 = vmatpush1.msra.mxu0 0.0
      %1061 = vmatprep.subr.mxu0 0.0
      %1062 = vmatpush1.msra.mxu0 0.0
      %1063 = vmatprep.subr.mxu0 0.0
      %1064 = vmatpush1.msra.mxu0 0.0
      %1065 = vmatprep.subr.mxu0 0.0
      %1066 = vmatpush1.msra.mxu0 0.0
      %1067 = vmatprep.subr.mxu0 0.0
      %1068 = vmatpush1.msra.mxu0 0.0
      %1069 = vmatprep.subr.mxu0 0.0
      %1070 = vmatpush1.msra.mxu0 0.0
      %1071 = vmatprep.subr.mxu0 0.0
      %1072 = vmatpush1.msra.mxu0 0.0
      %1073 = vmatprep.subr.mxu0 0.0
      %1074 = vmatpush1.msra.mxu0 0.0
      %1075 = vmatprep.subr.mxu0 0.0
      %1076 = vmatpush1.msra.mxu0 0.0
      %1077 = vmatprep.subr.mxu0 0.0
      %1078 = vmatpush1.msra.mxu0 0.0
      %1079 = vmatprep.subr.mxu0 0.0
      %1080 = vmatpush1.msra.mxu0 %v1039
      %1081 = vmatprep.subr.mxu0 0.0
      %1082 = vmatpush1.msra.mxu0 %v1038
      %1083 = vmatprep.subr.mxu0 0.0
      %1084 = vmatpush2.msra.mxu0 0.0
      %1085 = vmatprep.subr.mxu0 0.0
      %1086 = vmatpush2.msra.mxu0 0.0
      %1087 = vmatprep.subr.mxu0 0.0
      %1088 = vmatpush2.msra.mxu0 0.0
      %1089 = vmatprep.subr.mxu0 0.0
      %1090 = vmatpush2.msra.mxu0 0.0
      %1091 = vmatprep.subr.mxu0 0.0
      %1092 = vmatpush2.msra.mxu0 0.0
      %1093 = vmatprep.subr.mxu0 0.0
      %1094 = vmatpush2.msra.mxu0 0.0
      %1095 = vmatprep.subr.mxu0 0.0
      %1096 = vmatpush2.msra.mxu0 0.0
      %1097 = vmatprep.subr.mxu0 0.0
      %1098 = vmatpush2.msra.mxu0 0.0
      %1099 = vmatprep.subr.mxu0 0.0
      %1100 = vmatpush2.msra.mxu0 0.0
      %1101 = vmatprep.subr.mxu0 0.0
      %1102 = vmatpush2.msra.mxu0 0.0
      %1103 = vmatprep.subr.mxu0 0.0
      %1104 = vmatpush2.msra.mxu0 0.0
      %1105 = vmatprep.subr.mxu0 0.0
      %1106 = vmatpush2.msra.mxu0 0.0
      %1107 = vmatprep.subr.mxu0 0.0
      %1108 = vmatpush2.msra.mxu0 0.0
      %1109 = vmatprep.subr.mxu0 0.0
      %1110 = vmatpush2.msra.mxu0 0.0
      %1111 = vmatprep.subr.mxu0 0.0
      %1112 = vmatpush2.msra.mxu0 0.0
      %1113 = vmatprep.subr.mxu0 0.0
      %1114 = vmatpush2.msra.mxu0 0.0
      %1115 = vmatprep.mubr.f32.mxu0 0.0
      %1116 = vmatmul.mubr.f32.gmra.mxu0 %v1049
      %v1117 = vpop.f32.mrf.mxu0
      %v1118 = vadd.f32 %v1046, %v1117
      %v1119 = vpop.f32.mrf.mxu0
      %1120 = vdwg.mxu0
      %vm1121 = vcmp.gt.f32.partialorder %v1118, 0.0
      %v1122 = vmul.f32 %v1118, 0.01
      %v1123 = vsel %vm1121, %v1118, %v1122
      %s1124 = scalar_lea.vmem %s374, 96
      %v1125 = vld [vmem:[%s1124] sm:$0xff]
      %v1126 = vld [vmem:[%s1124 + $0x8] sm:$0xff]
      %v1127 = vld [vmem:[%s1124 + $0x10] sm:$0xff]
      %v1128 = vld [vmem:[%s1124 + $0x18] sm:$0xff]
      %s1129 = scalar_lea.vmem %s378, 3
      %v1130 = vld [vmem:[%s1129] sm:$0x1]
      %v1132 = vlaneseq
      %v1133 = vshrl.u32 %v1132, 7
      %v1134 = vsub.s32 0, %v1133
      %v1135 = vrot.slane %v1130, %v1134
      %v1138 = vsel %vm516, %v1123, 0
      %1140 = vmatprep.subr.mxu0 0.0
      %1141 = vmatpush1.msra.mxu0 0.0
      %1142 = vmatprep.subr.mxu0 0.0
      %1143 = vmatpush1.msra.mxu0 0.0
      %1144 = vmatprep.subr.mxu0 0.0
      %1145 = vmatpush1.msra.mxu0 0.0
      %1146 = vmatprep.subr.mxu0 0.0
      %1147 = vmatpush1.msra.mxu0 0.0
      %1148 = vmatprep.subr.mxu0 0.0
      %1149 = vmatpush1.msra.mxu0 0.0
      %1150 = vmatprep.subr.mxu0 0.0
      %1151 = vmatpush1.msra.mxu0 0.0
      %1152 = vmatprep.subr.mxu0 0.0
      %1153 = vmatpush1.msra.mxu0 0.0
      %1154 = vmatprep.subr.mxu0 0.0
      %1155 = vmatpush1.msra.mxu0 0.0
      %1156 = vmatprep.subr.mxu0 0.0
      %1157 = vmatpush1.msra.mxu0 0.0
      %1158 = vmatprep.subr.mxu0 0.0
      %1159 = vmatpush1.msra.mxu0 0.0
      %1160 = vmatprep.subr.mxu0 0.0
      %1161 = vmatpush1.msra.mxu0 0.0
      %1162 = vmatprep.subr.mxu0 0.0
      %1163 = vmatpush1.msra.mxu0 0.0
      %1164 = vmatprep.subr.mxu0 0.0
      %1165 = vmatpush1.msra.mxu0 %v1128
      %1166 = vmatprep.subr.mxu0 0.0
      %1167 = vmatpush1.msra.mxu0 %v1127
      %1168 = vmatprep.subr.mxu0 0.0
      %1169 = vmatpush1.msra.mxu0 %v1126
      %1170 = vmatprep.subr.mxu0 0.0
      %1171 = vmatpush1.msra.mxu0 %v1125
      %1172 = vmatprep.subr.mxu0 0.0
      %1173 = vmatpush2.msra.mxu0 0.0
      %1174 = vmatprep.subr.mxu0 0.0
      %1175 = vmatpush2.msra.mxu0 0.0
      %1176 = vmatprep.subr.mxu0 0.0
      %1177 = vmatpush2.msra.mxu0 0.0
      %1178 = vmatprep.subr.mxu0 0.0
      %1179 = vmatpush2.msra.mxu0 0.0
      %1180 = vmatprep.subr.mxu0 0.0
      %1181 = vmatpush2.msra.mxu0 0.0
      %1182 = vmatprep.subr.mxu0 0.0
      %1183 = vmatpush2.msra.mxu0 0.0
      %1184 = vmatprep.subr.mxu0 0.0
      %1185 = vmatpush2.msra.mxu0 0.0
      %1186 = vmatprep.subr.mxu0 0.0
      %1187 = vmatpush2.msra.mxu0 0.0
      %1188 = vmatprep.subr.mxu0 0.0
      %1189 = vmatpush2.msra.mxu0 0.0
      %1190 = vmatprep.subr.mxu0 0.0
      %1191 = vmatpush2.msra.mxu0 0.0
      %1192 = vmatprep.subr.mxu0 0.0
      %1193 = vmatpush2.msra.mxu0 0.0
      %1194 = vmatprep.subr.mxu0 0.0
      %1195 = vmatpush2.msra.mxu0 0.0
      %1196 = vmatprep.subr.mxu0 0.0
      %1197 = vmatpush2.msra.mxu0 0.0
      %1198 = vmatprep.subr.mxu0 0.0
      %1199 = vmatpush2.msra.mxu0 0.0
      %1200 = vmatprep.subr.mxu0 0.0
      %1201 = vmatpush2.msra.mxu0 0.0
      %1202 = vmatprep.subr.mxu0 0.0
      %1203 = vmatpush2.msra.mxu0 0.0
      %1204 = vmatprep.mubr.f32.mxu0 0.0
      %1205 = vmatmul.mubr.f32.gmra.mxu0 %v1138
      %v1206 = vpop.f32.mrf.mxu0
      %v1207 = vadd.f32 %v1135, %v1206
      %v1208 = vpop.f32.mrf.mxu0
      %1209 = vdwg.mxu0
      %s1210 = scalar_lea.vmem %s383, 24
      %1211 = vst.msk [vmem:[%s1210] sm:$0xff] %vm428, %v1207
      %p1212 = scmp.lt.s32.totalorder %s18, 1
      %s1213 = scalar_select %p1212, %s18, 1
      %s1214 = smul.addr %s1213, 4
      %s1215 = smul.addr %s1214, 8
      %s1216 = scalar_lea.vmem %s7, %s1215
      // Predicated region
      $region49: #{d_r_forward.5} parent=47 // pred_check
        %p1217 = pneg %p218
      $region50: #{d_r_forward.5} parent=47 // pred_check_branch
        %1219 = sbr.rel (%p1217) target = $region52
      $region51: #{d_r_forward.5} parent=47 // pred_region
        _
      $region52: #{d_r_forward.5} parent=47 // pred_fallthru
        _
    $region48: #{d_r_forward.5} parent=5 // pred_fallthru
      _
    %p1220 = scmp.le.s32.totalorder 2, %s13
    // Predicated region
    $region53: #{d_r_forward.5} parent=5 // pred_check
      %p1221 = pneg %p1220
    $region54: #{d_r_forward.5} parent=5 // pred_check_branch
      %1223 = sbr.rel (%p1221) target = $region56
    $region55: #{d_r_forward.5} parent=5 // pred_region
      %s1224 = ssub.s32 %s13, 2
      // Predicated region
      $region57: #{d_r_forward.5} parent=55 // pred_check
        %p1225 = pneg %p224
      $region58: #{d_r_forward.5} parent=55 // pred_check_branch
        %1227 = sbr.rel (%p1225) target = $region60
      $region59: #{d_r_forward.5} parent=55 // pred_region
        %p1228 = scmp.lt.s32.totalorder %s19, 1
        %s1229 = scalar_select %p1228, %s19, 1
        %s1230 = smul.addr %s1229, 4
        %s1231 = smul.addr %s1230, 8
        %s1232 = scalar_lea.vmem %s7, %s1231
      $region60: #{d_r_forward.5} parent=55 // pred_fallthru
        _
    $region56: #{d_r_forward.5} parent=5 // pred_fallthru
      _
  $region6: #{d_r_forward.5} parent=0 // loop_footer
    %s17 = sadd.s32 1, %s13
  $region7: #{d_r_forward.5} parent=0 // loop_footer_branch
    %12 = sbr.rel target = $region3
  $region8: #{d_r_forward.5} parent=0 // loop_exit
    _

// kernel: d_r_forward.4
$region0: #{d_r_forward.4}
  #allocation0 [shape = 'u32[]', space=smem, size = 0x4, offset = 0x4, fixed_abs, tag = 'smem constant byte address 0x4 - core index']
  #allocation1 [shape = 'u32[144,128]{1,0:T(1,128)}', space=vmem, size = 0x12000, scoped, tag = 'internal scratch']
  %s0 = inlined_call_operand.vmem [shape: f32[1,8,18], index: 0, kind: input, shape index: {}]
  %s1 = inlined_call_operand.vmem [shape: f32[1,32,2], index: 1, kind: input, shape index: {}]
  %s2 = inlined_call_operand.vmem [shape: f32[1,4,3], index: 2, kind: input, shape index: {}]
  %s3 = inlined_call_operand.vmem [shape: f32[1,4,1], index: 3, kind: input, shape index: {}]
  %s4 = inlined_call_operand.vmem [shape: f32[1,16,64], index: 4, kind: input, shape index: {}]
  %s5 = inlined_call_operand.vmem [shape: f32[1,1,64], index: 5, kind: input, shape index: {}]
  %s6 = inlined_call_operand.vmem [shape: f32[1,64,2], index: 6, kind: input, shape index: {}]
  %s7 = inlined_call_operand.vmem [shape: f32[1,1,2], index: 7, kind: input, shape index: {}]
  %s8 = inlined_call_operand.vmem [shape: f32[1,4,12], index: 8, kind: input, shape index: {}]
  %s9 = inlined_call_operand.vmem [shape: f32[1,1,4], index: 9, kind: input, shape index: {}]
  %s10 = inlined_call_operand.vmem [shape: f32[1,16,32], index: 10, kind: input, shape index: {}]
  %s11 = inlined_call_operand.vmem [shape: f32[1,1,32], index: 11, kind: input, shape index: {}]
  %s12 = inlined_call_operand.vmem [shape: f32[1,32,16], index: 12, kind: input, shape index: {}]
  %s13 = inlined_call_operand.vmem [shape: f32[1,1,16], index: 13, kind: input, shape index: {}]
  %s14 = inlined_call_operand.vmem [shape: f32[1,16,32], index: 14, kind: input, shape index: {}]
  %s15 = inlined_call_operand.vmem [shape: f32[1,1,32], index: 15, kind: input, shape index: {}]
  %s16 = inlined_call_operand.vmem [shape: f32[1,32,16], index: 16, kind: input, shape index: {}]
  %s17 = inlined_call_operand.vmem [shape: f32[1,1,16], index: 17, kind: input, shape index: {}]
  %s18 = inlined_call_operand.vmem [shape: f32[1,2,8,16], index: 18, kind: output, shape index: {}]
  %s19 = sld [smem:[#allocation0]]
  $region82: #{d_r_forward.4} parent=0
    _
  %s21 = ssub.s32 1, %s19
  %s22 = scalar_select 0, %s21, %s19
  // Predicated region
  $region2: #{d_r_forward.4} parent=0 // pred_check
    _
  $region3: #{d_r_forward.4} parent=0 // pred_check_branch
    %24 = sbr.rel (0) target = $region5
  $region4: #{d_r_forward.4} parent=0 // pred_region
    _
  $region5: #{d_r_forward.4} parent=0 // pred_fallthru
    _
  // Predicated region
  $region6: #{d_r_forward.4} parent=0 // pred_check
    _
  $region7: #{d_r_forward.4} parent=0 // pred_check_branch
    %26 = sbr.rel (0) target = $region9
  $region8: #{d_r_forward.4} parent=0 // pred_region
    _
  $region9: #{d_r_forward.4} parent=0 // pred_fallthru
    _
  // Predicated region
  $region10: #{d_r_forward.4} parent=0 // pred_check
    _
  $region11: #{d_r_forward.4} parent=0 // pred_check_branch
    %28 = sbr.rel (0) target = $region13
  $region12: #{d_r_forward.4} parent=0 // pred_region
    _
  $region13: #{d_r_forward.4} parent=0 // pred_fallthru
    _
  // Predicated region
  $region14: #{d_r_forward.4} parent=0 // pred_check
    _
  $region15: #{d_r_forward.4} parent=0 // pred_check_branch
    %30 = sbr.rel (0) target = $region17
  $region16: #{d_r_forward.4} parent=0 // pred_region
    _
  $region17: #{d_r_forward.4} parent=0 // pred_fallthru
    _
  // Predicated region
  $region18: #{d_r_forward.4} parent=0 // pred_check
    _
  $region19: #{d_r_forward.4} parent=0 // pred_check_branch
    %32 = sbr.rel (0) target = $region21
  $region20: #{d_r_forward.4} parent=0 // pred_region
    _
  $region21: #{d_r_forward.4} parent=0 // pred_fallthru
    _
  // Predicated region
  $region22: #{d_r_forward.4} parent=0 // pred_check
    _
  $region23: #{d_r_forward.4} parent=0 // pred_check_branch
    %34 = sbr.rel (0) target = $region25
  $region24: #{d_r_forward.4} parent=0 // pred_region
    _
  $region25: #{d_r_forward.4} parent=0 // pred_fallthru
    _
  // Predicated region
  $region26: #{d_r_forward.4} parent=0 // pred_check
    _
  $region27: #{d_r_forward.4} parent=0 // pred_check_branch
    %36 = sbr.rel (0) target = $region29
  $region28: #{d_r_forward.4} parent=0 // pred_region
    _
  $region29: #{d_r_forward.4} parent=0 // pred_fallthru
    _
  // Predicated region
  $region30: #{d_r_forward.4} parent=0 // pred_check
    _
  $region31: #{d_r_forward.4} parent=0 // pred_check_branch
    %38 = sbr.rel (0) target = $region33
  $region32: #{d_r_forward.4} parent=0 // pred_region
    _
  $region33: #{d_r_forward.4} parent=0 // pred_fallthru
    _
  // Predicated region
  $region34: #{d_r_forward.4} parent=0 // pred_check
    _
  $region35: #{d_r_forward.4} parent=0 // pred_check_branch
    %40 = sbr.rel (0) target = $region37
  $region36: #{d_r_forward.4} parent=0 // pred_region
    _
  $region37: #{d_r_forward.4} parent=0 // pred_fallthru
    _
  // Predicated region
  $region38: #{d_r_forward.4} parent=0 // pred_check
    _
  $region39: #{d_r_forward.4} parent=0 // pred_check_branch
    %42 = sbr.rel (0) target = $region41
  $region40: #{d_r_forward.4} parent=0 // pred_region
    _
  $region41: #{d_r_forward.4} parent=0 // pred_fallthru
    _
  // Predicated region
  $region42: #{d_r_forward.4} parent=0 // pred_check
    _
  $region43: #{d_r_forward.4} parent=0 // pred_check_branch
    %44 = sbr.rel (0) target = $region45
  $region44: #{d_r_forward.4} parent=0 // pred_region
    _
  $region45: #{d_r_forward.4} parent=0 // pred_fallthru
    _
  // Predicated region
  $region46: #{d_r_forward.4} parent=0 // pred_check
    _
  $region47: #{d_r_forward.4} parent=0 // pred_check_branch
    %46 = sbr.rel (0) target = $region49
  $region48: #{d_r_forward.4} parent=0 // pred_region
    _
  $region49: #{d_r_forward.4} parent=0 // pred_fallthru
    _
  // Predicated region
  $region50: #{d_r_forward.4} parent=0 // pred_check
    _
  $region51: #{d_r_forward.4} parent=0 // pred_check_branch
    %48 = sbr.rel (0) target = $region53
  $region52: #{d_r_forward.4} parent=0 // pred_region
    _
  $region53: #{d_r_forward.4} parent=0 // pred_fallthru
    _
  // Predicated region
  $region54: #{d_r_forward.4} parent=0 // pred_check
    _
  $region55: #{d_r_forward.4} parent=0 // pred_check_branch
    %50 = sbr.rel (0) target = $region57
  $region56: #{d_r_forward.4} parent=0 // pred_region
    _
  $region57: #{d_r_forward.4} parent=0 // pred_fallthru
    _
  // Predicated region
  $region58: #{d_r_forward.4} parent=0 // pred_check
    _
  $region59: #{d_r_forward.4} parent=0 // pred_check_branch
    %52 = sbr.rel (0) target = $region61
  $region60: #{d_r_forward.4} parent=0 // pred_region
    _
  $region61: #{d_r_forward.4} parent=0 // pred_fallthru
    _
  // Predicated region
  $region62: #{d_r_forward.4} parent=0 // pred_check
    _
  $region63: #{d_r_forward.4} parent=0 // pred_check_branch
    %54 = sbr.rel (0) target = $region65
  $region64: #{d_r_forward.4} parent=0 // pred_region
    _
  $region65: #{d_r_forward.4} parent=0 // pred_fallthru
    _
  // Predicated region
  $region66: #{d_r_forward.4} parent=0 // pred_check
    _
  $region67: #{d_r_forward.4} parent=0 // pred_check_branch
    %56 = sbr.rel (0) target = $region69
  $region68: #{d_r_forward.4} parent=0 // pred_region
    _
  $region69: #{d_r_forward.4} parent=0 // pred_fallthru
    _
  // Predicated region
  $region70: #{d_r_forward.4} parent=0 // pred_check
    _
  $region71: #{d_r_forward.4} parent=0 // pred_check_branch
    %58 = sbr.rel (0) target = $region73
  $region72: #{d_r_forward.4} parent=0 // pred_region
    _
  $region73: #{d_r_forward.4} parent=0 // pred_fallthru
    _
  %v59 = vld [vmem:[%s0] sm:$0xff]
  %v60 = vlaneseq
  %v61 = vshrl.u32 %v60, 7
  %v62 = vlaneseq
  %v63 = vand.u32 %v62, 127
  %vm64 = vcmp.lt.s32.totalorder %v61, 0
  %v65 = vsub.s32 0, %v61
  %v66 = vsel %vm64, %v65, %v61
  %v67 = vshrl.u32 %v66, 2
  %v68 = vand.u32 %v66, 3
  %v69 = vsub.s32 0, %v68
  %v70 = vsel %vm64, %v69, %v68
  %vm71 = vcmp.ne.s32.totalorder %v70, 0
  %vm72 = vcmp.lt.s32.totalorder %v70, 0
  %vm73 = vmand %vm72, %vm71
  %v74 = vadd.s32 %v70, 4
  %v75 = vsel %vm73, %v74, %v70
  %vm76 = vcmp.eq.s32.totalorder %v75, %v63
  %v77 = vsel %vm76, 1, 0
  %v78 = vcvt.s32.f32 %v77
  %vm79 = vcmp.lt.s32.totalorder %v63, 0
  %v80 = vsub.s32 0, %v63
  %v81 = vsel %vm79, %v80, %v63
  %v82 = vshrl.u32 %v81, 2
  %v83 = vand.u32 %v81, 3
  %v84 = vsub.s32 0, %v83
  %v85 = vsel %vm79, %v84, %v83
  %vm86 = vcmp.ne.s32.totalorder %v85, 0
  %vm87 = vcmp.lt.s32.totalorder %v85, 0
  %vm88 = vmand %vm87, %vm86
  %v89 = vadd.s32 %v85, 4
  %v90 = vsel %vm88, %v89, %v85
  %vm91 = vcmp.eq.s32.totalorder %v90, %v61
  %v92 = vsel %vm91, 1, 0
  %v93 = vcvt.s32.f32 %v92
  %v94 = vadd.s32 %v61, 8
  %v95 = vadd.s32 %v61, 16
  %v96 = vadd.s32 %v61, 24
  %vm97 = vcmp.lt.s32.totalorder %v94, 0
  %v98 = vsub.s32 0, %v94
  %v99 = vsel %vm97, %v98, %v94
  %v100 = vshrl.u32 %v99, 2
  %v101 = vand.u32 %v99, 3
  %v102 = vsub.s32 0, %v101
  %v103 = vsel %vm97, %v102, %v101
  %vm104 = vcmp.lt.s32.totalorder %v95, 0
  %v105 = vsub.s32 0, %v95
  %v106 = vsel %vm104, %v105, %v95
  %v107 = vshrl.u32 %v106, 2
  %v108 = vand.u32 %v106, 3
  %v109 = vsub.s32 0, %v108
  %v110 = vsel %vm104, %v109, %v108
  %vm111 = vcmp.lt.s32.totalorder %v96, 0
  %v112 = vsub.s32 0, %v96
  %v113 = vsel %vm111, %v112, %v96
  %v114 = vshrl.u32 %v113, 2
  %v115 = vand.u32 %v113, 3
  %v116 = vsub.s32 0, %v115
  %v117 = vsel %vm111, %v116, %v115
  %vm118 = vcmp.ne.s32.totalorder %v103, 0
  %vm119 = vcmp.ne.s32.totalorder %v110, 0
  %vm120 = vcmp.ne.s32.totalorder %v117, 0
  %vm121 = vcmp.lt.s32.totalorder %v103, 0
  %vm122 = vcmp.lt.s32.totalorder %v110, 0
  %vm123 = vcmp.lt.s32.totalorder %v117, 0
  %vm124 = vmand %vm121, %vm118
  %vm125 = vmand %vm122, %vm119
  %vm126 = vmand %vm123, %vm120
  %v127 = vadd.s32 %v103, 4
  %v128 = vadd.s32 %v110, 4
  %v129 = vadd.s32 %v117, 4
  %v130 = vsel %vm124, %v127, %v103
  %v131 = vsel %vm125, %v128, %v110
  %v132 = vsel %vm126, %v129, %v117
  %vm133 = vcmp.eq.s32.totalorder %v130, %v63
  %vm134 = vcmp.eq.s32.totalorder %v131, %v63
  %vm135 = vcmp.eq.s32.totalorder %v132, %v63
  %v136 = vsel %vm133, 1, 0
  %v137 = vsel %vm134, 1, 0
  %v138 = vsel %vm135, 1, 0
  %v139 = vcvt.s32.f32 %v136
  %v140 = vcvt.s32.f32 %v137
  %v141 = vcvt.s32.f32 %v138
  %vm142 = vcmp.lt.s32.totalorder %v61, 0
  %v143 = vsub.s32 0, %v61
  %v144 = vsel %vm142, %v143, %v61
  %v145 = vshrl.u32 %v144, 3
  %v146 = vand.u32 %v144, 7
  %v147 = vsub.s32 0, %v146
  %v148 = vsel %vm142, %v147, %v146
  %vm149 = vcmp.lt.s32.totalorder %v94, 0
  %v150 = vsub.s32 0, %v94
  %v151 = vsel %vm149, %v150, %v94
  %v152 = vshrl.u32 %v151, 3
  %v153 = vand.u32 %v151, 7
  %v154 = vsub.s32 0, %v153
  %v155 = vsel %vm149, %v154, %v153
  %vm156 = vcmp.lt.s32.totalorder %v95, 0
  %v157 = vsub.s32 0, %v95
  %v158 = vsel %vm156, %v157, %v95
  %v159 = vshrl.u32 %v158, 3
  %v160 = vand.u32 %v158, 7
  %v161 = vsub.s32 0, %v160
  %v162 = vsel %vm156, %v161, %v160
  %vm163 = vcmp.lt.s32.totalorder %v96, 0
  %v164 = vsub.s32 0, %v96
  %v165 = vsel %vm163, %v164, %v96
  %v166 = vshrl.u32 %v165, 3
  %v167 = vand.u32 %v165, 7
  %v168 = vsub.s32 0, %v167
  %v169 = vsel %vm163, %v168, %v167
  %vm170 = vcmp.ne.s32.totalorder %v148, 0
  %vm171 = vcmp.ne.s32.totalorder %v155, 0
  %vm172 = vcmp.ne.s32.totalorder %v162, 0
  %vm173 = vcmp.ne.s32.totalorder %v169, 0
  %vm174 = vcmp.lt.s32.totalorder %v148, 0
  %vm175 = vcmp.lt.s32.totalorder %v155, 0
  %vm176 = vcmp.lt.s32.totalorder %v162, 0
  %vm177 = vcmp.lt.s32.totalorder %v169, 0
  %vm178 = vmand %vm174, %vm170
  %vm179 = vmand %vm175, %vm171
  %vm180 = vmand %vm176, %vm172
  %vm181 = vmand %vm177, %vm173
  %v182 = vadd.s32 %v148, 8
  %v183 = vadd.s32 %v155, 8
  %v184 = vadd.s32 %v162, 8
  %v185 = vadd.s32 %v169, 8
  %v186 = vsel %vm178, %v182, %v148
  %v187 = vsel %vm179, %v183, %v155
  %v188 = vsel %vm180, %v184, %v162
  %v189 = vsel %vm181, %v185, %v169
  %vm190 = vcmp.eq.s32.totalorder %v186, %v63
  %vm191 = vcmp.eq.s32.totalorder %v187, %v63
  %vm192 = vcmp.eq.s32.totalorder %v188, %v63
  %vm193 = vcmp.eq.s32.totalorder %v189, %v63
  %v194 = vsel %vm190, 1, 0
  %v195 = vsel %vm191, 1, 0
  %v196 = vsel %vm192, 1, 0
  %v197 = vsel %vm193, 1, 0
  %v198 = vcvt.s32.f32 %v194
  %v199 = vcvt.s32.f32 %v195
  %v200 = vcvt.s32.f32 %v196
  %v201 = vcvt.s32.f32 %v197
  %v202 = vmul.u32 %v63, 8
  %vm203 = vcmp.ge.s32.totalorder %v61, %v202
  %vm204 = vcmp.ge.s32.totalorder %v94, %v202
  %vm205 = vcmp.ge.s32.totalorder %v95, %v202
  %vm206 = vcmp.ge.s32.totalorder %v96, %v202
  %v207 = vadd.s32 %v63, 1
  %v208 = vmul.u32 %v207, 8
  %vm209 = vcmp.lt.s32.totalorder %v61, %v208
  %vm210 = vcmp.lt.s32.totalorder %v94, %v208
  %vm211 = vcmp.lt.s32.totalorder %v95, %v208
  %vm212 = vcmp.lt.s32.totalorder %v96, %v208
  %vm213 = vmand %vm203, %vm209
  %vm214 = vmand %vm204, %vm210
  %vm215 = vmand %vm205, %vm211
  %vm216 = vmand %vm206, %vm212
  %v217 = vsel %vm213, 1, 0
  %v218 = vsel %vm214, 1, 0
  %v219 = vsel %vm215, 1, 0
  %v220 = vsel %vm216, 1, 0
  %v221 = vcvt.s32.f32 %v217
  %v222 = vcvt.s32.f32 %v218
  %v223 = vcvt.s32.f32 %v219
  %v224 = vcvt.s32.f32 %v220
  %vm225 = vcmask 64512
  %v227 = vsel %vm225, %v198, 0
  %v230 = vsel %vm225, %v199, 0
  %v233 = vsel %vm225, %v200, 0
  %v236 = vsel %vm225, %v201, 0
  %238 = vmatprep.subr.mxu0 0.0
  %239 = vmatpush1.msra.mxu0 0.0
  %240 = vmatprep.subr.mxu0 0.0
  %241 = vmatpush1.msra.mxu0 0.0
  %242 = vmatprep.subr.mxu0 0.0
  %243 = vmatpush1.msra.mxu0 0.0
  %244 = vmatprep.subr.mxu0 0.0
  %245 = vmatpush1.msra.mxu0 0.0
  %246 = vmatprep.subr.mxu0 0.0
  %247 = vmatpush1.msra.mxu0 0.0
  %248 = vmatprep.subr.mxu0 0.0
  %249 = vmatpush1.msra.mxu0 0.0
  %250 = vmatprep.subr.mxu0 0.0
  %251 = vmatpush1.msra.mxu0 0.0
  %252 = vmatprep.subr.mxu0 0.0
  %253 = vmatpush1.msra.mxu0 0.0
  %254 = vmatprep.subr.mxu0 0.0
  %255 = vmatpush1.msra.mxu0 0.0
  %256 = vmatprep.subr.mxu0 0.0
  %257 = vmatpush1.msra.mxu0 0.0
  %258 = vmatprep.subr.mxu0 0.0
  %259 = vmatpush1.msra.mxu0 0.0
  %260 = vmatprep.subr.mxu0 0.0
  %261 = vmatpush1.msra.mxu0 0.0
  %262 = vmatprep.subr.mxu0 0.0
  %263 = vmatpush1.msra.mxu0 0.0
  %264 = vmatprep.subr.mxu0 0.0
  %265 = vmatpush1.msra.mxu0 0.0
  %266 = vmatprep.subr.mxu0 0.0
  %267 = vmatpush1.msra.mxu0 0.0
  %268 = vmatprep.subr.mxu0 0.0
  %269 = vmatpush1.msra.mxu0 %v59
  %270 = vmatprep.subr.mxu0 0.0
  %271 = vmatpush2.msra.mxu0 0.0
  %272 = vmatprep.subr.mxu0 0.0
  %273 = vmatpush2.msra.mxu0 0.0
  %274 = vmatprep.subr.mxu0 0.0
  %275 = vmatpush2.msra.mxu0 0.0
  %276 = vmatprep.subr.mxu0 0.0
  %277 = vmatpush2.msra.mxu0 0.0
  %278 = vmatprep.subr.mxu0 0.0
  %279 = vmatpush2.msra.mxu0 0.0
  %280 = vmatprep.subr.mxu0 0.0
  %281 = vmatpush2.msra.mxu0 0.0
  %282 = vmatprep.subr.mxu0 0.0
  %283 = vmatpush2.msra.mxu0 0.0
  %284 = vmatprep.subr.mxu0 0.0
  %285 = vmatpush2.msra.mxu0 0.0
  %286 = vmatprep.subr.mxu0 0.0
  %287 = vmatpush2.msra.mxu0 0.0
  %288 = vmatprep.subr.mxu0 0.0
  %289 = vmatpush2.msra.mxu0 0.0
  %290 = vmatprep.subr.mxu0 0.0
  %291 = vmatpush2.msra.mxu0 0.0
  %292 = vmatprep.subr.mxu0 0.0
  %293 = vmatpush2.msra.mxu0 0.0
  %294 = vmatprep.subr.mxu0 0.0
  %295 = vmatpush2.msra.mxu0 0.0
  %296 = vmatprep.subr.mxu0 0.0
  %297 = vmatpush2.msra.mxu0 0.0
  %298 = vmatprep.subr.mxu0 0.0
  %299 = vmatpush2.msra.mxu0 0.0
  %300 = vmatprep.subr.mxu0 0.0
  %301 = vmatpush2.msra.mxu0 0.0
  %302 = vmatprep.mubr.f32.mxu0 0.0
  %303 = vmatmul.mubr.f32.gmra.mxu0 %v227
  %v304 = vpop.f32.mrf.mxu0
  %v305 = vadd.f32 0.0, %v304
  %v306 = vpop.f32.mrf.mxu0
  %307 = vmatprep.mubr.f32.mxu0 0.0
  %308 = vmatmul.mubr.f32.gmra.mxu0 %v230
  %v309 = vpop.f32.mrf.mxu0
  %v310 = vadd.f32 0.0, %v309
  %v311 = vpop.f32.mrf.mxu0
  %312 = vmatprep.mubr.f32.mxu0 0.0
  %313 = vmatmul.mubr.f32.gmra.mxu0 %v233
  %v314 = vpop.f32.mrf.mxu0
  %v315 = vadd.f32 0.0, %v314
  %v316 = vpop.f32.mrf.mxu0
  %317 = vmatprep.mubr.f32.mxu0 0.0
  %318 = vmatmul.mubr.f32.gmra.mxu0 %v236
  %v319 = vpop.f32.mrf.mxu0
  %v320 = vadd.f32 0.0, %v319
  %v321 = vpop.f32.mrf.mxu0
  %322 = vdwg.mxu0
  %v323 = vld [vmem:[%s2] sm:$0xf]
  %vm324 = vcmask 31744
  %v326 = vsel %vm324, %v221, 0
  %v329 = vsel %vm324, %v222, 0
  %v332 = vsel %vm324, %v223, 0
  %v335 = vsel %vm324, %v224, 0
  %vm337 = vcmask 1043456
  %v339 = vsel %vm337, %v323, 0
  %341 = vmatprep.subr.mxu0 0.0
  %342 = vmatpush1.msra.mxu0 0.0
  %343 = vmatprep.subr.mxu0 0.0
  %344 = vmatpush1.msra.mxu0 0.0
  %345 = vmatprep.subr.mxu0 0.0
  %346 = vmatpush1.msra.mxu0 0.0
  %347 = vmatprep.subr.mxu0 0.0
  %348 = vmatpush1.msra.mxu0 0.0
  %349 = vmatprep.subr.mxu0 0.0
  %350 = vmatpush1.msra.mxu0 0.0
  %351 = vmatprep.subr.mxu0 0.0
  %352 = vmatpush1.msra.mxu0 0.0
  %353 = vmatprep.subr.mxu0 0.0
  %354 = vmatpush1.msra.mxu0 0.0
  %355 = vmatprep.subr.mxu0 0.0
  %356 = vmatpush1.msra.mxu0 0.0
  %357 = vmatprep.subr.mxu0 0.0
  %358 = vmatpush1.msra.mxu0 0.0
  %359 = vmatprep.subr.mxu0 0.0
  %360 = vmatpush1.msra.mxu0 0.0
  %361 = vmatprep.subr.mxu0 0.0
  %362 = vmatpush1.msra.mxu0 0.0
  %363 = vmatprep.subr.mxu0 0.0
  %364 = vmatpush1.msra.mxu0 0.0
  %365 = vmatprep.subr.mxu0 0.0
  %366 = vmatpush1.msra.mxu0 0.0
  %367 = vmatprep.subr.mxu0 0.0
  %368 = vmatpush1.msra.mxu0 0.0
  %369 = vmatprep.subr.mxu0 0.0
  %370 = vmatpush1.msra.mxu0 0.0
  %371 = vmatprep.subr.mxu0 0.0
  %372 = vmatpush1.msra.mxu0 %v339
  %373 = vmatprep.subr.mxu0 0.0
  %374 = vmatpush2.msra.mxu0 0.0
  %375 = vmatprep.subr.mxu0 0.0
  %376 = vmatpush2.msra.mxu0 0.0
  %377 = vmatprep.subr.mxu0 0.0
  %378 = vmatpush2.msra.mxu0 0.0
  %379 = vmatprep.subr.mxu0 0.0
  %380 = vmatpush2.msra.mxu0 0.0
  %381 = vmatprep.subr.mxu0 0.0
  %382 = vmatpush2.msra.mxu0 0.0
  %383 = vmatprep.subr.mxu0 0.0
  %384 = vmatpush2.msra.mxu0 0.0
  %385 = vmatprep.subr.mxu0 0.0
  %386 = vmatpush2.msra.mxu0 0.0
  %387 = vmatprep.subr.mxu0 0.0
  %388 = vmatpush2.msra.mxu0 0.0
  %389 = vmatprep.subr.mxu0 0.0
  %390 = vmatpush2.msra.mxu0 0.0
  %391 = vmatprep.subr.mxu0 0.0
  %392 = vmatpush2.msra.mxu0 0.0
  %393 = vmatprep.subr.mxu0 0.0
  %394 = vmatpush2.msra.mxu0 0.0
  %395 = vmatprep.subr.mxu0 0.0
  %396 = vmatpush2.msra.mxu0 0.0
  %397 = vmatprep.subr.mxu0 0.0
  %398 = vmatpush2.msra.mxu0 0.0
  %399 = vmatprep.subr.mxu0 0.0
  %400 = vmatpush2.msra.mxu0 0.0
  %401 = vmatprep.subr.mxu0 0.0
  %402 = vmatpush2.msra.mxu0 0.0
  %403 = vmatprep.subr.mxu0 0.0
  %404 = vmatpush2.msra.mxu0 0.0
  %405 = vmatprep.mubr.f32.mxu0 0.0
  %406 = vmatmul.mubr.f32.gmra.mxu0 %v326
  %v407 = vpop.f32.mrf.mxu0
  %v408 = vadd.f32 0.0, %v407
  %v409 = vpop.f32.mrf.mxu0
  %410 = vmatprep.mubr.f32.mxu0 0.0
  %411 = vmatmul.mubr.f32.gmra.mxu0 %v329
  %v412 = vpop.f32.mrf.mxu0
  %v413 = vadd.f32 0.0, %v412
  %v414 = vpop.f32.mrf.mxu0
  %415 = vmatprep.mubr.f32.mxu0 0.0
  %416 = vmatmul.mubr.f32.gmra.mxu0 %v332
  %v417 = vpop.f32.mrf.mxu0
  %v418 = vadd.f32 0.0, %v417
  %v419 = vpop.f32.mrf.mxu0
  %420 = vmatprep.mubr.f32.mxu0 0.0
  %421 = vmatmul.mubr.f32.gmra.mxu0 %v335
  %v422 = vpop.f32.mrf.mxu0
  %v423 = vadd.f32 0.0, %v422
  %v424 = vpop.f32.mrf.mxu0
  %425 = vdwg.mxu0
  %v426 = vld [vmem:[%s3] sm:$0xf]
  %v428 = vsel %vm337, %v426, 0
  %430 = vmatprep.subr.mxu0 0.0
  %431 = vmatpush1.msra.mxu0 0.0
  %432 = vmatprep.subr.mxu0 0.0
  %433 = vmatpush1.msra.mxu0 0.0
  %434 = vmatprep.subr.mxu0 0.0
  %435 = vmatpush1.msra.mxu0 0.0
  %436 = vmatprep.subr.mxu0 0.0
  %437 = vmatpush1.msra.mxu0 0.0
  %438 = vmatprep.subr.mxu0 0.0
  %439 = vmatpush1.msra.mxu0 0.0
  %440 = vmatprep.subr.mxu0 0.0
  %441 = vmatpush1.msra.mxu0 0.0
  %442 = vmatprep.subr.mxu0 0.0
  %443 = vmatpush1.msra.mxu0 0.0
  %444 = vmatprep.subr.mxu0 0.0
  %445 = vmatpush1.msra.mxu0 0.0
  %446 = vmatprep.subr.mxu0 0.0
  %447 = vmatpush1.msra.mxu0 0.0
  %448 = vmatprep.subr.mxu0 0.0
  %449 = vmatpush1.msra.mxu0 0.0
  %450 = vmatprep.subr.mxu0 0.0
  %451 = vmatpush1.msra.mxu0 0.0
  %452 = vmatprep.subr.mxu0 0.0
  %453 = vmatpush1.msra.mxu0 0.0
  %454 = vmatprep.subr.mxu0 0.0
  %455 = vmatpush1.msra.mxu0 0.0
  %456 = vmatprep.subr.mxu0 0.0
  %457 = vmatpush1.msra.mxu0 0.0
  %458 = vmatprep.subr.mxu0 0.0
  %459 = vmatpush1.msra.mxu0 0.0
  %460 = vmatprep.subr.mxu0 0.0
  %461 = vmatpush1.msra.mxu0 %v428
  %462 = vmatprep.subr.mxu0 0.0
  %463 = vmatpush2.msra.mxu0 0.0
  %464 = vmatprep.subr.mxu0 0.0
  %465 = vmatpush2.msra.mxu0 0.0
  %466 = vmatprep.subr.mxu0 0.0
  %467 = vmatpush2.msra.mxu0 0.0
  %468 = vmatprep.subr.mxu0 0.0
  %469 = vmatpush2.msra.mxu0 0.0
  %470 = vmatprep.subr.mxu0 0.0
  %471 = vmatpush2.msra.mxu0 0.0
  %472 = vmatprep.subr.mxu0 0.0
  %473 = vmatpush2.msra.mxu0 0.0
  %474 = vmatprep.subr.mxu0 0.0
  %475 = vmatpush2.msra.mxu0 0.0
  %476 = vmatprep.subr.mxu0 0.0
  %477 = vmatpush2.msra.mxu0 0.0
  %478 = vmatprep.subr.mxu0 0.0
  %479 = vmatpush2.msra.mxu0 0.0
  %480 = vmatprep.subr.mxu0 0.0
  %481 = vmatpush2.msra.mxu0 0.0
  %482 = vmatprep.subr.mxu0 0.0
  %483 = vmatpush2.msra.mxu0 0.0
  %484 = vmatprep.subr.mxu0 0.0
  %485 = vmatpush2.msra.mxu0 0.0
  %486 = vmatprep.subr.mxu0 0.0
  %487 = vmatpush2.msra.mxu0 0.0
  %488 = vmatprep.subr.mxu0 0.0
  %489 = vmatpush2.msra.mxu0 0.0
  %490 = vmatprep.subr.mxu0 0.0
  %491 = vmatpush2.msra.mxu0 0.0
  %492 = vmatprep.subr.mxu0 0.0
  %493 = vmatpush2.msra.mxu0 0.0
  %494 = vmatprep.mubr.f32.mxu0 0.0
  %495 = vmatmul.mubr.f32.gmra.mxu0 %v326
  %v496 = vpop.f32.mrf.mxu0
  %v497 = vadd.f32 0.0, %v496
  %v498 = vpop.f32.mrf.mxu0
  %499 = vmatprep.mubr.f32.mxu0 0.0
  %500 = vmatmul.mubr.f32.gmra.mxu0 %v329
  %v501 = vpop.f32.mrf.mxu0
  %v502 = vadd.f32 0.0, %v501
  %v503 = vpop.f32.mrf.mxu0
  %504 = vmatprep.mubr.f32.mxu0 0.0
  %505 = vmatmul.mubr.f32.gmra.mxu0 %v332
  %v506 = vpop.f32.mrf.mxu0
  %v507 = vadd.f32 0.0, %v506
  %v508 = vpop.f32.mrf.mxu0
  %509 = vmatprep.mubr.f32.mxu0 0.0
  %510 = vmatmul.mubr.f32.gmra.mxu0 %v335
  %v511 = vpop.f32.mrf.mxu0
  %v512 = vadd.f32 0.0, %v511
  %v513 = vpop.f32.mrf.mxu0
  %514 = vdwg.mxu0
  %516 = vset.pattern.permute.xlu0 0
  %517 = vperm.xlu0 %516, %v408
  %v518 = vpop.permute.xlu0 %517
  %521 = vset.pattern.permute.xlu0 0
  %522 = vperm.xlu0 %521, %v413
  %v523 = vpop.permute.xlu0 %522
  %526 = vset.pattern.permute.xlu0 0
  %527 = vperm.xlu0 %526, %v418
  %v528 = vpop.permute.xlu0 %527
  %531 = vset.pattern.permute.xlu0 0
  %532 = vperm.xlu0 %531, %v423
  %v533 = vpop.permute.xlu0 %532
  %v535 = vmul.f32 %v518, %v305
  %v536 = vmul.f32 %v523, %v310
  %v537 = vmul.f32 %v528, %v315
  %v538 = vmul.f32 %v533, %v320
  %540 = vset.pattern.permute.xlu0 0
  %541 = vperm.xlu0 %540, %v497
  %v542 = vpop.permute.xlu0 %541
  %545 = vset.pattern.permute.xlu0 0
  %546 = vperm.xlu0 %545, %v502
  %v547 = vpop.permute.xlu0 %546
  %550 = vset.pattern.permute.xlu0 0
  %551 = vperm.xlu0 %550, %v507
  %v552 = vpop.permute.xlu0 %551
  %555 = vset.pattern.permute.xlu0 0
  %556 = vperm.xlu0 %555, %v512
  %v557 = vpop.permute.xlu0 %556
  %v559 = vadd.f32 %v542, %v535
  %v560 = vadd.f32 %v547, %v536
  %v561 = vadd.f32 %v552, %v537
  %v562 = vadd.f32 %v557, %v538
  %563 = vset.pattern.permute.xlu0 1
  %564 = vperm.xlu0 %563, %v408
  %v565 = vpop.permute.xlu0 %564
  %567 = vset.pattern.permute.xlu0 1
  %568 = vperm.xlu0 %567, %v413
  %v569 = vpop.permute.xlu0 %568
  %571 = vset.pattern.permute.xlu0 1
  %572 = vperm.xlu0 %571, %v418
  %v573 = vpop.permute.xlu0 %572
  %575 = vset.pattern.permute.xlu0 1
  %576 = vperm.xlu0 %575, %v423
  %v577 = vpop.permute.xlu0 %576
  %v579 = vmul.f32 %v565, %v305
  %v580 = vmul.f32 %v569, %v310
  %v581 = vmul.f32 %v573, %v315
  %v582 = vmul.f32 %v577, %v320
  %587 = vrot.lane.b32.xlu0 %v579, 127
  %v588 = vpop.permute.xlu0 %587
  %589 = vrot.lane.b32.xlu0 %v580, 127
  %v590 = vpop.permute.xlu0 %589
  %591 = vrot.lane.b32.xlu0 %v581, 127
  %v592 = vpop.permute.xlu0 %591
  %593 = vrot.lane.b32.xlu0 %v582, 127
  %v594 = vpop.permute.xlu0 %593
  %v599 = vadd.f32 %v559, %v588
  %v600 = vadd.f32 %v560, %v590
  %v601 = vadd.f32 %v561, %v592
  %v602 = vadd.f32 %v562, %v594
  %603 = vset.pattern.permute.xlu0 2
  %604 = vperm.xlu0 %603, %v408
  %v605 = vpop.permute.xlu0 %604
  %607 = vset.pattern.permute.xlu0 2
  %608 = vperm.xlu0 %607, %v413
  %v609 = vpop.permute.xlu0 %608
  %611 = vset.pattern.permute.xlu0 2
  %612 = vperm.xlu0 %611, %v418
  %v613 = vpop.permute.xlu0 %612
  %615 = vset.pattern.permute.xlu0 2
  %616 = vperm.xlu0 %615, %v423
  %v617 = vpop.permute.xlu0 %616
  %v619 = vmul.f32 %v605, %v305
  %v620 = vmul.f32 %v609, %v310
  %v621 = vmul.f32 %v613, %v315
  %v622 = vmul.f32 %v617, %v320
  %627 = vrot.lane.b32.xlu0 %v619, 126
  %v628 = vpop.permute.xlu0 %627
  %629 = vrot.lane.b32.xlu0 %v620, 126
  %v630 = vpop.permute.xlu0 %629
  %631 = vrot.lane.b32.xlu0 %v621, 126
  %v632 = vpop.permute.xlu0 %631
  %633 = vrot.lane.b32.xlu0 %v622, 126
  %v634 = vpop.permute.xlu0 %633
  %v639 = vadd.f32 %v599, %v628
  %v640 = vadd.f32 %v600, %v630
  %v641 = vadd.f32 %v601, %v632
  %v642 = vadd.f32 %v602, %v634
  %v643 = vld [vmem:[%s4] sm:$0xff]
  %v644 = vld [vmem:[%s4 + $0x8] sm:$0xff]
  %v645 = vld [vmem:[%s5] sm:$0x1]
  %v647 = vlaneseq
  %v648 = vshrl.u32 %v647, 7
  %v649 = vsub.s32 0, %v648
  %v650 = vrot.slane %v645, %v649
  %vm652 = vcmask 130048
  %v654 = vsel %vm652, %v639, 0
  %v657 = vsel %vm652, %v640, 0
  %v660 = vsel %vm652, %v641, 0
  %v663 = vsel %vm652, %v642, 0
  %665 = vmatprep.subr.mxu0 0.0
  %666 = vmatpush1.msra.mxu0 0.0
  %667 = vmatprep.subr.mxu0 0.0
  %668 = vmatpush1.msra.mxu0 0.0
  %669 = vmatprep.subr.mxu0 0.0
  %670 = vmatpush1.msra.mxu0 0.0
  %671 = vmatprep.subr.mxu0 0.0
  %672 = vmatpush1.msra.mxu0 0.0
  %673 = vmatprep.subr.mxu0 0.0
  %674 = vmatpush1.msra.mxu0 0.0
  %675 = vmatprep.subr.mxu0 0.0
  %676 = vmatpush1.msra.mxu0 0.0
  %677 = vmatprep.subr.mxu0 0.0
  %678 = vmatpush1.msra.mxu0 0.0
  %679 = vmatprep.subr.mxu0 0.0
  %680 = vmatpush1.msra.mxu0 0.0
  %681 = vmatprep.subr.mxu0 0.0
  %682 = vmatpush1.msra.mxu0 0.0
  %683 = vmatprep.subr.mxu0 0.0
  %684 = vmatpush1.msra.mxu0 0.0
  %685 = vmatprep.subr.mxu0 0.0
  %686 = vmatpush1.msra.mxu0 0.0
  %687 = vmatprep.subr.mxu0 0.0
  %688 = vmatpush1.msra.mxu0 0.0
  %689 = vmatprep.subr.mxu0 0.0
  %690 = vmatpush1.msra.mxu0 0.0
  %691 = vmatprep.subr.mxu0 0.0
  %692 = vmatpush1.msra.mxu0 0.0
  %693 = vmatprep.subr.mxu0 0.0
  %694 = vmatpush1.msra.mxu0 %v644
  %695 = vmatprep.subr.mxu0 0.0
  %696 = vmatpush1.msra.mxu0 %v643
  %697 = vmatprep.subr.mxu0 0.0
  %698 = vmatpush2.msra.mxu0 0.0
  %699 = vmatprep.subr.mxu0 0.0
  %700 = vmatpush2.msra.mxu0 0.0
  %701 = vmatprep.subr.mxu0 0.0
  %702 = vmatpush2.msra.mxu0 0.0
  %703 = vmatprep.subr.mxu0 0.0
  %704 = vmatpush2.msra.mxu0 0.0
  %705 = vmatprep.subr.mxu0 0.0
  %706 = vmatpush2.msra.mxu0 0.0
  %707 = vmatprep.subr.mxu0 0.0
  %708 = vmatpush2.msra.mxu0 0.0
  %709 = vmatprep.subr.mxu0 0.0
  %710 = vmatpush2.msra.mxu0 0.0
  %711 = vmatprep.subr.mxu0 0.0
  %712 = vmatpush2.msra.mxu0 0.0
  %713 = vmatprep.subr.mxu0 0.0
  %714 = vmatpush2.msra.mxu0 0.0
  %715 = vmatprep.subr.mxu0 0.0
  %716 = vmatpush2.msra.mxu0 0.0
  %717 = vmatprep.subr.mxu0 0.0
  %718 = vmatpush2.msra.mxu0 0.0
  %719 = vmatprep.subr.mxu0 0.0
  %720 = vmatpush2.msra.mxu0 0.0
  %721 = vmatprep.subr.mxu0 0.0
  %722 = vmatpush2.msra.mxu0 0.0
  %723 = vmatprep.subr.mxu0 0.0
  %724 = vmatpush2.msra.mxu0 0.0
  %725 = vmatprep.subr.mxu0 0.0
  %726 = vmatpush2.msra.mxu0 0.0
  %727 = vmatprep.subr.mxu0 0.0
  %728 = vmatpush2.msra.mxu0 0.0
  %729 = vmatprep.mubr.f32.mxu0 0.0
  %730 = vmatmul.mubr.f32.gmra.mxu0 %v654
  %v731 = vpop.f32.mrf.mxu0
  %v732 = vadd.f32 %v650, %v731
  %v733 = vpop.f32.mrf.mxu0
  %734 = vmatprep.mubr.f32.mxu0 0.0
  %735 = vmatmul.mubr.f32.gmra.mxu0 %v657
  %v736 = vpop.f32.mrf.mxu0
  %v737 = vadd.f32 %v650, %v736
  %v738 = vpop.f32.mrf.mxu0
  %739 = vmatprep.mubr.f32.mxu0 0.0
  %740 = vmatmul.mubr.f32.gmra.mxu0 %v660
  %v741 = vpop.f32.mrf.mxu0
  %v742 = vadd.f32 %v650, %v741
  %v743 = vpop.f32.mrf.mxu0
  %744 = vmatprep.mubr.f32.mxu0 0.0
  %745 = vmatmul.mubr.f32.gmra.mxu0 %v663
  %v746 = vpop.f32.mrf.mxu0
  %v747 = vadd.f32 %v650, %v746
  %v748 = vpop.f32.mrf.mxu0
  %749 = vdwg.mxu0
  %vm750 = vcmask 523264
  %v751 = vsel %vm750, %v732, 0.0
  %752 = vadd.xlane.f32.xlu0 %v751
  %v753 = vpop.xlane.xlu0 %752
  %v754 = vsel %vm750, %v737, 0.0
  %755 = vadd.xlane.f32.xlu0 %v754
  %v756 = vpop.xlane.xlu0 %755
  %v757 = vsel %vm750, %v742, 0.0
  %758 = vadd.xlane.f32.xlu0 %v757
  %v759 = vpop.xlane.xlu0 %758
  %v760 = vsel %vm750, %v747, 0.0
  %761 = vadd.xlane.f32.xlu0 %v760
  %v762 = vpop.xlane.xlu0 %761
  %vm763 = vcmask 261120
  %v765 = vsel %vm763, %v93, 0
  %767 = vmatprep.subr.mxu0 0.0
  %768 = vmatpush1.msra.mxu0 0.0
  %769 = vmatprep.subr.mxu0 0.0
  %770 = vmatpush1.msra.mxu0 0.0
  %771 = vmatprep.subr.mxu0 0.0
  %772 = vmatpush1.msra.mxu0 0.0
  %773 = vmatprep.subr.mxu0 0.0
  %774 = vmatpush1.msra.mxu0 0.0
  %775 = vmatprep.subr.mxu0 0.0
  %776 = vmatpush1.msra.mxu0 0.0
  %777 = vmatprep.subr.mxu0 0.0
  %778 = vmatpush1.msra.mxu0 0.0
  %779 = vmatprep.subr.mxu0 0.0
  %780 = vmatpush1.msra.mxu0 0.0
  %781 = vmatprep.subr.mxu0 0.0
  %782 = vmatpush1.msra.mxu0 0.0
  %783 = vmatprep.subr.mxu0 0.0
  %784 = vmatpush1.msra.mxu0 0.0
  %785 = vmatprep.subr.mxu0 0.0
  %786 = vmatpush1.msra.mxu0 0.0
  %787 = vmatprep.subr.mxu0 0.0
  %788 = vmatpush1.msra.mxu0 0.0
  %789 = vmatprep.subr.mxu0 0.0
  %790 = vmatpush1.msra.mxu0 0.0
  %791 = vmatprep.subr.mxu0 0.0
  %792 = vmatpush1.msra.mxu0 %v762
  %793 = vmatprep.subr.mxu0 0.0
  %794 = vmatpush1.msra.mxu0 %v759
  %795 = vmatprep.subr.mxu0 0.0
  %796 = vmatpush1.msra.mxu0 %v756
  %797 = vmatprep.subr.mxu0 0.0
  %798 = vmatpush1.msra.mxu0 %v753
  %799 = vmatprep.subr.mxu0 0.0
  %800 = vmatpush2.msra.mxu0 0.0
  %801 = vmatprep.subr.mxu0 0.0
  %802 = vmatpush2.msra.mxu0 0.0
  %803 = vmatprep.subr.mxu0 0.0
  %804 = vmatpush2.msra.mxu0 0.0
  %805 = vmatprep.subr.mxu0 0.0
  %806 = vmatpush2.msra.mxu0 0.0
  %807 = vmatprep.subr.mxu0 0.0
  %808 = vmatpush2.msra.mxu0 0.0
  %809 = vmatprep.subr.mxu0 0.0
  %810 = vmatpush2.msra.mxu0 0.0
  %811 = vmatprep.subr.mxu0 0.0
  %812 = vmatpush2.msra.mxu0 0.0
  %813 = vmatprep.subr.mxu0 0.0
  %814 = vmatpush2.msra.mxu0 0.0
  %815 = vmatprep.subr.mxu0 0.0
  %816 = vmatpush2.msra.mxu0 0.0
  %817 = vmatprep.subr.mxu0 0.0
  %818 = vmatpush2.msra.mxu0 0.0
  %819 = vmatprep.subr.mxu0 0.0
  %820 = vmatpush2.msra.mxu0 0.0
  %821 = vmatprep.subr.mxu0 0.0
  %822 = vmatpush2.msra.mxu0 0.0
  %823 = vmatprep.subr.mxu0 0.0
  %824 = vmatpush2.msra.mxu0 0.0
  %825 = vmatprep.subr.mxu0 0.0
  %826 = vmatpush2.msra.mxu0 0.0
  %827 = vmatprep.subr.mxu0 0.0
  %828 = vmatpush2.msra.mxu0 0.0
  %829 = vmatprep.subr.mxu0 0.0
  %830 = vmatpush2.msra.mxu0 0.0
  %831 = vmatprep.mubr.f32.mxu0 0.0
  %832 = vmatmul.mubr.f32.gmra.mxu0 %v765
  %v833 = vpop.f32.mrf.mxu0
  %v834 = vadd.f32 0.0, %v833
  %v835 = vpop.f32.mrf.mxu0
  %836 = vdwg.mxu0
  %v837 = vrcp.pop 512.0
  %v838 = vmul.f32 %v834, %v837
  %v840 = vsel %vm324, %v78, 0
  %v843 = vsel %vm324, %v139, 0
  %v846 = vsel %vm324, %v140, 0
  %v849 = vsel %vm324, %v141, 0
  %v852 = vsel %vm337, %v838, 0
  %854 = vmatprep.subr.mxu0 0.0
  %855 = vmatpush1.msra.mxu0 0.0
  %856 = vmatprep.subr.mxu0 0.0
  %857 = vmatpush1.msra.mxu0 0.0
  %858 = vmatprep.subr.mxu0 0.0
  %859 = vmatpush1.msra.mxu0 0.0
  %860 = vmatprep.subr.mxu0 0.0
  %861 = vmatpush1.msra.mxu0 0.0
  %862 = vmatprep.subr.mxu0 0.0
  %863 = vmatpush1.msra.mxu0 0.0
  %864 = vmatprep.subr.mxu0 0.0
  %865 = vmatpush1.msra.mxu0 0.0
  %866 = vmatprep.subr.mxu0 0.0
  %867 = vmatpush1.msra.mxu0 0.0
  %868 = vmatprep.subr.mxu0 0.0
  %869 = vmatpush1.msra.mxu0 0.0
  %870 = vmatprep.subr.mxu0 0.0
  %871 = vmatpush1.msra.mxu0 0.0
  %872 = vmatprep.subr.mxu0 0.0
  %873 = vmatpush1.msra.mxu0 0.0
  %874 = vmatprep.subr.mxu0 0.0
  %875 = vmatpush1.msra.mxu0 0.0
  %876 = vmatprep.subr.mxu0 0.0
  %877 = vmatpush1.msra.mxu0 0.0
  %878 = vmatprep.subr.mxu0 0.0
  %879 = vmatpush1.msra.mxu0 0.0
  %880 = vmatprep.subr.mxu0 0.0
  %881 = vmatpush1.msra.mxu0 0.0
  %882 = vmatprep.subr.mxu0 0.0
  %883 = vmatpush1.msra.mxu0 0.0
  %884 = vmatprep.subr.mxu0 0.0
  %885 = vmatpush1.msra.mxu0 %v852
  %886 = vmatprep.subr.mxu0 0.0
  %887 = vmatpush2.msra.mxu0 0.0
  %888 = vmatprep.subr.mxu0 0.0
  %889 = vmatpush2.msra.mxu0 0.0
  %890 = vmatprep.subr.mxu0 0.0
  %891 = vmatpush2.msra.mxu0 0.0
  %892 = vmatprep.subr.mxu0 0.0
  %893 = vmatpush2.msra.mxu0 0.0
  %894 = vmatprep.subr.mxu0 0.0
  %895 = vmatpush2.msra.mxu0 0.0
  %896 = vmatprep.subr.mxu0 0.0
  %897 = vmatpush2.msra.mxu0 0.0
  %898 = vmatprep.subr.mxu0 0.0
  %899 = vmatpush2.msra.mxu0 0.0
  %900 = vmatprep.subr.mxu0 0.0
  %901 = vmatpush2.msra.mxu0 0.0
  %902 = vmatprep.subr.mxu0 0.0
  %903 = vmatpush2.msra.mxu0 0.0
  %904 = vmatprep.subr.mxu0 0.0
  %905 = vmatpush2.msra.mxu0 0.0
  %906 = vmatprep.subr.mxu0 0.0
  %907 = vmatpush2.msra.mxu0 0.0
  %908 = vmatprep.subr.mxu0 0.0
  %909 = vmatpush2.msra.mxu0 0.0
  %910 = vmatprep.subr.mxu0 0.0
  %911 = vmatpush2.msra.mxu0 0.0
  %912 = vmatprep.subr.mxu0 0.0
  %913 = vmatpush2.msra.mxu0 0.0
  %914 = vmatprep.subr.mxu0 0.0
  %915 = vmatpush2.msra.mxu0 0.0
  %916 = vmatprep.subr.mxu0 0.0
  %917 = vmatpush2.msra.mxu0 0.0
  %918 = vmatprep.mubr.f32.mxu0 0.0
  %919 = vmatmul.mubr.f32.gmra.mxu0 %v840
  %v920 = vpop.f32.mrf.mxu0
  %v921 = vadd.f32 0.0, %v920
  %v922 = vpop.f32.mrf.mxu0
  %923 = vmatprep.mubr.f32.mxu0 0.0
  %924 = vmatmul.mubr.f32.gmra.mxu0 %v843
  %v925 = vpop.f32.mrf.mxu0
  %v926 = vadd.f32 0.0, %v925
  %v927 = vpop.f32.mrf.mxu0
  %928 = vmatprep.mubr.f32.mxu0 0.0
  %929 = vmatmul.mubr.f32.gmra.mxu0 %v846
  %v930 = vpop.f32.mrf.mxu0
  %v931 = vadd.f32 0.0, %v930
  %v932 = vpop.f32.mrf.mxu0
  %933 = vmatprep.mubr.f32.mxu0 0.0
  %934 = vmatmul.mubr.f32.gmra.mxu0 %v849
  %v935 = vpop.f32.mrf.mxu0
  %v936 = vadd.f32 0.0, %v935
  %v937 = vpop.f32.mrf.mxu0
  %938 = vdwg.mxu0
  %940 = vset.pattern.permute.xlu0 0
  %941 = vperm.xlu0 %940, %v921
  %v942 = vpop.permute.xlu0 %941
  %945 = vset.pattern.permute.xlu0 0
  %946 = vperm.xlu0 %945, %v926
  %v947 = vpop.permute.xlu0 %946
  %950 = vset.pattern.permute.xlu0 0
  %951 = vperm.xlu0 %950, %v931
  %v952 = vpop.permute.xlu0 %951
  %955 = vset.pattern.permute.xlu0 0
  %956 = vperm.xlu0 %955, %v936
  %v957 = vpop.permute.xlu0 %956
  %v959 = vsub.f32 %v732, %v942
  %v960 = vsub.f32 %v737, %v947
  %v961 = vsub.f32 %v742, %v952
  %v962 = vsub.f32 %v747, %v957
  %v963 = vmul.f32 %v959, %v959
  %v964 = vmul.f32 %v960, %v960
  %v965 = vmul.f32 %v961, %v961
  %v966 = vmul.f32 %v962, %v962
  %v967 = vsel %vm750, %v963, 0.0
  %968 = vadd.xlane.f32.xlu0 %v967
  %v969 = vpop.xlane.xlu0 %968
  %v970 = vsel %vm750, %v964, 0.0
  %971 = vadd.xlane.f32.xlu0 %v970
  %v972 = vpop.xlane.xlu0 %971
  %v973 = vsel %vm750, %v965, 0.0
  %974 = vadd.xlane.f32.xlu0 %v973
  %v975 = vpop.xlane.xlu0 %974
  %v976 = vsel %vm750, %v966, 0.0
  %977 = vadd.xlane.f32.xlu0 %v976
  %v978 = vpop.xlane.xlu0 %977
  %979 = vmatprep.subr.mxu0 0.0
  %980 = vmatpush1.msra.mxu0 0.0
  %981 = vmatprep.subr.mxu0 0.0
  %982 = vmatpush1.msra.mxu0 0.0
  %983 = vmatprep.subr.mxu0 0.0
  %984 = vmatpush1.msra.mxu0 0.0
  %985 = vmatprep.subr.mxu0 0.0
  %986 = vmatpush1.msra.mxu0 0.0
  %987 = vmatprep.subr.mxu0 0.0
  %988 = vmatpush1.msra.mxu0 0.0
  %989 = vmatprep.subr.mxu0 0.0
  %990 = vmatpush1.msra.mxu0 0.0
  %991 = vmatprep.subr.mxu0 0.0
  %992 = vmatpush1.msra.mxu0 0.0
  %993 = vmatprep.subr.mxu0 0.0
  %994 = vmatpush1.msra.mxu0 0.0
  %995 = vmatprep.subr.mxu0 0.0
  %996 = vmatpush1.msra.mxu0 0.0
  %997 = vmatprep.subr.mxu0 0.0
  %998 = vmatpush1.msra.mxu0 0.0
  %999 = vmatprep.subr.mxu0 0.0
  %1000 = vmatpush1.msra.mxu0 0.0
  %1001 = vmatprep.subr.mxu0 0.0
  %1002 = vmatpush1.msra.mxu0 0.0
  %1003 = vmatprep.subr.mxu0 0.0
  %1004 = vmatpush1.msra.mxu0 %v978
  %1005 = vmatprep.subr.mxu0 0.0
  %1006 = vmatpush1.msra.mxu0 %v975
  %1007 = vmatprep.subr.mxu0 0.0
  %1008 = vmatpush1.msra.mxu0 %v972
  %1009 = vmatprep.subr.mxu0 0.0
  %1010 = vmatpush1.msra.mxu0 %v969
  %1011 = vmatprep.subr.mxu0 0.0
  %1012 = vmatpush2.msra.mxu0 0.0
  %1013 = vmatprep.subr.mxu0 0.0
  %1014 = vmatpush2.msra.mxu0 0.0
  %1015 = vmatprep.subr.mxu0 0.0
  %1016 = vmatpush2.msra.mxu0 0.0
  %1017 = vmatprep.subr.mxu0 0.0
  %1018 = vmatpush2.msra.mxu0 0.0
  %1019 = vmatprep.subr.mxu0 0.0
  %1020 = vmatpush2.msra.mxu0 0.0
  %1021 = vmatprep.subr.mxu0 0.0
  %1022 = vmatpush2.msra.mxu0 0.0
  %1023 = vmatprep.subr.mxu0 0.0
  %1024 = vmatpush2.msra.mxu0 0.0
  %1025 = vmatprep.subr.mxu0 0.0
  %1026 = vmatpush2.msra.mxu0 0.0
  %1027 = vmatprep.subr.mxu0 0.0
  %1028 = vmatpush2.msra.mxu0 0.0
  %1029 = vmatprep.subr.mxu0 0.0
  %1030 = vmatpush2.msra.mxu0 0.0
  %1031 = vmatprep.subr.mxu0 0.0
  %1032 = vmatpush2.msra.mxu0 0.0
  %1033 = vmatprep.subr.mxu0 0.0
  %1034 = vmatpush2.msra.mxu0 0.0
  %1035 = vmatprep.subr.mxu0 0.0
  %1036 = vmatpush2.msra.mxu0 0.0
  %1037 = vmatprep.subr.mxu0 0.0
  %1038 = vmatpush2.msra.mxu0 0.0
  %1039 = vmatprep.subr.mxu0 0.0
  %1040 = vmatpush2.msra.mxu0 0.0
  %1041 = vmatprep.subr.mxu0 0.0
  %1042 = vmatpush2.msra.mxu0 0.0
  %1043 = vmatprep.mubr.f32.mxu0 0.0
  %1044 = vmatmul.mubr.f32.gmra.mxu0 %v765
  %v1045 = vpop.f32.mrf.mxu0
  %v1046 = vadd.f32 0.0, %v1045
  %v1047 = vpop.f32.mrf.mxu0
  %1048 = vdwg.mxu0
  %v1049 = vmul.f32 %v1046, %v837
  %v1051 = vsel %vm337, %v1049, 0
  %1053 = vmatprep.subr.mxu0 0.0
  %1054 = vmatpush1.msra.mxu0 0.0
  %1055 = vmatprep.subr.mxu0 0.0
  %1056 = vmatpush1.msra.mxu0 0.0
  %1057 = vmatprep.subr.mxu0 0.0
  %1058 = vmatpush1.msra.mxu0 0.0
  %1059 = vmatprep.subr.mxu0 0.0
  %1060 = vmatpush1.msra.mxu0 0.0
  %1061 = vmatprep.subr.mxu0 0.0
  %1062 = vmatpush1.msra.mxu0 0.0
  %1063 = vmatprep.subr.mxu0 0.0
  %1064 = vmatpush1.msra.mxu0 0.0
  %1065 = vmatprep.subr.mxu0 0.0
  %1066 = vmatpush1.msra.mxu0 0.0
  %1067 = vmatprep.subr.mxu0 0.0
  %1068 = vmatpush1.msra.mxu0 0.0
  %1069 = vmatprep.subr.mxu0 0.0
  %1070 = vmatpush1.msra.mxu0 0.0
  %1071 = vmatprep.subr.mxu0 0.0
  %1072 = vmatpush1.msra.mxu0 0.0
  %1073 = vmatprep.subr.mxu0 0.0
  %1074 = vmatpush1.msra.mxu0 0.0
  %1075 = vmatprep.subr.mxu0 0.0
  %1076 = vmatpush1.msra.mxu0 0.0
  %1077 = vmatprep.subr.mxu0 0.0
  %1078 = vmatpush1.msra.mxu0 0.0
  %1079 = vmatprep.subr.mxu0 0.0
  %1080 = vmatpush1.msra.mxu0 0.0
  %1081 = vmatprep.subr.mxu0 0.0
  %1082 = vmatpush1.msra.mxu0 0.0
  %1083 = vmatprep.subr.mxu0 0.0
  %1084 = vmatpush1.msra.mxu0 %v1051
  %1085 = vmatprep.subr.mxu0 0.0
  %1086 = vmatpush2.msra.mxu0 0.0
  %1087 = vmatprep.subr.mxu0 0.0
  %1088 = vmatpush2.msra.mxu0 0.0
  %1089 = vmatprep.subr.mxu0 0.0
  %1090 = vmatpush2.msra.mxu0 0.0
  %1091 = vmatprep.subr.mxu0 0.0
  %1092 = vmatpush2.msra.mxu0 0.0
  %1093 = vmatprep.subr.mxu0 0.0
  %1094 = vmatpush2.msra.mxu0 0.0
  %1095 = vmatprep.subr.mxu0 0.0
  %1096 = vmatpush2.msra.mxu0 0.0
  %1097 = vmatprep.subr.mxu0 0.0
  %1098 = vmatpush2.msra.mxu0 0.0
  %1099 = vmatprep.subr.mxu0 0.0
  %1100 = vmatpush2.msra.mxu0 0.0
  %1101 = vmatprep.subr.mxu0 0.0
  %1102 = vmatpush2.msra.mxu0 0.0
  %1103 = vmatprep.subr.mxu0 0.0
  %1104 = vmatpush2.msra.mxu0 0.0
  %1105 = vmatprep.subr.mxu0 0.0
  %1106 = vmatpush2.msra.mxu0 0.0
  %1107 = vmatprep.subr.mxu0 0.0
  %1108 = vmatpush2.msra.mxu0 0.0
  %1109 = vmatprep.subr.mxu0 0.0
  %1110 = vmatpush2.msra.mxu0 0.0
  %1111 = vmatprep.subr.mxu0 0.0
  %1112 = vmatpush2.msra.mxu0 0.0
  %1113 = vmatprep.subr.mxu0 0.0
  %1114 = vmatpush2.msra.mxu0 0.0
  %1115 = vmatprep.subr.mxu0 0.0
  %1116 = vmatpush2.msra.mxu0 0.0
  %1117 = vmatprep.mubr.f32.mxu0 0.0
  %1118 = vmatmul.mubr.f32.gmra.mxu0 %v840
  %v1119 = vpop.f32.mrf.mxu0
  %v1120 = vadd.f32 1e-05, %v1119
  %v1121 = vpop.f32.mrf.mxu0
  %1122 = vmatprep.mubr.f32.mxu0 0.0
  %1123 = vmatmul.mubr.f32.gmra.mxu0 %v843
  %v1124 = vpop.f32.mrf.mxu0
  %v1125 = vadd.f32 1e-05, %v1124
  %v1126 = vpop.f32.mrf.mxu0
  %1127 = vmatprep.mubr.f32.mxu0 0.0
  %1128 = vmatmul.mubr.f32.gmra.mxu0 %v846
  %v1129 = vpop.f32.mrf.mxu0
  %v1130 = vadd.f32 1e-05, %v1129
  %v1131 = vpop.f32.mrf.mxu0
  %1132 = vmatprep.mubr.f32.mxu0 0.0
  %1133 = vmatmul.mubr.f32.gmra.mxu0 %v849
  %v1134 = vpop.f32.mrf.mxu0
  %v1135 = vadd.f32 1e-05, %v1134
  %v1136 = vpop.f32.mrf.mxu0
  %1137 = vdwg.mxu0
  %v1138 = vrsqrt.pop %v1120
  %v1139 = vrsqrt.pop %v1125
  %v1140 = vrsqrt.pop %v1130
  %v1141 = vrsqrt.pop %v1135
  %1143 = vset.pattern.permute.xlu0 0
  %1144 = vperm.xlu0 %1143, %v1138
  %v1145 = vpop.permute.xlu0 %1144
  %1148 = vset.pattern.permute.xlu0 0
  %1149 = vperm.xlu0 %1148, %v1139
  %v1150 = vpop.permute.xlu0 %1149
  %1153 = vset.pattern.permute.xlu0 0
  %1154 = vperm.xlu0 %1153, %v1140
  %v1155 = vpop.permute.xlu0 %1154
  %1158 = vset.pattern.permute.xlu0 0
  %1159 = vperm.xlu0 %1158, %v1141
  %v1160 = vpop.permute.xlu0 %1159
  %v1162 = vmul.f32 %v959, %v1145
  %v1163 = vmul.f32 %v960, %v1150
  %v1164 = vmul.f32 %v961, %v1155
  %v1165 = vmul.f32 %v962, %v1160
  %vm1166 = vcmp.gt.f32.partialorder %v1162, 0.0
  %vm1167 = vcmp.gt.f32.partialorder %v1163, 0.0
  %vm1168 = vcmp.gt.f32.partialorder %v1164, 0.0
  %vm1169 = vcmp.gt.f32.partialorder %v1165, 0.0
  %v1170 = vmul.f32 %v1162, 0.01
  %v1171 = vmul.f32 %v1163, 0.01
  %v1172 = vmul.f32 %v1164, 0.01
  %v1173 = vmul.f32 %v1165, 0.01
  %v1174 = vsel %vm1166, %v1162, %v1170
  %v1175 = vsel %vm1167, %v1163, %v1171
  %v1176 = vsel %vm1168, %v1164, %v1172
  %v1177 = vsel %vm1169, %v1165, %v1173
  %v1178 = vld [vmem:[%s6] sm:$0xff]
  %v1179 = vld [vmem:[%s6 + $0x8] sm:$0xff]
  %v1180 = vld [vmem:[%s6 + $0x10] sm:$0xff]
  %v1181 = vld [vmem:[%s6 + $0x18] sm:$0xff]
  %v1182 = vld [vmem:[%s6 + $0x20] sm:$0xff]
  %v1183 = vld [vmem:[%s6 + $0x28] sm:$0xff]
  %v1184 = vld [vmem:[%s6 + $0x30] sm:$0xff]
  %v1185 = vld [vmem:[%s6 + $0x38] sm:$0xff]
  %v1186 = vld [vmem:[%s7] sm:$0x1]
  %v1188 = vlaneseq
  %v1189 = vshrl.u32 %v1188, 7
  %v1190 = vsub.s32 0, %v1189
  %v1191 = vrot.slane %v1186, %v1190
  %v1194 = vsel %vm750, %v1174, 0
  %v1197 = vsel %vm750, %v1175, 0
  %v1200 = vsel %vm750, %v1176, 0
  %v1203 = vsel %vm750, %v1177, 0
  %1205 = vmatprep.subr.mxu0 0.0
  %1206 = vmatpush1.msra.mxu0 0.0
  %1207 = vmatprep.subr.mxu0 0.0
  %1208 = vmatpush1.msra.mxu0 0.0
  %1209 = vmatprep.subr.mxu0 0.0
  %1210 = vmatpush1.msra.mxu0 0.0
  %1211 = vmatprep.subr.mxu0 0.0
  %1212 = vmatpush1.msra.mxu0 0.0
  %1213 = vmatprep.subr.mxu0 0.0
  %1214 = vmatpush1.msra.mxu0 0.0
  %1215 = vmatprep.subr.mxu0 0.0
  %1216 = vmatpush1.msra.mxu0 0.0
  %1217 = vmatprep.subr.mxu0 0.0
  %1218 = vmatpush1.msra.mxu0 0.0
  %1219 = vmatprep.subr.mxu0 0.0
  %1220 = vmatpush1.msra.mxu0 0.0
  %1221 = vmatprep.subr.mxu0 0.0
  %1222 = vmatpush1.msra.mxu0 %v1185
  %1223 = vmatprep.subr.mxu0 0.0
  %1224 = vmatpush1.msra.mxu0 %v1184
  %1225 = vmatprep.subr.mxu0 0.0
  %1226 = vmatpush1.msra.mxu0 %v1183
  %1227 = vmatprep.subr.mxu0 0.0
  %1228 = vmatpush1.msra.mxu0 %v1182
  %1229 = vmatprep.subr.mxu0 0.0
  %1230 = vmatpush1.msra.mxu0 %v1181
  %1231 = vmatprep.subr.mxu0 0.0
  %1232 = vmatpush1.msra.mxu0 %v1180
  %1233 = vmatprep.subr.mxu0 0.0
  %1234 = vmatpush1.msra.mxu0 %v1179
  %1235 = vmatprep.subr.mxu0 0.0
  %1236 = vmatpush1.msra.mxu0 %v1178
  %1237 = vmatprep.subr.mxu0 0.0
  %1238 = vmatpush2.msra.mxu0 0.0
  %1239 = vmatprep.subr.mxu0 0.0
  %1240 = vmatpush2.msra.mxu0 0.0
  %1241 = vmatprep.subr.mxu0 0.0
  %1242 = vmatpush2.msra.mxu0 0.0
  %1243 = vmatprep.subr.mxu0 0.0
  %1244 = vmatpush2.msra.mxu0 0.0
  %1245 = vmatprep.subr.mxu0 0.0
  %1246 = vmatpush2.msra.mxu0 0.0
  %1247 = vmatprep.subr.mxu0 0.0
  %1248 = vmatpush2.msra.mxu0 0.0
  %1249 = vmatprep.subr.mxu0 0.0
  %1250 = vmatpush2.msra.mxu0 0.0
  %1251 = vmatprep.subr.mxu0 0.0
  %1252 = vmatpush2.msra.mxu0 0.0
  %1253 = vmatprep.subr.mxu0 0.0
  %1254 = vmatpush2.msra.mxu0 0.0
  %1255 = vmatprep.subr.mxu0 0.0
  %1256 = vmatpush2.msra.mxu0 0.0
  %1257 = vmatprep.subr.mxu0 0.0
  %1258 = vmatpush2.msra.mxu0 0.0
  %1259 = vmatprep.subr.mxu0 0.0
  %1260 = vmatpush2.msra.mxu0 0.0
  %1261 = vmatprep.subr.mxu0 0.0
  %1262 = vmatpush2.msra.mxu0 0.0
  %1263 = vmatprep.subr.mxu0 0.0
  %1264 = vmatpush2.msra.mxu0 0.0
  %1265 = vmatprep.subr.mxu0 0.0
  %1266 = vmatpush2.msra.mxu0 0.0
  %1267 = vmatprep.subr.mxu0 0.0
  %1268 = vmatpush2.msra.mxu0 0.0
  %1269 = vmatprep.mubr.f32.mxu0 0.0
  %1270 = vmatmul.mubr.f32.gmra.mxu0 %v1194
  %v1271 = vpop.f32.mrf.mxu0
  %v1272 = vadd.f32 %v1191, %v1271
  %v1273 = vpop.f32.mrf.mxu0
  %1274 = vmatprep.mubr.f32.mxu0 0.0
  %1275 = vmatmul.mubr.f32.gmra.mxu0 %v1197
  %v1276 = vpop.f32.mrf.mxu0
  %v1277 = vadd.f32 %v1191, %v1276
  %v1278 = vpop.f32.mrf.mxu0
  %1279 = vmatprep.mubr.f32.mxu0 0.0
  %1280 = vmatmul.mubr.f32.gmra.mxu0 %v1200
  %v1281 = vpop.f32.mrf.mxu0
  %v1282 = vadd.f32 %v1191, %v1281
  %v1283 = vpop.f32.mrf.mxu0
  %1284 = vmatprep.mubr.f32.mxu0 0.0
  %1285 = vmatmul.mubr.f32.gmra.mxu0 %v1203
  %v1286 = vpop.f32.mrf.mxu0
  %v1287 = vadd.f32 %v1191, %v1286
  %v1288 = vpop.f32.mrf.mxu0
  %1289 = vdwg.mxu0
  %v1290 = vld [vmem:[%s1] sm:$0xff]
  %v1291 = vld [vmem:[%s1 + $0x8] sm:$0xff]
  %v1292 = vld [vmem:[%s1 + $0x10] sm:$0xff]
  %v1293 = vld [vmem:[%s1 + $0x18] sm:$0xff]
  %v1294 = vadd.f32 %v1272, %v1290
  %v1295 = vadd.f32 %v1277, %v1291
  %v1296 = vadd.f32 %v1282, %v1292
  %v1297 = vadd.f32 %v1287, %v1293
  %1302 = vrot.lane.b32.xlu0 %v1294, 127
  %v1303 = vpop.permute.xlu0 %1302
  %1304 = vrot.lane.b32.xlu0 %v1295, 127
  %v1305 = vpop.permute.xlu0 %1304
  %1306 = vrot.lane.b32.xlu0 %v1296, 127
  %v1307 = vpop.permute.xlu0 %1306
  %1308 = vrot.lane.b32.xlu0 %v1297, 127
  %v1309 = vpop.permute.xlu0 %1308
  %v1314 = vmax.f32 %v1294, %v1303
  %v1315 = vmax.f32 %v1295, %v1305
  %v1316 = vmax.f32 %v1296, %v1307
  %v1317 = vmax.f32 %v1297, %v1309
  %v1318 = vsub.f32 %v1294, %v1314
  %v1319 = vsub.f32 %v1295, %v1315
  %v1320 = vsub.f32 %v1296, %v1316
  %v1321 = vsub.f32 %v1297, %v1317
  %v1322 = vmul.f32 %v1318, 1.442695
  %v1323 = vpow.pop %v1322
  %v1324 = vmul.f32 %v1319, 1.442695
  %v1325 = vpow.pop %v1324
  %v1326 = vmul.f32 %v1320, 1.442695
  %v1327 = vpow.pop %v1326
  %v1328 = vmul.f32 %v1321, 1.442695
  %v1329 = vpow.pop %v1328
  %1334 = vrot.lane.b32.xlu0 %v1314, 1
  %v1335 = vpop.permute.xlu0 %1334
  %1336 = vrot.lane.b32.xlu0 %v1315, 1
  %v1337 = vpop.permute.xlu0 %1336
  %1338 = vrot.lane.b32.xlu0 %v1316, 1
  %v1339 = vpop.permute.xlu0 %1338
  %1340 = vrot.lane.b32.xlu0 %v1317, 1
  %v1341 = vpop.permute.xlu0 %1340
  %v1346 = vsub.f32 %v1294, %v1335
  %v1347 = vsub.f32 %v1295, %v1337
  %v1348 = vsub.f32 %v1296, %v1339
  %v1349 = vsub.f32 %v1297, %v1341
  %v1350 = vmul.f32 %v1346, 1.442695
  %v1351 = vpow.pop %v1350
  %v1352 = vmul.f32 %v1347, 1.442695
  %v1353 = vpow.pop %v1352
  %v1354 = vmul.f32 %v1348, 1.442695
  %v1355 = vpow.pop %v1354
  %v1356 = vmul.f32 %v1349, 1.442695
  %v1357 = vpow.pop %v1356
  %1362 = vrot.lane.b32.xlu0 %v1351, 127
  %v1363 = vpop.permute.xlu0 %1362
  %1364 = vrot.lane.b32.xlu0 %v1353, 127
  %v1365 = vpop.permute.xlu0 %1364
  %1366 = vrot.lane.b32.xlu0 %v1355, 127
  %v1367 = vpop.permute.xlu0 %1366
  %1368 = vrot.lane.b32.xlu0 %v1357, 127
  %v1369 = vpop.permute.xlu0 %1368
  %v1374 = vadd.f32 %v1323, %v1363
  %v1375 = vadd.f32 %v1325, %v1365
  %v1376 = vadd.f32 %v1327, %v1367
  %v1377 = vadd.f32 %v1329, %v1369
  %v1378 = vrcp.pop %v1374
  %v1379 = vrcp.pop %v1375
  %v1380 = vrcp.pop %v1376
  %v1381 = vrcp.pop %v1377
  %v1382 = vmul.f32 %v1323, %v1378
  %v1383 = vmul.f32 %v1325, %v1379
  %v1384 = vmul.f32 %v1327, %v1380
  %v1385 = vmul.f32 %v1329, %v1381
  %1390 = vrot.lane.b32.xlu0 %v1378, 1
  %v1391 = vpop.permute.xlu0 %1390
  %1392 = vrot.lane.b32.xlu0 %v1379, 1
  %v1393 = vpop.permute.xlu0 %1392
  %1394 = vrot.lane.b32.xlu0 %v1380, 1
  %v1395 = vpop.permute.xlu0 %1394
  %1396 = vrot.lane.b32.xlu0 %v1381, 1
  %v1397 = vpop.permute.xlu0 %1396
  %v1402 = vmul.f32 %v1351, %v1391
  %v1403 = vmul.f32 %v1353, %v1393
  %v1404 = vmul.f32 %v1355, %v1395
  %v1405 = vmul.f32 %v1357, %v1397
  %v1406 = vadd.s32 %v61, 1
  %v1407 = vadd.s32 %v94, 1
  %vm1408 = vcmp.eq.s32.totalorder %v1406, %v63
  %vm1409 = vcmp.eq.s32.totalorder %v1407, %v63
  %v1410 = vsel %vm1408, 1, 0
  %v1411 = vsel %vm1409, 1, 0
  %v1412 = vcvt.s32.f32 %v1410
  %v1413 = vcvt.s32.f32 %v1411
  %vm1414 = vcmp.eq.s32.totalorder %v61, %v207
  %vm1415 = vcmp.eq.s32.totalorder %v94, %v207
  %v1416 = vsel %vm1414, 1, 0
  %v1417 = vsel %vm1415, 1, 0
  %v1418 = vcvt.s32.f32 %v1416
  %v1419 = vcvt.s32.f32 %v1417
  %1420 = vmatprep.subr.mxu0 0.0
  %1421 = vmatpush1.msra.mxu0 0.0
  %1422 = vmatprep.subr.mxu0 0.0
  %1423 = vmatpush1.msra.mxu0 0.0
  %1424 = vmatprep.subr.mxu0 0.0
  %1425 = vmatpush1.msra.mxu0 0.0
  %1426 = vmatprep.subr.mxu0 0.0
  %1427 = vmatpush1.msra.mxu0 0.0
  %1428 = vmatprep.subr.mxu0 0.0
  %1429 = vmatpush1.msra.mxu0 0.0
  %1430 = vmatprep.subr.mxu0 0.0
  %1431 = vmatpush1.msra.mxu0 0.0
  %1432 = vmatprep.subr.mxu0 0.0
  %1433 = vmatpush1.msra.mxu0 0.0
  %1434 = vmatprep.subr.mxu0 0.0
  %1435 = vmatpush1.msra.mxu0 0.0
  %1436 = vmatprep.subr.mxu0 0.0
  %1437 = vmatpush1.msra.mxu0 0.0
  %1438 = vmatprep.subr.mxu0 0.0
  %1439 = vmatpush1.msra.mxu0 0.0
  %1440 = vmatprep.subr.mxu0 0.0
  %1441 = vmatpush1.msra.mxu0 0.0
  %1442 = vmatprep.subr.mxu0 0.0
  %1443 = vmatpush1.msra.mxu0 0.0
  %1444 = vmatprep.subr.mxu0 0.0
  %1445 = vmatpush1.msra.mxu0 0.0
  %1446 = vmatprep.subr.mxu0 0.0
  %1447 = vmatpush1.msra.mxu0 0.0
  %1448 = vmatprep.subr.mxu0 0.0
  %1449 = vmatpush1.msra.mxu0 %v1413
  %1450 = vmatprep.subr.mxu0 0.0
  %1451 = vmatpush1.msra.mxu0 %v1412
  %1452 = vmatprep.subr.mxu0 0.0
  %1453 = vmatpush2.msra.mxu0 0.0
  %1454 = vmatprep.subr.mxu0 0.0
  %1455 = vmatpush2.msra.mxu0 0.0
  %1456 = vmatprep.subr.mxu0 0.0
  %1457 = vmatpush2.msra.mxu0 0.0
  %1458 = vmatprep.subr.mxu0 0.0
  %1459 = vmatpush2.msra.mxu0 0.0
  %1460 = vmatprep.subr.mxu0 0.0
  %1461 = vmatpush2.msra.mxu0 0.0
  %1462 = vmatprep.subr.mxu0 0.0
  %1463 = vmatpush2.msra.mxu0 0.0
  %1464 = vmatprep.subr.mxu0 0.0
  %1465 = vmatpush2.msra.mxu0 0.0
  %1466 = vmatprep.subr.mxu0 0.0
  %1467 = vmatpush2.msra.mxu0 0.0
  %1468 = vmatprep.subr.mxu0 0.0
  %1469 = vmatpush2.msra.mxu0 0.0
  %1470 = vmatprep.subr.mxu0 0.0
  %1471 = vmatpush2.msra.mxu0 0.0
  %1472 = vmatprep.subr.mxu0 0.0
  %1473 = vmatpush2.msra.mxu0 0.0
  %1474 = vmatprep.subr.mxu0 0.0
  %1475 = vmatpush2.msra.mxu0 0.0
  %1476 = vmatprep.subr.mxu0 0.0
  %1477 = vmatpush2.msra.mxu0 0.0
  %1478 = vmatprep.subr.mxu0 0.0
  %1479 = vmatpush2.msra.mxu0 0.0
  %1480 = vmatprep.subr.mxu0 0.0
  %1481 = vmatpush2.msra.mxu0 0.0
  %1482 = vmatprep.subr.mxu0 0.0
  %1483 = vmatpush2.msra.mxu0 0.0
  %1484 = vmatprep.mubr.f32.mxu0 0.0
  %1485 = vmatmul.mubr.f32.gmra.mxu0 %v654
  %v1486 = vpop.f32.mrf.mxu0
  %v1487 = vadd.f32 0.0, %v1486
  %v1488 = vpop.f32.mrf.mxu0
  %1489 = vmatprep.mubr.f32.mxu0 0.0
  %1490 = vmatmul.mubr.f32.gmra.mxu0 %v657
  %v1491 = vpop.f32.mrf.mxu0
  %v1492 = vadd.f32 0.0, %v1491
  %v1493 = vpop.f32.mrf.mxu0
  %1494 = vmatprep.mubr.f32.mxu0 0.0
  %1495 = vmatmul.mubr.f32.gmra.mxu0 %v660
  %v1496 = vpop.f32.mrf.mxu0
  %v1497 = vadd.f32 0.0, %v1496
  %v1498 = vpop.f32.mrf.mxu0
  %1499 = vmatprep.mubr.f32.mxu0 0.0
  %1500 = vmatmul.mubr.f32.gmra.mxu0 %v663
  %v1501 = vpop.f32.mrf.mxu0
  %v1502 = vadd.f32 0.0, %v1501
  %v1503 = vpop.f32.mrf.mxu0
  %1504 = vdwg.mxu0
  %1505 = vmatprep.subr.mxu0 0.0
  %1506 = vmatpush1.msra.mxu0 0.0
  %1507 = vmatprep.subr.mxu0 0.0
  %1508 = vmatpush1.msra.mxu0 0.0
  %1509 = vmatprep.subr.mxu0 0.0
  %1510 = vmatpush1.msra.mxu0 0.0
  %1511 = vmatprep.subr.mxu0 0.0
  %1512 = vmatpush1.msra.mxu0 0.0
  %1513 = vmatprep.subr.mxu0 0.0
  %1514 = vmatpush1.msra.mxu0 0.0
  %1515 = vmatprep.subr.mxu0 0.0
  %1516 = vmatpush1.msra.mxu0 0.0
  %1517 = vmatprep.subr.mxu0 0.0
  %1518 = vmatpush1.msra.mxu0 0.0
  %1519 = vmatprep.subr.mxu0 0.0
  %1520 = vmatpush1.msra.mxu0 0.0
  %1521 = vmatprep.subr.mxu0 0.0
  %1522 = vmatpush1.msra.mxu0 0.0
  %1523 = vmatprep.subr.mxu0 0.0
  %1524 = vmatpush1.msra.mxu0 0.0
  %1525 = vmatprep.subr.mxu0 0.0
  %1526 = vmatpush1.msra.mxu0 0.0
  %1527 = vmatprep.subr.mxu0 0.0
  %1528 = vmatpush1.msra.mxu0 0.0
  %1529 = vmatprep.subr.mxu0 0.0
  %1530 = vmatpush1.msra.mxu0 0.0
  %1531 = vmatprep.subr.mxu0 0.0
  %1532 = vmatpush1.msra.mxu0 0.0
  %1533 = vmatprep.subr.mxu0 0.0
  %1534 = vmatpush1.msra.mxu0 %v1419
  %1535 = vmatprep.subr.mxu0 0.0
  %1536 = vmatpush1.msra.mxu0 %v1418
  %1537 = vmatprep.subr.mxu0 0.0
  %1538 = vmatpush2.msra.mxu0 0.0
  %1539 = vmatprep.subr.mxu0 0.0
  %1540 = vmatpush2.msra.mxu0 0.0
  %1541 = vmatprep.subr.mxu0 0.0
  %1542 = vmatpush2.msra.mxu0 0.0
  %1543 = vmatprep.subr.mxu0 0.0
  %1544 = vmatpush2.msra.mxu0 0.0
  %1545 = vmatprep.subr.mxu0 0.0
  %1546 = vmatpush2.msra.mxu0 0.0
  %1547 = vmatprep.subr.mxu0 0.0
  %1548 = vmatpush2.msra.mxu0 0.0
  %1549 = vmatprep.subr.mxu0 0.0
  %1550 = vmatpush2.msra.mxu0 0.0
  %1551 = vmatprep.subr.mxu0 0.0
  %1552 = vmatpush2.msra.mxu0 0.0
  %1553 = vmatprep.subr.mxu0 0.0
  %1554 = vmatpush2.msra.mxu0 0.0
  %1555 = vmatprep.subr.mxu0 0.0
  %1556 = vmatpush2.msra.mxu0 0.0
  %1557 = vmatprep.subr.mxu0 0.0
  %1558 = vmatpush2.msra.mxu0 0.0
  %1559 = vmatprep.subr.mxu0 0.0
  %1560 = vmatpush2.msra.mxu0 0.0
  %1561 = vmatprep.subr.mxu0 0.0
  %1562 = vmatpush2.msra.mxu0 0.0
  %1563 = vmatprep.subr.mxu0 0.0
  %1564 = vmatpush2.msra.mxu0 0.0
  %1565 = vmatprep.subr.mxu0 0.0
  %1566 = vmatpush2.msra.mxu0 0.0
  %1567 = vmatprep.subr.mxu0 0.0
  %1568 = vmatpush2.msra.mxu0 0.0
  %1569 = vmatprep.mubr.f32.mxu0 0.0
  %1570 = vmatmul.mubr.f32.gmra.mxu0 %v654
  %v1571 = vpop.f32.mrf.mxu0
  %v1572 = vadd.f32 0.0, %v1571
  %v1573 = vpop.f32.mrf.mxu0
  %1574 = vmatprep.mubr.f32.mxu0 0.0
  %1575 = vmatmul.mubr.f32.gmra.mxu0 %v657
  %v1576 = vpop.f32.mrf.mxu0
  %v1577 = vadd.f32 0.0, %v1576
  %v1578 = vpop.f32.mrf.mxu0
  %1579 = vmatprep.mubr.f32.mxu0 0.0
  %1580 = vmatmul.mubr.f32.gmra.mxu0 %v660
  %v1581 = vpop.f32.mrf.mxu0
  %v1582 = vadd.f32 0.0, %v1581
  %v1583 = vpop.f32.mrf.mxu0
  %1584 = vmatprep.mubr.f32.mxu0 0.0
  %1585 = vmatmul.mubr.f32.gmra.mxu0 %v663
  %v1586 = vpop.f32.mrf.mxu0
  %v1587 = vadd.f32 0.0, %v1586
  %v1588 = vpop.f32.mrf.mxu0
  %1589 = vdwg.mxu0
  %v1590 = vld [vmem:[%s8] sm:$0xf]
  %v1591 = vld [vmem:[%s9] sm:$0x1]
  %v1593 = vlaneseq
  %v1594 = vshrl.u32 %v1593, 7
  %v1595 = vsub.s32 0, %v1594
  %v1596 = vrot.slane %v1591, %v1595
  %1597 = vset.pattern.permute.xlu0 0
  %1598 = vperm.xlu0 %1597, %v1596
  %v1599 = vpop.permute.xlu0 %1598
  %v1601 = vadd.f32 %v1599, 0.0
  %s1603 = vtos %v1590
  %v1604 = vstv %s1603
  %v1606 = vmul.f32 %v1604, %v1487
  %v1607 = vadd.f32 %v1601, %v1606
  %1608 = vrot.lane.b32.xlu0 %v1590, 127
  %v1609 = vpop.permute.xlu0 %1608
  %s1610 = vtos %v1609
  %v1611 = vstv %s1610
  %v1613 = vmul.f32 %v1611, %v639
  %v1614 = vadd.f32 %v1607, %v1613
  %1615 = vrot.lane.b32.xlu0 %v1590, 126
  %v1616 = vpop.permute.xlu0 %1615
  %s1617 = vtos %v1616
  %v1618 = vstv %s1617
  %v1620 = vmul.f32 %v1618, %v1572
  %v1621 = vadd.f32 %v1614, %v1620
  %1622 = vrot.lane.b32.xlu0 %v1590, 125
  %v1623 = vpop.permute.xlu0 %1622
  %s1624 = vtos %v1623
  %v1625 = vstv %s1624
  %v1627 = vmul.f32 %v1625, %v1492
  %v1628 = vadd.f32 %v1621, %v1627
  %1629 = vrot.lane.b32.xlu0 %v1590, 124
  %v1630 = vpop.permute.xlu0 %1629
  %s1631 = vtos %v1630
  %v1632 = vstv %s1631
  %v1634 = vmul.f32 %v1632, %v640
  %v1635 = vadd.f32 %v1628, %v1634
  %1636 = vrot.lane.b32.xlu0 %v1590, 123
  %v1637 = vpop.permute.xlu0 %1636
  %s1638 = vtos %v1637
  %v1639 = vstv %s1638
  %v1641 = vmul.f32 %v1639, %v1577
  %v1642 = vadd.f32 %v1635, %v1641
  %1643 = vrot.lane.b32.xlu0 %v1590, 122
  %v1644 = vpop.permute.xlu0 %1643
  %s1645 = vtos %v1644
  %v1646 = vstv %s1645
  %v1648 = vmul.f32 %v1646, %v1497
  %v1649 = vadd.f32 %v1642, %v1648
  %1650 = vrot.lane.b32.xlu0 %v1590, 121
  %v1651 = vpop.permute.xlu0 %1650
  %s1652 = vtos %v1651
  %v1653 = vstv %s1652
  %v1655 = vmul.f32 %v1653, %v641
  %v1656 = vadd.f32 %v1649, %v1655
  %1657 = vrot.lane.b32.xlu0 %v1590, 120
  %v1658 = vpop.permute.xlu0 %1657
  %s1659 = vtos %v1658
  %v1660 = vstv %s1659
  %v1662 = vmul.f32 %v1660, %v1582
  %v1663 = vadd.f32 %v1656, %v1662
  %1664 = vrot.lane.b32.xlu0 %v1590, 119
  %v1665 = vpop.permute.xlu0 %1664
  %s1666 = vtos %v1665
  %v1667 = vstv %s1666
  %v1669 = vmul.f32 %v1667, %v1502
  %v1670 = vadd.f32 %v1663, %v1669
  %1671 = vrot.lane.b32.xlu0 %v1590, 118
  %v1672 = vpop.permute.xlu0 %1671
  %s1673 = vtos %v1672
  %v1674 = vstv %s1673
  %v1676 = vmul.f32 %v1674, %v642
  %v1677 = vadd.f32 %v1670, %v1676
  %1678 = vrot.lane.b32.xlu0 %v1590, 117
  %v1679 = vpop.permute.xlu0 %1678
  %s1680 = vtos %v1679
  %v1681 = vstv %s1680
  %v1683 = vmul.f32 %v1681, %v1587
  %v1684 = vadd.f32 %v1677, %v1683
  %v1685 = vmul.f32 %v639, %v1684
  %1687 = vset.pattern.permute.xlu0 0
  %1688 = vperm.xlu0 %1687, %v1382
  %v1689 = vpop.permute.xlu0 %1688
  %v1691 = vmul.f32 %v1685, %v1689
  %v1692 = vadd.f32 %v1691, 0.0
  %1694 = vset.pattern.permute.xlu0 1
  %1695 = vperm.xlu0 %1694, %v1402
  %v1696 = vpop.permute.xlu0 %1695
  %v1698 = vmul.f32 %v1685, %v1696
  %v1699 = vadd.f32 %v1698, 0.0
  %1700 = vset.pattern.permute.xlu0 1
  %1701 = vperm.xlu0 %1700, %v1596
  %v1702 = vpop.permute.xlu0 %1701
  %v1704 = vadd.f32 %v1702, 0.0
  %v1705 = vrot.slane %v1590, 1
  %s1706 = vtos %v1705
  %v1707 = vstv %s1706
  %v1709 = vmul.f32 %v1707, %v1487
  %v1710 = vadd.f32 %v1704, %v1709
  %1711 = vrot.lane.b32.xlu0 %v1705, 127
  %v1712 = vpop.permute.xlu0 %1711
  %s1713 = vtos %v1712
  %v1714 = vstv %s1713
  %v1716 = vmul.f32 %v1714, %v639
  %v1717 = vadd.f32 %v1710, %v1716
  %1718 = vrot.lane.b32.xlu0 %v1705, 126
  %v1719 = vpop.permute.xlu0 %1718
  %s1720 = vtos %v1719
  %v1721 = vstv %s1720
  %v1723 = vmul.f32 %v1721, %v1572
  %v1724 = vadd.f32 %v1717, %v1723
  %1725 = vrot.lane.b32.xlu0 %v1705, 125
  %v1726 = vpop.permute.xlu0 %1725
  %s1727 = vtos %v1726
  %v1728 = vstv %s1727
  %v1730 = vmul.f32 %v1728, %v1492
  %v1731 = vadd.f32 %v1724, %v1730
  %1732 = vrot.lane.b32.xlu0 %v1705, 124
  %v1733 = vpop.permute.xlu0 %1732
  %s1734 = vtos %v1733
  %v1735 = vstv %s1734
  %v1737 = vmul.f32 %v1735, %v640
  %v1738 = vadd.f32 %v1731, %v1737
  %1739 = vrot.lane.b32.xlu0 %v1705, 123
  %v1740 = vpop.permute.xlu0 %1739
  %s1741 = vtos %v1740
  %v1742 = vstv %s1741
  %v1744 = vmul.f32 %v1742, %v1577
  %v1745 = vadd.f32 %v1738, %v1744
  %1746 = vrot.lane.b32.xlu0 %v1705, 122
  %v1747 = vpop.permute.xlu0 %1746
  %s1748 = vtos %v1747
  %v1749 = vstv %s1748
  %v1751 = vmul.f32 %v1749, %v1497
  %v1752 = vadd.f32 %v1745, %v1751
  %1753 = vrot.lane.b32.xlu0 %v1705, 121
  %v1754 = vpop.permute.xlu0 %1753
  %s1755 = vtos %v1754
  %v1756 = vstv %s1755
  %v1758 = vmul.f32 %v1756, %v641
  %v1759 = vadd.f32 %v1752, %v1758
  %1760 = vrot.lane.b32.xlu0 %v1705, 120
  %v1761 = vpop.permute.xlu0 %1760
  %s1762 = vtos %v1761
  %v1763 = vstv %s1762
  %v1765 = vmul.f32 %v1763, %v1582
  %v1766 = vadd.f32 %v1759, %v1765
  %1767 = vrot.lane.b32.xlu0 %v1705, 119
  %v1768 = vpop.permute.xlu0 %1767
  %s1769 = vtos %v1768
  %v1770 = vstv %s1769
  %v1772 = vmul.f32 %v1770, %v1502
  %v1773 = vadd.f32 %v1766, %v1772
  %1774 = vrot.lane.b32.xlu0 %v1705, 118
  %v1775 = vpop.permute.xlu0 %1774
  %s1776 = vtos %v1775
  %v1777 = vstv %s1776
  %v1779 = vmul.f32 %v1777, %v642
  %v1780 = vadd.f32 %v1773, %v1779
  %1781 = vrot.lane.b32.xlu0 %v1705, 117
  %v1782 = vpop.permute.xlu0 %1781
  %s1783 = vtos %v1782
  %v1784 = vstv %s1783
  %v1786 = vmul.f32 %v1784, %v1587
  %v1787 = vadd.f32 %v1780, %v1786
  %v1788 = vmul.f32 %v640, %v1787
  %1790 = vset.pattern.permute.xlu0 0
  %1791 = vperm.xlu0 %1790, %v1383
  %v1792 = vpop.permute.xlu0 %1791
  %v1794 = vmul.f32 %v1788, %v1792
  %v1795 = vadd.f32 %v1692, %v1794
  %1797 = vset.pattern.permute.xlu0 1
  %1798 = vperm.xlu0 %1797, %v1403
  %v1799 = vpop.permute.xlu0 %1798
  %v1801 = vmul.f32 %v1788, %v1799
  %v1802 = vadd.f32 %v1699, %v1801
  %1803 = vset.pattern.permute.xlu0 2
  %1804 = vperm.xlu0 %1803, %v1596
  %v1805 = vpop.permute.xlu0 %1804
  %v1807 = vadd.f32 %v1805, 0.0
  %v1808 = vrot.slane %v1590, 2
  %s1809 = vtos %v1808
  %v1810 = vstv %s1809
  %v1812 = vmul.f32 %v1810, %v1487
  %v1813 = vadd.f32 %v1807, %v1812
  %1814 = vrot.lane.b32.xlu0 %v1808, 127
  %v1815 = vpop.permute.xlu0 %1814
  %s1816 = vtos %v1815
  %v1817 = vstv %s1816
  %v1819 = vmul.f32 %v1817, %v639
  %v1820 = vadd.f32 %v1813, %v1819
  %1821 = vrot.lane.b32.xlu0 %v1808, 126
  %v1822 = vpop.permute.xlu0 %1821
  %s1823 = vtos %v1822
  %v1824 = vstv %s1823
  %v1826 = vmul.f32 %v1824, %v1572
  %v1827 = vadd.f32 %v1820, %v1826
  %1828 = vrot.lane.b32.xlu0 %v1808, 125
  %v1829 = vpop.permute.xlu0 %1828
  %s1830 = vtos %v1829
  %v1831 = vstv %s1830
  %v1833 = vmul.f32 %v1831, %v1492
  %v1834 = vadd.f32 %v1827, %v1833
  %1835 = vrot.lane.b32.xlu0 %v1808, 124
  %v1836 = vpop.permute.xlu0 %1835
  %s1837 = vtos %v1836
  %v1838 = vstv %s1837
  %v1840 = vmul.f32 %v1838, %v640
  %v1841 = vadd.f32 %v1834, %v1840
  %1842 = vrot.lane.b32.xlu0 %v1808, 123
  %v1843 = vpop.permute.xlu0 %1842
  %s1844 = vtos %v1843
  %v1845 = vstv %s1844
  %v1847 = vmul.f32 %v1845, %v1577
  %v1848 = vadd.f32 %v1841, %v1847
  %1849 = vrot.lane.b32.xlu0 %v1808, 122
  %v1850 = vpop.permute.xlu0 %1849
  %s1851 = vtos %v1850
  %v1852 = vstv %s1851
  %v1854 = vmul.f32 %v1852, %v1497
  %v1855 = vadd.f32 %v1848, %v1854
  %1856 = vrot.lane.b32.xlu0 %v1808, 121
  %v1857 = vpop.permute.xlu0 %1856
  %s1858 = vtos %v1857
  %v1859 = vstv %s1858
  %v1861 = vmul.f32 %v1859, %v641
  %v1862 = vadd.f32 %v1855, %v1861
  %1863 = vrot.lane.b32.xlu0 %v1808, 120
  %v1864 = vpop.permute.xlu0 %1863
  %s1865 = vtos %v1864
  %v1866 = vstv %s1865
  %v1868 = vmul.f32 %v1866, %v1582
  %v1869 = vadd.f32 %v1862, %v1868
  %1870 = vrot.lane.b32.xlu0 %v1808, 119
  %v1871 = vpop.permute.xlu0 %1870
  %s1872 = vtos %v1871
  %v1873 = vstv %s1872
  %v1875 = vmul.f32 %v1873, %v1502
  %v1876 = vadd.f32 %v1869, %v1875
  %1877 = vrot.lane.b32.xlu0 %v1808, 118
  %v1878 = vpop.permute.xlu0 %1877
  %s1879 = vtos %v1878
  %v1880 = vstv %s1879
  %v1882 = vmul.f32 %v1880, %v642
  %v1883 = vadd.f32 %v1876, %v1882
  %1884 = vrot.lane.b32.xlu0 %v1808, 117
  %v1885 = vpop.permute.xlu0 %1884
  %s1886 = vtos %v1885
  %v1887 = vstv %s1886
  %v1889 = vmul.f32 %v1887, %v1587
  %v1890 = vadd.f32 %v1883, %v1889
  %v1891 = vmul.f32 %v641, %v1890
  %1893 = vset.pattern.permute.xlu0 0
  %1894 = vperm.xlu0 %1893, %v1384
  %v1895 = vpop.permute.xlu0 %1894
  %v1897 = vmul.f32 %v1891, %v1895
  %v1898 = vadd.f32 %v1795, %v1897
  %1900 = vset.pattern.permute.xlu0 1
  %1901 = vperm.xlu0 %1900, %v1404
  %v1902 = vpop.permute.xlu0 %1901
  %v1904 = vmul.f32 %v1891, %v1902
  %v1905 = vadd.f32 %v1802, %v1904
  %1906 = vset.pattern.permute.xlu0 3
  %1907 = vperm.xlu0 %1906, %v1596
  %v1908 = vpop.permute.xlu0 %1907
  %v1910 = vadd.f32 %v1908, 0.0
  %v1911 = vrot.slane %v1590, 3
  %s1912 = vtos %v1911
  %v1913 = vstv %s1912
  %v1915 = vmul.f32 %v1913, %v1487
  %v1916 = vadd.f32 %v1910, %v1915
  %1917 = vrot.lane.b32.xlu0 %v1911, 127
  %v1918 = vpop.permute.xlu0 %1917
  %s1919 = vtos %v1918
  %v1920 = vstv %s1919
  %v1922 = vmul.f32 %v1920, %v639
  %v1923 = vadd.f32 %v1916, %v1922
  %1924 = vrot.lane.b32.xlu0 %v1911, 126
  %v1925 = vpop.permute.xlu0 %1924
  %s1926 = vtos %v1925
  %v1927 = vstv %s1926
  %v1929 = vmul.f32 %v1927, %v1572
  %v1930 = vadd.f32 %v1923, %v1929
  %1931 = vrot.lane.b32.xlu0 %v1911, 125
  %v1932 = vpop.permute.xlu0 %1931
  %s1933 = vtos %v1932
  %v1934 = vstv %s1933
  %v1936 = vmul.f32 %v1934, %v1492
  %v1937 = vadd.f32 %v1930, %v1936
  %1938 = vrot.lane.b32.xlu0 %v1911, 124
  %v1939 = vpop.permute.xlu0 %1938
  %s1940 = vtos %v1939
  %v1941 = vstv %s1940
  %v1943 = vmul.f32 %v1941, %v640
  %v1944 = vadd.f32 %v1937, %v1943
  %1945 = vrot.lane.b32.xlu0 %v1911, 123
  %v1946 = vpop.permute.xlu0 %1945
  %s1947 = vtos %v1946
  %v1948 = vstv %s1947
  %v1950 = vmul.f32 %v1948, %v1577
  %v1951 = vadd.f32 %v1944, %v1950
  %1952 = vrot.lane.b32.xlu0 %v1911, 122
  %v1953 = vpop.permute.xlu0 %1952
  %s1954 = vtos %v1953
  %v1955 = vstv %s1954
  %v1957 = vmul.f32 %v1955, %v1497
  %v1958 = vadd.f32 %v1951, %v1957
  %1959 = vrot.lane.b32.xlu0 %v1911, 121
  %v1960 = vpop.permute.xlu0 %1959
  %s1961 = vtos %v1960
  %v1962 = vstv %s1961
  %v1964 = vmul.f32 %v1962, %v641
  %v1965 = vadd.f32 %v1958, %v1964
  %1966 = vrot.lane.b32.xlu0 %v1911, 120
  %v1967 = vpop.permute.xlu0 %1966
  %s1968 = vtos %v1967
  %v1969 = vstv %s1968
  %v1971 = vmul.f32 %v1969, %v1582
  %v1972 = vadd.f32 %v1965, %v1971
  %1973 = vrot.lane.b32.xlu0 %v1911, 119
  %v1974 = vpop.permute.xlu0 %1973
  %s1975 = vtos %v1974
  %v1976 = vstv %s1975
  %v1978 = vmul.f32 %v1976, %v1502
  %v1979 = vadd.f32 %v1972, %v1978
  %1980 = vrot.lane.b32.xlu0 %v1911, 118
  %v1981 = vpop.permute.xlu0 %1980
  %s1982 = vtos %v1981
  %v1983 = vstv %s1982
  %v1985 = vmul.f32 %v1983, %v642
  %v1986 = vadd.f32 %v1979, %v1985
  %1987 = vrot.lane.b32.xlu0 %v1911, 117
  %v1988 = vpop.permute.xlu0 %1987
  %s1989 = vtos %v1988
  %v1990 = vstv %s1989
  %v1992 = vmul.f32 %v1990, %v1587
  %v1993 = vadd.f32 %v1986, %v1992
  %v1994 = vmul.f32 %v642, %v1993
  %1996 = vset.pattern.permute.xlu0 0
  %1997 = vperm.xlu0 %1996, %v1385
  %v1998 = vpop.permute.xlu0 %1997
  %v2000 = vmul.f32 %v1994, %v1998
  %v2001 = vadd.f32 %v1898, %v2000
  %2003 = vset.pattern.permute.xlu0 1
  %2004 = vperm.xlu0 %2003, %v1405
  %v2005 = vpop.permute.xlu0 %2004
  %v2007 = vmul.f32 %v1994, %v2005
  %v2008 = vadd.f32 %v1905, %v2007
  %v2009 = vld [vmem:[%s10] sm:$0xff]
  %v2010 = vld [vmem:[%s10 + $0x8] sm:$0xff]
  %v2011 = vld [vmem:[%s11] sm:$0x1]
  %v2012 = vld [vmem:[%s12] sm:$0xff]
  %v2013 = vld [vmem:[%s12 + $0x8] sm:$0xff]
  %v2014 = vld [vmem:[%s12 + $0x10] sm:$0xff]
  %v2015 = vld [vmem:[%s12 + $0x18] sm:$0xff]
  %v2016 = vld [vmem:[%s13] sm:$0x1]
  %v2018 = vlaneseq
  %v2019 = vshrl.u32 %v2018, 7
  %v2020 = vsub.s32 0, %v2019
  %v2021 = vrot.slane %v2011, %v2020
  %v2024 = vsel %vm652, %v2001, 0
  %2026 = vmatprep.subr.mxu0 0.0
  %2027 = vmatpush1.msra.mxu0 0.0
  %2028 = vmatprep.subr.mxu0 0.0
  %2029 = vmatpush1.msra.mxu0 0.0
  %2030 = vmatprep.subr.mxu0 0.0
  %2031 = vmatpush1.msra.mxu0 0.0
  %2032 = vmatprep.subr.mxu0 0.0
  %2033 = vmatpush1.msra.mxu0 0.0
  %2034 = vmatprep.subr.mxu0 0.0
  %2035 = vmatpush1.msra.mxu0 0.0
  %2036 = vmatprep.subr.mxu0 0.0
  %2037 = vmatpush1.msra.mxu0 0.0
  %2038 = vmatprep.subr.mxu0 0.0
  %2039 = vmatpush1.msra.mxu0 0.0
  %2040 = vmatprep.subr.mxu0 0.0
  %2041 = vmatpush1.msra.mxu0 0.0
  %2042 = vmatprep.subr.mxu0 0.0
  %2043 = vmatpush1.msra.mxu0 0.0
  %2044 = vmatprep.subr.mxu0 0.0
  %2045 = vmatpush1.msra.mxu0 0.0
  %2046 = vmatprep.subr.mxu0 0.0
  %2047 = vmatpush1.msra.mxu0 0.0
  %2048 = vmatprep.subr.mxu0 0.0
  %2049 = vmatpush1.msra.mxu0 0.0
  %2050 = vmatprep.subr.mxu0 0.0
  %2051 = vmatpush1.msra.mxu0 0.0
  %2052 = vmatprep.subr.mxu0 0.0
  %2053 = vmatpush1.msra.mxu0 0.0
  %2054 = vmatprep.subr.mxu0 0.0
  %2055 = vmatpush1.msra.mxu0 %v2010
  %2056 = vmatprep.subr.mxu0 0.0
  %2057 = vmatpush1.msra.mxu0 %v2009
  %2058 = vmatprep.subr.mxu0 0.0
  %2059 = vmatpush2.msra.mxu0 0.0
  %2060 = vmatprep.subr.mxu0 0.0
  %2061 = vmatpush2.msra.mxu0 0.0
  %2062 = vmatprep.subr.mxu0 0.0
  %2063 = vmatpush2.msra.mxu0 0.0
  %2064 = vmatprep.subr.mxu0 0.0
  %2065 = vmatpush2.msra.mxu0 0.0
  %2066 = vmatprep.subr.mxu0 0.0
  %2067 = vmatpush2.msra.mxu0 0.0
  %2068 = vmatprep.subr.mxu0 0.0
  %2069 = vmatpush2.msra.mxu0 0.0
  %2070 = vmatprep.subr.mxu0 0.0
  %2071 = vmatpush2.msra.mxu0 0.0
  %2072 = vmatprep.subr.mxu0 0.0
  %2073 = vmatpush2.msra.mxu0 0.0
  %2074 = vmatprep.subr.mxu0 0.0
  %2075 = vmatpush2.msra.mxu0 0.0
  %2076 = vmatprep.subr.mxu0 0.0
  %2077 = vmatpush2.msra.mxu0 0.0
  %2078 = vmatprep.subr.mxu0 0.0
  %2079 = vmatpush2.msra.mxu0 0.0
  %2080 = vmatprep.subr.mxu0 0.0
  %2081 = vmatpush2.msra.mxu0 0.0
  %2082 = vmatprep.subr.mxu0 0.0
  %2083 = vmatpush2.msra.mxu0 0.0
  %2084 = vmatprep.subr.mxu0 0.0
  %2085 = vmatpush2.msra.mxu0 0.0
  %2086 = vmatprep.subr.mxu0 0.0
  %2087 = vmatpush2.msra.mxu0 0.0
  %2088 = vmatprep.subr.mxu0 0.0
  %2089 = vmatpush2.msra.mxu0 0.0
  %2090 = vmatprep.mubr.f32.mxu0 0.0
  %2091 = vmatmul.mubr.f32.gmra.mxu0 %v2024
  %v2092 = vpop.f32.mrf.mxu0
  %v2093 = vadd.f32 %v2021, %v2092
  %v2094 = vpop.f32.mrf.mxu0
  %2095 = vdwg.mxu0
  %v2096 = vsel %vm763, %v2093, 0.0
  %2097 = vadd.xlane.f32.xlu0 %v2096
  %v2098 = vpop.xlane.xlu0 %2097
  %v2099 = vsel %vm225, %v93, 0
  %2101 = vmatprep.subr.mxu0 0.0
  %2102 = vmatpush1.msra.mxu0 0.0
  %2103 = vmatprep.subr.mxu0 0.0
  %2104 = vmatpush1.msra.mxu0 0.0
  %2105 = vmatprep.subr.mxu0 0.0
  %2106 = vmatpush1.msra.mxu0 0.0
  %2107 = vmatprep.subr.mxu0 0.0
  %2108 = vmatpush1.msra.mxu0 0.0
  %2109 = vmatprep.subr.mxu0 0.0
  %2110 = vmatpush1.msra.mxu0 0.0
  %2111 = vmatprep.subr.mxu0 0.0
  %2112 = vmatpush1.msra.mxu0 0.0
  %2113 = vmatprep.subr.mxu0 0.0
  %2114 = vmatpush1.msra.mxu0 0.0
  %2115 = vmatprep.subr.mxu0 0.0
  %2116 = vmatpush1.msra.mxu0 0.0
  %2117 = vmatprep.subr.mxu0 0.0
  %2118 = vmatpush1.msra.mxu0 0.0
  %2119 = vmatprep.subr.mxu0 0.0
  %2120 = vmatpush1.msra.mxu0 0.0
  %2121 = vmatprep.subr.mxu0 0.0
  %2122 = vmatpush1.msra.mxu0 0.0
  %2123 = vmatprep.subr.mxu0 0.0
  %2124 = vmatpush1.msra.mxu0 0.0
  %2125 = vmatprep.subr.mxu0 0.0
  %2126 = vmatpush1.msra.mxu0 0.0
  %2127 = vmatprep.subr.mxu0 0.0
  %2128 = vmatpush1.msra.mxu0 0.0
  %2129 = vmatprep.subr.mxu0 0.0
  %2130 = vmatpush1.msra.mxu0 0.0
  %2131 = vmatprep.subr.mxu0 0.0
  %2132 = vmatpush1.msra.mxu0 %v2098
  %2133 = vmatprep.subr.mxu0 0.0
  %2134 = vmatpush2.msra.mxu0 0.0
  %2135 = vmatprep.subr.mxu0 0.0
  %2136 = vmatpush2.msra.mxu0 0.0
  %2137 = vmatprep.subr.mxu0 0.0
  %2138 = vmatpush2.msra.mxu0 0.0
  %2139 = vmatprep.subr.mxu0 0.0
  %2140 = vmatpush2.msra.mxu0 0.0
  %2141 = vmatprep.subr.mxu0 0.0
  %2142 = vmatpush2.msra.mxu0 0.0
  %2143 = vmatprep.subr.mxu0 0.0
  %2144 = vmatpush2.msra.mxu0 0.0
  %2145 = vmatprep.subr.mxu0 0.0
  %2146 = vmatpush2.msra.mxu0 0.0
  %2147 = vmatprep.subr.mxu0 0.0
  %2148 = vmatpush2.msra.mxu0 0.0
  %2149 = vmatprep.subr.mxu0 0.0
  %2150 = vmatpush2.msra.mxu0 0.0
  %2151 = vmatprep.subr.mxu0 0.0
  %2152 = vmatpush2.msra.mxu0 0.0
  %2153 = vmatprep.subr.mxu0 0.0
  %2154 = vmatpush2.msra.mxu0 0.0
  %2155 = vmatprep.subr.mxu0 0.0
  %2156 = vmatpush2.msra.mxu0 0.0
  %2157 = vmatprep.subr.mxu0 0.0
  %2158 = vmatpush2.msra.mxu0 0.0
  %2159 = vmatprep.subr.mxu0 0.0
  %2160 = vmatpush2.msra.mxu0 0.0
  %2161 = vmatprep.subr.mxu0 0.0
  %2162 = vmatpush2.msra.mxu0 0.0
  %2163 = vmatprep.subr.mxu0 0.0
  %2164 = vmatpush2.msra.mxu0 0.0
  %2165 = vmatprep.mubr.f32.mxu0 0.0
  %2166 = vmatmul.mubr.f32.gmra.mxu0 %v2099
  %v2167 = vpop.f32.mrf.mxu0
  %v2168 = vadd.f32 0.0, %v2167
  %v2169 = vpop.f32.mrf.mxu0
  %2170 = vdwg.mxu0
  %v2171 = vrcp.pop 64.0
  %v2172 = vmul.f32 %v2168, %v2171
  %v2174 = vsel %vm337, %v2172, 0
  %2176 = vmatprep.subr.mxu0 0.0
  %2177 = vmatpush1.msra.mxu0 0.0
  %2178 = vmatprep.subr.mxu0 0.0
  %2179 = vmatpush1.msra.mxu0 0.0
  %2180 = vmatprep.subr.mxu0 0.0
  %2181 = vmatpush1.msra.mxu0 0.0
  %2182 = vmatprep.subr.mxu0 0.0
  %2183 = vmatpush1.msra.mxu0 0.0
  %2184 = vmatprep.subr.mxu0 0.0
  %2185 = vmatpush1.msra.mxu0 0.0
  %2186 = vmatprep.subr.mxu0 0.0
  %2187 = vmatpush1.msra.mxu0 0.0
  %2188 = vmatprep.subr.mxu0 0.0
  %2189 = vmatpush1.msra.mxu0 0.0
  %2190 = vmatprep.subr.mxu0 0.0
  %2191 = vmatpush1.msra.mxu0 0.0
  %2192 = vmatprep.subr.mxu0 0.0
  %2193 = vmatpush1.msra.mxu0 0.0
  %2194 = vmatprep.subr.mxu0 0.0
  %2195 = vmatpush1.msra.mxu0 0.0
  %2196 = vmatprep.subr.mxu0 0.0
  %2197 = vmatpush1.msra.mxu0 0.0
  %2198 = vmatprep.subr.mxu0 0.0
  %2199 = vmatpush1.msra.mxu0 0.0
  %2200 = vmatprep.subr.mxu0 0.0
  %2201 = vmatpush1.msra.mxu0 0.0
  %2202 = vmatprep.subr.mxu0 0.0
  %2203 = vmatpush1.msra.mxu0 0.0
  %2204 = vmatprep.subr.mxu0 0.0
  %2205 = vmatpush1.msra.mxu0 0.0
  %2206 = vmatprep.subr.mxu0 0.0
  %2207 = vmatpush1.msra.mxu0 %v2174
  %2208 = vmatprep.subr.mxu0 0.0
  %2209 = vmatpush2.msra.mxu0 0.0
  %2210 = vmatprep.subr.mxu0 0.0
  %2211 = vmatpush2.msra.mxu0 0.0
  %2212 = vmatprep.subr.mxu0 0.0
  %2213 = vmatpush2.msra.mxu0 0.0
  %2214 = vmatprep.subr.mxu0 0.0
  %2215 = vmatpush2.msra.mxu0 0.0
  %2216 = vmatprep.subr.mxu0 0.0
  %2217 = vmatpush2.msra.mxu0 0.0
  %2218 = vmatprep.subr.mxu0 0.0
  %2219 = vmatpush2.msra.mxu0 0.0
  %2220 = vmatprep.subr.mxu0 0.0
  %2221 = vmatpush2.msra.mxu0 0.0
  %2222 = vmatprep.subr.mxu0 0.0
  %2223 = vmatpush2.msra.mxu0 0.0
  %2224 = vmatprep.subr.mxu0 0.0
  %2225 = vmatpush2.msra.mxu0 0.0
  %2226 = vmatprep.subr.mxu0 0.0
  %2227 = vmatpush2.msra.mxu0 0.0
  %2228 = vmatprep.subr.mxu0 0.0
  %2229 = vmatpush2.msra.mxu0 0.0
  %2230 = vmatprep.subr.mxu0 0.0
  %2231 = vmatpush2.msra.mxu0 0.0
  %2232 = vmatprep.subr.mxu0 0.0
  %2233 = vmatpush2.msra.mxu0 0.0
  %2234 = vmatprep.subr.mxu0 0.0
  %2235 = vmatpush2.msra.mxu0 0.0
  %2236 = vmatprep.subr.mxu0 0.0
  %2237 = vmatpush2.msra.mxu0 0.0
  %2238 = vmatprep.subr.mxu0 0.0
  %2239 = vmatpush2.msra.mxu0 0.0
  %2240 = vmatprep.mubr.f32.mxu0 0.0
  %2241 = vmatmul.mubr.f32.gmra.mxu0 %v840
  %v2242 = vpop.f32.mrf.mxu0
  %v2243 = vadd.f32 0.0, %v2242
  %v2244 = vpop.f32.mrf.mxu0
  %2245 = vdwg.mxu0
  %2247 = vset.pattern.permute.xlu0 0
  %2248 = vperm.xlu0 %2247, %v2243
  %v2249 = vpop.permute.xlu0 %2248
  %v2251 = vsub.f32 %v2093, %v2249
  %v2252 = vmul.f32 %v2251, %v2251
  %v2253 = vsel %vm763, %v2252, 0.0
  %2254 = vadd.xlane.f32.xlu0 %v2253
  %v2255 = vpop.xlane.xlu0 %2254
  %2256 = vmatprep.subr.mxu0 0.0
  %2257 = vmatpush1.msra.mxu0 0.0
  %2258 = vmatprep.subr.mxu0 0.0
  %2259 = vmatpush1.msra.mxu0 0.0
  %2260 = vmatprep.subr.mxu0 0.0
  %2261 = vmatpush1.msra.mxu0 0.0
  %2262 = vmatprep.subr.mxu0 0.0
  %2263 = vmatpush1.msra.mxu0 0.0
  %2264 = vmatprep.subr.mxu0 0.0
  %2265 = vmatpush1.msra.mxu0 0.0
  %2266 = vmatprep.subr.mxu0 0.0
  %2267 = vmatpush1.msra.mxu0 0.0
  %2268 = vmatprep.subr.mxu0 0.0
  %2269 = vmatpush1.msra.mxu0 0.0
  %2270 = vmatprep.subr.mxu0 0.0
  %2271 = vmatpush1.msra.mxu0 0.0
  %2272 = vmatprep.subr.mxu0 0.0
  %2273 = vmatpush1.msra.mxu0 0.0
  %2274 = vmatprep.subr.mxu0 0.0
  %2275 = vmatpush1.msra.mxu0 0.0
  %2276 = vmatprep.subr.mxu0 0.0
  %2277 = vmatpush1.msra.mxu0 0.0
  %2278 = vmatprep.subr.mxu0 0.0
  %2279 = vmatpush1.msra.mxu0 0.0
  %2280 = vmatprep.subr.mxu0 0.0
  %2281 = vmatpush1.msra.mxu0 0.0
  %2282 = vmatprep.subr.mxu0 0.0
  %2283 = vmatpush1.msra.mxu0 0.0
  %2284 = vmatprep.subr.mxu0 0.0
  %2285 = vmatpush1.msra.mxu0 0.0
  %2286 = vmatprep.subr.mxu0 0.0
  %2287 = vmatpush1.msra.mxu0 %v2255
  %2288 = vmatprep.subr.mxu0 0.0
  %2289 = vmatpush2.msra.mxu0 0.0
  %2290 = vmatprep.subr.mxu0 0.0
  %2291 = vmatpush2.msra.mxu0 0.0
  %2292 = vmatprep.subr.mxu0 0.0
  %2293 = vmatpush2.msra.mxu0 0.0
  %2294 = vmatprep.subr.mxu0 0.0
  %2295 = vmatpush2.msra.mxu0 0.0
  %2296 = vmatprep.subr.mxu0 0.0
  %2297 = vmatpush2.msra.mxu0 0.0
  %2298 = vmatprep.subr.mxu0 0.0
  %2299 = vmatpush2.msra.mxu0 0.0
  %2300 = vmatprep.subr.mxu0 0.0
  %2301 = vmatpush2.msra.mxu0 0.0
  %2302 = vmatprep.subr.mxu0 0.0
  %2303 = vmatpush2.msra.mxu0 0.0
  %2304 = vmatprep.subr.mxu0 0.0
  %2305 = vmatpush2.msra.mxu0 0.0
  %2306 = vmatprep.subr.mxu0 0.0
  %2307 = vmatpush2.msra.mxu0 0.0
  %2308 = vmatprep.subr.mxu0 0.0
  %2309 = vmatpush2.msra.mxu0 0.0
  %2310 = vmatprep.subr.mxu0 0.0
  %2311 = vmatpush2.msra.mxu0 0.0
  %2312 = vmatprep.subr.mxu0 0.0
  %2313 = vmatpush2.msra.mxu0 0.0
  %2314 = vmatprep.subr.mxu0 0.0
  %2315 = vmatpush2.msra.mxu0 0.0
  %2316 = vmatprep.subr.mxu0 0.0
  %2317 = vmatpush2.msra.mxu0 0.0
  %2318 = vmatprep.subr.mxu0 0.0
  %2319 = vmatpush2.msra.mxu0 0.0
  %2320 = vmatprep.mubr.f32.mxu0 0.0
  %2321 = vmatmul.mubr.f32.gmra.mxu0 %v2099
  %v2322 = vpop.f32.mrf.mxu0
  %v2323 = vadd.f32 0.0, %v2322
  %v2324 = vpop.f32.mrf.mxu0
  %2325 = vdwg.mxu0
  %v2326 = vmul.f32 %v2323, %v2171
  %v2328 = vsel %vm337, %v2326, 0
  %2330 = vmatprep.subr.mxu0 0.0
  %2331 = vmatpush1.msra.mxu0 0.0
  %2332 = vmatprep.subr.mxu0 0.0
  %2333 = vmatpush1.msra.mxu0 0.0
  %2334 = vmatprep.subr.mxu0 0.0
  %2335 = vmatpush1.msra.mxu0 0.0
  %2336 = vmatprep.subr.mxu0 0.0
  %2337 = vmatpush1.msra.mxu0 0.0
  %2338 = vmatprep.subr.mxu0 0.0
  %2339 = vmatpush1.msra.mxu0 0.0
  %2340 = vmatprep.subr.mxu0 0.0
  %2341 = vmatpush1.msra.mxu0 0.0
  %2342 = vmatprep.subr.mxu0 0.0
  %2343 = vmatpush1.msra.mxu0 0.0
  %2344 = vmatprep.subr.mxu0 0.0
  %2345 = vmatpush1.msra.mxu0 0.0
  %2346 = vmatprep.subr.mxu0 0.0
  %2347 = vmatpush1.msra.mxu0 0.0
  %2348 = vmatprep.subr.mxu0 0.0
  %2349 = vmatpush1.msra.mxu0 0.0
  %2350 = vmatprep.subr.mxu0 0.0
  %2351 = vmatpush1.msra.mxu0 0.0
  %2352 = vmatprep.subr.mxu0 0.0
  %2353 = vmatpush1.msra.mxu0 0.0
  %2354 = vmatprep.subr.mxu0 0.0
  %2355 = vmatpush1.msra.mxu0 0.0
  %2356 = vmatprep.subr.mxu0 0.0
  %2357 = vmatpush1.msra.mxu0 0.0
  %2358 = vmatprep.subr.mxu0 0.0
  %2359 = vmatpush1.msra.mxu0 0.0
  %2360 = vmatprep.subr.mxu0 0.0
  %2361 = vmatpush1.msra.mxu0 %v2328
  %2362 = vmatprep.subr.mxu0 0.0
  %2363 = vmatpush2.msra.mxu0 0.0
  %2364 = vmatprep.subr.mxu0 0.0
  %2365 = vmatpush2.msra.mxu0 0.0
  %2366 = vmatprep.subr.mxu0 0.0
  %2367 = vmatpush2.msra.mxu0 0.0
  %2368 = vmatprep.subr.mxu0 0.0
  %2369 = vmatpush2.msra.mxu0 0.0
  %2370 = vmatprep.subr.mxu0 0.0
  %2371 = vmatpush2.msra.mxu0 0.0
  %2372 = vmatprep.subr.mxu0 0.0
  %2373 = vmatpush2.msra.mxu0 0.0
  %2374 = vmatprep.subr.mxu0 0.0
  %2375 = vmatpush2.msra.mxu0 0.0
  %2376 = vmatprep.subr.mxu0 0.0
  %2377 = vmatpush2.msra.mxu0 0.0
  %2378 = vmatprep.subr.mxu0 0.0
  %2379 = vmatpush2.msra.mxu0 0.0
  %2380 = vmatprep.subr.mxu0 0.0
  %2381 = vmatpush2.msra.mxu0 0.0
  %2382 = vmatprep.subr.mxu0 0.0
  %2383 = vmatpush2.msra.mxu0 0.0
  %2384 = vmatprep.subr.mxu0 0.0
  %2385 = vmatpush2.msra.mxu0 0.0
  %2386 = vmatprep.subr.mxu0 0.0
  %2387 = vmatpush2.msra.mxu0 0.0
  %2388 = vmatprep.subr.mxu0 0.0
  %2389 = vmatpush2.msra.mxu0 0.0
  %2390 = vmatprep.subr.mxu0 0.0
  %2391 = vmatpush2.msra.mxu0 0.0
  %2392 = vmatprep.subr.mxu0 0.0
  %2393 = vmatpush2.msra.mxu0 0.0
  %2394 = vmatprep.mubr.f32.mxu0 0.0
  %2395 = vmatmul.mubr.f32.gmra.mxu0 %v840
  %v2396 = vpop.f32.mrf.mxu0
  %v2397 = vadd.f32 1e-05, %v2396
  %v2398 = vpop.f32.mrf.mxu0
  %2399 = vdwg.mxu0
  %v2400 = vrsqrt.pop %v2397
  %2402 = vset.pattern.permute.xlu0 0
  %2403 = vperm.xlu0 %2402, %v2400
  %v2404 = vpop.permute.xlu0 %2403
  %v2406 = vmul.f32 %v2251, %v2404
  %vm2407 = vcmp.gt.f32.partialorder %v2406, 0.0
  %v2408 = vmul.f32 %v2406, 0.01
  %v2409 = vsel %vm2407, %v2406, %v2408
  %v2411 = vlaneseq
  %v2412 = vshrl.u32 %v2411, 7
  %v2413 = vsub.s32 0, %v2412
  %v2414 = vrot.slane %v2016, %v2413
  %v2417 = vsel %vm763, %v2409, 0
  %2419 = vmatprep.subr.mxu0 0.0
  %2420 = vmatpush1.msra.mxu0 0.0
  %2421 = vmatprep.subr.mxu0 0.0
  %2422 = vmatpush1.msra.mxu0 0.0
  %2423 = vmatprep.subr.mxu0 0.0
  %2424 = vmatpush1.msra.mxu0 0.0
  %2425 = vmatprep.subr.mxu0 0.0
  %2426 = vmatpush1.msra.mxu0 0.0
  %2427 = vmatprep.subr.mxu0 0.0
  %2428 = vmatpush1.msra.mxu0 0.0
  %2429 = vmatprep.subr.mxu0 0.0
  %2430 = vmatpush1.msra.mxu0 0.0
  %2431 = vmatprep.subr.mxu0 0.0
  %2432 = vmatpush1.msra.mxu0 0.0
  %2433 = vmatprep.subr.mxu0 0.0
  %2434 = vmatpush1.msra.mxu0 0.0
  %2435 = vmatprep.subr.mxu0 0.0
  %2436 = vmatpush1.msra.mxu0 0.0
  %2437 = vmatprep.subr.mxu0 0.0
  %2438 = vmatpush1.msra.mxu0 0.0
  %2439 = vmatprep.subr.mxu0 0.0
  %2440 = vmatpush1.msra.mxu0 0.0
  %2441 = vmatprep.subr.mxu0 0.0
  %2442 = vmatpush1.msra.mxu0 0.0
  %2443 = vmatprep.subr.mxu0 0.0
  %2444 = vmatpush1.msra.mxu0 %v2015
  %2445 = vmatprep.subr.mxu0 0.0
  %2446 = vmatpush1.msra.mxu0 %v2014
  %2447 = vmatprep.subr.mxu0 0.0
  %2448 = vmatpush1.msra.mxu0 %v2013
  %2449 = vmatprep.subr.mxu0 0.0
  %2450 = vmatpush1.msra.mxu0 %v2012
  %2451 = vmatprep.subr.mxu0 0.0
  %2452 = vmatpush2.msra.mxu0 0.0
  %2453 = vmatprep.subr.mxu0 0.0
  %2454 = vmatpush2.msra.mxu0 0.0
  %2455 = vmatprep.subr.mxu0 0.0
  %2456 = vmatpush2.msra.mxu0 0.0
  %2457 = vmatprep.subr.mxu0 0.0
  %2458 = vmatpush2.msra.mxu0 0.0
  %2459 = vmatprep.subr.mxu0 0.0
  %2460 = vmatpush2.msra.mxu0 0.0
  %2461 = vmatprep.subr.mxu0 0.0
  %2462 = vmatpush2.msra.mxu0 0.0
  %2463 = vmatprep.subr.mxu0 0.0
  %2464 = vmatpush2.msra.mxu0 0.0
  %2465 = vmatprep.subr.mxu0 0.0
  %2466 = vmatpush2.msra.mxu0 0.0
  %2467 = vmatprep.subr.mxu0 0.0
  %2468 = vmatpush2.msra.mxu0 0.0
  %2469 = vmatprep.subr.mxu0 0.0
  %2470 = vmatpush2.msra.mxu0 0.0
  %2471 = vmatprep.subr.mxu0 0.0
  %2472 = vmatpush2.msra.mxu0 0.0
  %2473 = vmatprep.subr.mxu0 0.0
  %2474 = vmatpush2.msra.mxu0 0.0
  %2475 = vmatprep.subr.mxu0 0.0
  %2476 = vmatpush2.msra.mxu0 0.0
  %2477 = vmatprep.subr.mxu0 0.0
  %2478 = vmatpush2.msra.mxu0 0.0
  %2479 = vmatprep.subr.mxu0 0.0
  %2480 = vmatpush2.msra.mxu0 0.0
  %2481 = vmatprep.subr.mxu0 0.0
  %2482 = vmatpush2.msra.mxu0 0.0
  %2483 = vmatprep.mubr.f32.mxu0 0.0
  %2484 = vmatmul.mubr.f32.gmra.mxu0 %v2417
  %v2485 = vpop.f32.mrf.mxu0
  %v2486 = vadd.f32 %v2414, %v2485
  %v2487 = vpop.f32.mrf.mxu0
  %2488 = vdwg.mxu0
  %v2489 = vsel %vm652, %v2486, 0.0
  %2490 = vadd.xlane.f32.xlu0 %v2489
  %v2491 = vpop.xlane.xlu0 %2490
  %2492 = vmatprep.subr.mxu0 0.0
  %2493 = vmatpush1.msra.mxu0 0.0
  %2494 = vmatprep.subr.mxu0 0.0
  %2495 = vmatpush1.msra.mxu0 0.0
  %2496 = vmatprep.subr.mxu0 0.0
  %2497 = vmatpush1.msra.mxu0 0.0
  %2498 = vmatprep.subr.mxu0 0.0
  %2499 = vmatpush1.msra.mxu0 0.0
  %2500 = vmatprep.subr.mxu0 0.0
  %2501 = vmatpush1.msra.mxu0 0.0
  %2502 = vmatprep.subr.mxu0 0.0
  %2503 = vmatpush1.msra.mxu0 0.0
  %2504 = vmatprep.subr.mxu0 0.0
  %2505 = vmatpush1.msra.mxu0 0.0
  %2506 = vmatprep.subr.mxu0 0.0
  %2507 = vmatpush1.msra.mxu0 0.0
  %2508 = vmatprep.subr.mxu0 0.0
  %2509 = vmatpush1.msra.mxu0 0.0
  %2510 = vmatprep.subr.mxu0 0.0
  %2511 = vmatpush1.msra.mxu0 0.0
  %2512 = vmatprep.subr.mxu0 0.0
  %2513 = vmatpush1.msra.mxu0 0.0
  %2514 = vmatprep.subr.mxu0 0.0
  %2515 = vmatpush1.msra.mxu0 0.0
  %2516 = vmatprep.subr.mxu0 0.0
  %2517 = vmatpush1.msra.mxu0 0.0
  %2518 = vmatprep.subr.mxu0 0.0
  %2519 = vmatpush1.msra.mxu0 0.0
  %2520 = vmatprep.subr.mxu0 0.0
  %2521 = vmatpush1.msra.mxu0 0.0
  %2522 = vmatprep.subr.mxu0 0.0
  %2523 = vmatpush1.msra.mxu0 %v2491
  %2524 = vmatprep.subr.mxu0 0.0
  %2525 = vmatpush2.msra.mxu0 0.0
  %2526 = vmatprep.subr.mxu0 0.0
  %2527 = vmatpush2.msra.mxu0 0.0
  %2528 = vmatprep.subr.mxu0 0.0
  %2529 = vmatpush2.msra.mxu0 0.0
  %2530 = vmatprep.subr.mxu0 0.0
  %2531 = vmatpush2.msra.mxu0 0.0
  %2532 = vmatprep.subr.mxu0 0.0
  %2533 = vmatpush2.msra.mxu0 0.0
  %2534 = vmatprep.subr.mxu0 0.0
  %2535 = vmatpush2.msra.mxu0 0.0
  %2536 = vmatprep.subr.mxu0 0.0
  %2537 = vmatpush2.msra.mxu0 0.0
  %2538 = vmatprep.subr.mxu0 0.0
  %2539 = vmatpush2.msra.mxu0 0.0
  %2540 = vmatprep.subr.mxu0 0.0
  %2541 = vmatpush2.msra.mxu0 0.0
  %2542 = vmatprep.subr.mxu0 0.0
  %2543 = vmatpush2.msra.mxu0 0.0
  %2544 = vmatprep.subr.mxu0 0.0
  %2545 = vmatpush2.msra.mxu0 0.0
  %2546 = vmatprep.subr.mxu0 0.0
  %2547 = vmatpush2.msra.mxu0 0.0
  %2548 = vmatprep.subr.mxu0 0.0
  %2549 = vmatpush2.msra.mxu0 0.0
  %2550 = vmatprep.subr.mxu0 0.0
  %2551 = vmatpush2.msra.mxu0 0.0
  %2552 = vmatprep.subr.mxu0 0.0
  %2553 = vmatpush2.msra.mxu0 0.0
  %2554 = vmatprep.subr.mxu0 0.0
  %2555 = vmatpush2.msra.mxu0 0.0
  %2556 = vmatprep.mubr.f32.mxu0 0.0
  %2557 = vmatmul.mubr.f32.gmra.mxu0 %v2099
  %v2558 = vpop.f32.mrf.mxu0
  %v2559 = vadd.f32 0.0, %v2558
  %v2560 = vpop.f32.mrf.mxu0
  %2561 = vdwg.mxu0
  %v2562 = vrcp.pop 32.0
  %v2563 = vmul.f32 %v2559, %v2562
  %v2565 = vsel %vm337, %v2563, 0
  %2567 = vmatprep.subr.mxu0 0.0
  %2568 = vmatpush1.msra.mxu0 0.0
  %2569 = vmatprep.subr.mxu0 0.0
  %2570 = vmatpush1.msra.mxu0 0.0
  %2571 = vmatprep.subr.mxu0 0.0
  %2572 = vmatpush1.msra.mxu0 0.0
  %2573 = vmatprep.subr.mxu0 0.0
  %2574 = vmatpush1.msra.mxu0 0.0
  %2575 = vmatprep.subr.mxu0 0.0
  %2576 = vmatpush1.msra.mxu0 0.0
  %2577 = vmatprep.subr.mxu0 0.0
  %2578 = vmatpush1.msra.mxu0 0.0
  %2579 = vmatprep.subr.mxu0 0.0
  %2580 = vmatpush1.msra.mxu0 0.0
  %2581 = vmatprep.subr.mxu0 0.0
  %2582 = vmatpush1.msra.mxu0 0.0
  %2583 = vmatprep.subr.mxu0 0.0
  %2584 = vmatpush1.msra.mxu0 0.0
  %2585 = vmatprep.subr.mxu0 0.0
  %2586 = vmatpush1.msra.mxu0 0.0
  %2587 = vmatprep.subr.mxu0 0.0
  %2588 = vmatpush1.msra.mxu0 0.0
  %2589 = vmatprep.subr.mxu0 0.0
  %2590 = vmatpush1.msra.mxu0 0.0
  %2591 = vmatprep.subr.mxu0 0.0
  %2592 = vmatpush1.msra.mxu0 0.0
  %2593 = vmatprep.subr.mxu0 0.0
  %2594 = vmatpush1.msra.mxu0 0.0
  %2595 = vmatprep.subr.mxu0 0.0
  %2596 = vmatpush1.msra.mxu0 0.0
  %2597 = vmatprep.subr.mxu0 0.0
  %2598 = vmatpush1.msra.mxu0 %v2565
  %2599 = vmatprep.subr.mxu0 0.0
  %2600 = vmatpush2.msra.mxu0 0.0
  %2601 = vmatprep.subr.mxu0 0.0
  %2602 = vmatpush2.msra.mxu0 0.0
  %2603 = vmatprep.subr.mxu0 0.0
  %2604 = vmatpush2.msra.mxu0 0.0
  %2605 = vmatprep.subr.mxu0 0.0
  %2606 = vmatpush2.msra.mxu0 0.0
  %2607 = vmatprep.subr.mxu0 0.0
  %2608 = vmatpush2.msra.mxu0 0.0
  %2609 = vmatprep.subr.mxu0 0.0
  %2610 = vmatpush2.msra.mxu0 0.0
  %2611 = vmatprep.subr.mxu0 0.0
  %2612 = vmatpush2.msra.mxu0 0.0
  %2613 = vmatprep.subr.mxu0 0.0
  %2614 = vmatpush2.msra.mxu0 0.0
  %2615 = vmatprep.subr.mxu0 0.0
  %2616 = vmatpush2.msra.mxu0 0.0
  %2617 = vmatprep.subr.mxu0 0.0
  %2618 = vmatpush2.msra.mxu0 0.0
  %2619 = vmatprep.subr.mxu0 0.0
  %2620 = vmatpush2.msra.mxu0 0.0
  %2621 = vmatprep.subr.mxu0 0.0
  %2622 = vmatpush2.msra.mxu0 0.0
  %2623 = vmatprep.subr.mxu0 0.0
  %2624 = vmatpush2.msra.mxu0 0.0
  %2625 = vmatprep.subr.mxu0 0.0
  %2626 = vmatpush2.msra.mxu0 0.0
  %2627 = vmatprep.subr.mxu0 0.0
  %2628 = vmatpush2.msra.mxu0 0.0
  %2629 = vmatprep.subr.mxu0 0.0
  %2630 = vmatpush2.msra.mxu0 0.0
  %2631 = vmatprep.mubr.f32.mxu0 0.0
  %2632 = vmatmul.mubr.f32.gmra.mxu0 %v840
  %v2633 = vpop.f32.mrf.mxu0
  %v2634 = vadd.f32 0.0, %v2633
  %v2635 = vpop.f32.mrf.mxu0
  %2636 = vdwg.mxu0
  %2638 = vset.pattern.permute.xlu0 0
  %2639 = vperm.xlu0 %2638, %v2634
  %v2640 = vpop.permute.xlu0 %2639
  %v2642 = vsub.f32 %v2486, %v2640
  %v2643 = vmul.f32 %v2642, %v2642
  %v2644 = vsel %vm652, %v2643, 0.0
  %2645 = vadd.xlane.f32.xlu0 %v2644
  %v2646 = vpop.xlane.xlu0 %2645
  %2647 = vmatprep.subr.mxu0 0.0
  %2648 = vmatpush1.msra.mxu0 0.0
  %2649 = vmatprep.subr.mxu0 0.0
  %2650 = vmatpush1.msra.mxu0 0.0
  %2651 = vmatprep.subr.mxu0 0.0
  %2652 = vmatpush1.msra.mxu0 0.0
  %2653 = vmatprep.subr.mxu0 0.0
  %2654 = vmatpush1.msra.mxu0 0.0
  %2655 = vmatprep.subr.mxu0 0.0
  %2656 = vmatpush1.msra.mxu0 0.0
  %2657 = vmatprep.subr.mxu0 0.0
  %2658 = vmatpush1.msra.mxu0 0.0
  %2659 = vmatprep.subr.mxu0 0.0
  %2660 = vmatpush1.msra.mxu0 0.0
  %2661 = vmatprep.subr.mxu0 0.0
  %2662 = vmatpush1.msra.mxu0 0.0
  %2663 = vmatprep.subr.mxu0 0.0
  %2664 = vmatpush1.msra.mxu0 0.0
  %2665 = vmatprep.subr.mxu0 0.0
  %2666 = vmatpush1.msra.mxu0 0.0
  %2667 = vmatprep.subr.mxu0 0.0
  %2668 = vmatpush1.msra.mxu0 0.0
  %2669 = vmatprep.subr.mxu0 0.0
  %2670 = vmatpush1.msra.mxu0 0.0
  %2671 = vmatprep.subr.mxu0 0.0
  %2672 = vmatpush1.msra.mxu0 0.0
  %2673 = vmatprep.subr.mxu0 0.0
  %2674 = vmatpush1.msra.mxu0 0.0
  %2675 = vmatprep.subr.mxu0 0.0
  %2676 = vmatpush1.msra.mxu0 0.0
  %2677 = vmatprep.subr.mxu0 0.0
  %2678 = vmatpush1.msra.mxu0 %v2646
  %2679 = vmatprep.subr.mxu0 0.0
  %2680 = vmatpush2.msra.mxu0 0.0
  %2681 = vmatprep.subr.mxu0 0.0
  %2682 = vmatpush2.msra.mxu0 0.0
  %2683 = vmatprep.subr.mxu0 0.0
  %2684 = vmatpush2.msra.mxu0 0.0
  %2685 = vmatprep.subr.mxu0 0.0
  %2686 = vmatpush2.msra.mxu0 0.0
  %2687 = vmatprep.subr.mxu0 0.0
  %2688 = vmatpush2.msra.mxu0 0.0
  %2689 = vmatprep.subr.mxu0 0.0
  %2690 = vmatpush2.msra.mxu0 0.0
  %2691 = vmatprep.subr.mxu0 0.0
  %2692 = vmatpush2.msra.mxu0 0.0
  %2693 = vmatprep.subr.mxu0 0.0
  %2694 = vmatpush2.msra.mxu0 0.0
  %2695 = vmatprep.subr.mxu0 0.0
  %2696 = vmatpush2.msra.mxu0 0.0
  %2697 = vmatprep.subr.mxu0 0.0
  %2698 = vmatpush2.msra.mxu0 0.0
  %2699 = vmatprep.subr.mxu0 0.0
  %2700 = vmatpush2.msra.mxu0 0.0
  %2701 = vmatprep.subr.mxu0 0.0
  %2702 = vmatpush2.msra.mxu0 0.0
  %2703 = vmatprep.subr.mxu0 0.0
  %2704 = vmatpush2.msra.mxu0 0.0
  %2705 = vmatprep.subr.mxu0 0.0
  %2706 = vmatpush2.msra.mxu0 0.0
  %2707 = vmatprep.subr.mxu0 0.0
  %2708 = vmatpush2.msra.mxu0 0.0
  %2709 = vmatprep.subr.mxu0 0.0
  %2710 = vmatpush2.msra.mxu0 0.0
  %2711 = vmatprep.mubr.f32.mxu0 0.0
  %2712 = vmatmul.mubr.f32.gmra.mxu0 %v2099
  %v2713 = vpop.f32.mrf.mxu0
  %v2714 = vadd.f32 0.0, %v2713
  %v2715 = vpop.f32.mrf.mxu0
  %2716 = vdwg.mxu0
  %v2717 = vmul.f32 %v2714, %v2562
  %v2719 = vsel %vm337, %v2717, 0
  %2721 = vmatprep.subr.mxu0 0.0
  %2722 = vmatpush1.msra.mxu0 0.0
  %2723 = vmatprep.subr.mxu0 0.0
  %2724 = vmatpush1.msra.mxu0 0.0
  %2725 = vmatprep.subr.mxu0 0.0
  %2726 = vmatpush1.msra.mxu0 0.0
  %2727 = vmatprep.subr.mxu0 0.0
  %2728 = vmatpush1.msra.mxu0 0.0
  %2729 = vmatprep.subr.mxu0 0.0
  %2730 = vmatpush1.msra.mxu0 0.0
  %2731 = vmatprep.subr.mxu0 0.0
  %2732 = vmatpush1.msra.mxu0 0.0
  %2733 = vmatprep.subr.mxu0 0.0
  %2734 = vmatpush1.msra.mxu0 0.0
  %2735 = vmatprep.subr.mxu0 0.0
  %2736 = vmatpush1.msra.mxu0 0.0
  %2737 = vmatprep.subr.mxu0 0.0
  %2738 = vmatpush1.msra.mxu0 0.0
  %2739 = vmatprep.subr.mxu0 0.0
  %2740 = vmatpush1.msra.mxu0 0.0
  %2741 = vmatprep.subr.mxu0 0.0
  %2742 = vmatpush1.msra.mxu0 0.0
  %2743 = vmatprep.subr.mxu0 0.0
  %2744 = vmatpush1.msra.mxu0 0.0
  %2745 = vmatprep.subr.mxu0 0.0
  %2746 = vmatpush1.msra.mxu0 0.0
  %2747 = vmatprep.subr.mxu0 0.0
  %2748 = vmatpush1.msra.mxu0 0.0
  %2749 = vmatprep.subr.mxu0 0.0
  %2750 = vmatpush1.msra.mxu0 0.0
  %2751 = vmatprep.subr.mxu0 0.0
  %2752 = vmatpush1.msra.mxu0 %v2719
  %2753 = vmatprep.subr.mxu0 0.0
  %2754 = vmatpush2.msra.mxu0 0.0
  %2755 = vmatprep.subr.mxu0 0.0
  %2756 = vmatpush2.msra.mxu0 0.0
  %2757 = vmatprep.subr.mxu0 0.0
  %2758 = vmatpush2.msra.mxu0 0.0
  %2759 = vmatprep.subr.mxu0 0.0
  %2760 = vmatpush2.msra.mxu0 0.0
  %2761 = vmatprep.subr.mxu0 0.0
  %2762 = vmatpush2.msra.mxu0 0.0
  %2763 = vmatprep.subr.mxu0 0.0
  %2764 = vmatpush2.msra.mxu0 0.0
  %2765 = vmatprep.subr.mxu0 0.0
  %2766 = vmatpush2.msra.mxu0 0.0
  %2767 = vmatprep.subr.mxu0 0.0
  %2768 = vmatpush2.msra.mxu0 0.0
  %2769 = vmatprep.subr.mxu0 0.0
  %2770 = vmatpush2.msra.mxu0 0.0
  %2771 = vmatprep.subr.mxu0 0.0
  %2772 = vmatpush2.msra.mxu0 0.0
  %2773 = vmatprep.subr.mxu0 0.0
  %2774 = vmatpush2.msra.mxu0 0.0
  %2775 = vmatprep.subr.mxu0 0.0
  %2776 = vmatpush2.msra.mxu0 0.0
  %2777 = vmatprep.subr.mxu0 0.0
  %2778 = vmatpush2.msra.mxu0 0.0
  %2779 = vmatprep.subr.mxu0 0.0
  %2780 = vmatpush2.msra.mxu0 0.0
  %2781 = vmatprep.subr.mxu0 0.0
  %2782 = vmatpush2.msra.mxu0 0.0
  %2783 = vmatprep.subr.mxu0 0.0
  %2784 = vmatpush2.msra.mxu0 0.0
  %2785 = vmatprep.mubr.f32.mxu0 0.0
  %2786 = vmatmul.mubr.f32.gmra.mxu0 %v840
  %v2787 = vpop.f32.mrf.mxu0
  %v2788 = vadd.f32 1e-05, %v2787
  %v2789 = vpop.f32.mrf.mxu0
  %2790 = vdwg.mxu0
  %v2791 = vrsqrt.pop %v2788
  %2793 = vset.pattern.permute.xlu0 0
  %2794 = vperm.xlu0 %2793, %v2791
  %v2795 = vpop.permute.xlu0 %2794
  %v2797 = vmul.f32 %v2642, %v2795
  %vm2798 = vcmp.gt.f32.partialorder %v2797, 0.0
  %v2799 = vmul.f32 %v2797, 0.01
  %v2800 = vsel %vm2798, %v2797, %v2799
  %2801 = vst.msk [vmem:[%s18] sm:$0xff] %vm652, %v2800
  %v2802 = vld [vmem:[%s14] sm:$0xff]
  %v2803 = vld [vmem:[%s14 + $0x8] sm:$0xff]
  %v2804 = vld [vmem:[%s15] sm:$0x1]
  %v2805 = vld [vmem:[%s16] sm:$0xff]
  %v2806 = vld [vmem:[%s16 + $0x8] sm:$0xff]
  %v2807 = vld [vmem:[%s16 + $0x10] sm:$0xff]
  %v2808 = vld [vmem:[%s16 + $0x18] sm:$0xff]
  %v2809 = vld [vmem:[%s17] sm:$0x1]
  %v2811 = vlaneseq
  %v2812 = vshrl.u32 %v2811, 7
  %v2813 = vsub.s32 0, %v2812
  %v2814 = vrot.slane %v2804, %v2813
  %v2817 = vsel %vm652, %v2008, 0
  %2819 = vmatprep.subr.mxu0 0.0
  %2820 = vmatpush1.msra.mxu0 0.0
  %2821 = vmatprep.subr.mxu0 0.0
  %2822 = vmatpush1.msra.mxu0 0.0
  %2823 = vmatprep.subr.mxu0 0.0
  %2824 = vmatpush1.msra.mxu0 0.0
  %2825 = vmatprep.subr.mxu0 0.0
  %2826 = vmatpush1.msra.mxu0 0.0
  %2827 = vmatprep.subr.mxu0 0.0
  %2828 = vmatpush1.msra.mxu0 0.0
  %2829 = vmatprep.subr.mxu0 0.0
  %2830 = vmatpush1.msra.mxu0 0.0
  %2831 = vmatprep.subr.mxu0 0.0
  %2832 = vmatpush1.msra.mxu0 0.0
  %2833 = vmatprep.subr.mxu0 0.0
  %2834 = vmatpush1.msra.mxu0 0.0
  %2835 = vmatprep.subr.mxu0 0.0
  %2836 = vmatpush1.msra.mxu0 0.0
  %2837 = vmatprep.subr.mxu0 0.0
  %2838 = vmatpush1.msra.mxu0 0.0
  %2839 = vmatprep.subr.mxu0 0.0
  %2840 = vmatpush1.msra.mxu0 0.0
  %2841 = vmatprep.subr.mxu0 0.0
  %2842 = vmatpush1.msra.mxu0 0.0
  %2843 = vmatprep.subr.mxu0 0.0
  %2844 = vmatpush1.msra.mxu0 0.0
  %2845 = vmatprep.subr.mxu0 0.0
  %2846 = vmatpush1.msra.mxu0 0.0
  %2847 = vmatprep.subr.mxu0 0.0
  %2848 = vmatpush1.msra.mxu0 %v2803
  %2849 = vmatprep.subr.mxu0 0.0
  %2850 = vmatpush1.msra.mxu0 %v2802
  %2851 = vmatprep.subr.mxu0 0.0
  %2852 = vmatpush2.msra.mxu0 0.0
  %2853 = vmatprep.subr.mxu0 0.0
  %2854 = vmatpush2.msra.mxu0 0.0
  %2855 = vmatprep.subr.mxu0 0.0
  %2856 = vmatpush2.msra.mxu0 0.0
  %2857 = vmatprep.subr.mxu0 0.0
  %2858 = vmatpush2.msra.mxu0 0.0
  %2859 = vmatprep.subr.mxu0 0.0
  %2860 = vmatpush2.msra.mxu0 0.0
  %2861 = vmatprep.subr.mxu0 0.0
  %2862 = vmatpush2.msra.mxu0 0.0
  %2863 = vmatprep.subr.mxu0 0.0
  %2864 = vmatpush2.msra.mxu0 0.0
  %2865 = vmatprep.subr.mxu0 0.0
  %2866 = vmatpush2.msra.mxu0 0.0
  %2867 = vmatprep.subr.mxu0 0.0
  %2868 = vmatpush2.msra.mxu0 0.0
  %2869 = vmatprep.subr.mxu0 0.0
  %2870 = vmatpush2.msra.mxu0 0.0
  %2871 = vmatprep.subr.mxu0 0.0
  %2872 = vmatpush2.msra.mxu0 0.0
  %2873 = vmatprep.subr.mxu0 0.0
  %2874 = vmatpush2.msra.mxu0 0.0
  %2875 = vmatprep.subr.mxu0 0.0
  %2876 = vmatpush2.msra.mxu0 0.0
  %2877 = vmatprep.subr.mxu0 0.0
  %2878 = vmatpush2.msra.mxu0 0.0
  %2879 = vmatprep.subr.mxu0 0.0
  %2880 = vmatpush2.msra.mxu0 0.0
  %2881 = vmatprep.subr.mxu0 0.0
  %2882 = vmatpush2.msra.mxu0 0.0
  %2883 = vmatprep.mubr.f32.mxu0 0.0
  %2884 = vmatmul.mubr.f32.gmra.mxu0 %v2817
  %v2885 = vpop.f32.mrf.mxu0
  %v2886 = vadd.f32 %v2814, %v2885
  %v2887 = vpop.f32.mrf.mxu0
  %2888 = vdwg.mxu0
  %v2889 = vsel %vm763, %v2886, 0.0
  %2890 = vadd.xlane.f32.xlu0 %v2889
  %v2891 = vpop.xlane.xlu0 %2890
  %2892 = vmatprep.subr.mxu0 0.0
  %2893 = vmatpush1.msra.mxu0 0.0
  %2894 = vmatprep.subr.mxu0 0.0
  %2895 = vmatpush1.msra.mxu0 0.0
  %2896 = vmatprep.subr.mxu0 0.0
  %2897 = vmatpush1.msra.mxu0 0.0
  %2898 = vmatprep.subr.mxu0 0.0
  %2899 = vmatpush1.msra.mxu0 0.0
  %2900 = vmatprep.subr.mxu0 0.0
  %2901 = vmatpush1.msra.mxu0 0.0
  %2902 = vmatprep.subr.mxu0 0.0
  %2903 = vmatpush1.msra.mxu0 0.0
  %2904 = vmatprep.subr.mxu0 0.0
  %2905 = vmatpush1.msra.mxu0 0.0
  %2906 = vmatprep.subr.mxu0 0.0
  %2907 = vmatpush1.msra.mxu0 0.0
  %2908 = vmatprep.subr.mxu0 0.0
  %2909 = vmatpush1.msra.mxu0 0.0
  %2910 = vmatprep.subr.mxu0 0.0
  %2911 = vmatpush1.msra.mxu0 0.0
  %2912 = vmatprep.subr.mxu0 0.0
  %2913 = vmatpush1.msra.mxu0 0.0
  %2914 = vmatprep.subr.mxu0 0.0
  %2915 = vmatpush1.msra.mxu0 0.0
  %2916 = vmatprep.subr.mxu0 0.0
  %2917 = vmatpush1.msra.mxu0 0.0
  %2918 = vmatprep.subr.mxu0 0.0
  %2919 = vmatpush1.msra.mxu0 0.0
  %2920 = vmatprep.subr.mxu0 0.0
  %2921 = vmatpush1.msra.mxu0 0.0
  %2922 = vmatprep.subr.mxu0 0.0
  %2923 = vmatpush1.msra.mxu0 %v2891
  %2924 = vmatprep.subr.mxu0 0.0
  %2925 = vmatpush2.msra.mxu0 0.0
  %2926 = vmatprep.subr.mxu0 0.0
  %2927 = vmatpush2.msra.mxu0 0.0
  %2928 = vmatprep.subr.mxu0 0.0
  %2929 = vmatpush2.msra.mxu0 0.0
  %2930 = vmatprep.subr.mxu0 0.0
  %2931 = vmatpush2.msra.mxu0 0.0
  %2932 = vmatprep.subr.mxu0 0.0
  %2933 = vmatpush2.msra.mxu0 0.0
  %2934 = vmatprep.subr.mxu0 0.0
  %2935 = vmatpush2.msra.mxu0 0.0
  %2936 = vmatprep.subr.mxu0 0.0
  %2937 = vmatpush2.msra.mxu0 0.0
  %2938 = vmatprep.subr.mxu0 0.0
  %2939 = vmatpush2.msra.mxu0 0.0
  %2940 = vmatprep.subr.mxu0 0.0
  %2941 = vmatpush2.msra.mxu0 0.0
  %2942 = vmatprep.subr.mxu0 0.0
  %2943 = vmatpush2.msra.mxu0 0.0
  %2944 = vmatprep.subr.mxu0 0.0
  %2945 = vmatpush2.msra.mxu0 0.0
  %2946 = vmatprep.subr.mxu0 0.0
  %2947 = vmatpush2.msra.mxu0 0.0
  %2948 = vmatprep.subr.mxu0 0.0
  %2949 = vmatpush2.msra.mxu0 0.0
  %2950 = vmatprep.subr.mxu0 0.0
  %2951 = vmatpush2.msra.mxu0 0.0
  %2952 = vmatprep.subr.mxu0 0.0
  %2953 = vmatpush2.msra.mxu0 0.0
  %2954 = vmatprep.subr.mxu0 0.0
  %2955 = vmatpush2.msra.mxu0 0.0
  %2956 = vmatprep.mubr.f32.mxu0 0.0
  %2957 = vmatmul.mubr.f32.gmra.mxu0 %v2099
  %v2958 = vpop.f32.mrf.mxu0
  %v2959 = vadd.f32 0.0, %v2958
  %v2960 = vpop.f32.mrf.mxu0
  %2961 = vdwg.mxu0
  %v2962 = vmul.f32 %v2959, %v2171
  %v2964 = vsel %vm337, %v2962, 0
  %2966 = vmatprep.subr.mxu0 0.0
  %2967 = vmatpush1.msra.mxu0 0.0
  %2968 = vmatprep.subr.mxu0 0.0
  %2969 = vmatpush1.msra.mxu0 0.0
  %2970 = vmatprep.subr.mxu0 0.0
  %2971 = vmatpush1.msra.mxu0 0.0
  %2972 = vmatprep.subr.mxu0 0.0
  %2973 = vmatpush1.msra.mxu0 0.0
  %2974 = vmatprep.subr.mxu0 0.0
  %2975 = vmatpush1.msra.mxu0 0.0
  %2976 = vmatprep.subr.mxu0 0.0
  %2977 = vmatpush1.msra.mxu0 0.0
  %2978 = vmatprep.subr.mxu0 0.0
  %2979 = vmatpush1.msra.mxu0 0.0
  %2980 = vmatprep.subr.mxu0 0.0
  %2981 = vmatpush1.msra.mxu0 0.0
  %2982 = vmatprep.subr.mxu0 0.0
  %2983 = vmatpush1.msra.mxu0 0.0
  %2984 = vmatprep.subr.mxu0 0.0
  %2985 = vmatpush1.msra.mxu0 0.0
  %2986 = vmatprep.subr.mxu0 0.0
  %2987 = vmatpush1.msra.mxu0 0.0
  %2988 = vmatprep.subr.mxu0 0.0
  %2989 = vmatpush1.msra.mxu0 0.0
  %2990 = vmatprep.subr.mxu0 0.0
  %2991 = vmatpush1.msra.mxu0 0.0
  %2992 = vmatprep.subr.mxu0 0.0
  %2993 = vmatpush1.msra.mxu0 0.0
  %2994 = vmatprep.subr.mxu0 0.0
  %2995 = vmatpush1.msra.mxu0 0.0
  %2996 = vmatprep.subr.mxu0 0.0
  %2997 = vmatpush1.msra.mxu0 %v2964
  %2998 = vmatprep.subr.mxu0 0.0
  %2999 = vmatpush2.msra.mxu0 0.0
  %3000 = vmatprep.subr.mxu0 0.0
  %3001 = vmatpush2.msra.mxu0 0.0
  %3002 = vmatprep.subr.mxu0 0.0
  %3003 = vmatpush2.msra.mxu0 0.0
  %3004 = vmatprep.subr.mxu0 0.0
  %3005 = vmatpush2.msra.mxu0 0.0
  %3006 = vmatprep.subr.mxu0 0.0
  %3007 = vmatpush2.msra.mxu0 0.0
  %3008 = vmatprep.subr.mxu0 0.0
  %3009 = vmatpush2.msra.mxu0 0.0
  %3010 = vmatprep.subr.mxu0 0.0
  %3011 = vmatpush2.msra.mxu0 0.0
  %3012 = vmatprep.subr.mxu0 0.0
  %3013 = vmatpush2.msra.mxu0 0.0
  %3014 = vmatprep.subr.mxu0 0.0
  %3015 = vmatpush2.msra.mxu0 0.0
  %3016 = vmatprep.subr.mxu0 0.0
  %3017 = vmatpush2.msra.mxu0 0.0
  %3018 = vmatprep.subr.mxu0 0.0
  %3019 = vmatpush2.msra.mxu0 0.0
  %3020 = vmatprep.subr.mxu0 0.0
  %3021 = vmatpush2.msra.mxu0 0.0
  %3022 = vmatprep.subr.mxu0 0.0
  %3023 = vmatpush2.msra.mxu0 0.0
  %3024 = vmatprep.subr.mxu0 0.0
  %3025 = vmatpush2.msra.mxu0 0.0
  %3026 = vmatprep.subr.mxu0 0.0
  %3027 = vmatpush2.msra.mxu0 0.0
  %3028 = vmatprep.subr.mxu0 0.0
  %3029 = vmatpush2.msra.mxu0 0.0
  %3030 = vmatprep.mubr.f32.mxu0 0.0
  %3031 = vmatmul.mubr.f32.gmra.mxu0 %v840
  %v3032 = vpop.f32.mrf.mxu0
  %v3033 = vadd.f32 0.0, %v3032
  %v3034 = vpop.f32.mrf.mxu0
  %3035 = vdwg.mxu0
  %3037 = vset.pattern.permute.xlu0 0
  %3038 = vperm.xlu0 %3037, %v3033
  %v3039 = vpop.permute.xlu0 %3038
  %v3041 = vsub.f32 %v2886, %v3039
  %v3042 = vmul.f32 %v3041, %v3041
  %v3043 = vsel %vm763, %v3042, 0.0
  %3044 = vadd.xlane.f32.xlu0 %v3043
  %v3045 = vpop.xlane.xlu0 %3044
  %3046 = vmatprep.subr.mxu0 0.0
  %3047 = vmatpush1.msra.mxu0 0.0
  %3048 = vmatprep.subr.mxu0 0.0
  %3049 = vmatpush1.msra.mxu0 0.0
  %3050 = vmatprep.subr.mxu0 0.0
  %3051 = vmatpush1.msra.mxu0 0.0
  %3052 = vmatprep.subr.mxu0 0.0
  %3053 = vmatpush1.msra.mxu0 0.0
  %3054 = vmatprep.subr.mxu0 0.0
  %3055 = vmatpush1.msra.mxu0 0.0
  %3056 = vmatprep.subr.mxu0 0.0
  %3057 = vmatpush1.msra.mxu0 0.0
  %3058 = vmatprep.subr.mxu0 0.0
  %3059 = vmatpush1.msra.mxu0 0.0
  %3060 = vmatprep.subr.mxu0 0.0
  %3061 = vmatpush1.msra.mxu0 0.0
  %3062 = vmatprep.subr.mxu0 0.0
  %3063 = vmatpush1.msra.mxu0 0.0
  %3064 = vmatprep.subr.mxu0 0.0
  %3065 = vmatpush1.msra.mxu0 0.0
  %3066 = vmatprep.subr.mxu0 0.0
  %3067 = vmatpush1.msra.mxu0 0.0
  %3068 = vmatprep.subr.mxu0 0.0
  %3069 = vmatpush1.msra.mxu0 0.0
  %3070 = vmatprep.subr.mxu0 0.0
  %3071 = vmatpush1.msra.mxu0 0.0
  %3072 = vmatprep.subr.mxu0 0.0
  %3073 = vmatpush1.msra.mxu0 0.0
  %3074 = vmatprep.subr.mxu0 0.0
  %3075 = vmatpush1.msra.mxu0 0.0
  %3076 = vmatprep.subr.mxu0 0.0
  %3077 = vmatpush1.msra.mxu0 %v3045
  %3078 = vmatprep.subr.mxu0 0.0
  %3079 = vmatpush2.msra.mxu0 0.0
  %3080 = vmatprep.subr.mxu0 0.0
  %3081 = vmatpush2.msra.mxu0 0.0
  %3082 = vmatprep.subr.mxu0 0.0
  %3083 = vmatpush2.msra.mxu0 0.0
  %3084 = vmatprep.subr.mxu0 0.0
  %3085 = vmatpush2.msra.mxu0 0.0
  %3086 = vmatprep.subr.mxu0 0.0
  %3087 = vmatpush2.msra.mxu0 0.0
  %3088 = vmatprep.subr.mxu0 0.0
  %3089 = vmatpush2.msra.mxu0 0.0
  %3090 = vmatprep.subr.mxu0 0.0
  %3091 = vmatpush2.msra.mxu0 0.0
  %3092 = vmatprep.subr.mxu0 0.0
  %3093 = vmatpush2.msra.mxu0 0.0
  %3094 = vmatprep.subr.mxu0 0.0
  %3095 = vmatpush2.msra.mxu0 0.0
  %3096 = vmatprep.subr.mxu0 0.0
  %3097 = vmatpush2.msra.mxu0 0.0
  %3098 = vmatprep.subr.mxu0 0.0
  %3099 = vmatpush2.msra.mxu0 0.0
  %3100 = vmatprep.subr.mxu0 0.0
  %3101 = vmatpush2.msra.mxu0 0.0
  %3102 = vmatprep.subr.mxu0 0.0
  %3103 = vmatpush2.msra.mxu0 0.0
  %3104 = vmatprep.subr.mxu0 0.0
  %3105 = vmatpush2.msra.mxu0 0.0
  %3106 = vmatprep.subr.mxu0 0.0
  %3107 = vmatpush2.msra.mxu0 0.0
  %3108 = vmatprep.subr.mxu0 0.0
  %3109 = vmatpush2.msra.mxu0 0.0
  %3110 = vmatprep.mubr.f32.mxu0 0.0
  %3111 = vmatmul.mubr.f32.gmra.mxu0 %v2099
  %v3112 = vpop.f32.mrf.mxu0
  %v3113 = vadd.f32 0.0, %v3112
  %v3114 = vpop.f32.mrf.mxu0
  %3115 = vdwg.mxu0
  %v3116 = vmul.f32 %v3113, %v2171
  %v3118 = vsel %vm337, %v3116, 0
  %3120 = vmatprep.subr.mxu0 0.0
  %3121 = vmatpush1.msra.mxu0 0.0
  %3122 = vmatprep.subr.mxu0 0.0
  %3123 = vmatpush1.msra.mxu0 0.0
  %3124 = vmatprep.subr.mxu0 0.0
  %3125 = vmatpush1.msra.mxu0 0.0
  %3126 = vmatprep.subr.mxu0 0.0
  %3127 = vmatpush1.msra.mxu0 0.0
  %3128 = vmatprep.subr.mxu0 0.0
  %3129 = vmatpush1.msra.mxu0 0.0
  %3130 = vmatprep.subr.mxu0 0.0
  %3131 = vmatpush1.msra.mxu0 0.0
  %3132 = vmatprep.subr.mxu0 0.0
  %3133 = vmatpush1.msra.mxu0 0.0
  %3134 = vmatprep.subr.mxu0 0.0
  %3135 = vmatpush1.msra.mxu0 0.0
  %3136 = vmatprep.subr.mxu0 0.0
  %3137 = vmatpush1.msra.mxu0 0.0
  %3138 = vmatprep.subr.mxu0 0.0
  %3139 = vmatpush1.msra.mxu0 0.0
  %3140 = vmatprep.subr.mxu0 0.0
  %3141 = vmatpush1.msra.mxu0 0.0
  %3142 = vmatprep.subr.mxu0 0.0
  %3143 = vmatpush1.msra.mxu0 0.0
  %3144 = vmatprep.subr.mxu0 0.0
  %3145 = vmatpush1.msra.mxu0 0.0
  %3146 = vmatprep.subr.mxu0 0.0
  %3147 = vmatpush1.msra.mxu0 0.0
  %3148 = vmatprep.subr.mxu0 0.0
  %3149 = vmatpush1.msra.mxu0 0.0
  %3150 = vmatprep.subr.mxu0 0.0
  %3151 = vmatpush1.msra.mxu0 %v3118
  %3152 = vmatprep.subr.mxu0 0.0
  %3153 = vmatpush2.msra.mxu0 0.0
  %3154 = vmatprep.subr.mxu0 0.0
  %3155 = vmatpush2.msra.mxu0 0.0
  %3156 = vmatprep.subr.mxu0 0.0
  %3157 = vmatpush2.msra.mxu0 0.0
  %3158 = vmatprep.subr.mxu0 0.0
  %3159 = vmatpush2.msra.mxu0 0.0
  %3160 = vmatprep.subr.mxu0 0.0
  %3161 = vmatpush2.msra.mxu0 0.0
  %3162 = vmatprep.subr.mxu0 0.0
  %3163 = vmatpush2.msra.mxu0 0.0
  %3164 = vmatprep.subr.mxu0 0.0
  %3165 = vmatpush2.msra.mxu0 0.0
  %3166 = vmatprep.subr.mxu0 0.0
  %3167 = vmatpush2.msra.mxu0 0.0
  %3168 = vmatprep.subr.mxu0 0.0
  %3169 = vmatpush2.msra.mxu0 0.0
  %3170 = vmatprep.subr.mxu0 0.0
  %3171 = vmatpush2.msra.mxu0 0.0
  %3172 = vmatprep.subr.mxu0 0.0
  %3173 = vmatpush2.msra.mxu0 0.0
  %3174 = vmatprep.subr.mxu0 0.0
  %3175 = vmatpush2.msra.mxu0 0.0
  %3176 = vmatprep.subr.mxu0 0.0
  %3177 = vmatpush2.msra.mxu0 0.0
  %3178 = vmatprep.subr.mxu0 0.0
  %3179 = vmatpush2.msra.mxu0 0.0
  %3180 = vmatprep.subr.mxu0 0.0
  %3181 = vmatpush2.msra.mxu0 0.0
  %3182 = vmatprep.subr.mxu0 0.0
  %3183 = vmatpush2.msra.mxu0 0.0
  %3184 = vmatprep.mubr.f32.mxu0 0.0
  %3185 = vmatmul.mubr.f32.gmra.mxu0 %v840
  %v3186 = vpop.f32.mrf.mxu0
  %v3187 = vadd.f32 1e-05, %v3186
  %v3188 = vpop.f32.mrf.mxu0
  %3189 = vdwg.mxu0
  %v3190 = vrsqrt.pop %v3187
  %3192 = vset.pattern.permute.xlu0 0
  %3193 = vperm.xlu0 %3192, %v3190
  %v3194 = vpop.permute.xlu0 %3193
  %v3196 = vmul.f32 %v3041, %v3194
  %vm3197 = vcmp.gt.f32.partialorder %v3196, 0.0
  %v3198 = vmul.f32 %v3196, 0.01
  %v3199 = vsel %vm3197, %v3196, %v3198
  %v3201 = vlaneseq
  %v3202 = vshrl.u32 %v3201, 7
  %v3203 = vsub.s32 0, %v3202
  %v3204 = vrot.slane %v2809, %v3203
  %v3207 = vsel %vm763, %v3199, 0
  %3209 = vmatprep.subr.mxu0 0.0
  %3210 = vmatpush1.msra.mxu0 0.0
  %3211 = vmatprep.subr.mxu0 0.0
  %3212 = vmatpush1.msra.mxu0 0.0
  %3213 = vmatprep.subr.mxu0 0.0
  %3214 = vmatpush1.msra.mxu0 0.0
  %3215 = vmatprep.subr.mxu0 0.0
  %3216 = vmatpush1.msra.mxu0 0.0
  %3217 = vmatprep.subr.mxu0 0.0
  %3218 = vmatpush1.msra.mxu0 0.0
  %3219 = vmatprep.subr.mxu0 0.0
  %3220 = vmatpush1.msra.mxu0 0.0
  %3221 = vmatprep.subr.mxu0 0.0
  %3222 = vmatpush1.msra.mxu0 0.0
  %3223 = vmatprep.subr.mxu0 0.0
  %3224 = vmatpush1.msra.mxu0 0.0
  %3225 = vmatprep.subr.mxu0 0.0
  %3226 = vmatpush1.msra.mxu0 0.0
  %3227 = vmatprep.subr.mxu0 0.0
  %3228 = vmatpush1.msra.mxu0 0.0
  %3229 = vmatprep.subr.mxu0 0.0
  %3230 = vmatpush1.msra.mxu0 0.0
  %3231 = vmatprep.subr.mxu0 0.0
  %3232 = vmatpush1.msra.mxu0 0.0
  %3233 = vmatprep.subr.mxu0 0.0
  %3234 = vmatpush1.msra.mxu0 %v2808
  %3235 = vmatprep.subr.mxu0 0.0
  %3236 = vmatpush1.msra.mxu0 %v2807
  %3237 = vmatprep.subr.mxu0 0.0
  %3238 = vmatpush1.msra.mxu0 %v2806
  %3239 = vmatprep.subr.mxu0 0.0
  %3240 = vmatpush1.msra.mxu0 %v2805
  %3241 = vmatprep.subr.mxu0 0.0
  %3242 = vmatpush2.msra.mxu0 0.0
  %3243 = vmatprep.subr.mxu0 0.0
  %3244 = vmatpush2.msra.mxu0 0.0
  %3245 = vmatprep.subr.mxu0 0.0
  %3246 = vmatpush2.msra.mxu0 0.0
  %3247 = vmatprep.subr.mxu0 0.0
  %3248 = vmatpush2.msra.mxu0 0.0
  %3249 = vmatprep.subr.mxu0 0.0
  %3250 = vmatpush2.msra.mxu0 0.0
  %3251 = vmatprep.subr.mxu0 0.0
  %3252 = vmatpush2.msra.mxu0 0.0
  %3253 = vmatprep.subr.mxu0 0.0
  %3254 = vmatpush2.msra.mxu0 0.0
  %3255 = vmatprep.subr.mxu0 0.0
  %3256 = vmatpush2.msra.mxu0 0.0
  %3257 = vmatprep.subr.mxu0 0.0
  %3258 = vmatpush2.msra.mxu0 0.0
  %3259 = vmatprep.subr.mxu0 0.0
  %3260 = vmatpush2.msra.mxu0 0.0
  %3261 = vmatprep.subr.mxu0 0.0
  %3262 = vmatpush2.msra.mxu0 0.0
  %3263 = vmatprep.subr.mxu0 0.0
  %3264 = vmatpush2.msra.mxu0 0.0
  %3265 = vmatprep.subr.mxu0 0.0
  %3266 = vmatpush2.msra.mxu0 0.0
  %3267 = vmatprep.subr.mxu0 0.0
  %3268 = vmatpush2.msra.mxu0 0.0
  %3269 = vmatprep.subr.mxu0 0.0
  %3270 = vmatpush2.msra.mxu0 0.0
  %3271 = vmatprep.subr.mxu0 0.0
  %3272 = vmatpush2.msra.mxu0 0.0
  %3273 = vmatprep.mubr.f32.mxu0 0.0
  %3274 = vmatmul.mubr.f32.gmra.mxu0 %v3207
  %v3275 = vpop.f32.mrf.mxu0
  %v3276 = vadd.f32 %v3204, %v3275
  %v3277 = vpop.f32.mrf.mxu0
  %3278 = vdwg.mxu0
  %v3279 = vsel %vm652, %v3276, 0.0
  %3280 = vadd.xlane.f32.xlu0 %v3279
  %v3281 = vpop.xlane.xlu0 %3280
  %3282 = vmatprep.subr.mxu0 0.0
  %3283 = vmatpush1.msra.mxu0 0.0
  %3284 = vmatprep.subr.mxu0 0.0
  %3285 = vmatpush1.msra.mxu0 0.0
  %3286 = vmatprep.subr.mxu0 0.0
  %3287 = vmatpush1.msra.mxu0 0.0
  %3288 = vmatprep.subr.mxu0 0.0
  %3289 = vmatpush1.msra.mxu0 0.0
  %3290 = vmatprep.subr.mxu0 0.0
  %3291 = vmatpush1.msra.mxu0 0.0
  %3292 = vmatprep.subr.mxu0 0.0
  %3293 = vmatpush1.msra.mxu0 0.0
  %3294 = vmatprep.subr.mxu0 0.0
  %3295 = vmatpush1.msra.mxu0 0.0
  %3296 = vmatprep.subr.mxu0 0.0
  %3297 = vmatpush1.msra.mxu0 0.0
  %3298 = vmatprep.subr.mxu0 0.0
  %3299 = vmatpush1.msra.mxu0 0.0
  %3300 = vmatprep.subr.mxu0 0.0
  %3301 = vmatpush1.msra.mxu0 0.0
  %3302 = vmatprep.subr.mxu0 0.0
  %3303 = vmatpush1.msra.mxu0 0.0
  %3304 = vmatprep.subr.mxu0 0.0
  %3305 = vmatpush1.msra.mxu0 0.0
  %3306 = vmatprep.subr.mxu0 0.0
  %3307 = vmatpush1.msra.mxu0 0.0
  %3308 = vmatprep.subr.mxu0 0.0
  %3309 = vmatpush1.msra.mxu0 0.0
  %3310 = vmatprep.subr.mxu0 0.0
  %3311 = vmatpush1.msra.mxu0 0.0
  %3312 = vmatprep.subr.mxu0 0.0
  %3313 = vmatpush1.msra.mxu0 %v3281
  %3314 = vmatprep.subr.mxu0 0.0
  %3315 = vmatpush2.msra.mxu0 0.0
  %3316 = vmatprep.subr.mxu0 0.0
  %3317 = vmatpush2.msra.mxu0 0.0
  %3318 = vmatprep.subr.mxu0 0.0
  %3319 = vmatpush2.msra.mxu0 0.0
  %3320 = vmatprep.subr.mxu0 0.0
  %3321 = vmatpush2.msra.mxu0 0.0
  %3322 = vmatprep.subr.mxu0 0.0
  %3323 = vmatpush2.msra.mxu0 0.0
  %3324 = vmatprep.subr.mxu0 0.0
  %3325 = vmatpush2.msra.mxu0 0.0
  %3326 = vmatprep.subr.mxu0 0.0
  %3327 = vmatpush2.msra.mxu0 0.0
  %3328 = vmatprep.subr.mxu0 0.0
  %3329 = vmatpush2.msra.mxu0 0.0
  %3330 = vmatprep.subr.mxu0 0.0
  %3331 = vmatpush2.msra.mxu0 0.0
  %3332 = vmatprep.subr.mxu0 0.0
  %3333 = vmatpush2.msra.mxu0 0.0
  %3334 = vmatprep.subr.mxu0 0.0
  %3335 = vmatpush2.msra.mxu0 0.0
  %3336 = vmatprep.subr.mxu0 0.0
  %3337 = vmatpush2.msra.mxu0 0.0
  %3338 = vmatprep.subr.mxu0 0.0
  %3339 = vmatpush2.msra.mxu0 0.0
  %3340 = vmatprep.subr.mxu0 0.0
  %3341 = vmatpush2.msra.mxu0 0.0
  %3342 = vmatprep.subr.mxu0 0.0
  %3343 = vmatpush2.msra.mxu0 0.0
  %3344 = vmatprep.subr.mxu0 0.0
  %3345 = vmatpush2.msra.mxu0 0.0
  %3346 = vmatprep.mubr.f32.mxu0 0.0
  %3347 = vmatmul.mubr.f32.gmra.mxu0 %v2099
  %v3348 = vpop.f32.mrf.mxu0
  %v3349 = vadd.f32 0.0, %v3348
  %v3350 = vpop.f32.mrf.mxu0
  %3351 = vdwg.mxu0
  %v3352 = vmul.f32 %v3349, %v2562
  %v3354 = vsel %vm337, %v3352, 0
  %3356 = vmatprep.subr.mxu0 0.0
  %3357 = vmatpush1.msra.mxu0 0.0
  %3358 = vmatprep.subr.mxu0 0.0
  %3359 = vmatpush1.msra.mxu0 0.0
  %3360 = vmatprep.subr.mxu0 0.0
  %3361 = vmatpush1.msra.mxu0 0.0
  %3362 = vmatprep.subr.mxu0 0.0
  %3363 = vmatpush1.msra.mxu0 0.0
  %3364 = vmatprep.subr.mxu0 0.0
  %3365 = vmatpush1.msra.mxu0 0.0
  %3366 = vmatprep.subr.mxu0 0.0
  %3367 = vmatpush1.msra.mxu0 0.0
  %3368 = vmatprep.subr.mxu0 0.0
  %3369 = vmatpush1.msra.mxu0 0.0
  %3370 = vmatprep.subr.mxu0 0.0
  %3371 = vmatpush1.msra.mxu0 0.0
  %3372 = vmatprep.subr.mxu0 0.0
  %3373 = vmatpush1.msra.mxu0 0.0
  %3374 = vmatprep.subr.mxu0 0.0
  %3375 = vmatpush1.msra.mxu0 0.0
  %3376 = vmatprep.subr.mxu0 0.0
  %3377 = vmatpush1.msra.mxu0 0.0
  %3378 = vmatprep.subr.mxu0 0.0
  %3379 = vmatpush1.msra.mxu0 0.0
  %3380 = vmatprep.subr.mxu0 0.0
  %3381 = vmatpush1.msra.mxu0 0.0
  %3382 = vmatprep.subr.mxu0 0.0
  %3383 = vmatpush1.msra.mxu0 0.0
  %3384 = vmatprep.subr.mxu0 0.0
  %3385 = vmatpush1.msra.mxu0 0.0
  %3386 = vmatprep.subr.mxu0 0.0
  %3387 = vmatpush1.msra.mxu0 %v3354
  %3388 = vmatprep.subr.mxu0 0.0
  %3389 = vmatpush2.msra.mxu0 0.0
  %3390 = vmatprep.subr.mxu0 0.0
  %3391 = vmatpush2.msra.mxu0 0.0
  %3392 = vmatprep.subr.mxu0 0.0
  %3393 = vmatpush2.msra.mxu0 0.0
  %3394 = vmatprep.subr.mxu0 0.0
  %3395 = vmatpush2.msra.mxu0 0.0
  %3396 = vmatprep.subr.mxu0 0.0
  %3397 = vmatpush2.msra.mxu0 0.0
  %3398 = vmatprep.subr.mxu0 0.0
  %3399 = vmatpush2.msra.mxu0 0.0
  %3400 = vmatprep.subr.mxu0 0.0
  %3401 = vmatpush2.msra.mxu0 0.0
  %3402 = vmatprep.subr.mxu0 0.0
  %3403 = vmatpush2.msra.mxu0 0.0
  %3404 = vmatprep.subr.mxu0 0.0
  %3405 = vmatpush2.msra.mxu0 0.0
  %3406 = vmatprep.subr.mxu0 0.0
  %3407 = vmatpush2.msra.mxu0 0.0
  %3408 = vmatprep.subr.mxu0 0.0
  %3409 = vmatpush2.msra.mxu0 0.0
  %3410 = vmatprep.subr.mxu0 0.0
  %3411 = vmatpush2.msra.mxu0 0.0
  %3412 = vmatprep.subr.mxu0 0.0
  %3413 = vmatpush2.msra.mxu0 0.0
  %3414 = vmatprep.subr.mxu0 0.0
  %3415 = vmatpush2.msra.mxu0 0.0
  %3416 = vmatprep.subr.mxu0 0.0
  %3417 = vmatpush2.msra.mxu0 0.0
  %3418 = vmatprep.subr.mxu0 0.0
  %3419 = vmatpush2.msra.mxu0 0.0
  %3420 = vmatprep.mubr.f32.mxu0 0.0
  %3421 = vmatmul.mubr.f32.gmra.mxu0 %v840
  %v3422 = vpop.f32.mrf.mxu0
  %v3423 = vadd.f32 0.0, %v3422
  %v3424 = vpop.f32.mrf.mxu0
  %3425 = vdwg.mxu0
  %3427 = vset.pattern.permute.xlu0 0
  %3428 = vperm.xlu0 %3427, %v3423
  %v3429 = vpop.permute.xlu0 %3428
  %v3431 = vsub.f32 %v3276, %v3429
  %v3432 = vmul.f32 %v3431, %v3431
  %v3433 = vsel %vm652, %v3432, 0.0
  %3434 = vadd.xlane.f32.xlu0 %v3433
  %v3435 = vpop.xlane.xlu0 %3434
  %3436 = vmatprep.subr.mxu0 0.0
  %3437 = vmatpush1.msra.mxu0 0.0
  %3438 = vmatprep.subr.mxu0 0.0
  %3439 = vmatpush1.msra.mxu0 0.0
  %3440 = vmatprep.subr.mxu0 0.0
  %3441 = vmatpush1.msra.mxu0 0.0
  %3442 = vmatprep.subr.mxu0 0.0
  %3443 = vmatpush1.msra.mxu0 0.0
  %3444 = vmatprep.subr.mxu0 0.0
  %3445 = vmatpush1.msra.mxu0 0.0
  %3446 = vmatprep.subr.mxu0 0.0
  %3447 = vmatpush1.msra.mxu0 0.0
  %3448 = vmatprep.subr.mxu0 0.0
  %3449 = vmatpush1.msra.mxu0 0.0
  %3450 = vmatprep.subr.mxu0 0.0
  %3451 = vmatpush1.msra.mxu0 0.0
  %3452 = vmatprep.subr.mxu0 0.0
  %3453 = vmatpush1.msra.mxu0 0.0
  %3454 = vmatprep.subr.mxu0 0.0
  %3455 = vmatpush1.msra.mxu0 0.0
  %3456 = vmatprep.subr.mxu0 0.0
  %3457 = vmatpush1.msra.mxu0 0.0
  %3458 = vmatprep.subr.mxu0 0.0
  %3459 = vmatpush1.msra.mxu0 0.0
  %3460 = vmatprep.subr.mxu0 0.0
  %3461 = vmatpush1.msra.mxu0 0.0
  %3462 = vmatprep.subr.mxu0 0.0
  %3463 = vmatpush1.msra.mxu0 0.0
  %3464 = vmatprep.subr.mxu0 0.0
  %3465 = vmatpush1.msra.mxu0 0.0
  %3466 = vmatprep.subr.mxu0 0.0
  %3467 = vmatpush1.msra.mxu0 %v3435
  %3468 = vmatprep.subr.mxu0 0.0
  %3469 = vmatpush2.msra.mxu0 0.0
  %3470 = vmatprep.subr.mxu0 0.0
  %3471 = vmatpush2.msra.mxu0 0.0
  %3472 = vmatprep.subr.mxu0 0.0
  %3473 = vmatpush2.msra.mxu0 0.0
  %3474 = vmatprep.subr.mxu0 0.0
  %3475 = vmatpush2.msra.mxu0 0.0
  %3476 = vmatprep.subr.mxu0 0.0
  %3477 = vmatpush2.msra.mxu0 0.0
  %3478 = vmatprep.subr.mxu0 0.0
  %3479 = vmatpush2.msra.mxu0 0.0
  %3480 = vmatprep.subr.mxu0 0.0
  %3481 = vmatpush2.msra.mxu0 0.0
  %3482 = vmatprep.subr.mxu0 0.0
  %3483 = vmatpush2.msra.mxu0 0.0
  %3484 = vmatprep.subr.mxu0 0.0
  %3485 = vmatpush2.msra.mxu0 0.0
  %3486 = vmatprep.subr.mxu0 0.0
  %3487 = vmatpush2.msra.mxu0 0.0
  %3488 = vmatprep.subr.mxu0 0.0
  %3489 = vmatpush2.msra.mxu0 0.0
  %3490 = vmatprep.subr.mxu0 0.0
  %3491 = vmatpush2.msra.mxu0 0.0
  %3492 = vmatprep.subr.mxu0 0.0
  %3493 = vmatpush2.msra.mxu0 0.0
  %3494 = vmatprep.subr.mxu0 0.0
  %3495 = vmatpush2.msra.mxu0 0.0
  %3496 = vmatprep.subr.mxu0 0.0
  %3497 = vmatpush2.msra.mxu0 0.0
  %3498 = vmatprep.subr.mxu0 0.0
  %3499 = vmatpush2.msra.mxu0 0.0
  %3500 = vmatprep.mubr.f32.mxu0 0.0
  %3501 = vmatmul.mubr.f32.gmra.mxu0 %v2099
  %v3502 = vpop.f32.mrf.mxu0
  %v3503 = vadd.f32 0.0, %v3502
  %v3504 = vpop.f32.mrf.mxu0
  %3505 = vdwg.mxu0
  %v3506 = vmul.f32 %v3503, %v2562
  %v3508 = vsel %vm337, %v3506, 0
  %3510 = vmatprep.subr.mxu0 0.0
  %3511 = vmatpush1.msra.mxu0 0.0
  %3512 = vmatprep.subr.mxu0 0.0
  %3513 = vmatpush1.msra.mxu0 0.0
  %3514 = vmatprep.subr.mxu0 0.0
  %3515 = vmatpush1.msra.mxu0 0.0
  %3516 = vmatprep.subr.mxu0 0.0
  %3517 = vmatpush1.msra.mxu0 0.0
  %3518 = vmatprep.subr.mxu0 0.0
  %3519 = vmatpush1.msra.mxu0 0.0
  %3520 = vmatprep.subr.mxu0 0.0
  %3521 = vmatpush1.msra.mxu0 0.0
  %3522 = vmatprep.subr.mxu0 0.0
  %3523 = vmatpush1.msra.mxu0 0.0
  %3524 = vmatprep.subr.mxu0 0.0
  %3525 = vmatpush1.msra.mxu0 0.0
  %3526 = vmatprep.subr.mxu0 0.0
  %3527 = vmatpush1.msra.mxu0 0.0
  %3528 = vmatprep.subr.mxu0 0.0
  %3529 = vmatpush1.msra.mxu0 0.0
  %3530 = vmatprep.subr.mxu0 0.0
  %3531 = vmatpush1.msra.mxu0 0.0
  %3532 = vmatprep.subr.mxu0 0.0
  %3533 = vmatpush1.msra.mxu0 0.0
  %3534 = vmatprep.subr.mxu0 0.0
  %3535 = vmatpush1.msra.mxu0 0.0
  %3536 = vmatprep.subr.mxu0 0.0
  %3537 = vmatpush1.msra.mxu0 0.0
  %3538 = vmatprep.subr.mxu0 0.0
  %3539 = vmatpush1.msra.mxu0 0.0
  %3540 = vmatprep.subr.mxu0 0.0
  %3541 = vmatpush1.msra.mxu0 %v3508
  %3542 = vmatprep.subr.mxu0 0.0
  %3543 = vmatpush2.msra.mxu0 0.0
  %3544 = vmatprep.subr.mxu0 0.0
  %3545 = vmatpush2.msra.mxu0 0.0
  %3546 = vmatprep.subr.mxu0 0.0
  %3547 = vmatpush2.msra.mxu0 0.0
  %3548 = vmatprep.subr.mxu0 0.0
  %3549 = vmatpush2.msra.mxu0 0.0
  %3550 = vmatprep.subr.mxu0 0.0
  %3551 = vmatpush2.msra.mxu0 0.0
  %3552 = vmatprep.subr.mxu0 0.0
  %3553 = vmatpush2.msra.mxu0 0.0
  %3554 = vmatprep.subr.mxu0 0.0
  %3555 = vmatpush2.msra.mxu0 0.0
  %3556 = vmatprep.subr.mxu0 0.0
  %3557 = vmatpush2.msra.mxu0 0.0
  %3558 = vmatprep.subr.mxu0 0.0
  %3559 = vmatpush2.msra.mxu0 0.0
  %3560 = vmatprep.subr.mxu0 0.0
  %3561 = vmatpush2.msra.mxu0 0.0
  %3562 = vmatprep.subr.mxu0 0.0
  %3563 = vmatpush2.msra.mxu0 0.0
  %3564 = vmatprep.subr.mxu0 0.0
  %3565 = vmatpush2.msra.mxu0 0.0
  %3566 = vmatprep.subr.mxu0 0.0
  %3567 = vmatpush2.msra.mxu0 0.0
  %3568 = vmatprep.subr.mxu0 0.0
  %3569 = vmatpush2.msra.mxu0 0.0
  %3570 = vmatprep.subr.mxu0 0.0
  %3571 = vmatpush2.msra.mxu0 0.0
  %3572 = vmatprep.subr.mxu0 0.0
  %3573 = vmatpush2.msra.mxu0 0.0
  %3574 = vmatprep.mubr.f32.mxu0 0.0
  %3575 = vmatmul.mubr.f32.gmra.mxu0 %v840
  %v3576 = vpop.f32.mrf.mxu0
  %v3577 = vadd.f32 1e-05, %v3576
  %v3578 = vpop.f32.mrf.mxu0
  %3579 = vdwg.mxu0
  %v3580 = vrsqrt.pop %v3577
  %3582 = vset.pattern.permute.xlu0 0
  %3583 = vperm.xlu0 %3582, %v3580
  %v3584 = vpop.permute.xlu0 %3583
  %v3586 = vmul.f32 %v3431, %v3584
  %vm3587 = vcmp.gt.f32.partialorder %v3586, 0.0
  %v3588 = vmul.f32 %v3586, 0.01
  %v3589 = vsel %vm3587, %v3586, %v3588
  %s3590 = scalar_lea.vmem %s18, 8
  %3591 = vst.msk [vmem:[%s3590] sm:$0xff] %vm652, %v3589
  // Predicated region
  $region74: #{d_r_forward.4} parent=0 // pred_check
    _
  $region75: #{d_r_forward.4} parent=0 // pred_check_branch
    %3593 = sbr.rel (0) target = $region77
  $region76: #{d_r_forward.4} parent=0 // pred_region
    _
  $region77: #{d_r_forward.4} parent=0 // pred_fallthru
    _
  // Predicated region
  $region78: #{d_r_forward.4} parent=0 // pred_check
    _
  $region79: #{d_r_forward.4} parent=0 // pred_check_branch
    %3595 = sbr.rel (0) target = $region81
  $region80: #{d_r_forward.4} parent=0 // pred_region
    _
  $region81: #{d_r_forward.4} parent=0 // pred_fallthru
    _

</llo_original>
